<compile_context>
chip_gen: v6e
topology: v6e:2x2x1
jax: 0.10.0
libtpu: 0.0.40
codegen_flags: <defaults>
</compile_context>

<pallas_src>
import functools

import jax
import jax.numpy as jnp
import numpy as np
from jax import lax
from jax.experimental import pallas as pl
from jax.experimental.pallas import tpu as pltpu


def _round_up(a, b):
    return (a + b - 1) // b * b


def _cdiv(a, b):
    return (a + b - 1) // b


# -----------------------------------------------------------------------------------------
# ConvTranspose3d(kernel=4, stride=2, padding=1) with the preceding ReLU fused in.
#
# Sub-pixel decomposition (1-voxel zero-halo padded input, base index j per axis):
#   output voxel 2*j + p sums taps k = 3 - p - 2*s_idx over padded rows j + p + s_idx,
#   s_idx in {0, 1}.  Each of the 8 output parities therefore needs 8 shifted row slices and a
#   dense (8*Cin, Cout) weight -> 8 exact matmuls per row tile, 64 taps total.
def _per_parity_weights(weight):
    """(Cin, Cout, 4, 4, 4) PyTorch ConvTranspose3d weight -> (8, 8*Cin, Cout) bf16."""
    cin, cout = weight.shape[:2]
    kidx = jnp.array([[3, 1], [2, 0]], dtype=jnp.int32)      # [parity, shift_idx] -> tap
    w = weight.astype(jnp.float32)
    w = w[:, :, kidx]                  # (cin, cout, pd, di, kh, kw)
    w = w[:, :, :, :, kidx]            # (cin, cout, pd, di, ph, hi, kw)
    w = w[:, :, :, :, :, :, kidx]      # (cin, cout, pd, di, ph, hi, pw, wi)
    w = jnp.transpose(w, (2, 4, 6, 3, 5, 7, 0, 1))           # (pd,ph,pw, di,hi,wi, cin, cout)
    return w.reshape(8, 8 * cin, cout).astype(jnp.bfloat16)


def _deconv_kernel(xa_ref, xh_ref, w_ref, b_ref, o_ref, xs_ref, sem,
                   *, tr, halo_pad, parity_offs):
    # xa_ref: (tr, Cin) bf16        current row tile (auto-pipelined)
    # xh_ref: (rows_total, Cin)     full flattened input in HBM (ANY) - halo source
    # w_ref : (8, 8*Cin, Cout) bf16 per-parity dense weights (single-buffered)
    # b_ref : (1, 8*Cout) f32       bias tiled over the 8 parities (single-buffered)
    # o_ref : (tr, 8*Cout) bf16     lane-dense output, columns ordered (pd, ph, pw, cout)
    # xs_ref: (tr + halo_pad, Cin) bf16 scratch holding ReLU(x) for tile + halo
    i = pl.program_id(0)
    start = pl.multiple_of((i + 1) * tr, tr)
    halo_cp = pltpu.make_async_copy(
        xh_ref.at[pl.ds(start, halo_pad), :], xs_ref.at[pl.ds(tr, halo_pad), :], sem)
    halo_cp.start()

    # ReLU of the main tile in bf16, straight into the scratch (overlaps the halo DMA).
    xs_ref[:tr, :] = jnp.maximum(xa_ref[...], 0)
    halo_cp.wait()
    xs_ref[pl.ds(tr, halo_pad), :] = jnp.maximum(xs_ref[pl.ds(tr, halo_pad), :], 0)

    # 8 exact per-parity matmuls: bf16 operands, f32 MXU accumulation.
    parts = []
    for p in range(8):
        xp = jnp.concatenate([xs_ref[pl.ds(off, tr), :] for off in parity_offs[p]], axis=1)
        parts.append(jnp.dot(xp, w_ref[p], preferred_element_type=jnp.float32))
    acc = jnp.concatenate(parts, axis=1) + b_ref[...]
    o_ref[...] = acc.astype(o_ref.dtype)


def conv_transpose3d(x, weight, bias, *, row_tile=512):
    """x: (N, Cin, D, H, W); weight: (Cin, Cout, 4, 4, 4); bias: (Cout,).  Returns bf16 NCDHW."""
    n, cin, d, h, w = x.shape
    cout = weight.shape[1]
    dp, hp, wp = d + 2, h + 2, w + 2
    hpwp = hp * wp
    p_rows = dp * hpwp                       # rows per padded batch block
    halo = 2 * hpwp + 2 * wp + 2             # largest tap offset
    halo_pad = _round_up(halo, 16)           # bf16 sublane pack
    tr = _round_up(row_tile, 16)
    num_tiles = _cdiv(n * p_rows, tr)
    rows_total = num_tiles * tr + halo_pad   # only halo_pad rows of trailing pad

    # Channels-last, 1-voxel zero halo, flattened rows, bf16.
    xcl = jnp.transpose(x, (0, 2, 3, 4, 1))
    xpad = jnp.pad(xcl, ((0, 0), (1, 1), (1, 1), (1, 1), (0, 0)))
    x2d = xpad.reshape(n * p_rows, cin).astype(jnp.bfloat16)
    x2d = jnp.pad(x2d, ((0, rows_total - n * p_rows), (0, 0)))

    w_all = _per_parity_weights(weight)                               # (8, 8*Cin, Cout) bf16
    b2d = jnp.tile(bias.astype(jnp.float32), 8).reshape(1, 8 * cout)
    parity_offs = tuple(
        tuple((pd + di) * hpwp + (ph + hi) * wp + (pw + wi)
              for di in range(2) for hi in range(2) for wi in range(2))
        for pd in range(2) for ph in range(2) for pw in range(2))

    out = pl.pallas_call(
        functools.partial(_deconv_kernel, tr=tr, halo_pad=halo_pad, parity_offs=parity_offs),
        out_shape=jax.ShapeDtypeStruct((num_tiles * tr, 8 * cout), jnp.bfloat16),
        grid=(num_tiles,),
        in_specs=[
            pl.BlockSpec((tr, cin), lambda i: (i, 0)),                 # row tile
            pl.BlockSpec(memory_space=pl.ANY),                         # same array, halo DMA
            pl.BlockSpec((8, 8 * cin, cout), lambda i: (0, 0, 0),
                         pipeline_mode=pl.Buffered(1)),                # constant -> 1 buffer
            pl.BlockSpec((1, 8 * cout), lambda i: (0, 0),
                         pipeline_mode=pl.Buffered(1)),
        ],
        out_specs=pl.BlockSpec((tr, 8 * cout), lambda i: (i, 0)),
        scratch_shapes=[pltpu.VMEM((tr + halo_pad, cin), jnp.bfloat16),
                        pltpu.SemaphoreType.DMA(())],
        compiler_params=pltpu.CompilerParams(
            dimension_semantics=("parallel",),
            vmem_limit_bytes=40 * 1024 * 1024),
    )(x2d, x2d, w_all, b2d)

    # Crop halo/garbage rows; the lane packing already carries (pd, ph, pw, c), so one
    # transpose interleaves the parities and yields NCDHW (kept in bf16).
    out = out[:n * p_rows].reshape(n, dp, hp, wp, 2, 2, 2, cout)[:, :d, :h, :w]
    out = jnp.transpose(out, (0, 7, 1, 4, 2, 5, 3, 6))
    return out.reshape(n, cout, 2 * d, 2 * h, 2 * w)


# -----------------------------------------------------------------------------------------
# Adaptive instance normalization, spatially tiled.
def _adain_stats_kernel(x_ref, mean_ref, rstd_ref, acc_ref, mean_sc, *, s_valid, st, eps):
    # grid = (NC/CT, phase in {0: sum, 1: centered ssq}, S/ST); spatial & phase "arbitrary".
    ph = pl.program_id(1)
    j = pl.program_id(2)
    nj = pl.num_programs(2)

    @pl.when(j == 0)
    def _():
        acc_ref[...] = jnp.zeros_like(acc_ref)

    x = x_ref[...].astype(jnp.float32)
    col = lax.broadcasted_iota(jnp.int32, x.shape, 1) + j * st
    valid = col < s_valid

    @pl.when(ph == 0)
    def _():
        acc_ref[...] += jnp.sum(jnp.where(valid, x, 0.0), axis=1, keepdims=True)

        @pl.when(j == nj - 1)
        def _():
            m = acc_ref[...] * (1.0 / s_valid)
            mean_sc[...] = m
            mean_ref[...] = m

    @pl.when(ph == 1)
    def _():
        diff = jnp.where(valid, x - mean_sc[...], 0.0)
        acc_ref[...] += jnp.sum(diff * diff, axis=1, keepdims=True)

        @pl.when(j == nj - 1)
        def _():
            var = acc_ref[...] * (1.0 / (s_valid - 1))        # unbiased (torch.var)
            rstd_ref[...] = lax.rsqrt(var + eps)              # EUP rsqrt


def _adain_apply_kernel(x_ref, mean_ref, rstd_ref, smean_ref, sstd_ref, o_ref):
    x = x_ref[...].astype(jnp.float32)
    o_ref[...] = (x - mean_ref[...]) * (rstd_ref[...] * sstd_ref[...]) + smean_ref[...]


def adaptive_instance_normalization(content, style_feat, *, spatial_tile=2048):
    """content: (N, C, Do, Ho, Wo) (bf16 or f32); style_feat: (N, C, 2*Ss).  Returns f32."""
    n, c = content.shape[:2]
    s = int(np.prod(content.shape[2:]))
    nc = n * c
    x2 = content.reshape(nc, s)

    sty = style_feat.astype(jnp.float32)
    smean, sstd = jnp.split(sty, 2, axis=-1)
    smean = smean.reshape(nc, -1).mean(axis=1, keepdims=True)
    sstd = sstd.reshape(nc, -1).mean(axis=1, keepdims=True)

    ct = 16                                                   # bf16-friendly sublane tile
    ncp = _round_up(nc, ct)
    st = _round_up(s, 128) if s <= spatial_tile else spatial_tile
    sp = _round_up(s, st)

    xp = jnp.pad(x2, ((0, ncp - nc), (0, sp - s)))
    smean = jnp.pad(smean, ((0, ncp - nc), (0, 0)))
    sstd = jnp.pad(sstd, ((0, ncp - nc), (0, 0)))

    mean, rstd = pl.pallas_call(
        functools.partial(_adain_stats_kernel, s_valid=s, st=st, eps=1e-5),
        out_shape=(jax.ShapeDtypeStruct((ncp, 1), jnp.float32),
                   jax.ShapeDtypeStruct((ncp, 1), jnp.float32)),
        grid=(ncp // ct, 2, sp // st),
        in_specs=[pl.BlockSpec((ct, st), lambda i, ph, j: (i, j))],
        out_specs=(pl.BlockSpec((ct, 1), lambda i, ph, j: (i, 0)),
                   pl.BlockSpec((ct, 1), lambda i, ph, j: (i, 0))),
        scratch_shapes=[pltpu.VMEM((ct, 1), jnp.float32),
                        pltpu.VMEM((ct, 1), jnp.float32)],
        compiler_params=pltpu.CompilerParams(
            dimension_semantics=("parallel", "arbitrary", "arbitrary")),
    )(xp)

    out = pl.pallas_call(
        _adain_apply_kernel,
        out_shape=jax.ShapeDtypeStruct((ncp, sp), jnp.float32),
        grid=(ncp // ct, sp // st),
        in_specs=[pl.BlockSpec((ct, st), lambda i, j: (i, j)),
                  pl.BlockSpec((ct, 1), lambda i, j: (i, 0)),
                  pl.BlockSpec((ct, 1), lambda i, j: (i, 0)),
                  pl.BlockSpec((ct, 1), lambda i, j: (i, 0)),
                  pl.BlockSpec((ct, 1), lambda i, j: (i, 0))],
        out_specs=pl.BlockSpec((ct, st), lambda i, j: (i, j)),
        compiler_params=pltpu.CompilerParams(
            dimension_semantics=("parallel", "parallel")),
    )(xp, mean, rstd, smean, sstd)

    return out[:nc, :s].reshape(content.shape)


# -----------------------------------------------------------------------------------------
def deconv_block_with_emb(x, res, style_feat, weight, bias, *, row_tile=512):
    """Forward of DeConvBlock_withEmb.  x: (N, Cin, D, H, W); res: (N, Cres, 2D, 2H, 2W)|None."""
    y = conv_transpose3d(x, weight, bias, row_tile=row_tile)   # ReLU fused inside the kernel
    if res is not None:
        y = jnp.concatenate([y, res.astype(y.dtype)], axis=1)
    y = adaptive_instance_normalization(y, style_feat)
    # TODO(synk): nn.Dropout3d (training-mode stochastic channel drop) modeled as identity (eval).
    return y


# -----------------------------------------------------------------------------------------
# Pure-JAX f32 reference for sanity checking.
def _reference(x, res, style_feat, weight, bias):
    xr = jnp.maximum(x, 0.0)
    w = jnp.transpose(jnp.flip(weight, axis=(2, 3, 4)), (1, 0, 2, 3, 4))  # OIDHW, flipped
    y = lax.conv_general_dilated(
        xr, w, window_strides=(1, 1, 1), padding=[(2, 2)] * 3, lhs_dilation=(2, 2, 2),
        dimension_numbers=("NCDHW", "OIDHW", "NCDHW"), precision=lax.Precision.HIGHEST)
    y = y + bias[None, :, None, None, None]
    if res is not None:
        y = jnp.concatenate([y, res], axis=1)
    N, C = y.shape[:2]
    sm, ss = jnp.split(style_feat, 2, axis=-1)
    sm = sm.reshape(N, C, -1).mean(axis=2).reshape(N, C, 1, 1, 1)
    ss = ss.reshape(N, C, -1).mean(axis=2).reshape(N, C, 1, 1, 1)
    flat = y.reshape(N, C, -1)
    mean = flat.mean(axis=2).reshape(N, C, 1, 1, 1)
    std = jnp.sqrt(flat.var(axis=2, ddof=1).reshape(N, C, 1, 1, 1) + 1e-5)
    return (y - mean) / std * ss + sm


if __name__ == "__main__":
    key = jax.random.PRNGKey(0)
    k1, k2, k3, k4, k5 = jax.random.split(key, 5)

    N, Cin, Cout, D, H, W = 2, 4, 4, 6, 6, 6
    Cres = 4
    Ctot = Cout + Cres

    x = jax.random.normal(k1, (N, Cin, D, H, W), jnp.float32)
    res = jax.random.normal(k2, (N, Cres, 2 * D, 2 * H, 2 * W), jnp.float32)
    style_feat = jax.random.normal(k3, (N, Ctot, 2), jnp.float32)
    # ConvTranspose3d(inch=4, outch=4, k=4) parameters: weight (Cin, Cout, 4, 4, 4), bias (Cout,)
    weight = 0.1 * jax.random.normal(k4, (Cin, Cout, 4, 4, 4), jnp.float32)
    bias = 0.1 * jax.random.normal(k5, (Cout,), jnp.float32)

    # row_tile=256 gives 4 row tiles at this demo size, so the manual halo-DMA path of the
    # deconv kernel is genuinely exercised (default 512 for production sizes).
    fwd = jax.jit(functools.partial(deconv_block_with_emb, row_tile=256))
    y = jax.block_until_ready(fwd(x, res, style_feat, weight, bias))

    assert y.shape == (N, Ctot, 2 * D, 2 * H, 2 * W)
    y_ref = _reference(x, res, style_feat, weight, bias)
    # Deconv path runs in bf16 (inputs, weights, output) -> compare with a bf16-sized tolerance.
    np.testing.assert_allclose(np.asarray(y), np.asarray(y_ref), rtol=5e-2, atol=5e-2)

    print("KERNEL_OK")
</pallas_src>

<mosaic_0001>
module attributes {stable_mosaic.version = 11 : i64} {
  func.func @_deconv_kernel(%arg0: i32, %arg1: memref<256x4xbf16, #tpu.memory_space<vmem>>, %arg2: memref<1184x4xbf16, #tpu.memory_space<any>>, %arg3: memref<8x32x4xbf16, #tpu.memory_space<vmem>>, %arg4: memref<1x32xf32, #tpu.memory_space<vmem>>, %arg5: memref<256x32xbf16, #tpu.memory_space<vmem>>, %arg6: memref<416x4xbf16, #tpu.memory_space<vmem>>, %arg7: memref<!tpu.dma_semaphore, #tpu.memory_space<semaphore_mem>>) attributes {dimension_semantics = [#tpu.dimension_semantics<parallel>], iteration_bounds = array<i64: 4>, scalar_prefetch = 0 : i64, scratch_operands = 2 : i64, tpu.core_type = #tpu.core_type<tc>, window_params = [{transform_indices = @transform_0, window_bounds = array<i64: 256, 4>}, {}, {pipeline_mode = #tpu.pipeline_mode<synchronous>, transform_indices = @transform_2, window_bounds = array<i64: 8, 32, 4>}, {pipeline_mode = #tpu.pipeline_mode<synchronous>, transform_indices = @transform_3, window_bounds = array<i64: 1, 32>}, {transform_indices = @transform_4, window_bounds = array<i64: 256, 32>}]} {
    %c1_i32 = arith.constant 1 : i32
    %0 = arith.addi %arg0, %c1_i32 : i32
    %c256_i32 = arith.constant 256 : i32
    %1 = arith.muli %0, %c256_i32 : i32
    %2 = tpu.assume_multiple %1, 256 : i32
    %c0_i32 = arith.constant 0 : i32
    %3 = tpu.memref_slice %arg2[%2, %c0_i32] : memref<1184x4xbf16, #tpu.memory_space<any>> -> memref<160x4xbf16, #tpu.memory_space<any>>
    %c256_i32_0 = arith.constant 256 : i32
    %c0_i32_1 = arith.constant 0 : i32
    %4 = tpu.memref_slice %arg6[%c256_i32_0, %c0_i32_1] : memref<416x4xbf16, #tpu.memory_space<vmem>> -> memref<160x4xbf16, #tpu.memory_space<vmem>>
    tpu.enqueue_dma source(%3 : memref<160x4xbf16, #tpu.memory_space<any>>) target(%4 : memref<160x4xbf16, #tpu.memory_space<vmem>>) target_semaphore(%arg7 : memref<!tpu.dma_semaphore, #tpu.memory_space<semaphore_mem>>)
    %c0 = arith.constant 0 : index
    %c0_2 = arith.constant 0 : index
    %5 = vector.load %arg1[%c0, %c0_2] : memref<256x4xbf16, #tpu.memory_space<vmem>>, vector<256x4xbf16>
    %cst = arith.constant 0.000000e+00 : bf16
    %6 = vector.broadcast %cst : bf16 to vector<256x4xbf16>
    %7 = arith.maximumf %5, %6 : vector<256x4xbf16>
    %c0_3 = arith.constant 0 : index
    %c0_4 = arith.constant 0 : index
    %8 = vector.load %arg6[%c0_3, %c0_4] : memref<416x4xbf16, #tpu.memory_space<vmem>>, vector<256x4xbf16>
    tpu.vector_store %arg6[%c0_3, %c0_4], %7 {strides = array<i32>} : memref<416x4xbf16, #tpu.memory_space<vmem>>, vector<256x4xbf16>,
    %c0_i32_5 = arith.constant 0 : i32
    %9 = tpu.memref_slice %arg2[%2, %c0_i32_5] : memref<1184x4xbf16, #tpu.memory_space<any>> -> memref<160x4xbf16, #tpu.memory_space<any>>
    %c256_i32_6 = arith.constant 256 : i32
    %c0_i32_7 = arith.constant 0 : i32
    %10 = tpu.memref_slice %arg6[%c256_i32_6, %c0_i32_7] : memref<416x4xbf16, #tpu.memory_space<vmem>> -> memref<160x4xbf16, #tpu.memory_space<vmem>>
    tpu.wait_dma2 semaphore(%arg7 : memref<!tpu.dma_semaphore, #tpu.memory_space<semaphore_mem>>) src(%9 : memref<160x4xbf16, #tpu.memory_space<any>>) dst(%10 : memref<160x4xbf16, #tpu.memory_space<vmem>>)
    %c256 = arith.constant 256 : index
    %c0_8 = arith.constant 0 : index
    %11 = vector.load %arg6[%c256, %c0_8] : memref<416x4xbf16, #tpu.memory_space<vmem>>, vector<160x4xbf16>
    %cst_9 = arith.constant 0.000000e+00 : bf16
    %12 = vector.broadcast %cst_9 : bf16 to vector<160x4xbf16>
    %13 = arith.maximumf %11, %12 : vector<160x4xbf16>
    %c256_10 = arith.constant 256 : index
    %c0_11 = arith.constant 0 : index
    %14 = vector.load %arg6[%c256_10, %c0_11] : memref<416x4xbf16, #tpu.memory_space<vmem>>, vector<160x4xbf16>
    tpu.vector_store %arg6[%c256_10, %c0_11], %13 {strides = array<i32>} : memref<416x4xbf16, #tpu.memory_space<vmem>>, vector<160x4xbf16>,
    %c0_12 = arith.constant 0 : index
    %c0_13 = arith.constant 0 : index
    %15 = vector.load %arg6[%c0_12, %c0_13] : memref<416x4xbf16, #tpu.memory_space<vmem>>, vector<256x4xbf16>
    %c1 = arith.constant 1 : index
    %c0_14 = arith.constant 0 : index
    %16 = vector.load %arg6[%c1, %c0_14] : memref<416x4xbf16, #tpu.memory_space<vmem>>, vector<256x4xbf16>
    %c8 = arith.constant 8 : index
    %c0_15 = arith.constant 0 : index
    %17 = vector.load %arg6[%c8, %c0_15] : memref<416x4xbf16, #tpu.memory_space<vmem>>, vector<256x4xbf16>
    %c9 = arith.constant 9 : index
    %c0_16 = arith.constant 0 : index
    %18 = vector.load %arg6[%c9, %c0_16] : memref<416x4xbf16, #tpu.memory_space<vmem>>, vector<256x4xbf16>
    %c64 = arith.constant 64 : index
    %c0_17 = arith.constant 0 : index
    %19 = vector.load %arg6[%c64, %c0_17] : memref<416x4xbf16, #tpu.memory_space<vmem>>, vector<256x4xbf16>
    %c65 = arith.constant 65 : index
    %c0_18 = arith.constant 0 : index
    %20 = vector.load %arg6[%c65, %c0_18] : memref<416x4xbf16, #tpu.memory_space<vmem>>, vector<256x4xbf16>
    %c72 = arith.constant 72 : index
    %c0_19 = arith.constant 0 : index
    %21 = vector.load %arg6[%c72, %c0_19] : memref<416x4xbf16, #tpu.memory_space<vmem>>, vector<256x4xbf16>
    %c73 = arith.constant 73 : index
    %c0_20 = arith.constant 0 : index
    %22 = vector.load %arg6[%c73, %c0_20] : memref<416x4xbf16, #tpu.memory_space<vmem>>, vector<256x4xbf16>
    %23 = tpu.concatenate %15, %16, %17, %18, %19, %20, %21, %22 in 1 : vector<256x4xbf16>, vector<256x4xbf16>, vector<256x4xbf16>, vector<256x4xbf16>, vector<256x4xbf16>, vector<256x4xbf16>, vector<256x4xbf16>, vector<256x4xbf16> -> vector<256x32xbf16>
    %c0_21 = arith.constant 0 : index
    %c0_22 = arith.constant 0 : index
    %c0_23 = arith.constant 0 : index
    %24 = vector.load %arg3[%c0_21, %c0_22, %c0_23] : memref<8x32x4xbf16, #tpu.memory_space<vmem>>, vector<1x32x4xbf16>
    %25 = vector.shape_cast %24 : vector<1x32x4xbf16> to vector<32x4xbf16>
    %cst_24 = arith.constant dense<0.000000e+00> : vector<256x4xf32>
    %26 = tpu.matmul %23, %25, %cst_24 {dimension_numbers = #tpu.dot_dimension_numbers<[1], [0], [0], [1], [0, 0, 1, 1], [], []>} : vector<256x32xbf16>, vector<32x4xbf16>, vector<256x4xf32> -> vector<256x4xf32>
    %c1_25 = arith.constant 1 : index
    %c0_26 = arith.constant 0 : index
    %27 = vector.load %arg6[%c1_25, %c0_26] : memref<416x4xbf16, #tpu.memory_space<vmem>>, vector<256x4xbf16>
    %c2 = arith.constant 2 : index
    %c0_27 = arith.constant 0 : index
    %28 = vector.load %arg6[%c2, %c0_27] : memref<416x4xbf16, #tpu.memory_space<vmem>>, vector<256x4xbf16>
    %c9_28 = arith.constant 9 : index
    %c0_29 = arith.constant 0 : index
    %29 = vector.load %arg6[%c9_28, %c0_29] : memref<416x4xbf16, #tpu.memory_space<vmem>>, vector<256x4xbf16>
    %c10 = arith.constant 10 : index
    %c0_30 = arith.constant 0 : index
    %30 = vector.load %arg6[%c10, %c0_30] : memref<416x4xbf16, #tpu.memory_space<vmem>>, vector<256x4xbf16>
    %c65_31 = arith.constant 65 : index
    %c0_32 = arith.constant 0 : index
    %31 = vector.load %arg6[%c65_31, %c0_32] : memref<416x4xbf16, #tpu.memory_space<vmem>>, vector<256x4xbf16>
    %c66 = arith.constant 66 : index
    %c0_33 = arith.constant 0 : index
    %32 = vector.load %arg6[%c66, %c0_33] : memref<416x4xbf16, #tpu.memory_space<vmem>>, vector<256x4xbf16>
    %c73_34 = arith.constant 73 : index
    %c0_35 = arith.constant 0 : index
    %33 = vector.load %arg6[%c73_34, %c0_35] : memref<416x4xbf16, #tpu.memory_space<vmem>>, vector<256x4xbf16>
    %c74 = arith.constant 74 : index
    %c0_36 = arith.constant 0 : index
    %34 = vector.load %arg6[%c74, %c0_36] : memref<416x4xbf16, #tpu.memory_space<vmem>>, vector<256x4xbf16>
    %35 = tpu.concatenate %27, %28, %29, %30, %31, %32, %33, %34 in 1 : vector<256x4xbf16>, vector<256x4xbf16>, vector<256x4xbf16>, vector<256x4xbf16>, vector<256x4xbf16>, vector<256x4xbf16>, vector<256x4xbf16>, vector<256x4xbf16> -> vector<256x32xbf16>
    %c1_37 = arith.constant 1 : index
    %c0_38 = arith.constant 0 : index
    %c0_39 = arith.constant 0 : index
    %36 = vector.load %arg3[%c1_37, %c0_38, %c0_39] : memref<8x32x4xbf16, #tpu.memory_space<vmem>>, vector<1x32x4xbf16>
    %37 = vector.shape_cast %36 : vector<1x32x4xbf16> to vector<32x4xbf16>
    %cst_40 = arith.constant dense<0.000000e+00> : vector<256x4xf32>
    %38 = tpu.matmul %35, %37, %cst_40 {dimension_numbers = #tpu.dot_dimension_numbers<[1], [0], [0], [1], [0, 0, 1, 1], [], []>} : vector<256x32xbf16>, vector<32x4xbf16>, vector<256x4xf32> -> vector<256x4xf32>
    %c8_41 = arith.constant 8 : index
    %c0_42 = arith.constant 0 : index
    %39 = vector.load %arg6[%c8_41, %c0_42] : memref<416x4xbf16, #tpu.memory_space<vmem>>, vector<256x4xbf16>
    %c9_43 = arith.constant 9 : index
    %c0_44 = arith.constant 0 : index
    %40 = vector.load %arg6[%c9_43, %c0_44] : memref<416x4xbf16, #tpu.memory_space<vmem>>, vector<256x4xbf16>
    %c16 = arith.constant 16 : index
    %c0_45 = arith.constant 0 : index
    %41 = vector.load %arg6[%c16, %c0_45] : memref<416x4xbf16, #tpu.memory_space<vmem>>, vector<256x4xbf16>
    %c17 = arith.constant 17 : index
    %c0_46 = arith.constant 0 : index
    %42 = vector.load %arg6[%c17, %c0_46] : memref<416x4xbf16, #tpu.memory_space<vmem>>, vector<256x4xbf16>
    %c72_47 = arith.constant 72 : index
    %c0_48 = arith.constant 0 : index
    %43 = vector.load %arg6[%c72_47, %c0_48] : memref<416x4xbf16, #tpu.memory_space<vmem>>, vector<256x4xbf16>
    %c73_49 = arith.constant 73 : index
    %c0_50 = arith.constant 0 : index
    %44 = vector.load %arg6[%c73_49, %c0_50] : memref<416x4xbf16, #tpu.memory_space<vmem>>, vector<256x4xbf16>
    %c80 = arith.constant 80 : index
    %c0_51 = arith.constant 0 : index
    %45 = vector.load %arg6[%c80, %c0_51] : memref<416x4xbf16, #tpu.memory_space<vmem>>, vector<256x4xbf16>
    %c81 = arith.constant 81 : index
    %c0_52 = arith.constant 0 : index
    %46 = vector.load %arg6[%c81, %c0_52] : memref<416x4xbf16, #tpu.memory_space<vmem>>, vector<256x4xbf16>
    %47 = tpu.concatenate %39, %40, %41, %42, %43, %44, %45, %46 in 1 : vector<256x4xbf16>, vector<256x4xbf16>, vector<256x4xbf16>, vector<256x4xbf16>, vector<256x4xbf16>, vector<256x4xbf16>, vector<256x4xbf16>, vector<256x4xbf16> -> vector<256x32xbf16>
    %c2_53 = arith.constant 2 : index
    %c0_54 = arith.constant 0 : index
    %c0_55 = arith.constant 0 : index
    %48 = vector.load %arg3[%c2_53, %c0_54, %c0_55] : memref<8x32x4xbf16, #tpu.memory_space<vmem>>, vector<1x32x4xbf16>
    %49 = vector.shape_cast %48 : vector<1x32x4xbf16> to vector<32x4xbf16>
    %cst_56 = arith.constant dense<0.000000e+00> : vector<256x4xf32>
    %50 = tpu.matmul %47, %49, %cst_56 {dimension_numbers = #tpu.dot_dimension_numbers<[1], [0], [0], [1], [0, 0, 1, 1], [], []>} : vector<256x32xbf16>, vector<32x4xbf16>, vector<256x4xf32> -> vector<256x4xf32>
    %c9_57 = arith.constant 9 : index
    %c0_58 = arith.constant 0 : index
    %51 = vector.load %arg6[%c9_57, %c0_58] : memref<416x4xbf16, #tpu.memory_space<vmem>>, vector<256x4xbf16>
    %c10_59 = arith.constant 10 : index
    %c0_60 = arith.constant 0 : index
    %52 = vector.load %arg6[%c10_59, %c0_60] : memref<416x4xbf16, #tpu.memory_space<vmem>>, vector<256x4xbf16>
    %c17_61 = arith.constant 17 : index
    %c0_62 = arith.constant 0 : index
    %53 = vector.load %arg6[%c17_61, %c0_62] : memref<416x4xbf16, #tpu.memory_space<vmem>>, vector<256x4xbf16>
    %c18 = arith.constant 18 : index
    %c0_63 = arith.constant 0 : index
    %54 = vector.load %arg6[%c18, %c0_63] : memref<416x4xbf16, #tpu.memory_space<vmem>>, vector<256x4xbf16>
    %c73_64 = arith.constant 73 : index
    %c0_65 = arith.constant 0 : index
    %55 = vector.load %arg6[%c73_64, %c0_65] : memref<416x4xbf16, #tpu.memory_space<vmem>>, vector<256x4xbf16>
    %c74_66 = arith.constant 74 : index
    %c0_67 = arith.constant 0 : index
    %56 = vector.load %arg6[%c74_66, %c0_67] : memref<416x4xbf16, #tpu.memory_space<vmem>>, vector<256x4xbf16>
    %c81_68 = arith.constant 81 : index
    %c0_69 = arith.constant 0 : index
    %57 = vector.load %arg6[%c81_68, %c0_69] : memref<416x4xbf16, #tpu.memory_space<vmem>>, vector<256x4xbf16>
    %c82 = arith.constant 82 : index
    %c0_70 = arith.constant 0 : index
    %58 = vector.load %arg6[%c82, %c0_70] : memref<416x4xbf16, #tpu.memory_space<vmem>>, vector<256x4xbf16>
    %59 = tpu.concatenate %51, %52, %53, %54, %55, %56, %57, %58 in 1 : vector<256x4xbf16>, vector<256x4xbf16>, vector<256x4xbf16>, vector<256x4xbf16>, vector<256x4xbf16>, vector<256x4xbf16>, vector<256x4xbf16>, vector<256x4xbf16> -> vector<256x32xbf16>
    %c3 = arith.constant 3 : index
    %c0_71 = arith.constant 0 : index
    %c0_72 = arith.constant 0 : index
    %60 = vector.load %arg3[%c3, %c0_71, %c0_72] : memref<8x32x4xbf16, #tpu.memory_space<vmem>>, vector<1x32x4xbf16>
    %61 = vector.shape_cast %60 : vector<1x32x4xbf16> to vector<32x4xbf16>
    %cst_73 = arith.constant dense<0.000000e+00> : vector<256x4xf32>
    %62 = tpu.matmul %59, %61, %cst_73 {dimension_numbers = #tpu.dot_dimension_numbers<[1], [0], [0], [1], [0, 0, 1, 1], [], []>} : vector<256x32xbf16>, vector<32x4xbf16>, vector<256x4xf32> -> vector<256x4xf32>
    %c64_74 = arith.constant 64 : index
    %c0_75 = arith.constant 0 : index
    %63 = vector.load %arg6[%c64_74, %c0_75] : memref<416x4xbf16, #tpu.memory_space<vmem>>, vector<256x4xbf16>
    %c65_76 = arith.constant 65 : index
    %c0_77 = arith.constant 0 : index
    %64 = vector.load %arg6[%c65_76, %c0_77] : memref<416x4xbf16, #tpu.memory_space<vmem>>, vector<256x4xbf16>
    %c72_78 = arith.constant 72 : index
    %c0_79 = arith.constant 0 : index
    %65 = vector.load %arg6[%c72_78, %c0_79] : memref<416x4xbf16, #tpu.memory_space<vmem>>, vector<256x4xbf16>
    %c73_80 = arith.constant 73 : index
    %c0_81 = arith.constant 0 : index
    %66 = vector.load %arg6[%c73_80, %c0_81] : memref<416x4xbf16, #tpu.memory_space<vmem>>, vector<256x4xbf16>
    %c128 = arith.constant 128 : index
    %c0_82 = arith.constant 0 : index
    %67 = vector.load %arg6[%c128, %c0_82] : memref<416x4xbf16, #tpu.memory_space<vmem>>, vector<256x4xbf16>
    %c129 = arith.constant 129 : index
    %c0_83 = arith.constant 0 : index
    %68 = vector.load %arg6[%c129, %c0_83] : memref<416x4xbf16, #tpu.memory_space<vmem>>, vector<256x4xbf16>
    %c136 = arith.constant 136 : index
    %c0_84 = arith.constant 0 : index
    %69 = vector.load %arg6[%c136, %c0_84] : memref<416x4xbf16, #tpu.memory_space<vmem>>, vector<256x4xbf16>
    %c137 = arith.constant 137 : index
    %c0_85 = arith.constant 0 : index
    %70 = vector.load %arg6[%c137, %c0_85] : memref<416x4xbf16, #tpu.memory_space<vmem>>, vector<256x4xbf16>
    %71 = tpu.concatenate %63, %64, %65, %66, %67, %68, %69, %70 in 1 : vector<256x4xbf16>, vector<256x4xbf16>, vector<256x4xbf16>, vector<256x4xbf16>, vector<256x4xbf16>, vector<256x4xbf16>, vector<256x4xbf16>, vector<256x4xbf16> -> vector<256x32xbf16>
    %c4 = arith.constant 4 : index
    %c0_86 = arith.constant 0 : index
    %c0_87 = arith.constant 0 : index
    %72 = vector.load %arg3[%c4, %c0_86, %c0_87] : memref<8x32x4xbf16, #tpu.memory_space<vmem>>, vector<1x32x4xbf16>
    %73 = vector.shape_cast %72 : vector<1x32x4xbf16> to vector<32x4xbf16>
    %cst_88 = arith.constant dense<0.000000e+00> : vector<256x4xf32>
    %74 = tpu.matmul %71, %73, %cst_88 {dimension_numbers = #tpu.dot_dimension_numbers<[1], [0], [0], [1], [0, 0, 1, 1], [], []>} : vector<256x32xbf16>, vector<32x4xbf16>, vector<256x4xf32> -> vector<256x4xf32>
    %c65_89 = arith.constant 65 : index
    %c0_90 = arith.constant 0 : index
    %75 = vector.load %arg6[%c65_89, %c0_90] : memref<416x4xbf16, #tpu.memory_space<vmem>>, vector<256x4xbf16>
    %c66_91 = arith.constant 66 : index
    %c0_92 = arith.constant 0 : index
    %76 = vector.load %arg6[%c66_91, %c0_92] : memref<416x4xbf16, #tpu.memory_space<vmem>>, vector<256x4xbf16>
    %c73_93 = arith.constant 73 : index
    %c0_94 = arith.constant 0 : index
    %77 = vector.load %arg6[%c73_93, %c0_94] : memref<416x4xbf16, #tpu.memory_space<vmem>>, vector<256x4xbf16>
    %c74_95 = arith.constant 74 : index
    %c0_96 = arith.constant 0 : index
    %78 = vector.load %arg6[%c74_95, %c0_96] : memref<416x4xbf16, #tpu.memory_space<vmem>>, vector<256x4xbf16>
    %c129_97 = arith.constant 129 : index
    %c0_98 = arith.constant 0 : index
    %79 = vector.load %arg6[%c129_97, %c0_98] : memref<416x4xbf16, #tpu.memory_space<vmem>>, vector<256x4xbf16>
    %c130 = arith.constant 130 : index
    %c0_99 = arith.constant 0 : index
    %80 = vector.load %arg6[%c130, %c0_99] : memref<416x4xbf16, #tpu.memory_space<vmem>>, vector<256x4xbf16>
    %c137_100 = arith.constant 137 : index
    %c0_101 = arith.constant 0 : index
    %81 = vector.load %arg6[%c137_100, %c0_101] : memref<416x4xbf16, #tpu.memory_space<vmem>>, vector<256x4xbf16>
    %c138 = arith.constant 138 : index
    %c0_102 = arith.constant 0 : index
    %82 = vector.load %arg6[%c138, %c0_102] : memref<416x4xbf16, #tpu.memory_space<vmem>>, vector<256x4xbf16>
    %83 = tpu.concatenate %75, %76, %77, %78, %79, %80, %81, %82 in 1 : vector<256x4xbf16>, vector<256x4xbf16>, vector<256x4xbf16>, vector<256x4xbf16>, vector<256x4xbf16>, vector<256x4xbf16>, vector<256x4xbf16>, vector<256x4xbf16> -> vector<256x32xbf16>
    %c5 = arith.constant 5 : index
    %c0_103 = arith.constant 0 : index
    %c0_104 = arith.constant 0 : index
    %84 = vector.load %arg3[%c5, %c0_103, %c0_104] : memref<8x32x4xbf16, #tpu.memory_space<vmem>>, vector<1x32x4xbf16>
    %85 = vector.shape_cast %84 : vector<1x32x4xbf16> to vector<32x4xbf16>
    %cst_105 = arith.constant dense<0.000000e+00> : vector<256x4xf32>
    %86 = tpu.matmul %83, %85, %cst_105 {dimension_numbers = #tpu.dot_dimension_numbers<[1], [0], [0], [1], [0, 0, 1, 1], [], []>} : vector<256x32xbf16>, vector<32x4xbf16>, vector<256x4xf32> -> vector<256x4xf32>
    %c72_106 = arith.constant 72 : index
    %c0_107 = arith.constant 0 : index
    %87 = vector.load %arg6[%c72_106, %c0_107] : memref<416x4xbf16, #tpu.memory_space<vmem>>, vector<256x4xbf16>
    %c73_108 = arith.constant 73 : index
    %c0_109 = arith.constant 0 : index
    %88 = vector.load %arg6[%c73_108, %c0_109] : memref<416x4xbf16, #tpu.memory_space<vmem>>, vector<256x4xbf16>
    %c80_110 = arith.constant 80 : index
    %c0_111 = arith.constant 0 : index
    %89 = vector.load %arg6[%c80_110, %c0_111] : memref<416x4xbf16, #tpu.memory_space<vmem>>, vector<256x4xbf16>
    %c81_112 = arith.constant 81 : index
    %c0_113 = arith.constant 0 : index
    %90 = vector.load %arg6[%c81_112, %c0_113] : memref<416x4xbf16, #tpu.memory_space<vmem>>, vector<256x4xbf16>
    %c136_114 = arith.constant 136 : index
    %c0_115 = arith.constant 0 : index
    %91 = vector.load %arg6[%c136_114, %c0_115] : memref<416x4xbf16, #tpu.memory_space<vmem>>, vector<256x4xbf16>
    %c137_116 = arith.constant 137 : index
    %c0_117 = arith.constant 0 : index
    %92 = vector.load %arg6[%c137_116, %c0_117] : memref<416x4xbf16, #tpu.memory_space<vmem>>, vector<256x4xbf16>
    %c144 = arith.constant 144 : index
    %c0_118 = arith.constant 0 : index
    %93 = vector.load %arg6[%c144, %c0_118] : memref<416x4xbf16, #tpu.memory_space<vmem>>, vector<256x4xbf16>
    %c145 = arith.constant 145 : index
    %c0_119 = arith.constant 0 : index
    %94 = vector.load %arg6[%c145, %c0_119] : memref<416x4xbf16, #tpu.memory_space<vmem>>, vector<256x4xbf16>
    %95 = tpu.concatenate %87, %88, %89, %90, %91, %92, %93, %94 in 1 : vector<256x4xbf16>, vector<256x4xbf16>, vector<256x4xbf16>, vector<256x4xbf16>, vector<256x4xbf16>, vector<256x4xbf16>, vector<256x4xbf16>, vector<256x4xbf16> -> vector<256x32xbf16>
    %c6 = arith.constant 6 : index
    %c0_120 = arith.constant 0 : index
    %c0_121 = arith.constant 0 : index
    %96 = vector.load %arg3[%c6, %c0_120, %c0_121] : memref<8x32x4xbf16, #tpu.memory_space<vmem>>, vector<1x32x4xbf16>
    %97 = vector.shape_cast %96 : vector<1x32x4xbf16> to vector<32x4xbf16>
    %cst_122 = arith.constant dense<0.000000e+00> : vector<256x4xf32>
    %98 = tpu.matmul %95, %97, %cst_122 {dimension_numbers = #tpu.dot_dimension_numbers<[1], [0], [0], [1], [0, 0, 1, 1], [], []>} : vector<256x32xbf16>, vector<32x4xbf16>, vector<256x4xf32> -> vector<256x4xf32>
    %c73_123 = arith.constant 73 : index
    %c0_124 = arith.constant 0 : index
    %99 = vector.load %arg6[%c73_123, %c0_124] : memref<416x4xbf16, #tpu.memory_space<vmem>>, vector<256x4xbf16>
    %c74_125 = arith.constant 74 : index
    %c0_126 = arith.constant 0 : index
    %100 = vector.load %arg6[%c74_125, %c0_126] : memref<416x4xbf16, #tpu.memory_space<vmem>>, vector<256x4xbf16>
    %c81_127 = arith.constant 81 : index
    %c0_128 = arith.constant 0 : index
    %101 = vector.load %arg6[%c81_127, %c0_128] : memref<416x4xbf16, #tpu.memory_space<vmem>>, vector<256x4xbf16>
    %c82_129 = arith.constant 82 : index
    %c0_130 = arith.constant 0 : index
    %102 = vector.load %arg6[%c82_129, %c0_130] : memref<416x4xbf16, #tpu.memory_space<vmem>>, vector<256x4xbf16>
    %c137_131 = arith.constant 137 : index
    %c0_132 = arith.constant 0 : index
    %103 = vector.load %arg6[%c137_131, %c0_132] : memref<416x4xbf16, #tpu.memory_space<vmem>>, vector<256x4xbf16>
    %c138_133 = arith.constant 138 : index
    %c0_134 = arith.constant 0 : index
    %104 = vector.load %arg6[%c138_133, %c0_134] : memref<416x4xbf16, #tpu.memory_space<vmem>>, vector<256x4xbf16>
    %c145_135 = arith.constant 145 : index
    %c0_136 = arith.constant 0 : index
    %105 = vector.load %arg6[%c145_135, %c0_136] : memref<416x4xbf16, #tpu.memory_space<vmem>>, vector<256x4xbf16>
    %c146 = arith.constant 146 : index
    %c0_137 = arith.constant 0 : index
    %106 = vector.load %arg6[%c146, %c0_137] : memref<416x4xbf16, #tpu.memory_space<vmem>>, vector<256x4xbf16>
    %107 = tpu.concatenate %99, %100, %101, %102, %103, %104, %105, %106 in 1 : vector<256x4xbf16>, vector<256x4xbf16>, vector<256x4xbf16>, vector<256x4xbf16>, vector<256x4xbf16>, vector<256x4xbf16>, vector<256x4xbf16>, vector<256x4xbf16> -> vector<256x32xbf16>
    %c7 = arith.constant 7 : index
    %c0_138 = arith.constant 0 : index
    %c0_139 = arith.constant 0 : index
    %108 = vector.load %arg3[%c7, %c0_138, %c0_139] : memref<8x32x4xbf16, #tpu.memory_space<vmem>>, vector<1x32x4xbf16>
    %109 = vector.shape_cast %108 : vector<1x32x4xbf16> to vector<32x4xbf16>
    %cst_140 = arith.constant dense<0.000000e+00> : vector<256x4xf32>
    %110 = tpu.matmul %107, %109, %cst_140 {dimension_numbers = #tpu.dot_dimension_numbers<[1], [0], [0], [1], [0, 0, 1, 1], [], []>} : vector<256x32xbf16>, vector<32x4xbf16>, vector<256x4xf32> -> vector<256x4xf32>
    %111 = tpu.concatenate %26, %38, %50, %62, %74, %86, %98, %110 in 1 : vector<256x4xf32>, vector<256x4xf32>, vector<256x4xf32>, vector<256x4xf32>, vector<256x4xf32>, vector<256x4xf32>, vector<256x4xf32>, vector<256x4xf32> -> vector<256x32xf32>
    %c0_141 = arith.constant 0 : index
    %c0_142 = arith.constant 0 : index
    %112 = vector.load %arg4[%c0_141, %c0_142] : memref<1x32xf32, #tpu.memory_space<vmem>>, vector<1x32xf32>
    %113 = vector.broadcast %112 : vector<1x32xf32> to vector<256x32xf32>
    %114 = arith.addf %111, %113 : vector<256x32xf32>
    %115 = arith.truncf %114 : vector<256x32xf32> to vector<256x32xbf16>
    %c0_143 = arith.constant 0 : index
    %c0_144 = arith.constant 0 : index
    %116 = vector.load %arg5[%c0_143, %c0_144] : memref<256x32xbf16, #tpu.memory_space<vmem>>, vector<256x32xbf16>
    tpu.vector_store %arg5[%c0_143, %c0_144], %115 {strides = array<i32>} : memref<256x32xbf16, #tpu.memory_space<vmem>>, vector<256x32xbf16>,
    return
  }
  func.func @transform_0(%arg0: i32) -> (i32, i32) {
    %c0_i32 = arith.constant 0 : i32
    %c0_i32_0 = arith.constant 0 : i32
    return %arg0, %c0_i32 : i32, i32
  }
  func.func @transform_2(%arg0: i32) -> (i32, i32, i32) {
    %c0_i32 = arith.constant 0 : i32
    %c0_i32_0 = arith.constant 0 : i32
    %c0_i32_1 = arith.constant 0 : i32
    %c0_i32_2 = arith.constant 0 : i32
    return %c0_i32, %c0_i32_0, %c0_i32_1 : i32, i32, i32
  }
  func.func @transform_3(%arg0: i32) -> (i32, i32) {
    %c0_i32 = arith.constant 0 : i32
    %c0_i32_0 = arith.constant 0 : i32
    %c0_i32_1 = arith.constant 0 : i32
    return %c0_i32, %c0_i32_0 : i32, i32
  }
  func.func @transform_4(%arg0: i32) -> (i32, i32) {
    %c0_i32 = arith.constant 0 : i32
    %c0_i32_0 = arith.constant 0 : i32
    return %arg0, %c0_i32 : i32, i32
  }
}

module attributes {stable_mosaic.version = 11 : i64} {
  func.func @_adain_stats_kernel(%arg0: i32, %arg1: i32, %arg2: i32, %arg3: memref<16x1792xbf16, #tpu.memory_space<vmem>>, %arg4: memref<16x1xf32, #tpu.memory_space<vmem>>, %arg5: memref<16x1xf32, #tpu.memory_space<vmem>>, %arg6: memref<16x1xf32, #tpu.memory_space<vmem>>, %arg7: memref<16x1xf32, #tpu.memory_space<vmem>>) attributes {dimension_semantics = [#tpu.dimension_semantics<parallel>, #tpu.dimension_semantics<arbitrary>, #tpu.dimension_semantics<arbitrary>], iteration_bounds = array<i64: 1, 2, 1>, scalar_prefetch = 0 : i64, scratch_operands = 2 : i64, tpu.core_type = #tpu.core_type<tc>, window_params = [{transform_indices = @transform_0, window_bounds = array<i64: 16, 1792>}, {transform_indices = @transform_1, window_bounds = array<i64: 16, 1>}, {transform_indices = @transform_2, window_bounds = array<i64: 16, 1>}]} {
    %c0_i32 = arith.constant 0 : i32
    %0 = arith.cmpi eq, %arg2, %c0_i32 : i32
    %1 = arith.extui %0 : i1 to i32
    %c0_i32_0 = arith.constant 0 : i32
    %2 = arith.cmpi ne, %1, %c0_i32_0 : i32
    scf.if %2 {
      %cst = arith.constant 0.000000e+00 : f32
      %17 = vector.broadcast %cst : f32 to vector<16x1xf32>
      %c0_5 = arith.constant 0 : index
      %c0_6 = arith.constant 0 : index
      %18 = vector.load %arg6[%c0_5, %c0_6] : memref<16x1xf32, #tpu.memory_space<vmem>>, vector<16x1xf32>
      tpu.vector_store %arg6[%c0_5, %c0_6], %17 {strides = array<i32>} : memref<16x1xf32, #tpu.memory_space<vmem>>, vector<16x1xf32>,
    } else {
    }
    %c0 = arith.constant 0 : index
    %c0_1 = arith.constant 0 : index
    %3 = vector.load %arg3[%c0, %c0_1] : memref<16x1792xbf16, #tpu.memory_space<vmem>>, vector<16x1792xbf16>
    %4 = arith.extf %3 : vector<16x1792xbf16> to vector<16x1792xf32>
    %5 = tpu.iota {dimensions = array<i32: 1>} : vector<16x1792xi32>
    %c1792_i32 = arith.constant 1792 : i32
    %6 = arith.muli %arg2, %c1792_i32 : i32
    %7 = vector.broadcast %6 : i32 to vector<16x1792xi32>
    %8 = arith.addi %5, %7 : vector<16x1792xi32>
    %c1728_i32 = arith.constant 1728 : i32
    %9 = vector.broadcast %c1728_i32 : i32 to vector<16x1792xi32>
    %10 = arith.cmpi slt, %8, %9 : vector<16x1792xi32>
    %c0_i32_2 = arith.constant 0 : i32
    %11 = arith.cmpi eq, %arg1, %c0_i32_2 : i32
    %12 = arith.extui %11 : i1 to i32
    %c0_i32_3 = arith.constant 0 : i32
    %13 = arith.cmpi ne, %12, %c0_i32_3 : i32
    scf.if %13 {
      %c0_5 = arith.constant 0 : index
      %c0_6 = arith.constant 0 : index
      %17 = vector.load %arg6[%c0_5, %c0_6] : memref<16x1xf32, #tpu.memory_space<vmem>>, vector<16x1xf32>
      %cst = arith.constant 0.000000e+00 : f32
      %18 = vector.broadcast %cst : f32 to vector<16x1792xf32>
      %19 = arith.select %10, %4, %18 : vector<16x1792xi1>, vector<16x1792xf32>
      %cst_7 = arith.constant dense<0.000000e+00> : vector<16xf32>
      %20 = vector.multi_reduction <add>, %19, %cst_7 [1] : vector<16x1792xf32> to vector<16xf32>
      %21 = vector.shape_cast %20 : vector<16xf32> to vector<16x1xf32>
      %22 = arith.addf %17, %21 : vector<16x1xf32>
      %c0_8 = arith.constant 0 : index
      %c0_9 = arith.constant 0 : index
      %23 = vector.load %arg6[%c0_8, %c0_9] : memref<16x1xf32, #tpu.memory_space<vmem>>, vector<16x1xf32>
      tpu.vector_store %arg6[%c0_8, %c0_9], %22 {strides = array<i32>} : memref<16x1xf32, #tpu.memory_space<vmem>>, vector<16x1xf32>,
      %c0_i32_10 = arith.constant 0 : i32
      %24 = arith.cmpi eq, %arg2, %c0_i32_10 : i32
      %25 = arith.extui %24 : i1 to i32
      %c0_i32_11 = arith.constant 0 : i32
      %26 = arith.cmpi ne, %25, %c0_i32_11 : i32
      scf.if %26 {
        %c0_12 = arith.constant 0 : index
        %c0_13 = arith.constant 0 : index
        %27 = vector.load %arg6[%c0_12, %c0_13] : memref<16x1xf32, #tpu.memory_space<vmem>>, vector<16x1xf32>
        %cst_14 = arith.constant 5.78703708E-4 : f32
        %28 = vector.broadcast %cst_14 : f32 to vector<16x1xf32>
        %29 = arith.mulf %27, %28 : vector<16x1xf32>
        %c0_15 = arith.constant 0 : index
        %c0_16 = arith.constant 0 : index
        %30 = vector.load %arg7[%c0_15, %c0_16] : memref<16x1xf32, #tpu.memory_space<vmem>>, vector<16x1xf32>
        tpu.vector_store %arg7[%c0_15, %c0_16], %29 {strides = array<i32>} : memref<16x1xf32, #tpu.memory_space<vmem>>, vector<16x1xf32>,
        %c0_17 = arith.constant 0 : index
        %c0_18 = arith.constant 0 : index
        %31 = vector.load %arg4[%c0_17, %c0_18] : memref<16x1xf32, #tpu.memory_space<vmem>>, vector<16x1xf32>
        tpu.vector_store %arg4[%c0_17, %c0_18], %29 {strides = array<i32>} : memref<16x1xf32, #tpu.memory_space<vmem>>, vector<16x1xf32>,
      } else {
      }
    } else {
    }
    %c1_i32 = arith.constant 1 : i32
    %14 = arith.cmpi eq, %arg1, %c1_i32 : i32
    %15 = arith.extui %14 : i1 to i32
    %c0_i32_4 = arith.constant 0 : i32
    %16 = arith.cmpi ne, %15, %c0_i32_4 : i32
    scf.if %16 {
      %c0_5 = arith.constant 0 : index
      %c0_6 = arith.constant 0 : index
      %17 = vector.load %arg7[%c0_5, %c0_6] : memref<16x1xf32, #tpu.memory_space<vmem>>, vector<16x1xf32>
      %18 = vector.broadcast %17 : vector<16x1xf32> to vector<16x1792xf32>
      %19 = arith.subf %4, %18 : vector<16x1792xf32>
      %cst = arith.constant 0.000000e+00 : f32
      %20 = vector.broadcast %cst : f32 to vector<16x1792xf32>
      %21 = arith.select %10, %19, %20 : vector<16x1792xi1>, vector<16x1792xf32>
      %c0_7 = arith.constant 0 : index
      %c0_8 = arith.constant 0 : index
      %22 = vector.load %arg6[%c0_7, %c0_8] : memref<16x1xf32, #tpu.memory_space<vmem>>, vector<16x1xf32>
      %23 = arith.mulf %21, %21 : vector<16x1792xf32>
      %cst_9 = arith.constant dense<0.000000e+00> : vector<16xf32>
      %24 = vector.multi_reduction <add>, %23, %cst_9 [1] : vector<16x1792xf32> to vector<16xf32>
      %25 = vector.shape_cast %24 : vector<16xf32> to vector<16x1xf32>
      %26 = arith.addf %22, %25 : vector<16x1xf32>
      %c0_10 = arith.constant 0 : index
      %c0_11 = arith.constant 0 : index
      %27 = vector.load %arg6[%c0_10, %c0_11] : memref<16x1xf32, #tpu.memory_space<vmem>>, vector<16x1xf32>
      tpu.vector_store %arg6[%c0_10, %c0_11], %26 {strides = array<i32>} : memref<16x1xf32, #tpu.memory_space<vmem>>, vector<16x1xf32>,
      %c0_i32_12 = arith.constant 0 : i32
      %28 = arith.cmpi eq, %arg2, %c0_i32_12 : i32
      %29 = arith.extui %28 : i1 to i32
      %c0_i32_13 = arith.constant 0 : i32
      %30 = arith.cmpi ne, %29, %c0_i32_13 : i32
      scf.if %30 {
        %c0_14 = arith.constant 0 : index
        %c0_15 = arith.constant 0 : index
        %31 = vector.load %arg6[%c0_14, %c0_15] : memref<16x1xf32, #tpu.memory_space<vmem>>, vector<16x1xf32>
        %cst_16 = arith.constant 5.7903881E-4 : f32
        %32 = vector.broadcast %cst_16 : f32 to vector<16x1xf32>
        %33 = arith.mulf %31, %32 : vector<16x1xf32>
        %cst_17 = arith.constant 9.99999974E-6 : f32
        %34 = vector.broadcast %cst_17 : f32 to vector<16x1xf32>
        %35 = arith.addf %33, %34 : vector<16x1xf32>
        %36 = math.rsqrt %35 : vector<16x1xf32>
        %c0_18 = arith.constant 0 : index
        %c0_19 = arith.constant 0 : index
        %37 = vector.load %arg5[%c0_18, %c0_19] : memref<16x1xf32, #tpu.memory_space<vmem>>, vector<16x1xf32>
        tpu.vector_store %arg5[%c0_18, %c0_19], %36 {strides = array<i32>} : memref<16x1xf32, #tpu.memory_space<vmem>>, vector<16x1xf32>,
      } else {
      }
    } else {
    }
    return
  }
  func.func @transform_0(%arg0: i32, %arg1: i32, %arg2: i32) -> (i32, i32) {
    %c0_i32 = arith.constant 0 : i32
    return %arg0, %arg2 : i32, i32
  }
  func.func @transform_1(%arg0: i32, %arg1: i32, %arg2: i32) -> (i32, i32) {
    %c0_i32 = arith.constant 0 : i32
    %c0_i32_0 = arith.constant 0 : i32
    return %arg0, %c0_i32 : i32, i32
  }
  func.func @transform_2(%arg0: i32, %arg1: i32, %arg2: i32) -> (i32, i32) {
    %c0_i32 = arith.constant 0 : i32
    %c0_i32_0 = arith.constant 0 : i32
    return %arg0, %c0_i32 : i32, i32
  }
}

module attributes {stable_mosaic.version = 11 : i64} {
  func.func @_adain_apply_kernel(%arg0: i32, %arg1: i32, %arg2: memref<16x1792xbf16, #tpu.memory_space<vmem>>, %arg3: memref<16x1xf32, #tpu.memory_space<vmem>>, %arg4: memref<16x1xf32, #tpu.memory_space<vmem>>, %arg5: memref<16x1xf32, #tpu.memory_space<vmem>>, %arg6: memref<16x1xf32, #tpu.memory_space<vmem>>, %arg7: memref<16x1792xf32, #tpu.memory_space<vmem>>) attributes {dimension_semantics = [#tpu.dimension_semantics<parallel>, #tpu.dimension_semantics<parallel>], iteration_bounds = array<i64: 1, 1>, scalar_prefetch = 0 : i64, scratch_operands = 0 : i64, tpu.core_type = #tpu.core_type<tc>, window_params = [{transform_indices = @transform_0, window_bounds = array<i64: 16, 1792>}, {transform_indices = @transform_1, window_bounds = array<i64: 16, 1>}, {transform_indices = @transform_2, window_bounds = array<i64: 16, 1>}, {transform_indices = @transform_3, window_bounds = array<i64: 16, 1>}, {transform_indices = @transform_4, window_bounds = array<i64: 16, 1>}, {transform_indices = @transform_5, window_bounds = array<i64: 16, 1792>}]} {
    %c0 = arith.constant 0 : index
    %c0_0 = arith.constant 0 : index
    %0 = vector.load %arg2[%c0, %c0_0] : memref<16x1792xbf16, #tpu.memory_space<vmem>>, vector<16x1792xbf16>
    %1 = arith.extf %0 : vector<16x1792xbf16> to vector<16x1792xf32>
    %c0_1 = arith.constant 0 : index
    %c0_2 = arith.constant 0 : index
    %2 = vector.load %arg3[%c0_1, %c0_2] : memref<16x1xf32, #tpu.memory_space<vmem>>, vector<16x1xf32>
    %3 = vector.broadcast %2 : vector<16x1xf32> to vector<16x1792xf32>
    %4 = arith.subf %1, %3 : vector<16x1792xf32>
    %c0_3 = arith.constant 0 : index
    %c0_4 = arith.constant 0 : index
    %5 = vector.load %arg4[%c0_3, %c0_4] : memref<16x1xf32, #tpu.memory_space<vmem>>, vector<16x1xf32>
    %c0_5 = arith.constant 0 : index
    %c0_6 = arith.constant 0 : index
    %6 = vector.load %arg6[%c0_5, %c0_6] : memref<16x1xf32, #tpu.memory_space<vmem>>, vector<16x1xf32>
    %7 = arith.mulf %5, %6 : vector<16x1xf32>
    %8 = vector.broadcast %7 : vector<16x1xf32> to vector<16x1792xf32>
    %9 = arith.mulf %4, %8 : vector<16x1792xf32>
    %c0_7 = arith.constant 0 : index
    %c0_8 = arith.constant 0 : index
    %10 = vector.load %arg5[%c0_7, %c0_8] : memref<16x1xf32, #tpu.memory_space<vmem>>, vector<16x1xf32>
    %11 = vector.broadcast %10 : vector<16x1xf32> to vector<16x1792xf32>
    %12 = arith.addf %9, %11 : vector<16x1792xf32>
    %c0_9 = arith.constant 0 : index
    %c0_10 = arith.constant 0 : index
    %13 = vector.load %arg7[%c0_9, %c0_10] : memref<16x1792xf32, #tpu.memory_space<vmem>>, vector<16x1792xf32>
    tpu.vector_store %arg7[%c0_9, %c0_10], %12 {strides = array<i32>} : memref<16x1792xf32, #tpu.memory_space<vmem>>, vector<16x1792xf32>,
    return
  }
  func.func @transform_0(%arg0: i32, %arg1: i32) -> (i32, i32) {
    %c0_i32 = arith.constant 0 : i32
    return %arg0, %arg1 : i32, i32
  }
  func.func @transform_1(%arg0: i32, %arg1: i32) -> (i32, i32) {
    %c0_i32 = arith.constant 0 : i32
    %c0_i32_0 = arith.constant 0 : i32
    return %arg0, %c0_i32 : i32, i32
  }
  func.func @transform_2(%arg0: i32, %arg1: i32) -> (i32, i32) {
    %c0_i32 = arith.constant 0 : i32
    %c0_i32_0 = arith.constant 0 : i32
    return %arg0, %c0_i32 : i32, i32
  }
  func.func @transform_3(%arg0: i32, %arg1: i32) -> (i32, i32) {
    %c0_i32 = arith.constant 0 : i32
    %c0_i32_0 = arith.constant 0 : i32
    return %arg0, %c0_i32 : i32, i32
  }
  func.func @transform_4(%arg0: i32, %arg1: i32) -> (i32, i32) {
    %c0_i32 = arith.constant 0 : i32
    %c0_i32_0 = arith.constant 0 : i32
    return %arg0, %c0_i32 : i32, i32
  }
  func.func @transform_5(%arg0: i32, %arg1: i32) -> (i32, i32) {
    %c0_i32 = arith.constant 0 : i32
    return %arg0, %arg1 : i32, i32
  }
}

</mosaic_0001>

<llo_original>
// kernel: tile.9
$region0: #{tile.9}
  %s0 = inlined_call_operand.vmem [shape: f32[8,4], index: 0, kind: input, shape index: {}]
  %s1 = inlined_call_operand.vmem [shape: f32[1,32], index: 1, kind: output, shape index: {}]
  $region1: #{tile.9} parent=0
    #allocation0 [shape = 'u8[4096]{0}', space=vmem, size = 0x1000, scoped, tag = 'scoped mem for output reshape']
    %v2 = vld [vmem:[%s0] sm:$0x1]
    %vm3 = vcmask 31744
    %4 = vst.msk [vmem:[#allocation0] sm:$0x1] %vm3, %v2
    %s5 = scalar_lea.vmem %s0, 7
    %v6 = vld [vmem:[%s5] sm:$0x1]
    %7 = vrot.lane.b32.xlu0 %v6, 28
    %v8 = vpop.permute.xlu0 %7
    %vm9 = vcmask 261344
    %10 = vst.msk [vmem:[#allocation0] sm:$0x1] %vm9, %v8
    %s11 = scalar_lea.vmem %s0, 6
    %v12 = vld [vmem:[%s11] sm:$0x1]
    %13 = vrot.lane.b32.xlu0 %v12, 24
    %v14 = vpop.permute.xlu0 %13
    %vm15 = vcmask 228544
    %16 = vst.msk [vmem:[#allocation0] sm:$0x1] %vm15, %v14
    %s17 = scalar_lea.vmem %s0, 5
    %v18 = vld [vmem:[%s17] sm:$0x1]
    %19 = vrot.lane.b32.xlu0 %v18, 20
    %v20 = vpop.permute.xlu0 %19
    %vm21 = vcmask 195744
    %22 = vst.msk [vmem:[#allocation0] sm:$0x1] %vm21, %v20
    %s23 = scalar_lea.vmem %s0, 4
    %v24 = vld [vmem:[%s23] sm:$0x1]
    %25 = vrot.lane.b32.xlu0 %v24, 16
    %v26 = vpop.permute.xlu0 %25
    %vm27 = vcmask 162944
    %28 = vst.msk [vmem:[#allocation0] sm:$0x1] %vm27, %v26
    %s29 = scalar_lea.vmem %s0, 3
    %v30 = vld [vmem:[%s29] sm:$0x1]
    %31 = vrot.lane.b32.xlu0 %v30, 12
    %v32 = vpop.permute.xlu0 %31
    %vm33 = vcmask 130144
    %34 = vst.msk [vmem:[#allocation0] sm:$0x1] %vm33, %v32
    %s35 = scalar_lea.vmem %s0, 2
    %v36 = vld [vmem:[%s35] sm:$0x1]
    %37 = vrot.lane.b32.xlu0 %v36, 8
    %v38 = vpop.permute.xlu0 %37
    %vm39 = vcmask 97344
    %40 = vst.msk [vmem:[#allocation0] sm:$0x1] %vm39, %v38
    %s41 = scalar_lea.vmem %s0, 1
    %v42 = vld [vmem:[%s41] sm:$0x1]
    %43 = vrot.lane.b32.xlu0 %v42, 4
    %v44 = vpop.permute.xlu0 %43
    %vm45 = vcmask 64544
    %46 = vst.msk [vmem:[#allocation0] sm:$0x1] %vm45, %v44
    %s48 = sshll.u32 1, 1
    %s49 = ssub.s32 %s48, 1
    %v51 = vld [vmem:[#allocation0] sm:%s49]
    %s52 = sshll.u32 1, 1
    %s53 = ssub.s32 %s52, 1
    %54 = vst [vmem:[%s1] sm:%s53] %v51

// kernel: tile.8
$region0: #{tile.8}
  #allocation2 [shape = 's32[1]{0}', space=sflag, size = 0x4, scoped, tag = 'scoped memory for tile.8']
  %s0 = inlined_call_operand.hbm [shape: f32[4], index: 0, kind: input, shape index: {}]
  %s1 = inlined_call_operand.vmem [shape: f32[8,4], index: 1, kind: output, shape index: {}]
  $region1: #{tile.8} parent=0
    #allocation0 [shape = 'u8[512]{0}', space=vmem, size = 0x400, scoped, tag = 'operand span for operand 0']
    #allocation1 [shape = 's32[1]{0}', space=sflag, size = 0x4, scoped, tag = 'scoped memory for tile.8']
    %2 = vsyncpa [#allocation1], 0
    // Predicated region
    $region2: #{tile.8} parent=1 // pred_check
      _
    $region3: #{tile.8} parent=1 // pred_check_branch
      %4 = sbr.rel (0) target = $region5
    $region4: #{tile.8} parent=1 // pred_region
      %s6 = ssub.s32 16, 16
      %7 = vsyncadd [#allocation1], %s6
      %s9 = sshll.u32 [#allocation0], 4
      %s10 = int_to_ptr.vmem [resolvable:$true] %s9
      %12 = dma.hbm_to_vmem [thread:$0]  %s0, 16, %s10, [#allocation1]
    $region5: #{tile.8} parent=1 // pred_fallthru
      _
    // Predicated region
    $region6: #{tile.8} parent=1 // pred_check
      _
    $region7: #{tile.8} parent=1 // pred_check_branch
      %14 = sbr.rel (0) target = $region9
    $region8: #{tile.8} parent=1 // pred_region
      %15 = dma.done [#allocation1], 16
    $region9: #{tile.8} parent=1 // pred_fallthru
      _
    %v16 = vld [vmem:[#allocation0] ss:$0 sm:$0xff]
    %17 = vst [vmem:[%s1] sm:$0xff] %v16
    %18 = vsyncpa [#allocation1], 1

// kernel: deconv_block_with_emb.4
$region0: #{deconv_block_with_emb.4}
  #allocation0 [shape = 'u32[]', space=smem, size = 0x4, offset = 0x4, fixed_abs, tag = 'smem constant byte address 0x4 - core index']
  #allocation1 [shape = 'u32[144,128]{1,0:T(1,128)}', space=vmem, size = 0x12000, scoped, tag = 'internal scratch']
  #allocation2 [shape = 'f32[16,1]{1,0:T(8,128)}', space=vmem, size = 0x2000, scoped, tag = 'scratch operand']
  #allocation3 [shape = 'f32[16,1]{1,0:T(8,128)}', space=vmem, size = 0x2000, scoped, tag = 'scratch operand']
  %s0 = inlined_call_operand.vmem [shape: bf16[16,1792], index: 0, kind: input, shape index: {}]
  %s1 = inlined_call_operand.vmem [shape: f32[16,1], index: 1, kind: output, shape index: {0}]
  %s2 = inlined_call_operand.vmem [shape: f32[16,1], index: 2, kind: output, shape index: {1}]
  %3 = xla_tuple %s1, %s2
  %s4 = sld [smem:[#allocation0]]
  $region65: #{deconv_block_with_emb.4} parent=0
    _
  %s6 = ssub.s32 1, %s4
  %s7 = scalar_select 0, %s6, %s4
  loop: start=0, step=1, limit=4
  $region2: #{deconv_block_with_emb.4} parent=0 // loop_pre_header
    _
  $region3: #{deconv_block_with_emb.4} parent=0 // loop_header
    %s9 = sphi 0, %s13
    %p10 = scmp.ge.s32.totalorder %s9, 4
    %s16 = sphi 0, %s35
    %s17 = sphi 0, %s31
    %s18 = sphi 0, %s27
    %s19 = sphi 0, %s16
    %s20 = sphi 0, %s17
    %s21 = sphi 0, %s18
    %s22 = sphi 0, %s19
    %s23 = sphi 0, %s20
    %s24 = sphi 0, %s21
    %s40 = sphi 0, %s42
    %s43 = sphi 0, %s40
    %s44 = sphi 0, %s43
    %s60 = sphi 0, %s44
    %s66 = sphi 0, %s68
    %s69 = sphi 0, %s66
    %s70 = sphi 0, %s69
    %s86 = sphi 0, %s70
    %s92 = sphi 0, %s94
    %s95 = sphi 0, %s92
    %s96 = sphi 0, %s95
    %s112 = sphi 0, %s96
  $region4: #{deconv_block_with_emb.4} parent=0 // loop_header_branch
    %12 = sbr.rel (%p10) target = $region8
  $region5: #{deconv_block_with_emb.4} parent=0 // loop_body
    %s14 = ssub.s32 %s9, 1
    %s15 = ssub.s32 %s9, 2
    %s25 = sadd.s32 1, %s18
    %p26 = scmp.ge.s32.totalorder %s25, 1
    %s27 = scalar_select %p26, 0, %s25
    %s28 = sadd.s32 1, %s17
    %s29 = scalar_select %p26, %s28, %s17
    %p30 = scmp.ge.s32.totalorder %s29, 2
    %s31 = scalar_select %p30, 0, %s29
    %s32 = sadd.s32 1, %s16
    %s33 = scalar_select %p30, %s32, %s16
    %p34 = scmp.ge.s32.totalorder %s33, 1
    %s35 = scalar_select %p34, 0, %s33
    %s36 = ssub.s32 %s16, %s35
    %s37 = ssub.s32 %s18, %s27
    %s38 = sor.u32 %s36, %s37
    %p39 = scmp.eq.s32.totalorder %s38, 0
    %s41 = sadd.s32 %s40, 1
    %s42 = scalar_select %p39, %s40, %s41
    %p45 = pneg %p39
    %p46 = scmp.eq.s32.totalorder %s9, 1
    %p47 = por %p45, %p46
    %p48 = scmp.ne.s32.totalorder %s40, %s43
    %p49 = scmp.eq.s32.totalorder %s9, 0
    %p50 = por %p48, %p49
    %p51 = scmp.ne.s32.totalorder %s40, %s43
    %p52 = scmp.eq.s32.totalorder %s14, 1
    %p53 = por %p51, %p52
    %p54 = scmp.ne.s32.totalorder %s43, %s44
    %p55 = scmp.eq.s32.totalorder %s14, 0
    %p56 = por %p54, %p55
    %p57 = scmp.ne.s32.totalorder %s43, %s44
    %p58 = scmp.eq.s32.totalorder %s15, 1
    %p59 = por %p57, %p58
    %p61 = scmp.ne.s32.totalorder %s44, %s60
    %p62 = scmp.eq.s32.totalorder %s15, 0
    %p63 = por %p61, %p62
    %s64 = ssub.s32 %s16, %s35
    %p65 = scmp.eq.s32.totalorder %s64, 0
    %s67 = sadd.s32 %s66, 1
    %s68 = scalar_select %p65, %s66, %s67
    %p71 = pneg %p65
    %p72 = scmp.eq.s32.totalorder %s9, 1
    %p73 = por %p71, %p72
    %p74 = scmp.ne.s32.totalorder %s66, %s69
    %p75 = scmp.eq.s32.totalorder %s9, 0
    %p76 = por %p74, %p75
    %p77 = scmp.ne.s32.totalorder %s66, %s69
    %p78 = scmp.eq.s32.totalorder %s14, 1
    %p79 = por %p77, %p78
    %p80 = scmp.ne.s32.totalorder %s69, %s70
    %p81 = scmp.eq.s32.totalorder %s14, 0
    %p82 = por %p80, %p81
    %p83 = scmp.ne.s32.totalorder %s69, %s70
    %p84 = scmp.eq.s32.totalorder %s15, 1
    %p85 = por %p83, %p84
    %p87 = scmp.ne.s32.totalorder %s70, %s86
    %p88 = scmp.eq.s32.totalorder %s15, 0
    %p89 = por %p87, %p88
    %s90 = ssub.s32 %s16, %s35
    %p91 = scmp.eq.s32.totalorder %s90, 0
    %s93 = sadd.s32 %s92, 1
    %s94 = scalar_select %p91, %s92, %s93
    %p97 = pneg %p91
    %p98 = scmp.eq.s32.totalorder %s9, 1
    %p99 = por %p97, %p98
    %p100 = scmp.ne.s32.totalorder %s92, %s95
    %p101 = scmp.eq.s32.totalorder %s9, 0
    %p102 = por %p100, %p101
    %p103 = scmp.ne.s32.totalorder %s92, %s95
    %p104 = scmp.eq.s32.totalorder %s14, 1
    %p105 = por %p103, %p104
    %p106 = scmp.ne.s32.totalorder %s95, %s96
    %p107 = scmp.eq.s32.totalorder %s14, 0
    %p108 = por %p106, %p107
    %p109 = scmp.ne.s32.totalorder %s95, %s96
    %p110 = scmp.eq.s32.totalorder %s15, 1
    %p111 = por %p109, %p110
    %p113 = scmp.ne.s32.totalorder %s96, %s112
    %p114 = scmp.eq.s32.totalorder %s15, 0
    %p115 = por %p113, %p114
    %p116 = scmp.le.s32.totalorder 1, %s9
    %p117 = scmp.lt.s32.totalorder %s9, 3
    %p118 = pnand %p116, %p117
    %p119 = pneg %p118
    // Predicated region
    $region9: #{deconv_block_with_emb.4} parent=5 // pred_check
      _
    $region10: #{deconv_block_with_emb.4} parent=5 // pred_check_branch
      %121 = sbr.rel (%p118) target = $region12
    $region11: #{deconv_block_with_emb.4} parent=5 // pred_region
      %s122 = ssub.s32 %s9, 1
      // Predicated region
      $region13: #{deconv_block_with_emb.4} parent=11 // pred_check
        %p123 = pneg %p56
      $region14: #{deconv_block_with_emb.4} parent=11 // pred_check_branch
        %125 = sbr.rel (%p123) target = $region16
      $region15: #{deconv_block_with_emb.4} parent=11 // pred_region
        %s126 = smul.u32 2, %s19
        %s127 = smul.u32 14, %s21
        %p128 = scmp.lt.s32.totalorder %s126, 1
        %s129 = scalar_select %p128, %s126, 1
        %p130 = scmp.lt.s32.totalorder %s127, 13
        %s131 = scalar_select %p130, %s127, 13
        %s132 = smul.addr %s129, 14
        %s133 = sadd.s32 %s131, %s132
        %s134 = smul.addr %s133, 4
        %s135 = scalar_lea.vmem %s0, %s134
        %s136 = smul.u32 2, %s19
        %s137 = smul.u32 14, %s21
      $region16: #{deconv_block_with_emb.4} parent=11 // pred_fallthru
        _
    $region12: #{deconv_block_with_emb.4} parent=5 // pred_fallthru
      _
    %p138 = scmp.lt.s32.totalorder %s9, 2
    // Predicated region
    $region17: #{deconv_block_with_emb.4} parent=5 // pred_check
      %p139 = pneg %p138
    $region18: #{deconv_block_with_emb.4} parent=5 // pred_check_branch
      %141 = sbr.rel (%p139) target = $region20
    $region19: #{deconv_block_with_emb.4} parent=5 // pred_region
      _
    $region20: #{deconv_block_with_emb.4} parent=5 // pred_fallthru
      _
    %p142 = scmp.le.s32.totalorder 1, %s9
    %p143 = scmp.lt.s32.totalorder %s9, 3
    %p144 = pnand %p142, %p143
    %p145 = pneg %p144
    // Predicated region
    $region21: #{deconv_block_with_emb.4} parent=5 // pred_check
      _
    $region22: #{deconv_block_with_emb.4} parent=5 // pred_check_branch
      %147 = sbr.rel (%p144) target = $region24
    $region23: #{deconv_block_with_emb.4} parent=5 // pred_region
      %s148 = ssub.s32 %s9, 1
      %s149 = smul.u32 2, %s19
      %s150 = smul.u32 14, %s21
      %p151 = scmp.lt.s32.totalorder %s149, 1
      %s152 = scalar_select %p151, %s149, 1
      %p153 = scmp.lt.s32.totalorder %s150, 13
      %s154 = scalar_select %p153, %s150, 13
      %s155 = smul.addr %s152, 14
      %s156 = sadd.s32 %s154, %s155
      %s157 = smul.addr %s156, 4
      %s158 = scalar_lea.vmem %s0, %s157
      %p159 = pneg %p56
      %p160 = pneg %p53
      %p161 = pneg %p82
      %p162 = pneg %p79
      %s163 = smul.u32 2, %s19
      %p164 = scmp.lt.s32.totalorder %s163, 1
      %s165 = scalar_select %p164, %s163, 1
      %s166 = smul.addr %s165, 8
      %s167 = scalar_lea.vmem %s1, %s166
      %p168 = pneg %p108
      %p169 = pneg %p105
      %s170 = smul.u32 2, %s19
      %p171 = scmp.lt.s32.totalorder %s170, 1
      %s172 = scalar_select %p171, %s170, 1
      %s173 = smul.addr %s172, 8
      %s174 = scalar_lea.vmem %s2, %s173
      %s175 = smul.u32 2, %s19
      %s176 = smul.u32 14, %s21
      %p177 = scmp.lt.s32.totalorder %s175, 1
      %s178 = scalar_select %p177, %s175, 1
      %p179 = scmp.lt.s32.totalorder %s176, 13
      %s180 = scalar_select %p179, %s176, 13
      %s181 = smul.addr %s178, 14
      %s182 = sadd.s32 %s180, %s181
      %s183 = smul.addr %s182, 4
      %s184 = scalar_lea.vmem %s0, %s183
      %s185 = smul.u32 2, %s19
      %s186 = smul.u32 14, %s21
      %s187 = smul.u32 2, %s19
      %p188 = scmp.lt.s32.totalorder %s187, 1
      %s189 = scalar_select %p188, %s187, 1
      %s190 = smul.addr %s189, 8
      %s191 = scalar_lea.vmem %s1, %s190
      %s192 = smul.u32 2, %s19
      %s193 = smul.u32 2, %s19
      %p194 = scmp.lt.s32.totalorder %s193, 1
      %s195 = scalar_select %p194, %s193, 1
      %s196 = smul.addr %s195, 8
      %s197 = scalar_lea.vmem %s2, %s196
      %s198 = smul.u32 2, %s19
      %p199 = scmp.eq.s32.totalorder %s21, 0
      // Predicated region
      $region25: #{deconv_block_with_emb.4} parent=23 // pred_check
        %p200 = pneg %p199
      $region26: #{deconv_block_with_emb.4} parent=23 // pred_check_branch
        %202 = sbr.rel (%p200) target = $region28
      $region27: #{deconv_block_with_emb.4} parent=23 // pred_region
        %vm203 = vcmask 7168
        %204 = vst.msk [vmem:[#allocation2] sm:$0xff] %vm203, 0.0
        %205 = vst.msk [vmem:[#allocation2 + $0x8] sm:$0xff] %vm203, 0.0
      $region28: #{deconv_block_with_emb.4} parent=23 // pred_fallthru
        _
      %v206 = vld [vmem:[%s184] sm:$0xff]
      %v207 = vld [vmem:[%s184 + $0x8] sm:$0xff]
      %v208 = vld [vmem:[%s184 + $0x10] sm:$0xff]
      %v209 = vld [vmem:[%s184 + $0x18] sm:$0xff]
      %v210 = vld [vmem:[%s184 + $0x20] sm:$0xff]
      %v211 = vld [vmem:[%s184 + $0x28] sm:$0xff]
      %v212 = vld [vmem:[%s184 + $0x30] sm:$0xff]
      %v213 = vld [vmem:[%s184 + $0x38] sm:$0xff]
      %v214 = vld [vmem:[%s184 + $0x40] sm:$0xff]
      %v215 = vld [vmem:[%s184 + $0x48] sm:$0xff]
      %v216 = vld [vmem:[%s184 + $0x50] sm:$0xff]
      %v217 = vld [vmem:[%s184 + $0x58] sm:$0xff]
      %v218 = vld [vmem:[%s184 + $0x60] sm:$0xff]
      %v219 = vld [vmem:[%s184 + $0x68] sm:$0xff]
      %v220 = vunpack.c.l.bf16 %v206
      %v221 = vunpack.c.h.bf16 %v206
      %v222 = vunpack.c.l.bf16 %v207
      %v223 = vunpack.c.h.bf16 %v207
      %v224 = vunpack.c.l.bf16 %v208
      %v225 = vunpack.c.h.bf16 %v208
      %v226 = vunpack.c.l.bf16 %v209
      %v227 = vunpack.c.h.bf16 %v209
      %v228 = vunpack.c.l.bf16 %v210
      %v229 = vunpack.c.h.bf16 %v210
      %v230 = vunpack.c.l.bf16 %v211
      %v231 = vunpack.c.h.bf16 %v211
      %v232 = vunpack.c.l.bf16 %v212
      %v233 = vunpack.c.h.bf16 %v212
      %v234 = vunpack.c.l.bf16 %v213
      %v235 = vunpack.c.h.bf16 %v213
      %v236 = vunpack.c.l.bf16 %v214
      %v237 = vunpack.c.h.bf16 %v214
      %v238 = vunpack.c.l.bf16 %v215
      %v239 = vunpack.c.h.bf16 %v215
      %v240 = vunpack.c.l.bf16 %v216
      %v241 = vunpack.c.h.bf16 %v216
      %v242 = vunpack.c.l.bf16 %v217
      %v243 = vunpack.c.h.bf16 %v217
      %v244 = vunpack.c.l.bf16 %v218
      %v245 = vunpack.c.h.bf16 %v218
      %v246 = vunpack.c.l.bf16 %v219
      %v247 = vunpack.c.h.bf16 %v219
      %v248 = vlaneseq
      %v249 = vand.u32 %v248, 127
      %v250 = vadd.s32 %v249, 128
      %v251 = vadd.s32 %v249, 256
      %v252 = vadd.s32 %v249, 384
      %v253 = vadd.s32 %v249, 512
      %v254 = vadd.s32 %v249, 640
      %v255 = vadd.s32 %v249, 768
      %v256 = vadd.s32 %v249, 896
      %v257 = vadd.s32 %v249, 1024
      %v258 = vadd.s32 %v249, 1152
      %v259 = vadd.s32 %v249, 1280
      %v260 = vadd.s32 %v249, 1408
      %v261 = vadd.s32 %v249, 1536
      %v262 = vadd.s32 %v249, 1664
      %s263 = smul.u32 %s21, 1792
      %v264 = vstv %s263
      %v265 = vadd.s32 %v249, %v264
      %v266 = vadd.s32 %v250, %v264
      %v267 = vadd.s32 %v251, %v264
      %v268 = vadd.s32 %v252, %v264
      %v269 = vadd.s32 %v253, %v264
      %v270 = vadd.s32 %v254, %v264
      %v271 = vadd.s32 %v255, %v264
      %v272 = vadd.s32 %v256, %v264
      %v273 = vadd.s32 %v257, %v264
      %v274 = vadd.s32 %v258, %v264
      %v275 = vadd.s32 %v259, %v264
      %v276 = vadd.s32 %v260, %v264
      %v277 = vadd.s32 %v261, %v264
      %v278 = vadd.s32 %v262, %v264
      %vm279 = vcmp.lt.s32.totalorder %v265, 1728
      %vm280 = vcmp.lt.s32.totalorder %v266, 1728
      %vm281 = vcmp.lt.s32.totalorder %v267, 1728
      %vm282 = vcmp.lt.s32.totalorder %v268, 1728
      %vm283 = vcmp.lt.s32.totalorder %v269, 1728
      %vm284 = vcmp.lt.s32.totalorder %v270, 1728
      %vm285 = vcmp.lt.s32.totalorder %v271, 1728
      %vm286 = vcmp.lt.s32.totalorder %v272, 1728
      %vm287 = vcmp.lt.s32.totalorder %v273, 1728
      %vm288 = vcmp.lt.s32.totalorder %v274, 1728
      %vm289 = vcmp.lt.s32.totalorder %v275, 1728
      %vm290 = vcmp.lt.s32.totalorder %v276, 1728
      %vm291 = vcmp.lt.s32.totalorder %v277, 1728
      %vm292 = vcmp.lt.s32.totalorder %v278, 1728
      %p293 = scmp.eq.s32.totalorder %s20, 0
      // Predicated region
      $region29: #{deconv_block_with_emb.4} parent=23 // pred_check
        %p294 = pneg %p293
      $region30: #{deconv_block_with_emb.4} parent=23 // pred_check_branch
        %296 = sbr.rel (%p294) target = $region32
      $region31: #{deconv_block_with_emb.4} parent=23 // pred_region
        %v297 = vld [vmem:[#allocation2] sm:$0xff]
        %v298 = vld [vmem:[#allocation2 + $0x8] sm:$0xff]
        %v299 = vsel %vm279, %v220, 0.0
        %v300 = vsel %vm280, %v221, 0.0
        %v301 = vsel %vm281, %v222, 0.0
        %v302 = vsel %vm282, %v223, 0.0
        %v303 = vsel %vm283, %v224, 0.0
        %v304 = vsel %vm284, %v225, 0.0
        %v305 = vsel %vm285, %v226, 0.0
        %v306 = vsel %vm286, %v227, 0.0
        %v307 = vsel %vm287, %v228, 0.0
        %v308 = vsel %vm288, %v229, 0.0
        %v309 = vsel %vm289, %v230, 0.0
        %v310 = vsel %vm290, %v231, 0.0
        %v311 = vsel %vm291, %v232, 0.0
        %v312 = vsel %vm292, %v233, 0.0
        %v313 = vsel %vm279, %v234, 0.0
        %v314 = vsel %vm280, %v235, 0.0
        %v315 = vsel %vm281, %v236, 0.0
        %v316 = vsel %vm282, %v237, 0.0
        %v317 = vsel %vm283, %v238, 0.0
        %v318 = vsel %vm284, %v239, 0.0
        %v319 = vsel %vm285, %v240, 0.0
        %v320 = vsel %vm286, %v241, 0.0
        %v321 = vsel %vm287, %v242, 0.0
        %v322 = vsel %vm288, %v243, 0.0
        %v323 = vsel %vm289, %v244, 0.0
        %v324 = vsel %vm290, %v245, 0.0
        %v325 = vsel %vm291, %v246, 0.0
        %v326 = vsel %vm292, %v247, 0.0
        %v327 = vadd.f32 %v299, %v300
        %v328 = vadd.f32 %v327, %v301
        %v329 = vadd.f32 %v328, %v302
        %v330 = vadd.f32 %v329, %v303
        %v331 = vadd.f32 %v330, %v304
        %v332 = vadd.f32 %v331, %v305
        %v333 = vadd.f32 %v332, %v306
        %v334 = vadd.f32 %v333, %v307
        %v335 = vadd.f32 %v334, %v308
        %v336 = vadd.f32 %v335, %v309
        %v337 = vadd.f32 %v336, %v310
        %v338 = vadd.f32 %v337, %v311
        %v339 = vadd.f32 %v338, %v312
        %340 = vadd.xlane.f32.xlu0 %v339
        %v341 = vpop.xlane.xlu0 %340
        %v342 = vadd.f32 %v313, %v314
        %v343 = vadd.f32 %v342, %v315
        %v344 = vadd.f32 %v343, %v316
        %v345 = vadd.f32 %v344, %v317
        %v346 = vadd.f32 %v345, %v318
        %v347 = vadd.f32 %v346, %v319
        %v348 = vadd.f32 %v347, %v320
        %v349 = vadd.f32 %v348, %v321
        %v350 = vadd.f32 %v349, %v322
        %v351 = vadd.f32 %v350, %v323
        %v352 = vadd.f32 %v351, %v324
        %v353 = vadd.f32 %v352, %v325
        %v354 = vadd.f32 %v353, %v326
        %355 = vadd.xlane.f32.xlu0 %v354
        %v356 = vpop.xlane.xlu0 %355
        %v357 = vadd.f32 %v297, %v341
        %v358 = vadd.f32 %v298, %v356
        %vm359 = vcmask 7168
        %360 = vst.msk [vmem:[#allocation2] sm:$0xff] %vm359, %v357
        %361 = vst.msk [vmem:[#allocation2 + $0x8] sm:$0xff] %vm359, %v358
        // Predicated region
        $region33: #{deconv_block_with_emb.4} parent=31 // pred_check
          %p362 = pneg %p199
        $region34: #{deconv_block_with_emb.4} parent=31 // pred_check_branch
          %364 = sbr.rel (%p362) target = $region36
        $region35: #{deconv_block_with_emb.4} parent=31 // pred_region
          %v365 = vld [vmem:[#allocation2] sm:$0xff]
          %v366 = vld [vmem:[#allocation2 + $0x8] sm:$0xff]
          %v367 = vmul.f32 %v365, 0.0005787037
          %v368 = vmul.f32 %v366, 0.0005787037
          %369 = vst.msk [vmem:[#allocation3] sm:$0xff] %vm359, %v367
          %370 = vst.msk [vmem:[#allocation3 + $0x8] sm:$0xff] %vm359, %v368
          %371 = vst.msk [vmem:[%s191] sm:$0xff] %vm359, %v367
          %372 = vst.msk [vmem:[%s191 + $0x8] sm:$0xff] %vm359, %v368
        $region36: #{deconv_block_with_emb.4} parent=31 // pred_fallthru
          _
      $region32: #{deconv_block_with_emb.4} parent=23 // pred_fallthru
        _
      %p373 = scmp.eq.s32.totalorder %s20, 1
      // Predicated region
      $region37: #{deconv_block_with_emb.4} parent=23 // pred_check
        %p374 = pneg %p373
      $region38: #{deconv_block_with_emb.4} parent=23 // pred_check_branch
        %376 = sbr.rel (%p374) target = $region40
      $region39: #{deconv_block_with_emb.4} parent=23 // pred_region
        %v377 = vld [vmem:[#allocation3] sm:$0xff]
        %v378 = vld [vmem:[#allocation3 + $0x8] sm:$0xff]
        %380 = vset.pattern.permute.xlu0 0
        %381 = vperm.xlu0 %380, %v377
        %v382 = vpop.permute.xlu0 %381
        %385 = vset.pattern.permute.xlu0 0
        %386 = vperm.xlu0 %385, %v378
        %v387 = vpop.permute.xlu0 %386
        %v389 = vsub.f32 %v220, %v382
        %v390 = vsub.f32 %v221, %v382
        %v391 = vsub.f32 %v222, %v382
        %v392 = vsub.f32 %v223, %v382
        %v393 = vsub.f32 %v224, %v382
        %v394 = vsub.f32 %v225, %v382
        %v395 = vsub.f32 %v226, %v382
        %v396 = vsub.f32 %v227, %v382
        %v397 = vsub.f32 %v228, %v382
        %v398 = vsub.f32 %v229, %v382
        %v399 = vsub.f32 %v230, %v382
        %v400 = vsub.f32 %v231, %v382
        %v401 = vsub.f32 %v232, %v382
        %v402 = vsub.f32 %v233, %v382
        %v403 = vsub.f32 %v234, %v387
        %v404 = vsub.f32 %v235, %v387
        %v405 = vsub.f32 %v236, %v387
        %v406 = vsub.f32 %v237, %v387
        %v407 = vsub.f32 %v238, %v387
        %v408 = vsub.f32 %v239, %v387
        %v409 = vsub.f32 %v240, %v387
        %v410 = vsub.f32 %v241, %v387
        %v411 = vsub.f32 %v242, %v387
        %v412 = vsub.f32 %v243, %v387
        %v413 = vsub.f32 %v244, %v387
        %v414 = vsub.f32 %v245, %v387
        %v415 = vsub.f32 %v246, %v387
        %v416 = vsub.f32 %v247, %v387
        %v417 = vsel %vm279, %v389, 0.0
        %v418 = vsel %vm280, %v390, 0.0
        %v419 = vsel %vm281, %v391, 0.0
        %v420 = vsel %vm282, %v392, 0.0
        %v421 = vsel %vm283, %v393, 0.0
        %v422 = vsel %vm284, %v394, 0.0
        %v423 = vsel %vm285, %v395, 0.0
        %v424 = vsel %vm286, %v396, 0.0
        %v425 = vsel %vm287, %v397, 0.0
        %v426 = vsel %vm288, %v398, 0.0
        %v427 = vsel %vm289, %v399, 0.0
        %v428 = vsel %vm290, %v400, 0.0
        %v429 = vsel %vm291, %v401, 0.0
        %v430 = vsel %vm292, %v402, 0.0
        %v431 = vsel %vm279, %v403, 0.0
        %v432 = vsel %vm280, %v404, 0.0
        %v433 = vsel %vm281, %v405, 0.0
        %v434 = vsel %vm282, %v406, 0.0
        %v435 = vsel %vm283, %v407, 0.0
        %v436 = vsel %vm284, %v408, 0.0
        %v437 = vsel %vm285, %v409, 0.0
        %v438 = vsel %vm286, %v410, 0.0
        %v439 = vsel %vm287, %v411, 0.0
        %v440 = vsel %vm288, %v412, 0.0
        %v441 = vsel %vm289, %v413, 0.0
        %v442 = vsel %vm290, %v414, 0.0
        %v443 = vsel %vm291, %v415, 0.0
        %v444 = vsel %vm292, %v416, 0.0
        %v445 = vld [vmem:[#allocation2] sm:$0xff]
        %v446 = vld [vmem:[#allocation2 + $0x8] sm:$0xff]
        %v447 = vmul.f32 %v417, %v417
        %v448 = vmul.f32 %v418, %v418
        %v449 = vmul.f32 %v419, %v419
        %v450 = vmul.f32 %v420, %v420
        %v451 = vmul.f32 %v421, %v421
        %v452 = vmul.f32 %v422, %v422
        %v453 = vmul.f32 %v423, %v423
        %v454 = vmul.f32 %v424, %v424
        %v455 = vmul.f32 %v425, %v425
        %v456 = vmul.f32 %v426, %v426
        %v457 = vmul.f32 %v427, %v427
        %v458 = vmul.f32 %v428, %v428
        %v459 = vmul.f32 %v429, %v429
        %v460 = vmul.f32 %v430, %v430
        %v461 = vmul.f32 %v431, %v431
        %v462 = vmul.f32 %v432, %v432
        %v463 = vmul.f32 %v433, %v433
        %v464 = vmul.f32 %v434, %v434
        %v465 = vmul.f32 %v435, %v435
        %v466 = vmul.f32 %v436, %v436
        %v467 = vmul.f32 %v437, %v437
        %v468 = vmul.f32 %v438, %v438
        %v469 = vmul.f32 %v439, %v439
        %v470 = vmul.f32 %v440, %v440
        %v471 = vmul.f32 %v441, %v441
        %v472 = vmul.f32 %v442, %v442
        %v473 = vmul.f32 %v443, %v443
        %v474 = vmul.f32 %v444, %v444
        %v475 = vadd.f32 %v447, %v448
        %v476 = vadd.f32 %v475, %v449
        %v477 = vadd.f32 %v476, %v450
        %v478 = vadd.f32 %v477, %v451
        %v479 = vadd.f32 %v478, %v452
        %v480 = vadd.f32 %v479, %v453
        %v481 = vadd.f32 %v480, %v454
        %v482 = vadd.f32 %v481, %v455
        %v483 = vadd.f32 %v482, %v456
        %v484 = vadd.f32 %v483, %v457
        %v485 = vadd.f32 %v484, %v458
        %v486 = vadd.f32 %v485, %v459
        %v487 = vadd.f32 %v486, %v460
        %488 = vadd.xlane.f32.xlu0 %v487
        %v489 = vpop.xlane.xlu0 %488
        %v490 = vadd.f32 %v461, %v462
        %v491 = vadd.f32 %v490, %v463
        %v492 = vadd.f32 %v491, %v464
        %v493 = vadd.f32 %v492, %v465
        %v494 = vadd.f32 %v493, %v466
        %v495 = vadd.f32 %v494, %v467
        %v496 = vadd.f32 %v495, %v468
        %v497 = vadd.f32 %v496, %v469
        %v498 = vadd.f32 %v497, %v470
        %v499 = vadd.f32 %v498, %v471
        %v500 = vadd.f32 %v499, %v472
        %v501 = vadd.f32 %v500, %v473
        %v502 = vadd.f32 %v501, %v474
        %503 = vadd.xlane.f32.xlu0 %v502
        %v504 = vpop.xlane.xlu0 %503
        %v505 = vadd.f32 %v445, %v489
        %v506 = vadd.f32 %v446, %v504
        %vm507 = vcmask 7168
        %508 = vst.msk [vmem:[#allocation2] sm:$0xff] %vm507, %v505
        %509 = vst.msk [vmem:[#allocation2 + $0x8] sm:$0xff] %vm507, %v506
        // Predicated region
        $region41: #{deconv_block_with_emb.4} parent=39 // pred_check
          %p510 = pneg %p199
        $region42: #{deconv_block_with_emb.4} parent=39 // pred_check_branch
          %512 = sbr.rel (%p510) target = $region44
        $region43: #{deconv_block_with_emb.4} parent=39 // pred_region
          %v513 = vld [vmem:[#allocation2] sm:$0xff]
          %v514 = vld [vmem:[#allocation2 + $0x8] sm:$0xff]
          %v515 = vmul.f32 %v513, 0.0005790388
          %v516 = vmul.f32 %v514, 0.0005790388
          %v517 = vadd.f32 %v515, 1e-05
          %v518 = vadd.f32 %v516, 1e-05
          %v519 = vrsqrt.pop %v517
          %v520 = vrsqrt.pop %v518
          %521 = vst.msk [vmem:[%s197] sm:$0xff] %vm507, %v519
          %522 = vst.msk [vmem:[%s197 + $0x8] sm:$0xff] %vm507, %v520
        $region44: #{deconv_block_with_emb.4} parent=39 // pred_fallthru
          _
      $region40: #{deconv_block_with_emb.4} parent=23 // pred_fallthru
        _
      %s523 = smul.u32 2, %s19
      %p524 = scmp.lt.s32.totalorder %s523, 1
      %s525 = scalar_select %p524, %s523, 1
      %s526 = smul.addr %s525, 8
      %s527 = scalar_lea.vmem %s1, %s526
      %s528 = smul.u32 2, %s19
      %p529 = scmp.lt.s32.totalorder %s528, 1
      %s530 = scalar_select %p529, %s528, 1
      %s531 = smul.addr %s530, 8
      %s532 = scalar_lea.vmem %s2, %s531
      // Predicated region
      $region45: #{deconv_block_with_emb.4} parent=23 // pred_check
        %p533 = pneg %p79
      $region46: #{deconv_block_with_emb.4} parent=23 // pred_check_branch
        %535 = sbr.rel (%p533) target = $region48
      $region47: #{deconv_block_with_emb.4} parent=23 // pred_region
        %s536 = smul.u32 2, %s19
      $region48: #{deconv_block_with_emb.4} parent=23 // pred_fallthru
        _
      // Predicated region
      $region49: #{deconv_block_with_emb.4} parent=23 // pred_check
        %p537 = pneg %p105
      $region50: #{deconv_block_with_emb.4} parent=23 // pred_check_branch
        %539 = sbr.rel (%p537) target = $region52
      $region51: #{deconv_block_with_emb.4} parent=23 // pred_region
        %s540 = smul.u32 2, %s19
      $region52: #{deconv_block_with_emb.4} parent=23 // pred_fallthru
        _
      // Predicated region
      $region53: #{deconv_block_with_emb.4} parent=23 // pred_check
        %p541 = pneg %p79
      $region54: #{deconv_block_with_emb.4} parent=23 // pred_check_branch
        %543 = sbr.rel (%p541) target = $region56
      $region55: #{deconv_block_with_emb.4} parent=23 // pred_region
        %s544 = smul.u32 2, %s19
        %p545 = scmp.lt.s32.totalorder %s544, 1
        %s546 = scalar_select %p545, %s544, 1
        %s547 = smul.addr %s546, 8
        %s548 = scalar_lea.vmem %s1, %s547
      $region56: #{deconv_block_with_emb.4} parent=23 // pred_fallthru
        _
      // Predicated region
      $region57: #{deconv_block_with_emb.4} parent=23 // pred_check
        %p549 = pneg %p105
      $region58: #{deconv_block_with_emb.4} parent=23 // pred_check_branch
        %551 = sbr.rel (%p549) target = $region60
      $region59: #{deconv_block_with_emb.4} parent=23 // pred_region
        %s552 = smul.u32 2, %s19
        %p553 = scmp.lt.s32.totalorder %s552, 1
        %s554 = scalar_select %p553, %s552, 1
        %s555 = smul.addr %s554, 8
        %s556 = scalar_lea.vmem %s2, %s555
      $region60: #{deconv_block_with_emb.4} parent=23 // pred_fallthru
        _
    $region24: #{deconv_block_with_emb.4} parent=5 // pred_fallthru
      _
    %p557 = scmp.le.s32.totalorder 2, %s9
    // Predicated region
    $region61: #{deconv_block_with_emb.4} parent=5 // pred_check
      %p558 = pneg %p557
    $region62: #{deconv_block_with_emb.4} parent=5 // pred_check_branch
      %560 = sbr.rel (%p558) target = $region64
    $region63: #{deconv_block_with_emb.4} parent=5 // pred_region
      %s561 = ssub.s32 %s9, 2
    $region64: #{deconv_block_with_emb.4} parent=5 // pred_fallthru
      _
  $region6: #{deconv_block_with_emb.4} parent=0 // loop_footer
    %s13 = sadd.s32 1, %s9
  $region7: #{deconv_block_with_emb.4} parent=0 // loop_footer_branch
    %8 = sbr.rel target = $region3
  $region8: #{deconv_block_with_emb.4} parent=0 // loop_exit
    _

// kernel: deconv_block_with_emb.5
$region0: #{deconv_block_with_emb.5}
  #allocation0 [shape = 'u32[]', space=smem, size = 0x4, offset = 0x4, fixed_abs, tag = 'smem constant byte address 0x4 - core index']
  #allocation1 [shape = 'u32[144,128]{1,0:T(1,128)}', space=vmem, size = 0x12000, scoped, tag = 'internal scratch']
  %s0 = inlined_call_operand.vmem [shape: bf16[16,1792], index: 0, kind: input, shape index: {}]
  %s1 = inlined_call_operand.vmem [shape: f32[16,1], index: 1, kind: input, shape index: {}]
  %s2 = inlined_call_operand.vmem [shape: f32[16,1], index: 2, kind: input, shape index: {}]
  %s3 = inlined_call_operand.vmem [shape: f32[16,1], index: 3, kind: input, shape index: {}]
  %s4 = inlined_call_operand.vmem [shape: f32[16,1], index: 4, kind: input, shape index: {}]
  %s5 = inlined_call_operand.vmem [shape: f32[16,1792], index: 5, kind: output, shape index: {}]
  %s6 = sld [smem:[#allocation0]]
  $region30: #{deconv_block_with_emb.5} parent=0
    _
  %s8 = ssub.s32 1, %s6
  %s9 = scalar_select 0, %s8, %s6
  // Predicated region
  $region2: #{deconv_block_with_emb.5} parent=0 // pred_check
    _
  $region3: #{deconv_block_with_emb.5} parent=0 // pred_check_branch
    %11 = sbr.rel (0) target = $region5
  $region4: #{deconv_block_with_emb.5} parent=0 // pred_region
    _
  $region5: #{deconv_block_with_emb.5} parent=0 // pred_fallthru
    _
  // Predicated region
  $region6: #{deconv_block_with_emb.5} parent=0 // pred_check
    _
  $region7: #{deconv_block_with_emb.5} parent=0 // pred_check_branch
    %13 = sbr.rel (0) target = $region9
  $region8: #{deconv_block_with_emb.5} parent=0 // pred_region
    _
  $region9: #{deconv_block_with_emb.5} parent=0 // pred_fallthru
    _
  // Predicated region
  $region10: #{deconv_block_with_emb.5} parent=0 // pred_check
    _
  $region11: #{deconv_block_with_emb.5} parent=0 // pred_check_branch
    %15 = sbr.rel (0) target = $region13
  $region12: #{deconv_block_with_emb.5} parent=0 // pred_region
    _
  $region13: #{deconv_block_with_emb.5} parent=0 // pred_fallthru
    _
  // Predicated region
  $region14: #{deconv_block_with_emb.5} parent=0 // pred_check
    _
  $region15: #{deconv_block_with_emb.5} parent=0 // pred_check_branch
    %17 = sbr.rel (0) target = $region17
  $region16: #{deconv_block_with_emb.5} parent=0 // pred_region
    _
  $region17: #{deconv_block_with_emb.5} parent=0 // pred_fallthru
    _
  // Predicated region
  $region18: #{deconv_block_with_emb.5} parent=0 // pred_check
    _
  $region19: #{deconv_block_with_emb.5} parent=0 // pred_check_branch
    %19 = sbr.rel (0) target = $region21
  $region20: #{deconv_block_with_emb.5} parent=0 // pred_region
    _
  $region21: #{deconv_block_with_emb.5} parent=0 // pred_fallthru
    _
  %v20 = vld [vmem:[%s0] sm:$0xff]
  %v21 = vld [vmem:[%s0 + $0x8] sm:$0xff]
  %v22 = vld [vmem:[%s0 + $0x10] sm:$0xff]
  %v23 = vld [vmem:[%s0 + $0x18] sm:$0xff]
  %v24 = vld [vmem:[%s0 + $0x20] sm:$0xff]
  %v25 = vld [vmem:[%s0 + $0x28] sm:$0xff]
  %v26 = vld [vmem:[%s0 + $0x30] sm:$0xff]
  %v27 = vld [vmem:[%s0 + $0x38] sm:$0xff]
  %v28 = vld [vmem:[%s0 + $0x40] sm:$0xff]
  %v29 = vld [vmem:[%s0 + $0x48] sm:$0xff]
  %v30 = vld [vmem:[%s0 + $0x50] sm:$0xff]
  %v31 = vld [vmem:[%s0 + $0x58] sm:$0xff]
  %v32 = vld [vmem:[%s0 + $0x60] sm:$0xff]
  %v33 = vld [vmem:[%s0 + $0x68] sm:$0xff]
  %v34 = vunpack.c.l.bf16 %v20
  %v35 = vunpack.c.h.bf16 %v20
  %v36 = vunpack.c.l.bf16 %v21
  %v37 = vunpack.c.h.bf16 %v21
  %v38 = vunpack.c.l.bf16 %v22
  %v39 = vunpack.c.h.bf16 %v22
  %v40 = vunpack.c.l.bf16 %v23
  %v41 = vunpack.c.h.bf16 %v23
  %v42 = vunpack.c.l.bf16 %v24
  %v43 = vunpack.c.h.bf16 %v24
  %v44 = vunpack.c.l.bf16 %v25
  %v45 = vunpack.c.h.bf16 %v25
  %v46 = vunpack.c.l.bf16 %v26
  %v47 = vunpack.c.h.bf16 %v26
  %v48 = vunpack.c.l.bf16 %v27
  %v49 = vunpack.c.h.bf16 %v27
  %v50 = vunpack.c.l.bf16 %v28
  %v51 = vunpack.c.h.bf16 %v28
  %v52 = vunpack.c.l.bf16 %v29
  %v53 = vunpack.c.h.bf16 %v29
  %v54 = vunpack.c.l.bf16 %v30
  %v55 = vunpack.c.h.bf16 %v30
  %v56 = vunpack.c.l.bf16 %v31
  %v57 = vunpack.c.h.bf16 %v31
  %v58 = vunpack.c.l.bf16 %v32
  %v59 = vunpack.c.h.bf16 %v32
  %v60 = vunpack.c.l.bf16 %v33
  %v61 = vunpack.c.h.bf16 %v33
  %v62 = vld [vmem:[%s1] sm:$0xff]
  %v63 = vld [vmem:[%s1 + $0x8] sm:$0xff]
  %65 = vset.pattern.permute.xlu0 0
  %66 = vperm.xlu0 %65, %v62
  %v67 = vpop.permute.xlu0 %66
  %70 = vset.pattern.permute.xlu0 0
  %71 = vperm.xlu0 %70, %v63
  %v72 = vpop.permute.xlu0 %71
  %v74 = vsub.f32 %v34, %v67
  %v75 = vsub.f32 %v35, %v67
  %v76 = vsub.f32 %v36, %v67
  %v77 = vsub.f32 %v37, %v67
  %v78 = vsub.f32 %v38, %v67
  %v79 = vsub.f32 %v39, %v67
  %v80 = vsub.f32 %v40, %v67
  %v81 = vsub.f32 %v41, %v67
  %v82 = vsub.f32 %v42, %v67
  %v83 = vsub.f32 %v43, %v67
  %v84 = vsub.f32 %v44, %v67
  %v85 = vsub.f32 %v45, %v67
  %v86 = vsub.f32 %v46, %v67
  %v87 = vsub.f32 %v47, %v67
  %v88 = vsub.f32 %v48, %v72
  %v89 = vsub.f32 %v49, %v72
  %v90 = vsub.f32 %v50, %v72
  %v91 = vsub.f32 %v51, %v72
  %v92 = vsub.f32 %v52, %v72
  %v93 = vsub.f32 %v53, %v72
  %v94 = vsub.f32 %v54, %v72
  %v95 = vsub.f32 %v55, %v72
  %v96 = vsub.f32 %v56, %v72
  %v97 = vsub.f32 %v57, %v72
  %v98 = vsub.f32 %v58, %v72
  %v99 = vsub.f32 %v59, %v72
  %v100 = vsub.f32 %v60, %v72
  %v101 = vsub.f32 %v61, %v72
  %v102 = vld [vmem:[%s2] sm:$0xff]
  %v103 = vld [vmem:[%s2 + $0x8] sm:$0xff]
  %v104 = vld [vmem:[%s4] sm:$0xff]
  %v105 = vld [vmem:[%s4 + $0x8] sm:$0xff]
  %v106 = vmul.f32 %v102, %v104
  %v107 = vmul.f32 %v103, %v105
  %109 = vset.pattern.permute.xlu0 0
  %110 = vperm.xlu0 %109, %v106
  %v111 = vpop.permute.xlu0 %110
  %114 = vset.pattern.permute.xlu0 0
  %115 = vperm.xlu0 %114, %v107
  %v116 = vpop.permute.xlu0 %115
  %v118 = vmul.f32 %v74, %v111
  %v119 = vmul.f32 %v75, %v111
  %v120 = vmul.f32 %v76, %v111
  %v121 = vmul.f32 %v77, %v111
  %v122 = vmul.f32 %v78, %v111
  %v123 = vmul.f32 %v79, %v111
  %v124 = vmul.f32 %v80, %v111
  %v125 = vmul.f32 %v81, %v111
  %v126 = vmul.f32 %v82, %v111
  %v127 = vmul.f32 %v83, %v111
  %v128 = vmul.f32 %v84, %v111
  %v129 = vmul.f32 %v85, %v111
  %v130 = vmul.f32 %v86, %v111
  %v131 = vmul.f32 %v87, %v111
  %v132 = vmul.f32 %v88, %v116
  %v133 = vmul.f32 %v89, %v116
  %v134 = vmul.f32 %v90, %v116
  %v135 = vmul.f32 %v91, %v116
  %v136 = vmul.f32 %v92, %v116
  %v137 = vmul.f32 %v93, %v116
  %v138 = vmul.f32 %v94, %v116
  %v139 = vmul.f32 %v95, %v116
  %v140 = vmul.f32 %v96, %v116
  %v141 = vmul.f32 %v97, %v116
  %v142 = vmul.f32 %v98, %v116
  %v143 = vmul.f32 %v99, %v116
  %v144 = vmul.f32 %v100, %v116
  %v145 = vmul.f32 %v101, %v116
  %v146 = vld [vmem:[%s3] sm:$0xff]
  %v147 = vld [vmem:[%s3 + $0x8] sm:$0xff]
  %149 = vset.pattern.permute.xlu0 0
  %150 = vperm.xlu0 %149, %v146
  %v151 = vpop.permute.xlu0 %150
  %154 = vset.pattern.permute.xlu0 0
  %155 = vperm.xlu0 %154, %v147
  %v156 = vpop.permute.xlu0 %155
  %v158 = vadd.f32 %v118, %v151
  %v159 = vadd.f32 %v119, %v151
  %v160 = vadd.f32 %v120, %v151
  %v161 = vadd.f32 %v121, %v151
  %v162 = vadd.f32 %v122, %v151
  %v163 = vadd.f32 %v123, %v151
  %v164 = vadd.f32 %v124, %v151
  %v165 = vadd.f32 %v125, %v151
  %v166 = vadd.f32 %v126, %v151
  %v167 = vadd.f32 %v127, %v151
  %v168 = vadd.f32 %v128, %v151
  %v169 = vadd.f32 %v129, %v151
  %v170 = vadd.f32 %v130, %v151
  %v171 = vadd.f32 %v131, %v151
  %v172 = vadd.f32 %v132, %v156
  %v173 = vadd.f32 %v133, %v156
  %v174 = vadd.f32 %v134, %v156
  %v175 = vadd.f32 %v135, %v156
  %v176 = vadd.f32 %v136, %v156
  %v177 = vadd.f32 %v137, %v156
  %v178 = vadd.f32 %v138, %v156
  %v179 = vadd.f32 %v139, %v156
  %v180 = vadd.f32 %v140, %v156
  %v181 = vadd.f32 %v141, %v156
  %v182 = vadd.f32 %v142, %v156
  %v183 = vadd.f32 %v143, %v156
  %v184 = vadd.f32 %v144, %v156
  %v185 = vadd.f32 %v145, %v156
  %186 = vst [vmem:[%s5] sm:$0xff] %v158
  %187 = vst [vmem:[%s5 + $0x8] sm:$0xff] %v159
  %188 = vst [vmem:[%s5 + $0x10] sm:$0xff] %v160
  %189 = vst [vmem:[%s5 + $0x18] sm:$0xff] %v161
  %190 = vst [vmem:[%s5 + $0x20] sm:$0xff] %v162
  %191 = vst [vmem:[%s5 + $0x28] sm:$0xff] %v163
  %192 = vst [vmem:[%s5 + $0x30] sm:$0xff] %v164
  %193 = vst [vmem:[%s5 + $0x38] sm:$0xff] %v165
  %194 = vst [vmem:[%s5 + $0x40] sm:$0xff] %v166
  %195 = vst [vmem:[%s5 + $0x48] sm:$0xff] %v167
  %196 = vst [vmem:[%s5 + $0x50] sm:$0xff] %v168
  %197 = vst [vmem:[%s5 + $0x58] sm:$0xff] %v169
  %198 = vst [vmem:[%s5 + $0x60] sm:$0xff] %v170
  %199 = vst [vmem:[%s5 + $0x68] sm:$0xff] %v171
  %200 = vst [vmem:[%s5 + $0x70] sm:$0xff] %v172
  %201 = vst [vmem:[%s5 + $0x78] sm:$0xff] %v173
  %202 = vst [vmem:[%s5 + $0x80] sm:$0xff] %v174
  %203 = vst [vmem:[%s5 + $0x88] sm:$0xff] %v175
  %204 = vst [vmem:[%s5 + $0x90] sm:$0xff] %v176
  %205 = vst [vmem:[%s5 + $0x98] sm:$0xff] %v177
  %206 = vst [vmem:[%s5 + $0xa0] sm:$0xff] %v178
  %207 = vst [vmem:[%s5 + $0xa8] sm:$0xff] %v179
  %208 = vst [vmem:[%s5 + $0xb0] sm:$0xff] %v180
  %209 = vst [vmem:[%s5 + $0xb8] sm:$0xff] %v181
  %210 = vst [vmem:[%s5 + $0xc0] sm:$0xff] %v182
  %211 = vst [vmem:[%s5 + $0xc8] sm:$0xff] %v183
  %212 = vst [vmem:[%s5 + $0xd0] sm:$0xff] %v184
  %213 = vst [vmem:[%s5 + $0xd8] sm:$0xff] %v185
  // Predicated region
  $region22: #{deconv_block_with_emb.5} parent=0 // pred_check
    _
  $region23: #{deconv_block_with_emb.5} parent=0 // pred_check_branch
    %215 = sbr.rel (0) target = $region25
  $region24: #{deconv_block_with_emb.5} parent=0 // pred_region
    _
  $region25: #{deconv_block_with_emb.5} parent=0 // pred_fallthru
    _
  // Predicated region
  $region26: #{deconv_block_with_emb.5} parent=0 // pred_check
    _
  $region27: #{deconv_block_with_emb.5} parent=0 // pred_check_branch
    %217 = sbr.rel (0) target = $region29
  $region28: #{deconv_block_with_emb.5} parent=0 // pred_region
    _
  $region29: #{deconv_block_with_emb.5} parent=0 // pred_fallthru
    _

// kernel: deconv_block_with_emb.3
$region0: #{deconv_block_with_emb.3}
  #allocation0 [shape = 'u32[]', space=smem, size = 0x4, offset = 0x4, fixed_abs, tag = 'smem constant byte address 0x4 - core index']
  #allocation1 [shape = 'u32[144,128]{1,0:T(1,128)}', space=vmem, size = 0x12000, scoped, tag = 'internal scratch']
  #allocation2 [shape = 'bf16[416,4]{1,0:T(8,128)(2,1)}', space=vmem, size = 0x1a000, scoped, tag = 'scratch operand']
  #allocation3 [shape = 's32[1]{0}', space=sflag, size = 0x4, scoped, tag = 'scratch operand']
  #allocation4 [shape = 's32[]', space=sflag, size = 0x4, offset = 0, fixed_abs, tag = 'sflag constant byte address 0x0 - dummy sync flag']
  %s0 = inlined_call_operand.vmem [shape: bf16[1184,4], index: 0, kind: input, shape index: {}, may-alias: {0,1}]
  %s1 = inlined_call_operand.vmem [shape: bf16[1184,4], index: 1, kind: input, shape index: {}, may-alias: {0,1}]
  %s2 = inlined_call_operand.vmem [shape: bf16[8,32,4], index: 2, kind: input, shape index: {}]
  %s3 = inlined_call_operand.vmem [shape: f32[1,32], index: 3, kind: input, shape index: {}]
  %s4 = inlined_call_operand.vmem [shape: bf16[1024,32], index: 4, kind: output, shape index: {}]
  %s5 = sld [smem:[#allocation0]]
  $region79: #{deconv_block_with_emb.3} parent=0
    _
  %s7 = ssub.s32 1, %s5
  %s8 = scalar_select 0, %s7, %s5
  loop: start=0, step=1, limit=6
  $region2: #{deconv_block_with_emb.3} parent=0 // loop_pre_header
    _
  $region3: #{deconv_block_with_emb.3} parent=0 // loop_header
    %s10 = sphi 0, %s14
    %p11 = scmp.ge.s32.totalorder %s10, 6
    %s20 = sphi 0, %s22
    %s23 = sphi 0, %s20
    %s24 = sphi 0, %s23
    %s40 = sphi 0, %s24
    %s44 = sphi 0, %s44
    %s46 = sphi 0, %s44
    %s47 = sphi 0, %s46
    %s61 = sphi 0, %s47
    %s65 = sphi 0, %s65
    %s67 = sphi 0, %s65
    %s68 = sphi 0, %s67
    %s82 = sphi 0, %s68
    %s88 = sphi 0, %s90
    %s91 = sphi 0, %s88
    %s92 = sphi 0, %s91
    %s108 = sphi 0, %s92
  $region4: #{deconv_block_with_emb.3} parent=0 // loop_header_branch
    %13 = sbr.rel (%p11) target = $region8
  $region5: #{deconv_block_with_emb.3} parent=0 // loop_body
    %s15 = ssub.s32 %s10, 1
    %s16 = ssub.s32 %s10, 2
    %s17 = sadd.s32 %s10, 1
    %s18 = ssub.s32 %s10, %s17
    %p19 = scmp.eq.s32.totalorder %s18, 0
    %s21 = sadd.s32 %s20, 1
    %s22 = scalar_select %p19, %s20, %s21
    %p25 = pneg %p19
    %p26 = scmp.eq.s32.totalorder %s10, 3
    %p27 = por %p25, %p26
    %p28 = scmp.ne.s32.totalorder %s20, %s23
    %p29 = scmp.eq.s32.totalorder %s10, 0
    %p30 = por %p28, %p29
    %p31 = scmp.ne.s32.totalorder %s20, %s23
    %p32 = scmp.eq.s32.totalorder %s15, 3
    %p33 = por %p31, %p32
    %p34 = scmp.ne.s32.totalorder %s23, %s24
    %p35 = scmp.eq.s32.totalorder %s15, 0
    %p36 = por %p34, %p35
    %p37 = scmp.ne.s32.totalorder %s23, %s24
    %p38 = scmp.eq.s32.totalorder %s16, 3
    %p39 = por %p37, %p38
    %p41 = scmp.ne.s32.totalorder %s24, %s40
    %p42 = scmp.eq.s32.totalorder %s16, 0
    %p43 = por %p41, %p42
    %s45 = sadd.s32 %s44, 1
    %p48 = scmp.eq.s32.totalorder %s10, 3
    %p49 = scmp.ne.s32.totalorder %s44, %s46
    %p50 = scmp.eq.s32.totalorder %s10, 0
    %p51 = por %p49, %p50
    %p52 = scmp.ne.s32.totalorder %s44, %s46
    %p53 = scmp.eq.s32.totalorder %s15, 3
    %p54 = por %p52, %p53
    %p55 = scmp.ne.s32.totalorder %s46, %s47
    %p56 = scmp.eq.s32.totalorder %s15, 0
    %p57 = por %p55, %p56
    %p58 = scmp.ne.s32.totalorder %s46, %s47
    %p59 = scmp.eq.s32.totalorder %s16, 3
    %p60 = por %p58, %p59
    %p62 = scmp.ne.s32.totalorder %s47, %s61
    %p63 = scmp.eq.s32.totalorder %s16, 0
    %p64 = por %p62, %p63
    %s66 = sadd.s32 %s65, 1
    %p69 = scmp.eq.s32.totalorder %s10, 3
    %p70 = scmp.ne.s32.totalorder %s65, %s67
    %p71 = scmp.eq.s32.totalorder %s10, 0
    %p72 = por %p70, %p71
    %p73 = scmp.ne.s32.totalorder %s65, %s67
    %p74 = scmp.eq.s32.totalorder %s15, 3
    %p75 = por %p73, %p74
    %p76 = scmp.ne.s32.totalorder %s67, %s68
    %p77 = scmp.eq.s32.totalorder %s15, 0
    %p78 = por %p76, %p77
    %p79 = scmp.ne.s32.totalorder %s67, %s68
    %p80 = scmp.eq.s32.totalorder %s16, 3
    %p81 = por %p79, %p80
    %p83 = scmp.ne.s32.totalorder %s68, %s82
    %p84 = scmp.eq.s32.totalorder %s16, 0
    %p85 = por %p83, %p84
    %s86 = ssub.s32 %s10, %s17
    %p87 = scmp.eq.s32.totalorder %s86, 0
    %s89 = sadd.s32 %s88, 1
    %s90 = scalar_select %p87, %s88, %s89
    %p93 = pneg %p87
    %p94 = scmp.eq.s32.totalorder %s10, 3
    %p95 = por %p93, %p94
    %p96 = scmp.ne.s32.totalorder %s88, %s91
    %p97 = scmp.eq.s32.totalorder %s10, 0
    %p98 = por %p96, %p97
    %p99 = scmp.ne.s32.totalorder %s88, %s91
    %p100 = scmp.eq.s32.totalorder %s15, 3
    %p101 = por %p99, %p100
    %p102 = scmp.ne.s32.totalorder %s91, %s92
    %p103 = scmp.eq.s32.totalorder %s15, 0
    %p104 = por %p102, %p103
    %p105 = scmp.ne.s32.totalorder %s91, %s92
    %p106 = scmp.eq.s32.totalorder %s16, 3
    %p107 = por %p105, %p106
    %p109 = scmp.ne.s32.totalorder %s92, %s108
    %p110 = scmp.eq.s32.totalorder %s16, 0
    %p111 = por %p109, %p110
    %p112 = scmp.le.s32.totalorder 1, %s10
    %p113 = scmp.lt.s32.totalorder %s10, 5
    %p114 = pnand %p112, %p113
    %p115 = pneg %p114
    // Predicated region
    $region9: #{deconv_block_with_emb.3} parent=5 // pred_check
      _
    $region10: #{deconv_block_with_emb.3} parent=5 // pred_check_branch
      %117 = sbr.rel (%p114) target = $region12
    $region11: #{deconv_block_with_emb.3} parent=5 // pred_region
      %s118 = ssub.s32 %s10, 1
      // Predicated region
      $region13: #{deconv_block_with_emb.3} parent=11 // pred_check
        %p119 = pneg %p57
      $region14: #{deconv_block_with_emb.3} parent=11 // pred_check_branch
        %121 = sbr.rel (%p119) target = $region16
      $region15: #{deconv_block_with_emb.3} parent=11 // pred_region
        _
      $region16: #{deconv_block_with_emb.3} parent=11 // pred_fallthru
        _
      // Predicated region
      $region17: #{deconv_block_with_emb.3} parent=11 // pred_check
        %p122 = pneg %p78
      $region18: #{deconv_block_with_emb.3} parent=11 // pred_check_branch
        %124 = sbr.rel (%p122) target = $region20
      $region19: #{deconv_block_with_emb.3} parent=11 // pred_region
        _
      $region20: #{deconv_block_with_emb.3} parent=11 // pred_fallthru
        _
    $region12: #{deconv_block_with_emb.3} parent=5 // pred_fallthru
      _
    %p125 = scmp.lt.s32.totalorder %s10, 4
    // Predicated region
    $region21: #{deconv_block_with_emb.3} parent=5 // pred_check
      %p126 = pneg %p125
    $region22: #{deconv_block_with_emb.3} parent=5 // pred_check_branch
      %128 = sbr.rel (%p126) target = $region24
    $region23: #{deconv_block_with_emb.3} parent=5 // pred_region
      // Predicated region
      $region25: #{deconv_block_with_emb.3} parent=23 // pred_check
        %p129 = pneg %p30
      $region26: #{deconv_block_with_emb.3} parent=23 // pred_check_branch
        %131 = sbr.rel (%p129) target = $region28
      $region27: #{deconv_block_with_emb.3} parent=23 // pred_region
        %s132 = smul.u32 32, %s10
        %s133 = ssub.s32 148, %s132
        %p134 = scmp.lt.s32.totalorder %s133, 32
        %s135 = scalar_select %p134, %s133, 32
        %s136 = smul.u32 64, %s135
        %p137 = scmp.lt.s32.totalorder %s132, 147
        %s138 = scalar_select %p137, %s132, 147
        %s139 = smul.addr %s138, 4
        %s140 = scalar_lea.vmem %s0, %s139
        %s141 = smul.u32 32, %s10
        %s142 = ssub.s32 148, %s141
        %p143 = scmp.lt.s32.totalorder %s142, 32
        %s144 = scalar_select %p143, %s142, 32
        %s145 = smul.u32 64, %s144
      $region28: #{deconv_block_with_emb.3} parent=23 // pred_fallthru
        _
    $region24: #{deconv_block_with_emb.3} parent=5 // pred_fallthru
      _
    %p146 = scmp.le.s32.totalorder 1, %s10
    %p147 = scmp.lt.s32.totalorder %s10, 5
    %p148 = pnand %p146, %p147
    %p149 = pneg %p148
    // Predicated region
    $region29: #{deconv_block_with_emb.3} parent=5 // pred_check
      _
    $region30: #{deconv_block_with_emb.3} parent=5 // pred_check_branch
      %151 = sbr.rel (%p148) target = $region32
    $region31: #{deconv_block_with_emb.3} parent=5 // pred_region
      %s152 = ssub.s32 %s10, 1
      %s153 = smul.u32 32, %s15
      %s154 = ssub.s32 148, %s153
      %p155 = scmp.lt.s32.totalorder %s154, 32
      %s156 = scalar_select %p155, %s154, 32
      %s157 = smul.u32 64, %s156
      %p158 = scmp.lt.s32.totalorder %s153, 147
      %s159 = scalar_select %p158, %s153, 147
      %s160 = smul.addr %s159, 4
      %s161 = scalar_lea.vmem %s0, %s160
      %p162 = pneg %p36
      %p163 = pneg %p33
      %p164 = pneg %p57
      %p165 = pneg %p54
      %p166 = pneg %p78
      %p167 = pneg %p75
      %p168 = pneg %p104
      %p169 = pneg %p101
      %s170 = smul.u32 32, %s15
      %p171 = scmp.lt.s32.totalorder %s170, 127
      %s172 = scalar_select %p171, %s170, 127
      %s173 = smul.addr %s172, 4
      %s174 = scalar_lea.vmem %s4, %s173
      %s175 = smul.u32 32, %s15
      %s176 = ssub.s32 148, %s175
      %p177 = scmp.lt.s32.totalorder %s176, 32
      %s178 = scalar_select %p177, %s176, 32
      %s179 = smul.u32 64, %s178
      %p180 = scmp.lt.s32.totalorder %s175, 147
      %s181 = scalar_select %p180, %s175, 147
      %s182 = smul.addr %s181, 4
      %s183 = scalar_lea.vmem %s0, %s182
      %s184 = smul.u32 32, %s15
      %s185 = ssub.s32 148, %s184
      %p186 = scmp.lt.s32.totalorder %s185, 32
      %s187 = scalar_select %p186, %s185, 32
      %s188 = smul.u32 64, %s187
      %s189 = smul.u32 32, %s15
      %p190 = scmp.lt.s32.totalorder %s189, 127
      %s191 = scalar_select %p190, %s189, 127
      %s192 = smul.addr %s191, 4
      %s193 = scalar_lea.vmem %s4, %s192
      %s194 = smul.u32 32, %s15
      %s196 = sadd.s32 %s15, 1
      %s197 = smul.u32 %s196, 256
      %s198 = sshra.s32 %s197, 3
      %s199 = sand.u32 %s197, 7
      %s200 = smul.addr %s198, 4
      %s201 = scalar_lea.vmem %s1, %s200
      %s202 = scalar_lea.vmem [#allocation2], 128
      %p204 = scmp.lt.u32.totalorder 80, 8
      %p205 = pneg %p204
      // Predicated region
      $region33: #{deconv_block_with_emb.3} parent=31 // pred_check
        _
      $region34: #{deconv_block_with_emb.3} parent=31 // pred_check_branch
        %207 = sbr.rel (%p204) target = $region36
      $region35: #{deconv_block_with_emb.3} parent=31 // pred_region
        %s223 = sand.u32 80, 7
        %p224 = scmp.eq.s32.totalorder %s223, 0
        // Predicated region
        $region48: #{deconv_block_with_emb.3} parent=35 // pred_check
          %p225 = pneg %p224
        $region49: #{deconv_block_with_emb.3} parent=35 // pred_check_branch
          %227 = sbr.rel (%p225) target = $region51
        $region50: #{deconv_block_with_emb.3} parent=35 // pred_region
          loop: start=0, step=1, limit=1
          $region52: #{deconv_block_with_emb.3} parent=50 // loop_pre_header
            _
          $region53: #{deconv_block_with_emb.3} parent=50 // loop_header
            %s229 = sphi 0, %s233
            %p230 = scmp.ge.s32.totalorder %s229, 1
            %s234 = sphi %s201, %s201
            %s235 = sphi %s202, %s202
          $region54: #{deconv_block_with_emb.3} parent=50 // loop_header_branch
            %232 = sbr.rel (%p230) target = $region58
          $region55: #{deconv_block_with_emb.3} parent=50 // loop_body
            %v236 = vld [vmem:[%s234] sm:$0xff]
            %237 = vst [vmem:[%s235] sm:$0xff] %v236
            %v238 = vld [vmem:[%s234 + $0x8] sm:$0xff]
            %239 = vst [vmem:[%s235 + $0x8] sm:$0xff] %v238
            %v240 = vld [vmem:[%s234 + $0x10] sm:$0xff]
            %241 = vst [vmem:[%s235 + $0x10] sm:$0xff] %v240
            %v242 = vld [vmem:[%s234 + $0x18] sm:$0xff]
            %243 = vst [vmem:[%s235 + $0x18] sm:$0xff] %v242
            %v244 = vld [vmem:[%s234 + $0x20] sm:$0xff]
            %245 = vst [vmem:[%s235 + $0x20] sm:$0xff] %v244
            %v246 = vld [vmem:[%s234 + $0x28] sm:$0xff]
            %247 = vst [vmem:[%s235 + $0x28] sm:$0xff] %v246
            %v248 = vld [vmem:[%s234 + $0x30] sm:$0xff]
            %249 = vst [vmem:[%s235 + $0x30] sm:$0xff] %v248
            %v250 = vld [vmem:[%s234 + $0x38] sm:$0xff]
            %251 = vst [vmem:[%s235 + $0x38] sm:$0xff] %v250
            %v252 = vld [vmem:[%s234 + $0x40] sm:$0xff]
            %253 = vst [vmem:[%s235 + $0x40] sm:$0xff] %v252
            %v254 = vld [vmem:[%s234 + $0x48] sm:$0xff]
            %255 = vst [vmem:[%s235 + $0x48] sm:$0xff] %v254
          $region56: #{deconv_block_with_emb.3} parent=50 // loop_footer
            %s233 = sadd.s32 1, %s229
          $region57: #{deconv_block_with_emb.3} parent=50 // loop_footer_branch
            %228 = sbr.rel target = $region53
          $region58: #{deconv_block_with_emb.3} parent=50 // loop_exit
            _
        $region51: #{deconv_block_with_emb.3} parent=35 // pred_fallthru
          _
        %p256 = pneg %p224
        // Predicated region
        $region59: #{deconv_block_with_emb.3} parent=35 // pred_check
          _
        $region60: #{deconv_block_with_emb.3} parent=35 // pred_check_branch
          %258 = sbr.rel (%p224) target = $region62
        $region61: #{deconv_block_with_emb.3} parent=35 // pred_region
          %s259 = sand.u32 80, 7
        $region62: #{deconv_block_with_emb.3} parent=35 // pred_fallthru
          _
      $region36: #{deconv_block_with_emb.3} parent=31 // pred_fallthru
        _
      // Predicated region
      $region37: #{deconv_block_with_emb.3} parent=31 // pred_check
        %p208 = pneg %p204
      $region38: #{deconv_block_with_emb.3} parent=31 // pred_check_branch
        %210 = sbr.rel (%p208) target = $region40
      $region39: #{deconv_block_with_emb.3} parent=31 // pred_region
        %s211 = sshll.u32 1, 80
        %s212 = ssub.s32 %s211, 1
        loop: start=0, step=1, limit=1
        $region41: #{deconv_block_with_emb.3} parent=39 // loop_pre_header
          _
        $region42: #{deconv_block_with_emb.3} parent=39 // loop_header
          %s214 = sphi 0, %s218
          %p215 = scmp.ge.s32.totalorder %s214, 1
          %s219 = sphi %s201, %s201
          %s220 = sphi %s202, %s202
        $region43: #{deconv_block_with_emb.3} parent=39 // loop_header_branch
          %217 = sbr.rel (%p215) target = $region47
        $region44: #{deconv_block_with_emb.3} parent=39 // loop_body
          %v221 = vld [vmem:[%s219] sm:%s212]
          %222 = vst [vmem:[%s220] sm:%s212] %v221
        $region45: #{deconv_block_with_emb.3} parent=39 // loop_footer
          %s218 = sadd.s32 1, %s214
        $region46: #{deconv_block_with_emb.3} parent=39 // loop_footer_branch
          %213 = sbr.rel target = $region42
        $region47: #{deconv_block_with_emb.3} parent=39 // loop_exit
          _
      $region40: #{deconv_block_with_emb.3} parent=31 // pred_fallthru
        _
      // Predicated region
      $region63: #{deconv_block_with_emb.3} parent=31 // pred_check
        _
      $region64: #{deconv_block_with_emb.3} parent=31 // pred_check_branch
        %262 = sbr.rel (0) target = $region66
      $region65: #{deconv_block_with_emb.3} parent=31 // pred_region
        %263 = vsyncadd [#allocation3], 1280
      $region66: #{deconv_block_with_emb.3} parent=31 // pred_fallthru
        _
      %v264 = vld [vmem:[%s183] sm:$0xf]
      %v265 = vld [vmem:[%s183 + $0x4] sm:$0xf]
      %v266 = vld [vmem:[%s183 + $0x8] sm:$0xf]
      %v267 = vld [vmem:[%s183 + $0xc] sm:$0xf]
      %v268 = vld [vmem:[%s183 + $0x10] sm:$0xf]
      %v269 = vld [vmem:[%s183 + $0x14] sm:$0xf]
      %v270 = vld [vmem:[%s183 + $0x18] sm:$0xf]
      %v271 = vld [vmem:[%s183 + $0x1c] sm:$0xf]
      %v272 = vld [vmem:[%s183 + $0x20] sm:$0xf]
      %v273 = vld [vmem:[%s183 + $0x24] sm:$0xf]
      %v274 = vld [vmem:[%s183 + $0x28] sm:$0xf]
      %v275 = vld [vmem:[%s183 + $0x2c] sm:$0xf]
      %v276 = vld [vmem:[%s183 + $0x30] sm:$0xf]
      %v277 = vld [vmem:[%s183 + $0x34] sm:$0xf]
      %v278 = vld [vmem:[%s183 + $0x38] sm:$0xf]
      %v279 = vld [vmem:[%s183 + $0x3c] sm:$0xf]
      %v280 = vld [vmem:[%s183 + $0x40] sm:$0xf]
      %v281 = vld [vmem:[%s183 + $0x44] sm:$0xf]
      %v282 = vld [vmem:[%s183 + $0x48] sm:$0xf]
      %v283 = vld [vmem:[%s183 + $0x4c] sm:$0xf]
      %v284 = vld [vmem:[%s183 + $0x50] sm:$0xf]
      %v285 = vld [vmem:[%s183 + $0x54] sm:$0xf]
      %v286 = vld [vmem:[%s183 + $0x58] sm:$0xf]
      %v287 = vld [vmem:[%s183 + $0x5c] sm:$0xf]
      %v288 = vld [vmem:[%s183 + $0x60] sm:$0xf]
      %v289 = vld [vmem:[%s183 + $0x64] sm:$0xf]
      %v290 = vld [vmem:[%s183 + $0x68] sm:$0xf]
      %v291 = vld [vmem:[%s183 + $0x6c] sm:$0xf]
      %v292 = vld [vmem:[%s183 + $0x70] sm:$0xf]
      %v293 = vld [vmem:[%s183 + $0x74] sm:$0xf]
      %v294 = vld [vmem:[%s183 + $0x78] sm:$0xf]
      %v295 = vld [vmem:[%s183 + $0x7c] sm:$0xf]
      %v296 = vmax.bf16 %v264, 0
      %v297 = vmax.bf16 %v265, 0
      %v298 = vmax.bf16 %v266, 0
      %v299 = vmax.bf16 %v267, 0
      %v300 = vmax.bf16 %v268, 0
      %v301 = vmax.bf16 %v269, 0
      %v302 = vmax.bf16 %v270, 0
      %v303 = vmax.bf16 %v271, 0
      %v304 = vmax.bf16 %v272, 0
      %v305 = vmax.bf16 %v273, 0
      %v306 = vmax.bf16 %v274, 0
      %v307 = vmax.bf16 %v275, 0
      %v308 = vmax.bf16 %v276, 0
      %v309 = vmax.bf16 %v277, 0
      %v310 = vmax.bf16 %v278, 0
      %v311 = vmax.bf16 %v279, 0
      %v312 = vmax.bf16 %v280, 0
      %v313 = vmax.bf16 %v281, 0
      %v314 = vmax.bf16 %v282, 0
      %v315 = vmax.bf16 %v283, 0
      %v316 = vmax.bf16 %v284, 0
      %v317 = vmax.bf16 %v285, 0
      %v318 = vmax.bf16 %v286, 0
      %v319 = vmax.bf16 %v287, 0
      %v320 = vmax.bf16 %v288, 0
      %v321 = vmax.bf16 %v289, 0
      %v322 = vmax.bf16 %v290, 0
      %v323 = vmax.bf16 %v291, 0
      %v324 = vmax.bf16 %v292, 0
      %v325 = vmax.bf16 %v293, 0
      %v326 = vmax.bf16 %v294, 0
      %v327 = vmax.bf16 %v295, 0
      %vm328 = vcmask 27648
      %329 = vst.msk [vmem:[#allocation2] sm:$0xf] %vm328, %v296
      %330 = vst.msk [vmem:[#allocation2 + $0x4] sm:$0xf] %vm328, %v297
      %331 = vst.msk [vmem:[#allocation2 + $0x8] sm:$0xf] %vm328, %v298
      %332 = vst.msk [vmem:[#allocation2 + $0xc] sm:$0xf] %vm328, %v299
      %333 = vst.msk [vmem:[#allocation2 + $0x10] sm:$0xf] %vm328, %v300
      %334 = vst.msk [vmem:[#allocation2 + $0x14] sm:$0xf] %vm328, %v301
      %335 = vst.msk [vmem:[#allocation2 + $0x18] sm:$0xf] %vm328, %v302
      %336 = vst.msk [vmem:[#allocation2 + $0x1c] sm:$0xf] %vm328, %v303
      %337 = vst.msk [vmem:[#allocation2 + $0x20] sm:$0xf] %vm328, %v304
      %338 = vst.msk [vmem:[#allocation2 + $0x24] sm:$0xf] %vm328, %v305
      %339 = vst.msk [vmem:[#allocation2 + $0x28] sm:$0xf] %vm328, %v306
      %340 = vst.msk [vmem:[#allocation2 + $0x2c] sm:$0xf] %vm328, %v307
      %341 = vst.msk [vmem:[#allocation2 + $0x30] sm:$0xf] %vm328, %v308
      %342 = vst.msk [vmem:[#allocation2 + $0x34] sm:$0xf] %vm328, %v309
      %343 = vst.msk [vmem:[#allocation2 + $0x38] sm:$0xf] %vm328, %v310
      %344 = vst.msk [vmem:[#allocation2 + $0x3c] sm:$0xf] %vm328, %v311
      %345 = vst.msk [vmem:[#allocation2 + $0x40] sm:$0xf] %vm328, %v312
      %346 = vst.msk [vmem:[#allocation2 + $0x44] sm:$0xf] %vm328, %v313
      %347 = vst.msk [vmem:[#allocation2 + $0x48] sm:$0xf] %vm328, %v314
      %348 = vst.msk [vmem:[#allocation2 + $0x4c] sm:$0xf] %vm328, %v315
      %349 = vst.msk [vmem:[#allocation2 + $0x50] sm:$0xf] %vm328, %v316
      %350 = vst.msk [vmem:[#allocation2 + $0x54] sm:$0xf] %vm328, %v317
      %351 = vst.msk [vmem:[#allocation2 + $0x58] sm:$0xf] %vm328, %v318
      %352 = vst.msk [vmem:[#allocation2 + $0x5c] sm:$0xf] %vm328, %v319
      %353 = vst.msk [vmem:[#allocation2 + $0x60] sm:$0xf] %vm328, %v320
      %354 = vst.msk [vmem:[#allocation2 + $0x64] sm:$0xf] %vm328, %v321
      %355 = vst.msk [vmem:[#allocation2 + $0x68] sm:$0xf] %vm328, %v322
      %356 = vst.msk [vmem:[#allocation2 + $0x6c] sm:$0xf] %vm328, %v323
      %357 = vst.msk [vmem:[#allocation2 + $0x70] sm:$0xf] %vm328, %v324
      %358 = vst.msk [vmem:[#allocation2 + $0x74] sm:$0xf] %vm328, %v325
      %359 = vst.msk [vmem:[#allocation2 + $0x78] sm:$0xf] %vm328, %v326
      %360 = vst.msk [vmem:[#allocation2 + $0x7c] sm:$0xf] %vm328, %v327
      %s361 = smul.u32 4, 20
      %s362 = smul.u32 %s361, 1
      %s363 = sshll.u32 %s362, 4
      %364 = dma.done [#allocation3], %s363
      %v365 = vld [vmem:[#allocation2 + $0x80] sm:$0xf]
      %v366 = vld [vmem:[#allocation2 + $0x84] sm:$0xf]
      %v367 = vld [vmem:[#allocation2 + $0x88] sm:$0xf]
      %v368 = vld [vmem:[#allocation2 + $0x8c] sm:$0xf]
      %v369 = vld [vmem:[#allocation2 + $0x90] sm:$0xf]
      %v370 = vld [vmem:[#allocation2 + $0x94] sm:$0xf]
      %v371 = vld [vmem:[#allocation2 + $0x98] sm:$0xf]
      %v372 = vld [vmem:[#allocation2 + $0x9c] sm:$0xf]
      %v373 = vld [vmem:[#allocation2 + $0xa0] sm:$0xf]
      %v374 = vld [vmem:[#allocation2 + $0xa4] sm:$0xf]
      %v375 = vld [vmem:[#allocation2 + $0xa8] sm:$0xf]
      %v376 = vld [vmem:[#allocation2 + $0xac] sm:$0xf]
      %v377 = vld [vmem:[#allocation2 + $0xb0] sm:$0xf]
      %v378 = vld [vmem:[#allocation2 + $0xb4] sm:$0xf]
      %v379 = vld [vmem:[#allocation2 + $0xb8] sm:$0xf]
      %v380 = vld [vmem:[#allocation2 + $0xbc] sm:$0xf]
      %v381 = vld [vmem:[#allocation2 + $0xc0] sm:$0xf]
      %v382 = vld [vmem:[#allocation2 + $0xc4] sm:$0xf]
      %v383 = vld [vmem:[#allocation2 + $0xc8] sm:$0xf]
      %v384 = vld [vmem:[#allocation2 + $0xcc] sm:$0xf]
      %v385 = vmax.bf16 %v365, 0
      %v386 = vmax.bf16 %v366, 0
      %v387 = vmax.bf16 %v367, 0
      %v388 = vmax.bf16 %v368, 0
      %v389 = vmax.bf16 %v369, 0
      %v390 = vmax.bf16 %v370, 0
      %v391 = vmax.bf16 %v371, 0
      %v392 = vmax.bf16 %v372, 0
      %v393 = vmax.bf16 %v373, 0
      %v394 = vmax.bf16 %v374, 0
      %v395 = vmax.bf16 %v375, 0
      %v396 = vmax.bf16 %v376, 0
      %v397 = vmax.bf16 %v377, 0
      %v398 = vmax.bf16 %v378, 0
      %v399 = vmax.bf16 %v379, 0
      %v400 = vmax.bf16 %v380, 0
      %v401 = vmax.bf16 %v381, 0
      %v402 = vmax.bf16 %v382, 0
      %v403 = vmax.bf16 %v383, 0
      %v404 = vmax.bf16 %v384, 0
      %405 = vst.msk [vmem:[#allocation2 + $0x80] sm:$0xf] %vm328, %v385
      %406 = vst.msk [vmem:[#allocation2 + $0x84] sm:$0xf] %vm328, %v386
      %407 = vst.msk [vmem:[#allocation2 + $0x88] sm:$0xf] %vm328, %v387
      %408 = vst.msk [vmem:[#allocation2 + $0x8c] sm:$0xf] %vm328, %v388
      %409 = vst.msk [vmem:[#allocation2 + $0x90] sm:$0xf] %vm328, %v389
      %410 = vst.msk [vmem:[#allocation2 + $0x94] sm:$0xf] %vm328, %v390
      %411 = vst.msk [vmem:[#allocation2 + $0x98] sm:$0xf] %vm328, %v391
      %412 = vst.msk [vmem:[#allocation2 + $0x9c] sm:$0xf] %vm328, %v392
      %413 = vst.msk [vmem:[#allocation2 + $0xa0] sm:$0xf] %vm328, %v393
      %414 = vst.msk [vmem:[#allocation2 + $0xa4] sm:$0xf] %vm328, %v394
      %415 = vst.msk [vmem:[#allocation2 + $0xa8] sm:$0xf] %vm328, %v395
      %416 = vst.msk [vmem:[#allocation2 + $0xac] sm:$0xf] %vm328, %v396
      %417 = vst.msk [vmem:[#allocation2 + $0xb0] sm:$0xf] %vm328, %v397
      %418 = vst.msk [vmem:[#allocation2 + $0xb4] sm:$0xf] %vm328, %v398
      %419 = vst.msk [vmem:[#allocation2 + $0xb8] sm:$0xf] %vm328, %v399
      %420 = vst.msk [vmem:[#allocation2 + $0xbc] sm:$0xf] %vm328, %v400
      %421 = vst.msk [vmem:[#allocation2 + $0xc0] sm:$0xf] %vm328, %v401
      %422 = vst.msk [vmem:[#allocation2 + $0xc4] sm:$0xf] %vm328, %v402
      %423 = vst.msk [vmem:[#allocation2 + $0xc8] sm:$0xf] %vm328, %v403
      %424 = vst.msk [vmem:[#allocation2 + $0xcc] sm:$0xf] %vm328, %v404
      %v425 = vld [vmem:[#allocation2] sm:$0xf]
      %v426 = vld [vmem:[#allocation2 + $0x4] sm:$0xf]
      %v427 = vld [vmem:[#allocation2 + $0x8] sm:$0xf]
      %v428 = vld [vmem:[#allocation2 + $0xc] sm:$0xf]
      %v429 = vld [vmem:[#allocation2 + $0x10] sm:$0xf]
      %v430 = vld [vmem:[#allocation2 + $0x14] sm:$0xf]
      %v431 = vld [vmem:[#allocation2 + $0x18] sm:$0xf]
      %v432 = vld [vmem:[#allocation2 + $0x1c] sm:$0xf]
      %v433 = vld [vmem:[#allocation2 + $0x20] sm:$0xf]
      %v434 = vld [vmem:[#allocation2 + $0x24] sm:$0xf]
      %v435 = vld [vmem:[#allocation2 + $0x28] sm:$0xf]
      %v436 = vld [vmem:[#allocation2 + $0x2c] sm:$0xf]
      %v437 = vld [vmem:[#allocation2 + $0x30] sm:$0xf]
      %v438 = vld [vmem:[#allocation2 + $0x34] sm:$0xf]
      %v439 = vld [vmem:[#allocation2 + $0x38] sm:$0xf]
      %v440 = vld [vmem:[#allocation2 + $0x3c] sm:$0xf]
      %v441 = vld [vmem:[#allocation2 + $0x40] sm:$0xf]
      %v442 = vld [vmem:[#allocation2 + $0x44] sm:$0xf]
      %v443 = vld [vmem:[#allocation2 + $0x48] sm:$0xf]
      %v444 = vld [vmem:[#allocation2 + $0x4c] sm:$0xf]
      %v445 = vld [vmem:[#allocation2 + $0x50] sm:$0xf]
      %v446 = vld [vmem:[#allocation2 + $0x54] sm:$0xf]
      %v447 = vld [vmem:[#allocation2 + $0x58] sm:$0xf]
      %v448 = vld [vmem:[#allocation2 + $0x5c] sm:$0xf]
      %v449 = vld [vmem:[#allocation2 + $0x60] sm:$0xf]
      %v450 = vld [vmem:[#allocation2 + $0x64] sm:$0xf]
      %v451 = vld [vmem:[#allocation2 + $0x68] sm:$0xf]
      %v452 = vld [vmem:[#allocation2 + $0x6c] sm:$0xf]
      %v453 = vld [vmem:[#allocation2 + $0x70] sm:$0xf]
      %v454 = vld [vmem:[#allocation2 + $0x74] sm:$0xf]
      %v455 = vld [vmem:[#allocation2 + $0x78] sm:$0xf]
      %v456 = vld [vmem:[#allocation2 + $0x7c] sm:$0xf]
      %v457 = vld [vmem:[#allocation2 + $0x80] sm:$0x1]
      %v458 = vld [vmem:[#allocation2 + $0x80] sm:$0xf]
      %v459 = vld [vmem:[#allocation2 + $0x84] sm:$0x1]
      %v460 = vld [vmem:[#allocation2 + $0x84] sm:$0xf]
      %v461 = vld [vmem:[#allocation2 + $0x88] sm:$0xf]
      %v462 = vld [vmem:[#allocation2 + $0x8c] sm:$0xf]
      %v463 = vld [vmem:[#allocation2 + $0x90] sm:$0xf]
      %v464 = vld [vmem:[#allocation2 + $0x94] sm:$0xf]
      %v465 = vld [vmem:[#allocation2 + $0x98] sm:$0xf]
      %v466 = vld [vmem:[#allocation2 + $0x9c] sm:$0xf]
      %v467 = vld [vmem:[#allocation2 + $0xa0] sm:$0x1]
      %v468 = vld [vmem:[#allocation2 + $0xa0] sm:$0xf]
      %v469 = vld [vmem:[#allocation2 + $0xa4] sm:$0x1]
      %v502 = vunpack.c.l.b16 %v425
      %v503 = vunpack.c.l.b16 %v426
      %v504 = vunpack.c.l.b16 %v427
      %v505 = vunpack.c.l.b16 %v428
      %v506 = vunpack.c.l.b16 %v429
      %v507 = vunpack.c.l.b16 %v430
      %v508 = vunpack.c.l.b16 %v431
      %v509 = vunpack.c.l.b16 %v432
      %v510 = vunpack.c.l.b16 %v433
      %v511 = vunpack.c.l.b16 %v434
      %v512 = vunpack.c.l.b16 %v435
      %v513 = vunpack.c.l.b16 %v436
      %v514 = vunpack.c.l.b16 %v437
      %v515 = vunpack.c.l.b16 %v438
      %v516 = vunpack.c.l.b16 %v439
      %v517 = vunpack.c.l.b16 %v440
      %v518 = vunpack.c.l.b16 %v441
      %v519 = vunpack.c.l.b16 %v442
      %v520 = vunpack.c.l.b16 %v443
      %v521 = vunpack.c.l.b16 %v444
      %v522 = vunpack.c.l.b16 %v445
      %v523 = vunpack.c.l.b16 %v446
      %v524 = vunpack.c.l.b16 %v447
      %v525 = vunpack.c.l.b16 %v448
      %v526 = vunpack.c.l.b16 %v449
      %v527 = vunpack.c.l.b16 %v450
      %v528 = vunpack.c.l.b16 %v451
      %v529 = vunpack.c.l.b16 %v452
      %v530 = vunpack.c.l.b16 %v453
      %v531 = vunpack.c.l.b16 %v454
      %v532 = vunpack.c.l.b16 %v455
      %v533 = vunpack.c.l.b16 %v456
      %v534 = vpack.c.b16 %v503, %v502
      %v535 = vpack.c.b16 %v505, %v504
      %v536 = vpack.c.b16 %v507, %v506
      %v537 = vpack.c.b16 %v509, %v508
      %v538 = vpack.c.b16 %v511, %v510
      %v539 = vpack.c.b16 %v513, %v512
      %v540 = vpack.c.b16 %v515, %v514
      %v541 = vpack.c.b16 %v517, %v516
      %v542 = vpack.c.b16 %v519, %v518
      %v543 = vpack.c.b16 %v521, %v520
      %v544 = vpack.c.b16 %v523, %v522
      %v545 = vpack.c.b16 %v525, %v524
      %v546 = vpack.c.b16 %v527, %v526
      %v547 = vpack.c.b16 %v529, %v528
      %v548 = vpack.c.b16 %v531, %v530
      %v549 = vpack.c.b16 %v533, %v532
      %v551 = vunpack.c.l.b16 %v457
      %v552 = vpack.c.b16 %v551, %v551
      %vm553 = vsmask.f32 7424
      %v555 = vshrl.u32 %v534, 16
      %v557 = vshll.u32 %v534, 16
      %v559 = vrot.slane %v557, 1
      %v560 = vor.u32 %v555, %v559
      %v562 = vshll.u32 %v535, 16
      %v564 = vrot.slane %v562, 1
      %v565 = vsel %vm553, %v560, %v564
      %v566 = vshrl.u32 %v535, 16
      %v568 = vor.u32 %v566, %v564
      %v570 = vshll.u32 %v536, 16
      %v572 = vrot.slane %v570, 1
      %v573 = vsel %vm553, %v568, %v572
      %v574 = vshrl.u32 %v536, 16
      %v576 = vor.u32 %v574, %v572
      %v578 = vshll.u32 %v537, 16
      %v580 = vrot.slane %v578, 1
      %v581 = vsel %vm553, %v576, %v580
      %v582 = vshrl.u32 %v537, 16
      %v584 = vor.u32 %v582, %v580
      %v586 = vshll.u32 %v538, 16
      %v588 = vrot.slane %v586, 1
      %v589 = vsel %vm553, %v584, %v588
      %v590 = vshrl.u32 %v538, 16
      %v592 = vor.u32 %v590, %v588
      %v594 = vshll.u32 %v539, 16
      %v596 = vrot.slane %v594, 1
      %v597 = vsel %vm553, %v592, %v596
      %v598 = vshrl.u32 %v539, 16
      %v600 = vor.u32 %v598, %v596
      %v602 = vshll.u32 %v540, 16
      %v604 = vrot.slane %v602, 1
      %v605 = vsel %vm553, %v600, %v604
      %v606 = vshrl.u32 %v540, 16
      %v608 = vor.u32 %v606, %v604
      %v610 = vshll.u32 %v541, 16
      %v612 = vrot.slane %v610, 1
      %v613 = vsel %vm553, %v608, %v612
      %v614 = vshrl.u32 %v541, 16
      %v616 = vor.u32 %v614, %v612
      %v618 = vshll.u32 %v542, 16
      %v620 = vrot.slane %v618, 1
      %v621 = vsel %vm553, %v616, %v620
      %v622 = vshrl.u32 %v542, 16
      %v624 = vor.u32 %v622, %v620
      %v626 = vshll.u32 %v543, 16
      %v628 = vrot.slane %v626, 1
      %v629 = vsel %vm553, %v624, %v628
      %v630 = vshrl.u32 %v543, 16
      %v632 = vor.u32 %v630, %v628
      %v634 = vshll.u32 %v544, 16
      %v636 = vrot.slane %v634, 1
      %v637 = vsel %vm553, %v632, %v636
      %v638 = vshrl.u32 %v544, 16
      %v640 = vor.u32 %v638, %v636
      %v642 = vshll.u32 %v545, 16
      %v644 = vrot.slane %v642, 1
      %v645 = vsel %vm553, %v640, %v644
      %v646 = vshrl.u32 %v545, 16
      %v648 = vor.u32 %v646, %v644
      %v650 = vshll.u32 %v546, 16
      %v652 = vrot.slane %v650, 1
      %v653 = vsel %vm553, %v648, %v652
      %v654 = vshrl.u32 %v546, 16
      %v656 = vor.u32 %v654, %v652
      %v658 = vshll.u32 %v547, 16
      %v660 = vrot.slane %v658, 1
      %v661 = vsel %vm553, %v656, %v660
      %v662 = vshrl.u32 %v547, 16
      %v664 = vor.u32 %v662, %v660
      %v666 = vshll.u32 %v548, 16
      %v668 = vrot.slane %v666, 1
      %v669 = vsel %vm553, %v664, %v668
      %v670 = vshrl.u32 %v548, 16
      %v672 = vor.u32 %v670, %v668
      %v674 = vshll.u32 %v549, 16
      %v676 = vrot.slane %v674, 1
      %v677 = vsel %vm553, %v672, %v676
      %v678 = vshrl.u32 %v549, 16
      %v680 = vor.u32 %v678, %v676
      %v682 = vshll.u32 %v552, 16
      %v684 = vrot.slane %v682, 1
      %v685 = vsel %vm553, %v680, %v684
      %686 = vrot.lane.b32.xlu0 %v565, 4
      %v687 = vpop.permute.xlu0 %686
      %688 = vrot.lane.b32.xlu0 %v573, 4
      %v689 = vpop.permute.xlu0 %688
      %690 = vrot.lane.b32.xlu0 %v581, 4
      %v691 = vpop.permute.xlu0 %690
      %692 = vrot.lane.b32.xlu0 %v589, 4
      %v693 = vpop.permute.xlu0 %692
      %694 = vrot.lane.b32.xlu0 %v597, 4
      %v695 = vpop.permute.xlu0 %694
      %696 = vrot.lane.b32.xlu0 %v605, 4
      %v697 = vpop.permute.xlu0 %696
      %698 = vrot.lane.b32.xlu0 %v613, 4
      %v699 = vpop.permute.xlu0 %698
      %700 = vrot.lane.b32.xlu0 %v621, 4
      %v701 = vpop.permute.xlu0 %700
      %702 = vrot.lane.b32.xlu0 %v629, 4
      %v703 = vpop.permute.xlu0 %702
      %704 = vrot.lane.b32.xlu0 %v637, 4
      %v705 = vpop.permute.xlu0 %704
      %706 = vrot.lane.b32.xlu0 %v645, 4
      %v707 = vpop.permute.xlu0 %706
      %708 = vrot.lane.b32.xlu0 %v653, 4
      %v709 = vpop.permute.xlu0 %708
      %710 = vrot.lane.b32.xlu0 %v661, 4
      %v711 = vpop.permute.xlu0 %710
      %712 = vrot.lane.b32.xlu0 %v669, 4
      %v713 = vpop.permute.xlu0 %712
      %714 = vrot.lane.b32.xlu0 %v677, 4
      %v715 = vpop.permute.xlu0 %714
      %716 = vrot.lane.b32.xlu0 %v685, 4
      %v717 = vpop.permute.xlu0 %716
      %v719 = vunpack.c.l.b16 %v458
      %v720 = vpack.c.b16 %v504, %v503
      %v721 = vpack.c.b16 %v506, %v505
      %v722 = vpack.c.b16 %v508, %v507
      %v723 = vpack.c.b16 %v510, %v509
      %v724 = vpack.c.b16 %v512, %v511
      %v725 = vpack.c.b16 %v514, %v513
      %v726 = vpack.c.b16 %v516, %v515
      %v727 = vpack.c.b16 %v518, %v517
      %v728 = vpack.c.b16 %v520, %v519
      %v729 = vpack.c.b16 %v522, %v521
      %v730 = vpack.c.b16 %v524, %v523
      %v731 = vpack.c.b16 %v526, %v525
      %v732 = vpack.c.b16 %v528, %v527
      %v733 = vpack.c.b16 %v530, %v529
      %v734 = vpack.c.b16 %v532, %v531
      %v735 = vpack.c.b16 %v719, %v533
      %736 = vrot.lane.b32.xlu0 %v720, 8
      %v737 = vpop.permute.xlu0 %736
      %738 = vrot.lane.b32.xlu0 %v721, 8
      %v739 = vpop.permute.xlu0 %738
      %740 = vrot.lane.b32.xlu0 %v722, 8
      %v741 = vpop.permute.xlu0 %740
      %742 = vrot.lane.b32.xlu0 %v723, 8
      %v743 = vpop.permute.xlu0 %742
      %744 = vrot.lane.b32.xlu0 %v724, 8
      %v745 = vpop.permute.xlu0 %744
      %746 = vrot.lane.b32.xlu0 %v725, 8
      %v747 = vpop.permute.xlu0 %746
      %748 = vrot.lane.b32.xlu0 %v726, 8
      %v749 = vpop.permute.xlu0 %748
      %750 = vrot.lane.b32.xlu0 %v727, 8
      %v751 = vpop.permute.xlu0 %750
      %752 = vrot.lane.b32.xlu0 %v728, 8
      %v753 = vpop.permute.xlu0 %752
      %754 = vrot.lane.b32.xlu0 %v729, 8
      %v755 = vpop.permute.xlu0 %754
      %756 = vrot.lane.b32.xlu0 %v730, 8
      %v757 = vpop.permute.xlu0 %756
      %758 = vrot.lane.b32.xlu0 %v731, 8
      %v759 = vpop.permute.xlu0 %758
      %760 = vrot.lane.b32.xlu0 %v732, 8
      %v761 = vpop.permute.xlu0 %760
      %762 = vrot.lane.b32.xlu0 %v733, 8
      %v763 = vpop.permute.xlu0 %762
      %764 = vrot.lane.b32.xlu0 %v734, 8
      %v765 = vpop.permute.xlu0 %764
      %766 = vrot.lane.b32.xlu0 %v735, 8
      %v767 = vpop.permute.xlu0 %766
      %v769 = vunpack.c.l.b16 %v459
      %v770 = vpack.c.b16 %v769, %v769
      %v772 = vshrl.u32 %v720, 16
      %v774 = vshll.u32 %v720, 16
      %v776 = vrot.slane %v774, 1
      %v777 = vor.u32 %v772, %v776
      %v779 = vshll.u32 %v721, 16
      %v781 = vrot.slane %v779, 1
      %v782 = vsel %vm553, %v777, %v781
      %v783 = vshrl.u32 %v721, 16
      %v785 = vor.u32 %v783, %v781
      %v787 = vshll.u32 %v722, 16
      %v789 = vrot.slane %v787, 1
      %v790 = vsel %vm553, %v785, %v789
      %v791 = vshrl.u32 %v722, 16
      %v793 = vor.u32 %v791, %v789
      %v795 = vshll.u32 %v723, 16
      %v797 = vrot.slane %v795, 1
      %v798 = vsel %vm553, %v793, %v797
      %v799 = vshrl.u32 %v723, 16
      %v801 = vor.u32 %v799, %v797
      %v803 = vshll.u32 %v724, 16
      %v805 = vrot.slane %v803, 1
      %v806 = vsel %vm553, %v801, %v805
      %v807 = vshrl.u32 %v724, 16
      %v809 = vor.u32 %v807, %v805
      %v811 = vshll.u32 %v725, 16
      %v813 = vrot.slane %v811, 1
      %v814 = vsel %vm553, %v809, %v813
      %v815 = vshrl.u32 %v725, 16
      %v817 = vor.u32 %v815, %v813
      %v819 = vshll.u32 %v726, 16
      %v821 = vrot.slane %v819, 1
      %v822 = vsel %vm553, %v817, %v821
      %v823 = vshrl.u32 %v726, 16
      %v825 = vor.u32 %v823, %v821
      %v827 = vshll.u32 %v727, 16
      %v829 = vrot.slane %v827, 1
      %v830 = vsel %vm553, %v825, %v829
      %v831 = vshrl.u32 %v727, 16
      %v833 = vor.u32 %v831, %v829
      %v835 = vshll.u32 %v728, 16
      %v837 = vrot.slane %v835, 1
      %v838 = vsel %vm553, %v833, %v837
      %v839 = vshrl.u32 %v728, 16
      %v841 = vor.u32 %v839, %v837
      %v843 = vshll.u32 %v729, 16
      %v845 = vrot.slane %v843, 1
      %v846 = vsel %vm553, %v841, %v845
      %v847 = vshrl.u32 %v729, 16
      %v849 = vor.u32 %v847, %v845
      %v851 = vshll.u32 %v730, 16
      %v853 = vrot.slane %v851, 1
      %v854 = vsel %vm553, %v849, %v853
      %v855 = vshrl.u32 %v730, 16
      %v857 = vor.u32 %v855, %v853
      %v859 = vshll.u32 %v731, 16
      %v861 = vrot.slane %v859, 1
      %v862 = vsel %vm553, %v857, %v861
      %v863 = vshrl.u32 %v731, 16
      %v865 = vor.u32 %v863, %v861
      %v867 = vshll.u32 %v732, 16
      %v869 = vrot.slane %v867, 1
      %v870 = vsel %vm553, %v865, %v869
      %v871 = vshrl.u32 %v732, 16
      %v873 = vor.u32 %v871, %v869
      %v875 = vshll.u32 %v733, 16
      %v877 = vrot.slane %v875, 1
      %v878 = vsel %vm553, %v873, %v877
      %v879 = vshrl.u32 %v733, 16
      %v881 = vor.u32 %v879, %v877
      %v883 = vshll.u32 %v734, 16
      %v885 = vrot.slane %v883, 1
      %v886 = vsel %vm553, %v881, %v885
      %v887 = vshrl.u32 %v734, 16
      %v889 = vor.u32 %v887, %v885
      %v891 = vshll.u32 %v735, 16
      %v893 = vrot.slane %v891, 1
      %v894 = vsel %vm553, %v889, %v893
      %v895 = vshrl.u32 %v735, 16
      %v897 = vor.u32 %v895, %v893
      %v899 = vshll.u32 %v770, 16
      %v901 = vrot.slane %v899, 1
      %v902 = vsel %vm553, %v897, %v901
      %903 = vrot.lane.b32.xlu0 %v782, 12
      %v904 = vpop.permute.xlu0 %903
      %905 = vrot.lane.b32.xlu0 %v790, 12
      %v906 = vpop.permute.xlu0 %905
      %907 = vrot.lane.b32.xlu0 %v798, 12
      %v908 = vpop.permute.xlu0 %907
      %909 = vrot.lane.b32.xlu0 %v806, 12
      %v910 = vpop.permute.xlu0 %909
      %911 = vrot.lane.b32.xlu0 %v814, 12
      %v912 = vpop.permute.xlu0 %911
      %913 = vrot.lane.b32.xlu0 %v822, 12
      %v914 = vpop.permute.xlu0 %913
      %915 = vrot.lane.b32.xlu0 %v830, 12
      %v916 = vpop.permute.xlu0 %915
      %917 = vrot.lane.b32.xlu0 %v838, 12
      %v918 = vpop.permute.xlu0 %917
      %919 = vrot.lane.b32.xlu0 %v846, 12
      %v920 = vpop.permute.xlu0 %919
      %921 = vrot.lane.b32.xlu0 %v854, 12
      %v922 = vpop.permute.xlu0 %921
      %923 = vrot.lane.b32.xlu0 %v862, 12
      %v924 = vpop.permute.xlu0 %923
      %925 = vrot.lane.b32.xlu0 %v870, 12
      %v926 = vpop.permute.xlu0 %925
      %927 = vrot.lane.b32.xlu0 %v878, 12
      %v928 = vpop.permute.xlu0 %927
      %929 = vrot.lane.b32.xlu0 %v886, 12
      %v930 = vpop.permute.xlu0 %929
      %931 = vrot.lane.b32.xlu0 %v894, 12
      %v932 = vpop.permute.xlu0 %931
      %933 = vrot.lane.b32.xlu0 %v902, 12
      %v934 = vpop.permute.xlu0 %933
      %v942 = vunpack.c.l.b16 %v460
      %v943 = vunpack.c.l.b16 %v461
      %v944 = vunpack.c.l.b16 %v462
      %v945 = vunpack.c.l.b16 %v463
      %v946 = vunpack.c.l.b16 %v464
      %v947 = vunpack.c.l.b16 %v465
      %v948 = vunpack.c.l.b16 %v466
      %v949 = vpack.c.b16 %v942, %v719
      %v950 = vpack.c.b16 %v944, %v943
      %v951 = vpack.c.b16 %v946, %v945
      %v952 = vpack.c.b16 %v948, %v947
      %953 = vrot.lane.b32.xlu0 %v538, 16
      %v954 = vpop.permute.xlu0 %953
      %955 = vrot.lane.b32.xlu0 %v539, 16
      %v956 = vpop.permute.xlu0 %955
      %957 = vrot.lane.b32.xlu0 %v540, 16
      %v958 = vpop.permute.xlu0 %957
      %959 = vrot.lane.b32.xlu0 %v541, 16
      %v960 = vpop.permute.xlu0 %959
      %961 = vrot.lane.b32.xlu0 %v542, 16
      %v962 = vpop.permute.xlu0 %961
      %963 = vrot.lane.b32.xlu0 %v543, 16
      %v964 = vpop.permute.xlu0 %963
      %965 = vrot.lane.b32.xlu0 %v544, 16
      %v966 = vpop.permute.xlu0 %965
      %967 = vrot.lane.b32.xlu0 %v545, 16
      %v968 = vpop.permute.xlu0 %967
      %969 = vrot.lane.b32.xlu0 %v546, 16
      %v970 = vpop.permute.xlu0 %969
      %971 = vrot.lane.b32.xlu0 %v547, 16
      %v972 = vpop.permute.xlu0 %971
      %973 = vrot.lane.b32.xlu0 %v548, 16
      %v974 = vpop.permute.xlu0 %973
      %975 = vrot.lane.b32.xlu0 %v549, 16
      %v976 = vpop.permute.xlu0 %975
      %977 = vrot.lane.b32.xlu0 %v949, 16
      %v978 = vpop.permute.xlu0 %977
      %979 = vrot.lane.b32.xlu0 %v950, 16
      %v980 = vpop.permute.xlu0 %979
      %981 = vrot.lane.b32.xlu0 %v951, 16
      %v982 = vpop.permute.xlu0 %981
      %983 = vrot.lane.b32.xlu0 %v952, 16
      %v984 = vpop.permute.xlu0 %983
      %v986 = vunpack.c.l.b16 %v467
      %v987 = vpack.c.b16 %v986, %v986
      %v989 = vshll.u32 %v949, 16
      %v991 = vrot.slane %v989, 1
      %v992 = vsel %vm553, %v680, %v991
      %v993 = vshrl.u32 %v949, 16
      %v995 = vor.u32 %v993, %v991
      %v997 = vshll.u32 %v950, 16
      %v999 = vrot.slane %v997, 1
      %v1000 = vsel %vm553, %v995, %v999
      %v1001 = vshrl.u32 %v950, 16
      %v1003 = vor.u32 %v1001, %v999
      %v1005 = vshll.u32 %v951, 16
      %v1007 = vrot.slane %v1005, 1
      %v1008 = vsel %vm553, %v1003, %v1007
      %v1009 = vshrl.u32 %v951, 16
      %v1011 = vor.u32 %v1009, %v1007
      %v1013 = vshll.u32 %v952, 16
      %v1015 = vrot.slane %v1013, 1
      %v1016 = vsel %vm553, %v1011, %v1015
      %v1017 = vshrl.u32 %v952, 16
      %v1019 = vor.u32 %v1017, %v1015
      %v1021 = vshll.u32 %v987, 16
      %v1023 = vrot.slane %v1021, 1
      %v1024 = vsel %vm553, %v1019, %v1023
      %1025 = vrot.lane.b32.xlu0 %v597, 20
      %v1026 = vpop.permute.xlu0 %1025
      %1027 = vrot.lane.b32.xlu0 %v605, 20
      %v1028 = vpop.permute.xlu0 %1027
      %1029 = vrot.lane.b32.xlu0 %v613, 20
      %v1030 = vpop.permute.xlu0 %1029
      %1031 = vrot.lane.b32.xlu0 %v621, 20
      %v1032 = vpop.permute.xlu0 %1031
      %1033 = vrot.lane.b32.xlu0 %v629, 20
      %v1034 = vpop.permute.xlu0 %1033
      %1035 = vrot.lane.b32.xlu0 %v637, 20
      %v1036 = vpop.permute.xlu0 %1035
      %1037 = vrot.lane.b32.xlu0 %v645, 20
      %v1038 = vpop.permute.xlu0 %1037
      %1039 = vrot.lane.b32.xlu0 %v653, 20
      %v1040 = vpop.permute.xlu0 %1039
      %1041 = vrot.lane.b32.xlu0 %v661, 20
      %v1042 = vpop.permute.xlu0 %1041
      %1043 = vrot.lane.b32.xlu0 %v669, 20
      %v1044 = vpop.permute.xlu0 %1043
      %1045 = vrot.lane.b32.xlu0 %v677, 20
      %v1046 = vpop.permute.xlu0 %1045
      %1047 = vrot.lane.b32.xlu0 %v992, 20
      %v1048 = vpop.permute.xlu0 %1047
      %1049 = vrot.lane.b32.xlu0 %v1000, 20
      %v1050 = vpop.permute.xlu0 %1049
      %1051 = vrot.lane.b32.xlu0 %v1008, 20
      %v1052 = vpop.permute.xlu0 %1051
      %1053 = vrot.lane.b32.xlu0 %v1016, 20
      %v1054 = vpop.permute.xlu0 %1053
      %1055 = vrot.lane.b32.xlu0 %v1024, 20
      %v1056 = vpop.permute.xlu0 %1055
      %v1058 = vunpack.c.l.b16 %v468
      %v1059 = vpack.c.b16 %v943, %v942
      %v1060 = vpack.c.b16 %v945, %v944
      %v1061 = vpack.c.b16 %v947, %v946
      %v1062 = vpack.c.b16 %v1058, %v948
      %1063 = vrot.lane.b32.xlu0 %v724, 24
      %v1064 = vpop.permute.xlu0 %1063
      %1065 = vrot.lane.b32.xlu0 %v725, 24
      %v1066 = vpop.permute.xlu0 %1065
      %1067 = vrot.lane.b32.xlu0 %v726, 24
      %v1068 = vpop.permute.xlu0 %1067
      %1069 = vrot.lane.b32.xlu0 %v727, 24
      %v1070 = vpop.permute.xlu0 %1069
      %1071 = vrot.lane.b32.xlu0 %v728, 24
      %v1072 = vpop.permute.xlu0 %1071
      %1073 = vrot.lane.b32.xlu0 %v729, 24
      %v1074 = vpop.permute.xlu0 %1073
      %1075 = vrot.lane.b32.xlu0 %v730, 24
      %v1076 = vpop.permute.xlu0 %1075
      %1077 = vrot.lane.b32.xlu0 %v731, 24
      %v1078 = vpop.permute.xlu0 %1077
      %1079 = vrot.lane.b32.xlu0 %v732, 24
      %v1080 = vpop.permute.xlu0 %1079
      %1081 = vrot.lane.b32.xlu0 %v733, 24
      %v1082 = vpop.permute.xlu0 %1081
      %1083 = vrot.lane.b32.xlu0 %v734, 24
      %v1084 = vpop.permute.xlu0 %1083
      %1085 = vrot.lane.b32.xlu0 %v735, 24
      %v1086 = vpop.permute.xlu0 %1085
      %1087 = vrot.lane.b32.xlu0 %v1059, 24
      %v1088 = vpop.permute.xlu0 %1087
      %1089 = vrot.lane.b32.xlu0 %v1060, 24
      %v1090 = vpop.permute.xlu0 %1089
      %1091 = vrot.lane.b32.xlu0 %v1061, 24
      %v1092 = vpop.permute.xlu0 %1091
      %1093 = vrot.lane.b32.xlu0 %v1062, 24
      %v1094 = vpop.permute.xlu0 %1093
      %v1096 = vunpack.c.l.b16 %v469
      %v1097 = vpack.c.b16 %v1096, %v1096
      %v1099 = vshll.u32 %v1059, 16
      %v1101 = vrot.slane %v1099, 1
      %v1102 = vsel %vm553, %v897, %v1101
      %v1103 = vshrl.u32 %v1059, 16
      %v1105 = vor.u32 %v1103, %v1101
      %v1107 = vshll.u32 %v1060, 16
      %v1109 = vrot.slane %v1107, 1
      %v1110 = vsel %vm553, %v1105, %v1109
      %v1111 = vshrl.u32 %v1060, 16
      %v1113 = vor.u32 %v1111, %v1109
      %v1115 = vshll.u32 %v1061, 16
      %v1117 = vrot.slane %v1115, 1
      %v1118 = vsel %vm553, %v1113, %v1117
      %v1119 = vshrl.u32 %v1061, 16
      %v1121 = vor.u32 %v1119, %v1117
      %v1123 = vshll.u32 %v1062, 16
      %v1125 = vrot.slane %v1123, 1
      %v1126 = vsel %vm553, %v1121, %v1125
      %v1127 = vshrl.u32 %v1062, 16
      %v1129 = vor.u32 %v1127, %v1125
      %v1131 = vshll.u32 %v1097, 16
      %v1133 = vrot.slane %v1131, 1
      %v1134 = vsel %vm553, %v1129, %v1133
      %1135 = vrot.lane.b32.xlu0 %v814, 28
      %v1136 = vpop.permute.xlu0 %1135
      %1137 = vrot.lane.b32.xlu0 %v822, 28
      %v1138 = vpop.permute.xlu0 %1137
      %1139 = vrot.lane.b32.xlu0 %v830, 28
      %v1140 = vpop.permute.xlu0 %1139
      %1141 = vrot.lane.b32.xlu0 %v838, 28
      %v1142 = vpop.permute.xlu0 %1141
      %1143 = vrot.lane.b32.xlu0 %v846, 28
      %v1144 = vpop.permute.xlu0 %1143
      %1145 = vrot.lane.b32.xlu0 %v854, 28
      %v1146 = vpop.permute.xlu0 %1145
      %1147 = vrot.lane.b32.xlu0 %v862, 28
      %v1148 = vpop.permute.xlu0 %1147
      %1149 = vrot.lane.b32.xlu0 %v870, 28
      %v1150 = vpop.permute.xlu0 %1149
      %1151 = vrot.lane.b32.xlu0 %v878, 28
      %v1152 = vpop.permute.xlu0 %1151
      %1153 = vrot.lane.b32.xlu0 %v886, 28
      %v1154 = vpop.permute.xlu0 %1153
      %1155 = vrot.lane.b32.xlu0 %v894, 28
      %v1156 = vpop.permute.xlu0 %1155
      %1157 = vrot.lane.b32.xlu0 %v1102, 28
      %v1158 = vpop.permute.xlu0 %1157
      %1159 = vrot.lane.b32.xlu0 %v1110, 28
      %v1160 = vpop.permute.xlu0 %1159
      %1161 = vrot.lane.b32.xlu0 %v1118, 28
      %v1162 = vpop.permute.xlu0 %1161
      %1163 = vrot.lane.b32.xlu0 %v1126, 28
      %v1164 = vpop.permute.xlu0 %1163
      %1165 = vrot.lane.b32.xlu0 %v1134, 28
      %v1166 = vpop.permute.xlu0 %1165
      %vm1167 = vcmask 31744
      %v1169 = vsel %vm1167, %v534, %v687
      %v1171 = vsel %vm1167, %v535, %v689
      %v1173 = vsel %vm1167, %v536, %v691
      %v1175 = vsel %vm1167, %v537, %v693
      %v1177 = vsel %vm1167, %v538, %v695
      %v1179 = vsel %vm1167, %v539, %v697
      %v1181 = vsel %vm1167, %v540, %v699
      %v1183 = vsel %vm1167, %v541, %v701
      %v1185 = vsel %vm1167, %v542, %v703
      %v1187 = vsel %vm1167, %v543, %v705
      %v1189 = vsel %vm1167, %v544, %v707
      %v1191 = vsel %vm1167, %v545, %v709
      %v1193 = vsel %vm1167, %v546, %v711
      %v1195 = vsel %vm1167, %v547, %v713
      %v1197 = vsel %vm1167, %v548, %v715
      %v1199 = vsel %vm1167, %v549, %v717
      %vm1200 = vcmask 64512
      %v1202 = vsel %vm1200, %v1169, %v737
      %v1204 = vsel %vm1200, %v1171, %v739
      %v1206 = vsel %vm1200, %v1173, %v741
      %v1208 = vsel %vm1200, %v1175, %v743
      %v1210 = vsel %vm1200, %v1177, %v745
      %v1212 = vsel %vm1200, %v1179, %v747
      %v1214 = vsel %vm1200, %v1181, %v749
      %v1216 = vsel %vm1200, %v1183, %v751
      %v1218 = vsel %vm1200, %v1185, %v753
      %v1220 = vsel %vm1200, %v1187, %v755
      %v1222 = vsel %vm1200, %v1189, %v757
      %v1224 = vsel %vm1200, %v1191, %v759
      %v1226 = vsel %vm1200, %v1193, %v761
      %v1228 = vsel %vm1200, %v1195, %v763
      %v1230 = vsel %vm1200, %v1197, %v765
      %v1232 = vsel %vm1200, %v1199, %v767
      %vm1233 = vcmask 97280
      %v1235 = vsel %vm1233, %v1202, %v904
      %v1237 = vsel %vm1233, %v1204, %v906
      %v1239 = vsel %vm1233, %v1206, %v908
      %v1241 = vsel %vm1233, %v1208, %v910
      %v1243 = vsel %vm1233, %v1210, %v912
      %v1245 = vsel %vm1233, %v1212, %v914
      %v1247 = vsel %vm1233, %v1214, %v916
      %v1249 = vsel %vm1233, %v1216, %v918
      %v1251 = vsel %vm1233, %v1218, %v920
      %v1253 = vsel %vm1233, %v1220, %v922
      %v1255 = vsel %vm1233, %v1222, %v924
      %v1257 = vsel %vm1233, %v1224, %v926
      %v1259 = vsel %vm1233, %v1226, %v928
      %v1261 = vsel %vm1233, %v1228, %v930
      %v1263 = vsel %vm1233, %v1230, %v932
      %v1265 = vsel %vm1233, %v1232, %v934
      %vm1266 = vcmask 130048
      %v1268 = vsel %vm1266, %v1235, %v954
      %v1270 = vsel %vm1266, %v1237, %v956
      %v1272 = vsel %vm1266, %v1239, %v958
      %v1274 = vsel %vm1266, %v1241, %v960
      %v1276 = vsel %vm1266, %v1243, %v962
      %v1278 = vsel %vm1266, %v1245, %v964
      %v1280 = vsel %vm1266, %v1247, %v966
      %v1282 = vsel %vm1266, %v1249, %v968
      %v1284 = vsel %vm1266, %v1251, %v970
      %v1286 = vsel %vm1266, %v1253, %v972
      %v1288 = vsel %vm1266, %v1255, %v974
      %v1290 = vsel %vm1266, %v1257, %v976
      %v1292 = vsel %vm1266, %v1259, %v978
      %v1294 = vsel %vm1266, %v1261, %v980
      %v1296 = vsel %vm1266, %v1263, %v982
      %v1298 = vsel %vm1266, %v1265, %v984
      %vm1299 = vcmask 162816
      %v1301 = vsel %vm1299, %v1268, %v1026
      %v1303 = vsel %vm1299, %v1270, %v1028
      %v1305 = vsel %vm1299, %v1272, %v1030
      %v1307 = vsel %vm1299, %v1274, %v1032
      %v1309 = vsel %vm1299, %v1276, %v1034
      %v1311 = vsel %vm1299, %v1278, %v1036
      %v1313 = vsel %vm1299, %v1280, %v1038
      %v1315 = vsel %vm1299, %v1282, %v1040
      %v1317 = vsel %vm1299, %v1284, %v1042
      %v1319 = vsel %vm1299, %v1286, %v1044
      %v1321 = vsel %vm1299, %v1288, %v1046
      %v1323 = vsel %vm1299, %v1290, %v1048
      %v1325 = vsel %vm1299, %v1292, %v1050
      %v1327 = vsel %vm1299, %v1294, %v1052
      %v1329 = vsel %vm1299, %v1296, %v1054
      %v1331 = vsel %vm1299, %v1298, %v1056
      %vm1332 = vcmask 195584
      %v1334 = vsel %vm1332, %v1301, %v1064
      %v1336 = vsel %vm1332, %v1303, %v1066
      %v1338 = vsel %vm1332, %v1305, %v1068
      %v1340 = vsel %vm1332, %v1307, %v1070
      %v1342 = vsel %vm1332, %v1309, %v1072
      %v1344 = vsel %vm1332, %v1311, %v1074
      %v1346 = vsel %vm1332, %v1313, %v1076
      %v1348 = vsel %vm1332, %v1315, %v1078
      %v1350 = vsel %vm1332, %v1317, %v1080
      %v1352 = vsel %vm1332, %v1319, %v1082
      %v1354 = vsel %vm1332, %v1321, %v1084
      %v1356 = vsel %vm1332, %v1323, %v1086
      %v1358 = vsel %vm1332, %v1325, %v1088
      %v1360 = vsel %vm1332, %v1327, %v1090
      %v1362 = vsel %vm1332, %v1329, %v1092
      %v1364 = vsel %vm1332, %v1331, %v1094
      %vm1365 = vcmask 228352
      %v1367 = vsel %vm1365, %v1334, %v1136
      %v1369 = vsel %vm1365, %v1336, %v1138
      %v1371 = vsel %vm1365, %v1338, %v1140
      %v1373 = vsel %vm1365, %v1340, %v1142
      %v1375 = vsel %vm1365, %v1342, %v1144
      %v1377 = vsel %vm1365, %v1344, %v1146
      %v1379 = vsel %vm1365, %v1346, %v1148
      %v1381 = vsel %vm1365, %v1348, %v1150
      %v1383 = vsel %vm1365, %v1350, %v1152
      %v1385 = vsel %vm1365, %v1352, %v1154
      %v1387 = vsel %vm1365, %v1354, %v1156
      %v1389 = vsel %vm1365, %v1356, %v1158
      %v1391 = vsel %vm1365, %v1358, %v1160
      %v1393 = vsel %vm1365, %v1360, %v1162
      %v1395 = vsel %vm1365, %v1362, %v1164
      %v1397 = vsel %vm1365, %v1364, %v1166
      %v1398 = vld [vmem:[%s2] sm:$0xf]
      %v1399 = vld [vmem:[%s2 + $0x4] sm:$0xf]
      %v1400 = vld [vmem:[%s2 + $0x8] sm:$0xf]
      %v1401 = vld [vmem:[%s2 + $0xc] sm:$0xf]
      %v1406 = vunpack.c.l.b16 %v1398
      %v1407 = vunpack.c.l.b16 %v1399
      %v1408 = vunpack.c.l.b16 %v1400
      %v1409 = vunpack.c.l.b16 %v1401
      %v1410 = vpack.c.b16 %v1407, %v1406
      %v1411 = vpack.c.b16 %v1409, %v1408
      %vm1414 = vcmask 261120
      %v1415 = vsel %vm1414, %v1367, 0
      %v1417 = vsel %vm1414, %v1369, 0
      %v1419 = vsel %vm1414, %v1371, 0
      %v1421 = vsel %vm1414, %v1373, 0
      %v1423 = vsel %vm1414, %v1375, 0
      %v1425 = vsel %vm1414, %v1377, 0
      %v1427 = vsel %vm1414, %v1379, 0
      %v1429 = vsel %vm1414, %v1381, 0
      %v1431 = vsel %vm1414, %v1383, 0
      %v1433 = vsel %vm1414, %v1385, 0
      %v1435 = vsel %vm1414, %v1387, 0
      %v1437 = vsel %vm1414, %v1389, 0
      %v1439 = vsel %vm1414, %v1391, 0
      %v1441 = vsel %vm1414, %v1393, 0
      %v1443 = vsel %vm1414, %v1395, 0
      %v1445 = vsel %vm1414, %v1397, 0
      %1447 = vmatprep.subr.bf16.mxu0 0
      %1448 = vmatpush1.bf16.msra.mxu0 0
      %1449 = vmatprep.subr.bf16.mxu0 0
      %1450 = vmatpush1.bf16.msra.mxu0 0
      %1451 = vmatprep.subr.bf16.mxu0 0
      %1452 = vmatpush1.bf16.msra.mxu0 0
      %1453 = vmatprep.subr.bf16.mxu0 0
      %1454 = vmatpush1.bf16.msra.mxu0 0
      %1455 = vmatprep.subr.bf16.mxu0 0
      %1456 = vmatpush1.bf16.msra.mxu0 0
      %1457 = vmatprep.subr.bf16.mxu0 0
      %1458 = vmatpush1.bf16.msra.mxu0 0
      %1459 = vmatprep.subr.bf16.mxu0 0
      %1460 = vmatpush1.bf16.msra.mxu0 %v1411
      %1461 = vmatprep.subr.bf16.mxu0 0
      %1462 = vmatpush1.bf16.msra.mxu0 %v1410
      %1463 = vmatprep.subr.bf16.mxu0 0
      %1464 = vmatpush2.bf16.msra.mxu0 0
      %1465 = vmatprep.subr.bf16.mxu0 0
      %1466 = vmatpush2.bf16.msra.mxu0 0
      %1467 = vmatprep.subr.bf16.mxu0 0
      %1468 = vmatpush2.bf16.msra.mxu0 0
      %1469 = vmatprep.subr.bf16.mxu0 0
      %1470 = vmatpush2.bf16.msra.mxu0 0
      %1471 = vmatprep.subr.bf16.mxu0 0
      %1472 = vmatpush2.bf16.msra.mxu0 0
      %1473 = vmatprep.subr.bf16.mxu0 0
      %1474 = vmatpush2.bf16.msra.mxu0 0
      %1475 = vmatprep.subr.bf16.mxu0 0
      %1476 = vmatpush2.bf16.msra.mxu0 0
      %1477 = vmatprep.subr.bf16.mxu0 0
      %1478 = vmatpush2.bf16.msra.mxu0 0
      %1479 = vmatprep.mubr.bf16.mxu0 0
      %1480 = vmatmul.mubr.bf16.gmra.mxu0 %v1415
      %v1481 = vpop.f32.mrf.mxu0
      %v1482 = vadd.f32 0.0, %v1481
      %v1483 = vpop.f32.mrf.mxu0
      %v1484 = vpop.f32.mrf.mxu0
      %v1485 = vadd.f32 0.0, %v1484
      %v1486 = vpop.f32.mrf.mxu0
      %1487 = vmatprep.mubr.bf16.mxu0 0
      %1488 = vmatmul.mubr.bf16.gmra.mxu0 %v1417
      %v1489 = vpop.f32.mrf.mxu0
      %v1490 = vadd.f32 0.0, %v1489
      %v1491 = vpop.f32.mrf.mxu0
      %v1492 = vpop.f32.mrf.mxu0
      %v1493 = vadd.f32 0.0, %v1492
      %v1494 = vpop.f32.mrf.mxu0
      %1495 = vmatprep.mubr.bf16.mxu0 0
      %1496 = vmatmul.mubr.bf16.gmra.mxu0 %v1419
      %v1497 = vpop.f32.mrf.mxu0
      %v1498 = vadd.f32 0.0, %v1497
      %v1499 = vpop.f32.mrf.mxu0
      %v1500 = vpop.f32.mrf.mxu0
      %v1501 = vadd.f32 0.0, %v1500
      %v1502 = vpop.f32.mrf.mxu0
      %1503 = vmatprep.mubr.bf16.mxu0 0
      %1504 = vmatmul.mubr.bf16.gmra.mxu0 %v1421
      %v1505 = vpop.f32.mrf.mxu0
      %v1506 = vadd.f32 0.0, %v1505
      %v1507 = vpop.f32.mrf.mxu0
      %v1508 = vpop.f32.mrf.mxu0
      %v1509 = vadd.f32 0.0, %v1508
      %v1510 = vpop.f32.mrf.mxu0
      %1511 = vmatprep.mubr.bf16.mxu0 0
      %1512 = vmatmul.mubr.bf16.gmra.mxu0 %v1423
      %v1513 = vpop.f32.mrf.mxu0
      %v1514 = vadd.f32 0.0, %v1513
      %v1515 = vpop.f32.mrf.mxu0
      %v1516 = vpop.f32.mrf.mxu0
      %v1517 = vadd.f32 0.0, %v1516
      %v1518 = vpop.f32.mrf.mxu0
      %1519 = vmatprep.mubr.bf16.mxu0 0
      %1520 = vmatmul.mubr.bf16.gmra.mxu0 %v1425
      %v1521 = vpop.f32.mrf.mxu0
      %v1522 = vadd.f32 0.0, %v1521
      %v1523 = vpop.f32.mrf.mxu0
      %v1524 = vpop.f32.mrf.mxu0
      %v1525 = vadd.f32 0.0, %v1524
      %v1526 = vpop.f32.mrf.mxu0
      %1527 = vmatprep.mubr.bf16.mxu0 0
      %1528 = vmatmul.mubr.bf16.gmra.mxu0 %v1427
      %v1529 = vpop.f32.mrf.mxu0
      %v1530 = vadd.f32 0.0, %v1529
      %v1531 = vpop.f32.mrf.mxu0
      %v1532 = vpop.f32.mrf.mxu0
      %v1533 = vadd.f32 0.0, %v1532
      %v1534 = vpop.f32.mrf.mxu0
      %1535 = vmatprep.mubr.bf16.mxu0 0
      %1536 = vmatmul.mubr.bf16.gmra.mxu0 %v1429
      %v1537 = vpop.f32.mrf.mxu0
      %v1538 = vadd.f32 0.0, %v1537
      %v1539 = vpop.f32.mrf.mxu0
      %v1540 = vpop.f32.mrf.mxu0
      %v1541 = vadd.f32 0.0, %v1540
      %v1542 = vpop.f32.mrf.mxu0
      %1543 = vmatprep.mubr.bf16.mxu0 0
      %1544 = vmatmul.mubr.bf16.gmra.mxu0 %v1431
      %v1545 = vpop.f32.mrf.mxu0
      %v1546 = vadd.f32 0.0, %v1545
      %v1547 = vpop.f32.mrf.mxu0
      %v1548 = vpop.f32.mrf.mxu0
      %v1549 = vadd.f32 0.0, %v1548
      %v1550 = vpop.f32.mrf.mxu0
      %1551 = vmatprep.mubr.bf16.mxu0 0
      %1552 = vmatmul.mubr.bf16.gmra.mxu0 %v1433
      %v1553 = vpop.f32.mrf.mxu0
      %v1554 = vadd.f32 0.0, %v1553
      %v1555 = vpop.f32.mrf.mxu0
      %v1556 = vpop.f32.mrf.mxu0
      %v1557 = vadd.f32 0.0, %v1556
      %v1558 = vpop.f32.mrf.mxu0
      %1559 = vmatprep.mubr.bf16.mxu0 0
      %1560 = vmatmul.mubr.bf16.gmra.mxu0 %v1435
      %v1561 = vpop.f32.mrf.mxu0
      %v1562 = vadd.f32 0.0, %v1561
      %v1563 = vpop.f32.mrf.mxu0
      %v1564 = vpop.f32.mrf.mxu0
      %v1565 = vadd.f32 0.0, %v1564
      %v1566 = vpop.f32.mrf.mxu0
      %1567 = vmatprep.mubr.bf16.mxu0 0
      %1568 = vmatmul.mubr.bf16.gmra.mxu0 %v1437
      %v1569 = vpop.f32.mrf.mxu0
      %v1570 = vadd.f32 0.0, %v1569
      %v1571 = vpop.f32.mrf.mxu0
      %v1572 = vpop.f32.mrf.mxu0
      %v1573 = vadd.f32 0.0, %v1572
      %v1574 = vpop.f32.mrf.mxu0
      %1575 = vmatprep.mubr.bf16.mxu0 0
      %1576 = vmatmul.mubr.bf16.gmra.mxu0 %v1439
      %v1577 = vpop.f32.mrf.mxu0
      %v1578 = vadd.f32 0.0, %v1577
      %v1579 = vpop.f32.mrf.mxu0
      %v1580 = vpop.f32.mrf.mxu0
      %v1581 = vadd.f32 0.0, %v1580
      %v1582 = vpop.f32.mrf.mxu0
      %1583 = vmatprep.mubr.bf16.mxu0 0
      %1584 = vmatmul.mubr.bf16.gmra.mxu0 %v1441
      %v1585 = vpop.f32.mrf.mxu0
      %v1586 = vadd.f32 0.0, %v1585
      %v1587 = vpop.f32.mrf.mxu0
      %v1588 = vpop.f32.mrf.mxu0
      %v1589 = vadd.f32 0.0, %v1588
      %v1590 = vpop.f32.mrf.mxu0
      %1591 = vmatprep.mubr.bf16.mxu0 0
      %1592 = vmatmul.mubr.bf16.gmra.mxu0 %v1443
      %v1593 = vpop.f32.mrf.mxu0
      %v1594 = vadd.f32 0.0, %v1593
      %v1595 = vpop.f32.mrf.mxu0
      %v1596 = vpop.f32.mrf.mxu0
      %v1597 = vadd.f32 0.0, %v1596
      %v1598 = vpop.f32.mrf.mxu0
      %1599 = vmatprep.mubr.bf16.mxu0 0
      %1600 = vmatmul.mubr.bf16.gmra.mxu0 %v1445
      %v1601 = vpop.f32.mrf.mxu0
      %v1602 = vadd.f32 0.0, %v1601
      %v1603 = vpop.f32.mrf.mxu0
      %v1604 = vpop.f32.mrf.mxu0
      %v1605 = vadd.f32 0.0, %v1604
      %v1606 = vpop.f32.mrf.mxu0
      %1607 = vdwg.mxu0
      %v1608 = vld [vmem:[#allocation2] sm:$0xe]
      %v1609 = vld [vmem:[#allocation2 + $0x4] sm:$0xe]
      %v1610 = vld [vmem:[#allocation2 + $0x20] sm:$0xe]
      %v1611 = vld [vmem:[#allocation2 + $0x24] sm:$0xe]
      %v1613 = vunpack.c.l.b16 %v1608
      %v1614 = vpack.c.b16 %v503, %v1613
      %v1616 = vshrl.u32 %v1614, 16
      %v1618 = vshll.u32 %v1614, 16
      %v1620 = vrot.slane %v1618, 1
      %v1621 = vor.u32 %v1616, %v1620
      %v1622 = vsel %vm553, %v1621, %v564
      %v1623 = vshrl.u32 %v552, 16
      %1625 = vrot.lane.b32.xlu0 %v1622, 4
      %v1626 = vpop.permute.xlu0 %1625
      %1627 = vrot.lane.b32.xlu0 %v1623, 4
      %v1628 = vpop.permute.xlu0 %1627
      %1629 = vrot.lane.b32.xlu0 %v770, 8
      %v1630 = vpop.permute.xlu0 %1629
      %v1632 = vunpack.c.l.b16 %v1609
      %v1633 = vpack.c.b16 %v504, %v1632
      %v1635 = vshrl.u32 %v1633, 16
      %v1637 = vshll.u32 %v1633, 16
      %v1639 = vrot.slane %v1637, 1
      %v1640 = vor.u32 %v1635, %v1639
      %v1641 = vsel %vm553, %v1640, %v781
      %v1642 = vshrl.u32 %v770, 16
      %1644 = vrot.lane.b32.xlu0 %v1641, 12
      %v1645 = vpop.permute.xlu0 %1644
      %1646 = vrot.lane.b32.xlu0 %v1642, 12
      %v1647 = vpop.permute.xlu0 %1646
      %1648 = vrot.lane.b32.xlu0 %v987, 16
      %v1649 = vpop.permute.xlu0 %1648
      %v1651 = vunpack.c.l.b16 %v1610
      %v1652 = vpack.c.b16 %v511, %v1651
      %v1654 = vshrl.u32 %v1652, 16
      %v1656 = vshll.u32 %v1652, 16
      %v1658 = vrot.slane %v1656, 1
      %v1659 = vor.u32 %v1654, %v1658
      %v1660 = vsel %vm553, %v1659, %v596
      %v1661 = vshrl.u32 %v987, 16
      %1663 = vrot.lane.b32.xlu0 %v1660, 20
      %v1664 = vpop.permute.xlu0 %1663
      %1665 = vrot.lane.b32.xlu0 %v1661, 20
      %v1666 = vpop.permute.xlu0 %1665
      %1667 = vrot.lane.b32.xlu0 %v1097, 24
      %v1668 = vpop.permute.xlu0 %1667
      %v1670 = vunpack.c.l.b16 %v1611
      %v1671 = vpack.c.b16 %v512, %v1670
      %v1673 = vshrl.u32 %v1671, 16
      %v1675 = vshll.u32 %v1671, 16
      %v1677 = vrot.slane %v1675, 1
      %v1678 = vor.u32 %v1673, %v1677
      %v1679 = vsel %vm553, %v1678, %v813
      %v1680 = vshrl.u32 %v1097, 16
      %1682 = vrot.lane.b32.xlu0 %v1679, 28
      %v1683 = vpop.permute.xlu0 %1682
      %1684 = vrot.lane.b32.xlu0 %v1680, 28
      %v1685 = vpop.permute.xlu0 %1684
      %v1687 = vsel %vm1167, %v534, %v1626
      %v1689 = vsel %vm1167, %v552, %v1628
      %v1690 = vsel %vm1200, %v1687, %v737
      %v1692 = vsel %vm1200, %v1689, %v1630
      %v1694 = vsel %vm1233, %v1690, %v1645
      %v1696 = vsel %vm1233, %v1692, %v1647
      %v1697 = vsel %vm1266, %v1694, %v954
      %v1699 = vsel %vm1266, %v1696, %v1649
      %v1701 = vsel %vm1299, %v1697, %v1664
      %v1703 = vsel %vm1299, %v1699, %v1666
      %v1704 = vsel %vm1332, %v1701, %v1064
      %v1706 = vsel %vm1332, %v1703, %v1668
      %v1708 = vsel %vm1365, %v1704, %v1683
      %v1710 = vsel %vm1365, %v1706, %v1685
      %s1711 = scalar_lea.vmem %s2, 16
      %v1712 = vld [vmem:[%s1711] sm:$0xf]
      %v1713 = vld [vmem:[%s1711 + $0x4] sm:$0xf]
      %v1714 = vld [vmem:[%s1711 + $0x8] sm:$0xf]
      %v1715 = vld [vmem:[%s1711 + $0xc] sm:$0xf]
      %v1716 = vshrl.u32 %v1708, 16
      %v1718 = vshll.u32 %v1708, 16
      %v1720 = vrot.slane %v1718, 1
      %v1721 = vor.u32 %v1716, %v1720
      %v1722 = vshll.u32 %v1369, 16
      %v1724 = vrot.slane %v1722, 1
      %v1725 = vsel %vm553, %v1721, %v1724
      %v1726 = vshrl.u32 %v1369, 16
      %v1728 = vor.u32 %v1726, %v1724
      %v1729 = vshll.u32 %v1371, 16
      %v1731 = vrot.slane %v1729, 1
      %v1732 = vsel %vm553, %v1728, %v1731
      %v1733 = vshrl.u32 %v1371, 16
      %v1735 = vor.u32 %v1733, %v1731
      %v1736 = vshll.u32 %v1373, 16
      %v1738 = vrot.slane %v1736, 1
      %v1739 = vsel %vm553, %v1735, %v1738
      %v1740 = vshrl.u32 %v1373, 16
      %v1742 = vor.u32 %v1740, %v1738
      %v1743 = vshll.u32 %v1375, 16
      %v1745 = vrot.slane %v1743, 1
      %v1746 = vsel %vm553, %v1742, %v1745
      %v1747 = vshrl.u32 %v1375, 16
      %v1749 = vor.u32 %v1747, %v1745
      %v1750 = vshll.u32 %v1377, 16
      %v1752 = vrot.slane %v1750, 1
      %v1753 = vsel %vm553, %v1749, %v1752
      %v1754 = vshrl.u32 %v1377, 16
      %v1756 = vor.u32 %v1754, %v1752
      %v1757 = vshll.u32 %v1379, 16
      %v1759 = vrot.slane %v1757, 1
      %v1760 = vsel %vm553, %v1756, %v1759
      %v1761 = vshrl.u32 %v1379, 16
      %v1763 = vor.u32 %v1761, %v1759
      %v1764 = vshll.u32 %v1381, 16
      %v1766 = vrot.slane %v1764, 1
      %v1767 = vsel %vm553, %v1763, %v1766
      %v1768 = vshrl.u32 %v1381, 16
      %v1770 = vor.u32 %v1768, %v1766
      %v1771 = vshll.u32 %v1383, 16
      %v1773 = vrot.slane %v1771, 1
      %v1774 = vsel %vm553, %v1770, %v1773
      %v1775 = vshrl.u32 %v1383, 16
      %v1777 = vor.u32 %v1775, %v1773
      %v1778 = vshll.u32 %v1385, 16
      %v1780 = vrot.slane %v1778, 1
      %v1781 = vsel %vm553, %v1777, %v1780
      %v1782 = vshrl.u32 %v1385, 16
      %v1784 = vor.u32 %v1782, %v1780
      %v1785 = vshll.u32 %v1387, 16
      %v1787 = vrot.slane %v1785, 1
      %v1788 = vsel %vm553, %v1784, %v1787
      %v1789 = vshrl.u32 %v1387, 16
      %v1791 = vor.u32 %v1789, %v1787
      %v1792 = vshll.u32 %v1389, 16
      %v1794 = vrot.slane %v1792, 1
      %v1795 = vsel %vm553, %v1791, %v1794
      %v1796 = vshrl.u32 %v1389, 16
      %v1798 = vor.u32 %v1796, %v1794
      %v1799 = vshll.u32 %v1391, 16
      %v1801 = vrot.slane %v1799, 1
      %v1802 = vsel %vm553, %v1798, %v1801
      %v1803 = vshrl.u32 %v1391, 16
      %v1805 = vor.u32 %v1803, %v1801
      %v1806 = vshll.u32 %v1393, 16
      %v1808 = vrot.slane %v1806, 1
      %v1809 = vsel %vm553, %v1805, %v1808
      %v1810 = vshrl.u32 %v1393, 16
      %v1812 = vor.u32 %v1810, %v1808
      %v1813 = vshll.u32 %v1395, 16
      %v1815 = vrot.slane %v1813, 1
      %v1816 = vsel %vm553, %v1812, %v1815
      %v1817 = vshrl.u32 %v1395, 16
      %v1819 = vor.u32 %v1817, %v1815
      %v1820 = vshll.u32 %v1397, 16
      %v1822 = vrot.slane %v1820, 1
      %v1823 = vsel %vm553, %v1819, %v1822
      %v1824 = vshrl.u32 %v1397, 16
      %v1826 = vor.u32 %v1824, %v1822
      %v1827 = vshll.u32 %v1710, 16
      %v1829 = vrot.slane %v1827, 1
      %v1830 = vsel %vm553, %v1826, %v1829
      %v1835 = vunpack.c.l.b16 %v1712
      %v1836 = vunpack.c.l.b16 %v1713
      %v1837 = vunpack.c.l.b16 %v1714
      %v1838 = vunpack.c.l.b16 %v1715
      %v1839 = vpack.c.b16 %v1836, %v1835
      %v1840 = vpack.c.b16 %v1838, %v1837
      %v1844 = vsel %vm1414, %v1725, 0
      %v1847 = vsel %vm1414, %v1732, 0
      %v1850 = vsel %vm1414, %v1739, 0
      %v1853 = vsel %vm1414, %v1746, 0
      %v1856 = vsel %vm1414, %v1753, 0
      %v1859 = vsel %vm1414, %v1760, 0
      %v1862 = vsel %vm1414, %v1767, 0
      %v1865 = vsel %vm1414, %v1774, 0
      %v1868 = vsel %vm1414, %v1781, 0
      %v1871 = vsel %vm1414, %v1788, 0
      %v1874 = vsel %vm1414, %v1795, 0
      %v1877 = vsel %vm1414, %v1802, 0
      %v1880 = vsel %vm1414, %v1809, 0
      %v1883 = vsel %vm1414, %v1816, 0
      %v1886 = vsel %vm1414, %v1823, 0
      %v1889 = vsel %vm1414, %v1830, 0
      %1891 = vmatprep.subr.bf16.mxu0 0
      %1892 = vmatpush1.bf16.msra.mxu0 0
      %1893 = vmatprep.subr.bf16.mxu0 0
      %1894 = vmatpush1.bf16.msra.mxu0 0
      %1895 = vmatprep.subr.bf16.mxu0 0
      %1896 = vmatpush1.bf16.msra.mxu0 0
      %1897 = vmatprep.subr.bf16.mxu0 0
      %1898 = vmatpush1.bf16.msra.mxu0 0
      %1899 = vmatprep.subr.bf16.mxu0 0
      %1900 = vmatpush1.bf16.msra.mxu0 0
      %1901 = vmatprep.subr.bf16.mxu0 0
      %1902 = vmatpush1.bf16.msra.mxu0 0
      %1903 = vmatprep.subr.bf16.mxu0 0
      %1904 = vmatpush1.bf16.msra.mxu0 %v1840
      %1905 = vmatprep.subr.bf16.mxu0 0
      %1906 = vmatpush1.bf16.msra.mxu0 %v1839
      %1907 = vmatprep.subr.bf16.mxu0 0
      %1908 = vmatpush2.bf16.msra.mxu0 0
      %1909 = vmatprep.subr.bf16.mxu0 0
      %1910 = vmatpush2.bf16.msra.mxu0 0
      %1911 = vmatprep.subr.bf16.mxu0 0
      %1912 = vmatpush2.bf16.msra.mxu0 0
      %1913 = vmatprep.subr.bf16.mxu0 0
      %1914 = vmatpush2.bf16.msra.mxu0 0
      %1915 = vmatprep.subr.bf16.mxu0 0
      %1916 = vmatpush2.bf16.msra.mxu0 0
      %1917 = vmatprep.subr.bf16.mxu0 0
      %1918 = vmatpush2.bf16.msra.mxu0 0
      %1919 = vmatprep.subr.bf16.mxu0 0
      %1920 = vmatpush2.bf16.msra.mxu0 0
      %1921 = vmatprep.subr.bf16.mxu0 0
      %1922 = vmatpush2.bf16.msra.mxu0 0
      %1923 = vmatprep.mubr.bf16.mxu0 0
      %1924 = vmatmul.mubr.bf16.gmra.mxu0 %v1844
      %v1925 = vpop.f32.mrf.mxu0
      %v1926 = vadd.f32 0.0, %v1925
      %v1927 = vpop.f32.mrf.mxu0
      %v1928 = vpop.f32.mrf.mxu0
      %v1929 = vadd.f32 0.0, %v1928
      %v1930 = vpop.f32.mrf.mxu0
      %1931 = vmatprep.mubr.bf16.mxu0 0
      %1932 = vmatmul.mubr.bf16.gmra.mxu0 %v1847
      %v1933 = vpop.f32.mrf.mxu0
      %v1934 = vadd.f32 0.0, %v1933
      %v1935 = vpop.f32.mrf.mxu0
      %v1936 = vpop.f32.mrf.mxu0
      %v1937 = vadd.f32 0.0, %v1936
      %v1938 = vpop.f32.mrf.mxu0
      %1939 = vmatprep.mubr.bf16.mxu0 0
      %1940 = vmatmul.mubr.bf16.gmra.mxu0 %v1850
      %v1941 = vpop.f32.mrf.mxu0
      %v1942 = vadd.f32 0.0, %v1941
      %v1943 = vpop.f32.mrf.mxu0
      %v1944 = vpop.f32.mrf.mxu0
      %v1945 = vadd.f32 0.0, %v1944
      %v1946 = vpop.f32.mrf.mxu0
      %1947 = vmatprep.mubr.bf16.mxu0 0
      %1948 = vmatmul.mubr.bf16.gmra.mxu0 %v1853
      %v1949 = vpop.f32.mrf.mxu0
      %v1950 = vadd.f32 0.0, %v1949
      %v1951 = vpop.f32.mrf.mxu0
      %v1952 = vpop.f32.mrf.mxu0
      %v1953 = vadd.f32 0.0, %v1952
      %v1954 = vpop.f32.mrf.mxu0
      %1955 = vmatprep.mubr.bf16.mxu0 0
      %1956 = vmatmul.mubr.bf16.gmra.mxu0 %v1856
      %v1957 = vpop.f32.mrf.mxu0
      %v1958 = vadd.f32 0.0, %v1957
      %v1959 = vpop.f32.mrf.mxu0
      %v1960 = vpop.f32.mrf.mxu0
      %v1961 = vadd.f32 0.0, %v1960
      %v1962 = vpop.f32.mrf.mxu0
      %1963 = vmatprep.mubr.bf16.mxu0 0
      %1964 = vmatmul.mubr.bf16.gmra.mxu0 %v1859
      %v1965 = vpop.f32.mrf.mxu0
      %v1966 = vadd.f32 0.0, %v1965
      %v1967 = vpop.f32.mrf.mxu0
      %v1968 = vpop.f32.mrf.mxu0
      %v1969 = vadd.f32 0.0, %v1968
      %v1970 = vpop.f32.mrf.mxu0
      %1971 = vmatprep.mubr.bf16.mxu0 0
      %1972 = vmatmul.mubr.bf16.gmra.mxu0 %v1862
      %v1973 = vpop.f32.mrf.mxu0
      %v1974 = vadd.f32 0.0, %v1973
      %v1975 = vpop.f32.mrf.mxu0
      %v1976 = vpop.f32.mrf.mxu0
      %v1977 = vadd.f32 0.0, %v1976
      %v1978 = vpop.f32.mrf.mxu0
      %1979 = vmatprep.mubr.bf16.mxu0 0
      %1980 = vmatmul.mubr.bf16.gmra.mxu0 %v1865
      %v1981 = vpop.f32.mrf.mxu0
      %v1982 = vadd.f32 0.0, %v1981
      %v1983 = vpop.f32.mrf.mxu0
      %v1984 = vpop.f32.mrf.mxu0
      %v1985 = vadd.f32 0.0, %v1984
      %v1986 = vpop.f32.mrf.mxu0
      %1987 = vmatprep.mubr.bf16.mxu0 0
      %1988 = vmatmul.mubr.bf16.gmra.mxu0 %v1868
      %v1989 = vpop.f32.mrf.mxu0
      %v1990 = vadd.f32 0.0, %v1989
      %v1991 = vpop.f32.mrf.mxu0
      %v1992 = vpop.f32.mrf.mxu0
      %v1993 = vadd.f32 0.0, %v1992
      %v1994 = vpop.f32.mrf.mxu0
      %1995 = vmatprep.mubr.bf16.mxu0 0
      %1996 = vmatmul.mubr.bf16.gmra.mxu0 %v1871
      %v1997 = vpop.f32.mrf.mxu0
      %v1998 = vadd.f32 0.0, %v1997
      %v1999 = vpop.f32.mrf.mxu0
      %v2000 = vpop.f32.mrf.mxu0
      %v2001 = vadd.f32 0.0, %v2000
      %v2002 = vpop.f32.mrf.mxu0
      %2003 = vmatprep.mubr.bf16.mxu0 0
      %2004 = vmatmul.mubr.bf16.gmra.mxu0 %v1874
      %v2005 = vpop.f32.mrf.mxu0
      %v2006 = vadd.f32 0.0, %v2005
      %v2007 = vpop.f32.mrf.mxu0
      %v2008 = vpop.f32.mrf.mxu0
      %v2009 = vadd.f32 0.0, %v2008
      %v2010 = vpop.f32.mrf.mxu0
      %2011 = vmatprep.mubr.bf16.mxu0 0
      %2012 = vmatmul.mubr.bf16.gmra.mxu0 %v1877
      %v2013 = vpop.f32.mrf.mxu0
      %v2014 = vadd.f32 0.0, %v2013
      %v2015 = vpop.f32.mrf.mxu0
      %v2016 = vpop.f32.mrf.mxu0
      %v2017 = vadd.f32 0.0, %v2016
      %v2018 = vpop.f32.mrf.mxu0
      %2019 = vmatprep.mubr.bf16.mxu0 0
      %2020 = vmatmul.mubr.bf16.gmra.mxu0 %v1880
      %v2021 = vpop.f32.mrf.mxu0
      %v2022 = vadd.f32 0.0, %v2021
      %v2023 = vpop.f32.mrf.mxu0
      %v2024 = vpop.f32.mrf.mxu0
      %v2025 = vadd.f32 0.0, %v2024
      %v2026 = vpop.f32.mrf.mxu0
      %2027 = vmatprep.mubr.bf16.mxu0 0
      %2028 = vmatmul.mubr.bf16.gmra.mxu0 %v1883
      %v2029 = vpop.f32.mrf.mxu0
      %v2030 = vadd.f32 0.0, %v2029
      %v2031 = vpop.f32.mrf.mxu0
      %v2032 = vpop.f32.mrf.mxu0
      %v2033 = vadd.f32 0.0, %v2032
      %v2034 = vpop.f32.mrf.mxu0
      %2035 = vmatprep.mubr.bf16.mxu0 0
      %2036 = vmatmul.mubr.bf16.gmra.mxu0 %v1886
      %v2037 = vpop.f32.mrf.mxu0
      %v2038 = vadd.f32 0.0, %v2037
      %v2039 = vpop.f32.mrf.mxu0
      %v2040 = vpop.f32.mrf.mxu0
      %v2041 = vadd.f32 0.0, %v2040
      %v2042 = vpop.f32.mrf.mxu0
      %2043 = vmatprep.mubr.bf16.mxu0 0
      %2044 = vmatmul.mubr.bf16.gmra.mxu0 %v1889
      %v2045 = vpop.f32.mrf.mxu0
      %v2046 = vadd.f32 0.0, %v2045
      %v2047 = vpop.f32.mrf.mxu0
      %v2048 = vpop.f32.mrf.mxu0
      %v2049 = vadd.f32 0.0, %v2048
      %v2050 = vpop.f32.mrf.mxu0
      %2051 = vdwg.mxu0
      %v2052 = vld [vmem:[#allocation2 + $0x84] sm:$0xf]
      %v2053 = vld [vmem:[#allocation2 + $0x8] sm:$0xf]
      %v2054 = vld [vmem:[#allocation2 + $0xc] sm:$0xf]
      %v2055 = vld [vmem:[#allocation2 + $0x10] sm:$0xf]
      %v2056 = vld [vmem:[#allocation2 + $0x14] sm:$0xf]
      %v2057 = vld [vmem:[#allocation2 + $0x18] sm:$0xf]
      %v2058 = vld [vmem:[#allocation2 + $0x1c] sm:$0xf]
      %v2059 = vld [vmem:[#allocation2 + $0x20] sm:$0xf]
      %v2060 = vld [vmem:[#allocation2 + $0x24] sm:$0xf]
      %v2061 = vld [vmem:[#allocation2 + $0x28] sm:$0xf]
      %v2062 = vld [vmem:[#allocation2 + $0x2c] sm:$0xf]
      %v2063 = vld [vmem:[#allocation2 + $0x30] sm:$0xf]
      %v2064 = vld [vmem:[#allocation2 + $0x34] sm:$0xf]
      %v2065 = vld [vmem:[#allocation2 + $0x38] sm:$0xf]
      %v2066 = vld [vmem:[#allocation2 + $0x3c] sm:$0xf]
      %v2067 = vld [vmem:[#allocation2 + $0x40] sm:$0xf]
      %v2068 = vld [vmem:[#allocation2 + $0x44] sm:$0xf]
      %v2069 = vld [vmem:[#allocation2 + $0x48] sm:$0xf]
      %v2070 = vld [vmem:[#allocation2 + $0x4c] sm:$0xf]
      %v2071 = vld [vmem:[#allocation2 + $0x50] sm:$0xf]
      %v2072 = vld [vmem:[#allocation2 + $0x54] sm:$0xf]
      %v2073 = vld [vmem:[#allocation2 + $0x58] sm:$0xf]
      %v2074 = vld [vmem:[#allocation2 + $0x5c] sm:$0xf]
      %v2075 = vld [vmem:[#allocation2 + $0x60] sm:$0xf]
      %v2076 = vld [vmem:[#allocation2 + $0x64] sm:$0xf]
      %v2077 = vld [vmem:[#allocation2 + $0x68] sm:$0xf]
      %v2078 = vld [vmem:[#allocation2 + $0x6c] sm:$0xf]
      %v2079 = vld [vmem:[#allocation2 + $0x70] sm:$0xf]
      %v2080 = vld [vmem:[#allocation2 + $0x74] sm:$0xf]
      %v2081 = vld [vmem:[#allocation2 + $0x78] sm:$0xf]
      %v2082 = vld [vmem:[#allocation2 + $0x7c] sm:$0xf]
      %v2083 = vld [vmem:[#allocation2 + $0x80] sm:$0xf]
      %v2084 = vld [vmem:[#allocation2 + $0x88] sm:$0x1]
      %v2085 = vld [vmem:[#allocation2 + $0xa4] sm:$0xf]
      %v2086 = vld [vmem:[#allocation2 + $0x88] sm:$0xf]
      %v2087 = vld [vmem:[#allocation2 + $0x8c] sm:$0xf]
      %v2088 = vld [vmem:[#allocation2 + $0x90] sm:$0xf]
      %v2089 = vld [vmem:[#allocation2 + $0x94] sm:$0xf]
      %v2090 = vld [vmem:[#allocation2 + $0x98] sm:$0xf]
      %v2091 = vld [vmem:[#allocation2 + $0x9c] sm:$0xf]
      %v2092 = vld [vmem:[#allocation2 + $0xa0] sm:$0xf]
      %v2093 = vld [vmem:[#allocation2 + $0xa8] sm:$0x1]
      %2094 = vrot.lane.b32.xlu0 %v782, 4
      %v2095 = vpop.permute.xlu0 %2094
      %2096 = vrot.lane.b32.xlu0 %v790, 4
      %v2097 = vpop.permute.xlu0 %2096
      %2098 = vrot.lane.b32.xlu0 %v798, 4
      %v2099 = vpop.permute.xlu0 %2098
      %2100 = vrot.lane.b32.xlu0 %v806, 4
      %v2101 = vpop.permute.xlu0 %2100
      %2102 = vrot.lane.b32.xlu0 %v814, 4
      %v2103 = vpop.permute.xlu0 %2102
      %2104 = vrot.lane.b32.xlu0 %v822, 4
      %v2105 = vpop.permute.xlu0 %2104
      %2106 = vrot.lane.b32.xlu0 %v830, 4
      %v2107 = vpop.permute.xlu0 %2106
      %2108 = vrot.lane.b32.xlu0 %v838, 4
      %v2109 = vpop.permute.xlu0 %2108
      %2110 = vrot.lane.b32.xlu0 %v846, 4
      %v2111 = vpop.permute.xlu0 %2110
      %2112 = vrot.lane.b32.xlu0 %v854, 4
      %v2113 = vpop.permute.xlu0 %2112
      %2114 = vrot.lane.b32.xlu0 %v862, 4
      %v2115 = vpop.permute.xlu0 %2114
      %2116 = vrot.lane.b32.xlu0 %v870, 4
      %v2117 = vpop.permute.xlu0 %2116
      %2118 = vrot.lane.b32.xlu0 %v878, 4
      %v2119 = vpop.permute.xlu0 %2118
      %2120 = vrot.lane.b32.xlu0 %v886, 4
      %v2121 = vpop.permute.xlu0 %2120
      %2122 = vrot.lane.b32.xlu0 %v894, 4
      %v2123 = vpop.permute.xlu0 %2122
      %2124 = vrot.lane.b32.xlu0 %v902, 4
      %v2125 = vpop.permute.xlu0 %2124
      %v2127 = vunpack.c.l.b16 %v2052
      %v2128 = vpack.c.b16 %v2127, %v719
      %2129 = vrot.lane.b32.xlu0 %v535, 8
      %v2130 = vpop.permute.xlu0 %2129
      %2131 = vrot.lane.b32.xlu0 %v536, 8
      %v2132 = vpop.permute.xlu0 %2131
      %2133 = vrot.lane.b32.xlu0 %v537, 8
      %v2134 = vpop.permute.xlu0 %2133
      %2135 = vrot.lane.b32.xlu0 %v538, 8
      %v2136 = vpop.permute.xlu0 %2135
      %2137 = vrot.lane.b32.xlu0 %v539, 8
      %v2138 = vpop.permute.xlu0 %2137
      %2139 = vrot.lane.b32.xlu0 %v540, 8
      %v2140 = vpop.permute.xlu0 %2139
      %2141 = vrot.lane.b32.xlu0 %v541, 8
      %v2142 = vpop.permute.xlu0 %2141
      %2143 = vrot.lane.b32.xlu0 %v542, 8
      %v2144 = vpop.permute.xlu0 %2143
      %2145 = vrot.lane.b32.xlu0 %v543, 8
      %v2146 = vpop.permute.xlu0 %2145
      %2147 = vrot.lane.b32.xlu0 %v544, 8
      %v2148 = vpop.permute.xlu0 %2147
      %2149 = vrot.lane.b32.xlu0 %v545, 8
      %v2150 = vpop.permute.xlu0 %2149
      %2151 = vrot.lane.b32.xlu0 %v546, 8
      %v2152 = vpop.permute.xlu0 %2151
      %2153 = vrot.lane.b32.xlu0 %v547, 8
      %v2154 = vpop.permute.xlu0 %2153
      %2155 = vrot.lane.b32.xlu0 %v548, 8
      %v2156 = vpop.permute.xlu0 %2155
      %2157 = vrot.lane.b32.xlu0 %v549, 8
      %v2158 = vpop.permute.xlu0 %2157
      %2159 = vrot.lane.b32.xlu0 %v2128, 8
      %v2160 = vpop.permute.xlu0 %2159
      %v2193 = vunpack.c.l.b16 %v2053
      %v2194 = vunpack.c.l.b16 %v2054
      %v2195 = vunpack.c.l.b16 %v2055
      %v2196 = vunpack.c.l.b16 %v2056
      %v2197 = vunpack.c.l.b16 %v2057
      %v2198 = vunpack.c.l.b16 %v2058
      %v2199 = vunpack.c.l.b16 %v2059
      %v2200 = vunpack.c.l.b16 %v2060
      %v2201 = vunpack.c.l.b16 %v2061
      %v2202 = vunpack.c.l.b16 %v2062
      %v2203 = vunpack.c.l.b16 %v2063
      %v2204 = vunpack.c.l.b16 %v2064
      %v2205 = vunpack.c.l.b16 %v2065
      %v2206 = vunpack.c.l.b16 %v2066
      %v2207 = vunpack.c.l.b16 %v2067
      %v2208 = vunpack.c.l.b16 %v2068
      %v2209 = vunpack.c.l.b16 %v2069
      %v2210 = vunpack.c.l.b16 %v2070
      %v2211 = vunpack.c.l.b16 %v2071
      %v2212 = vunpack.c.l.b16 %v2072
      %v2213 = vunpack.c.l.b16 %v2073
      %v2214 = vunpack.c.l.b16 %v2074
      %v2215 = vunpack.c.l.b16 %v2075
      %v2216 = vunpack.c.l.b16 %v2076
      %v2217 = vunpack.c.l.b16 %v2077
      %v2218 = vunpack.c.l.b16 %v2078
      %v2219 = vunpack.c.l.b16 %v2079
      %v2220 = vunpack.c.l.b16 %v2080
      %v2221 = vunpack.c.l.b16 %v2081
      %v2222 = vunpack.c.l.b16 %v2082
      %v2223 = vunpack.c.l.b16 %v2083
      %v2224 = vunpack.c.l.b16 %v2084
      %v2225 = vpack.c.b16 %v2194, %v2193
      %v2226 = vpack.c.b16 %v2196, %v2195
      %v2227 = vpack.c.b16 %v2198, %v2197
      %v2228 = vpack.c.b16 %v2200, %v2199
      %v2229 = vpack.c.b16 %v2202, %v2201
      %v2230 = vpack.c.b16 %v2204, %v2203
      %v2231 = vpack.c.b16 %v2206, %v2205
      %v2232 = vpack.c.b16 %v2208, %v2207
      %v2233 = vpack.c.b16 %v2210, %v2209
      %v2234 = vpack.c.b16 %v2212, %v2211
      %v2235 = vpack.c.b16 %v2214, %v2213
      %v2236 = vpack.c.b16 %v2216, %v2215
      %v2237 = vpack.c.b16 %v2218, %v2217
      %v2238 = vpack.c.b16 %v2220, %v2219
      %v2239 = vpack.c.b16 %v2222, %v2221
      %v2240 = vpack.c.b16 %v2127, %v2223
      %v2241 = vpack.c.b16 %v2224, %v2224
      %v2243 = vshrl.u32 %v2225, 16
      %v2245 = vshll.u32 %v2225, 16
      %v2247 = vrot.slane %v2245, 1
      %v2248 = vor.u32 %v2243, %v2247
      %v2250 = vshll.u32 %v2226, 16
      %v2252 = vrot.slane %v2250, 1
      %v2253 = vsel %vm553, %v2248, %v2252
      %v2254 = vshrl.u32 %v2226, 16
      %v2256 = vor.u32 %v2254, %v2252
      %v2258 = vshll.u32 %v2227, 16
      %v2260 = vrot.slane %v2258, 1
      %v2261 = vsel %vm553, %v2256, %v2260
      %v2262 = vshrl.u32 %v2227, 16
      %v2264 = vor.u32 %v2262, %v2260
      %v2266 = vshll.u32 %v2228, 16
      %v2268 = vrot.slane %v2266, 1
      %v2269 = vsel %vm553, %v2264, %v2268
      %v2270 = vshrl.u32 %v2228, 16
      %v2272 = vor.u32 %v2270, %v2268
      %v2274 = vshll.u32 %v2229, 16
      %v2276 = vrot.slane %v2274, 1
      %v2277 = vsel %vm553, %v2272, %v2276
      %v2278 = vshrl.u32 %v2229, 16
      %v2280 = vor.u32 %v2278, %v2276
      %v2282 = vshll.u32 %v2230, 16
      %v2284 = vrot.slane %v2282, 1
      %v2285 = vsel %vm553, %v2280, %v2284
      %v2286 = vshrl.u32 %v2230, 16
      %v2288 = vor.u32 %v2286, %v2284
      %v2290 = vshll.u32 %v2231, 16
      %v2292 = vrot.slane %v2290, 1
      %v2293 = vsel %vm553, %v2288, %v2292
      %v2294 = vshrl.u32 %v2231, 16
      %v2296 = vor.u32 %v2294, %v2292
      %v2298 = vshll.u32 %v2232, 16
      %v2300 = vrot.slane %v2298, 1
      %v2301 = vsel %vm553, %v2296, %v2300
      %v2302 = vshrl.u32 %v2232, 16
      %v2304 = vor.u32 %v2302, %v2300
      %v2306 = vshll.u32 %v2233, 16
      %v2308 = vrot.slane %v2306, 1
      %v2309 = vsel %vm553, %v2304, %v2308
      %v2310 = vshrl.u32 %v2233, 16
      %v2312 = vor.u32 %v2310, %v2308
      %v2314 = vshll.u32 %v2234, 16
      %v2316 = vrot.slane %v2314, 1
      %v2317 = vsel %vm553, %v2312, %v2316
      %v2318 = vshrl.u32 %v2234, 16
      %v2320 = vor.u32 %v2318, %v2316
      %v2322 = vshll.u32 %v2235, 16
      %v2324 = vrot.slane %v2322, 1
      %v2325 = vsel %vm553, %v2320, %v2324
      %v2326 = vshrl.u32 %v2235, 16
      %v2328 = vor.u32 %v2326, %v2324
      %v2330 = vshll.u32 %v2236, 16
      %v2332 = vrot.slane %v2330, 1
      %v2333 = vsel %vm553, %v2328, %v2332
      %v2334 = vshrl.u32 %v2236, 16
      %v2336 = vor.u32 %v2334, %v2332
      %v2338 = vshll.u32 %v2237, 16
      %v2340 = vrot.slane %v2338, 1
      %v2341 = vsel %vm553, %v2336, %v2340
      %v2342 = vshrl.u32 %v2237, 16
      %v2344 = vor.u32 %v2342, %v2340
      %v2346 = vshll.u32 %v2238, 16
      %v2348 = vrot.slane %v2346, 1
      %v2349 = vsel %vm553, %v2344, %v2348
      %v2350 = vshrl.u32 %v2238, 16
      %v2352 = vor.u32 %v2350, %v2348
      %v2354 = vshll.u32 %v2239, 16
      %v2356 = vrot.slane %v2354, 1
      %v2357 = vsel %vm553, %v2352, %v2356
      %v2358 = vshrl.u32 %v2239, 16
      %v2360 = vor.u32 %v2358, %v2356
      %v2362 = vshll.u32 %v2240, 16
      %v2364 = vrot.slane %v2362, 1
      %v2365 = vsel %vm553, %v2360, %v2364
      %v2366 = vshrl.u32 %v2240, 16
      %v2368 = vor.u32 %v2366, %v2364
      %v2370 = vshll.u32 %v2241, 16
      %v2372 = vrot.slane %v2370, 1
      %v2373 = vsel %vm553, %v2368, %v2372
      %2374 = vrot.lane.b32.xlu0 %v2253, 12
      %v2375 = vpop.permute.xlu0 %2374
      %2376 = vrot.lane.b32.xlu0 %v2261, 12
      %v2377 = vpop.permute.xlu0 %2376
      %2378 = vrot.lane.b32.xlu0 %v2269, 12
      %v2379 = vpop.permute.xlu0 %2378
      %2380 = vrot.lane.b32.xlu0 %v2277, 12
      %v2381 = vpop.permute.xlu0 %2380
      %2382 = vrot.lane.b32.xlu0 %v2285, 12
      %v2383 = vpop.permute.xlu0 %2382
      %2384 = vrot.lane.b32.xlu0 %v2293, 12
      %v2385 = vpop.permute.xlu0 %2384
      %2386 = vrot.lane.b32.xlu0 %v2301, 12
      %v2387 = vpop.permute.xlu0 %2386
      %2388 = vrot.lane.b32.xlu0 %v2309, 12
      %v2389 = vpop.permute.xlu0 %2388
      %2390 = vrot.lane.b32.xlu0 %v2317, 12
      %v2391 = vpop.permute.xlu0 %2390
      %2392 = vrot.lane.b32.xlu0 %v2325, 12
      %v2393 = vpop.permute.xlu0 %2392
      %2394 = vrot.lane.b32.xlu0 %v2333, 12
      %v2395 = vpop.permute.xlu0 %2394
      %2396 = vrot.lane.b32.xlu0 %v2341, 12
      %v2397 = vpop.permute.xlu0 %2396
      %2398 = vrot.lane.b32.xlu0 %v2349, 12
      %v2399 = vpop.permute.xlu0 %2398
      %2400 = vrot.lane.b32.xlu0 %v2357, 12
      %v2401 = vpop.permute.xlu0 %2400
      %2402 = vrot.lane.b32.xlu0 %v2365, 12
      %v2403 = vpop.permute.xlu0 %2402
      %2404 = vrot.lane.b32.xlu0 %v2373, 12
      %v2405 = vpop.permute.xlu0 %2404
      %2406 = vrot.lane.b32.xlu0 %v724, 16
      %v2407 = vpop.permute.xlu0 %2406
      %2408 = vrot.lane.b32.xlu0 %v725, 16
      %v2409 = vpop.permute.xlu0 %2408
      %2410 = vrot.lane.b32.xlu0 %v726, 16
      %v2411 = vpop.permute.xlu0 %2410
      %2412 = vrot.lane.b32.xlu0 %v727, 16
      %v2413 = vpop.permute.xlu0 %2412
      %2414 = vrot.lane.b32.xlu0 %v728, 16
      %v2415 = vpop.permute.xlu0 %2414
      %2416 = vrot.lane.b32.xlu0 %v729, 16
      %v2417 = vpop.permute.xlu0 %2416
      %2418 = vrot.lane.b32.xlu0 %v730, 16
      %v2419 = vpop.permute.xlu0 %2418
      %2420 = vrot.lane.b32.xlu0 %v731, 16
      %v2421 = vpop.permute.xlu0 %2420
      %2422 = vrot.lane.b32.xlu0 %v732, 16
      %v2423 = vpop.permute.xlu0 %2422
      %2424 = vrot.lane.b32.xlu0 %v733, 16
      %v2425 = vpop.permute.xlu0 %2424
      %2426 = vrot.lane.b32.xlu0 %v734, 16
      %v2427 = vpop.permute.xlu0 %2426
      %2428 = vrot.lane.b32.xlu0 %v735, 16
      %v2429 = vpop.permute.xlu0 %2428
      %2430 = vrot.lane.b32.xlu0 %v1059, 16
      %v2431 = vpop.permute.xlu0 %2430
      %2432 = vrot.lane.b32.xlu0 %v1060, 16
      %v2433 = vpop.permute.xlu0 %2432
      %2434 = vrot.lane.b32.xlu0 %v1061, 16
      %v2435 = vpop.permute.xlu0 %2434
      %2436 = vrot.lane.b32.xlu0 %v1062, 16
      %v2437 = vpop.permute.xlu0 %2436
      %2438 = vrot.lane.b32.xlu0 %v814, 20
      %v2439 = vpop.permute.xlu0 %2438
      %2440 = vrot.lane.b32.xlu0 %v822, 20
      %v2441 = vpop.permute.xlu0 %2440
      %2442 = vrot.lane.b32.xlu0 %v830, 20
      %v2443 = vpop.permute.xlu0 %2442
      %2444 = vrot.lane.b32.xlu0 %v838, 20
      %v2445 = vpop.permute.xlu0 %2444
      %2446 = vrot.lane.b32.xlu0 %v846, 20
      %v2447 = vpop.permute.xlu0 %2446
      %2448 = vrot.lane.b32.xlu0 %v854, 20
      %v2449 = vpop.permute.xlu0 %2448
      %2450 = vrot.lane.b32.xlu0 %v862, 20
      %v2451 = vpop.permute.xlu0 %2450
      %2452 = vrot.lane.b32.xlu0 %v870, 20
      %v2453 = vpop.permute.xlu0 %2452
      %2454 = vrot.lane.b32.xlu0 %v878, 20
      %v2455 = vpop.permute.xlu0 %2454
      %2456 = vrot.lane.b32.xlu0 %v886, 20
      %v2457 = vpop.permute.xlu0 %2456
      %2458 = vrot.lane.b32.xlu0 %v894, 20
      %v2459 = vpop.permute.xlu0 %2458
      %2460 = vrot.lane.b32.xlu0 %v1102, 20
      %v2461 = vpop.permute.xlu0 %2460
      %2462 = vrot.lane.b32.xlu0 %v1110, 20
      %v2463 = vpop.permute.xlu0 %2462
      %2464 = vrot.lane.b32.xlu0 %v1118, 20
      %v2465 = vpop.permute.xlu0 %2464
      %2466 = vrot.lane.b32.xlu0 %v1126, 20
      %v2467 = vpop.permute.xlu0 %2466
      %2468 = vrot.lane.b32.xlu0 %v1134, 20
      %v2469 = vpop.permute.xlu0 %2468
      %v2471 = vunpack.c.l.b16 %v2085
      %v2472 = vpack.c.b16 %v2471, %v1058
      %2473 = vrot.lane.b32.xlu0 %v539, 24
      %v2474 = vpop.permute.xlu0 %2473
      %2475 = vrot.lane.b32.xlu0 %v540, 24
      %v2476 = vpop.permute.xlu0 %2475
      %2477 = vrot.lane.b32.xlu0 %v541, 24
      %v2478 = vpop.permute.xlu0 %2477
      %2479 = vrot.lane.b32.xlu0 %v542, 24
      %v2480 = vpop.permute.xlu0 %2479
      %2481 = vrot.lane.b32.xlu0 %v543, 24
      %v2482 = vpop.permute.xlu0 %2481
      %2483 = vrot.lane.b32.xlu0 %v544, 24
      %v2484 = vpop.permute.xlu0 %2483
      %2485 = vrot.lane.b32.xlu0 %v545, 24
      %v2486 = vpop.permute.xlu0 %2485
      %2487 = vrot.lane.b32.xlu0 %v546, 24
      %v2488 = vpop.permute.xlu0 %2487
      %2489 = vrot.lane.b32.xlu0 %v547, 24
      %v2490 = vpop.permute.xlu0 %2489
      %2491 = vrot.lane.b32.xlu0 %v548, 24
      %v2492 = vpop.permute.xlu0 %2491
      %2493 = vrot.lane.b32.xlu0 %v549, 24
      %v2494 = vpop.permute.xlu0 %2493
      %2495 = vrot.lane.b32.xlu0 %v949, 24
      %v2496 = vpop.permute.xlu0 %2495
      %2497 = vrot.lane.b32.xlu0 %v950, 24
      %v2498 = vpop.permute.xlu0 %2497
      %2499 = vrot.lane.b32.xlu0 %v951, 24
      %v2500 = vpop.permute.xlu0 %2499
      %2501 = vrot.lane.b32.xlu0 %v952, 24
      %v2502 = vpop.permute.xlu0 %2501
      %2503 = vrot.lane.b32.xlu0 %v2472, 24
      %v2504 = vpop.permute.xlu0 %2503
      %v2513 = vunpack.c.l.b16 %v2086
      %v2514 = vunpack.c.l.b16 %v2087
      %v2515 = vunpack.c.l.b16 %v2088
      %v2516 = vunpack.c.l.b16 %v2089
      %v2517 = vunpack.c.l.b16 %v2090
      %v2518 = vunpack.c.l.b16 %v2091
      %v2519 = vunpack.c.l.b16 %v2092
      %v2520 = vunpack.c.l.b16 %v2093
      %v2521 = vpack.c.b16 %v2514, %v2513
      %v2522 = vpack.c.b16 %v2516, %v2515
      %v2523 = vpack.c.b16 %v2518, %v2517
      %v2524 = vpack.c.b16 %v2471, %v2519
      %v2525 = vpack.c.b16 %v2520, %v2520
      %v2527 = vshll.u32 %v2521, 16
      %v2529 = vrot.slane %v2527, 1
      %v2530 = vsel %vm553, %v2368, %v2529
      %v2531 = vshrl.u32 %v2521, 16
      %v2533 = vor.u32 %v2531, %v2529
      %v2535 = vshll.u32 %v2522, 16
      %v2537 = vrot.slane %v2535, 1
      %v2538 = vsel %vm553, %v2533, %v2537
      %v2539 = vshrl.u32 %v2522, 16
      %v2541 = vor.u32 %v2539, %v2537
      %v2543 = vshll.u32 %v2523, 16
      %v2545 = vrot.slane %v2543, 1
      %v2546 = vsel %vm553, %v2541, %v2545
      %v2547 = vshrl.u32 %v2523, 16
      %v2549 = vor.u32 %v2547, %v2545
      %v2551 = vshll.u32 %v2524, 16
      %v2553 = vrot.slane %v2551, 1
      %v2554 = vsel %vm553, %v2549, %v2553
      %v2555 = vshrl.u32 %v2524, 16
      %v2557 = vor.u32 %v2555, %v2553
      %v2559 = vshll.u32 %v2525, 16
      %v2561 = vrot.slane %v2559, 1
      %v2562 = vsel %vm553, %v2557, %v2561
      %2563 = vrot.lane.b32.xlu0 %v2285, 28
      %v2564 = vpop.permute.xlu0 %2563
      %2565 = vrot.lane.b32.xlu0 %v2293, 28
      %v2566 = vpop.permute.xlu0 %2565
      %2567 = vrot.lane.b32.xlu0 %v2301, 28
      %v2568 = vpop.permute.xlu0 %2567
      %2569 = vrot.lane.b32.xlu0 %v2309, 28
      %v2570 = vpop.permute.xlu0 %2569
      %2571 = vrot.lane.b32.xlu0 %v2317, 28
      %v2572 = vpop.permute.xlu0 %2571
      %2573 = vrot.lane.b32.xlu0 %v2325, 28
      %v2574 = vpop.permute.xlu0 %2573
      %2575 = vrot.lane.b32.xlu0 %v2333, 28
      %v2576 = vpop.permute.xlu0 %2575
      %2577 = vrot.lane.b32.xlu0 %v2341, 28
      %v2578 = vpop.permute.xlu0 %2577
      %2579 = vrot.lane.b32.xlu0 %v2349, 28
      %v2580 = vpop.permute.xlu0 %2579
      %2581 = vrot.lane.b32.xlu0 %v2357, 28
      %v2582 = vpop.permute.xlu0 %2581
      %2583 = vrot.lane.b32.xlu0 %v2365, 28
      %v2584 = vpop.permute.xlu0 %2583
      %2585 = vrot.lane.b32.xlu0 %v2530, 28
      %v2586 = vpop.permute.xlu0 %2585
      %2587 = vrot.lane.b32.xlu0 %v2538, 28
      %v2588 = vpop.permute.xlu0 %2587
      %2589 = vrot.lane.b32.xlu0 %v2546, 28
      %v2590 = vpop.permute.xlu0 %2589
      %2591 = vrot.lane.b32.xlu0 %v2554, 28
      %v2592 = vpop.permute.xlu0 %2591
      %2593 = vrot.lane.b32.xlu0 %v2562, 28
      %v2594 = vpop.permute.xlu0 %2593
      %v2596 = vsel %vm1167, %v720, %v2095
      %v2598 = vsel %vm1167, %v721, %v2097
      %v2600 = vsel %vm1167, %v722, %v2099
      %v2602 = vsel %vm1167, %v723, %v2101
      %v2604 = vsel %vm1167, %v724, %v2103
      %v2606 = vsel %vm1167, %v725, %v2105
      %v2608 = vsel %vm1167, %v726, %v2107
      %v2610 = vsel %vm1167, %v727, %v2109
      %v2612 = vsel %vm1167, %v728, %v2111
      %v2614 = vsel %vm1167, %v729, %v2113
      %v2616 = vsel %vm1167, %v730, %v2115
      %v2618 = vsel %vm1167, %v731, %v2117
      %v2620 = vsel %vm1167, %v732, %v2119
      %v2622 = vsel %vm1167, %v733, %v2121
      %v2624 = vsel %vm1167, %v734, %v2123
      %v2626 = vsel %vm1167, %v735, %v2125
      %v2628 = vsel %vm1200, %v2596, %v2130
      %v2630 = vsel %vm1200, %v2598, %v2132
      %v2632 = vsel %vm1200, %v2600, %v2134
      %v2634 = vsel %vm1200, %v2602, %v2136
      %v2636 = vsel %vm1200, %v2604, %v2138
      %v2638 = vsel %vm1200, %v2606, %v2140
      %v2640 = vsel %vm1200, %v2608, %v2142
      %v2642 = vsel %vm1200, %v2610, %v2144
      %v2644 = vsel %vm1200, %v2612, %v2146
      %v2646 = vsel %vm1200, %v2614, %v2148
      %v2648 = vsel %vm1200, %v2616, %v2150
      %v2650 = vsel %vm1200, %v2618, %v2152
      %v2652 = vsel %vm1200, %v2620, %v2154
      %v2654 = vsel %vm1200, %v2622, %v2156
      %v2656 = vsel %vm1200, %v2624, %v2158
      %v2658 = vsel %vm1200, %v2626, %v2160
      %v2660 = vsel %vm1233, %v2628, %v2375
      %v2662 = vsel %vm1233, %v2630, %v2377
      %v2664 = vsel %vm1233, %v2632, %v2379
      %v2666 = vsel %vm1233, %v2634, %v2381
      %v2668 = vsel %vm1233, %v2636, %v2383
      %v2670 = vsel %vm1233, %v2638, %v2385
      %v2672 = vsel %vm1233, %v2640, %v2387
      %v2674 = vsel %vm1233, %v2642, %v2389
      %v2676 = vsel %vm1233, %v2644, %v2391
      %v2678 = vsel %vm1233, %v2646, %v2393
      %v2680 = vsel %vm1233, %v2648, %v2395
      %v2682 = vsel %vm1233, %v2650, %v2397
      %v2684 = vsel %vm1233, %v2652, %v2399
      %v2686 = vsel %vm1233, %v2654, %v2401
      %v2688 = vsel %vm1233, %v2656, %v2403
      %v2690 = vsel %vm1233, %v2658, %v2405
      %v2692 = vsel %vm1266, %v2660, %v2407
      %v2694 = vsel %vm1266, %v2662, %v2409
      %v2696 = vsel %vm1266, %v2664, %v2411
      %v2698 = vsel %vm1266, %v2666, %v2413
      %v2700 = vsel %vm1266, %v2668, %v2415
      %v2702 = vsel %vm1266, %v2670, %v2417
      %v2704 = vsel %vm1266, %v2672, %v2419
      %v2706 = vsel %vm1266, %v2674, %v2421
      %v2708 = vsel %vm1266, %v2676, %v2423
      %v2710 = vsel %vm1266, %v2678, %v2425
      %v2712 = vsel %vm1266, %v2680, %v2427
      %v2714 = vsel %vm1266, %v2682, %v2429
      %v2716 = vsel %vm1266, %v2684, %v2431
      %v2718 = vsel %vm1266, %v2686, %v2433
      %v2720 = vsel %vm1266, %v2688, %v2435
      %v2722 = vsel %vm1266, %v2690, %v2437
      %v2724 = vsel %vm1299, %v2692, %v2439
      %v2726 = vsel %vm1299, %v2694, %v2441
      %v2728 = vsel %vm1299, %v2696, %v2443
      %v2730 = vsel %vm1299, %v2698, %v2445
      %v2732 = vsel %vm1299, %v2700, %v2447
      %v2734 = vsel %vm1299, %v2702, %v2449
      %v2736 = vsel %vm1299, %v2704, %v2451
      %v2738 = vsel %vm1299, %v2706, %v2453
      %v2740 = vsel %vm1299, %v2708, %v2455
      %v2742 = vsel %vm1299, %v2710, %v2457
      %v2744 = vsel %vm1299, %v2712, %v2459
      %v2746 = vsel %vm1299, %v2714, %v2461
      %v2748 = vsel %vm1299, %v2716, %v2463
      %v2750 = vsel %vm1299, %v2718, %v2465
      %v2752 = vsel %vm1299, %v2720, %v2467
      %v2754 = vsel %vm1299, %v2722, %v2469
      %v2756 = vsel %vm1332, %v2724, %v2474
      %v2758 = vsel %vm1332, %v2726, %v2476
      %v2760 = vsel %vm1332, %v2728, %v2478
      %v2762 = vsel %vm1332, %v2730, %v2480
      %v2764 = vsel %vm1332, %v2732, %v2482
      %v2766 = vsel %vm1332, %v2734, %v2484
      %v2768 = vsel %vm1332, %v2736, %v2486
      %v2770 = vsel %vm1332, %v2738, %v2488
      %v2772 = vsel %vm1332, %v2740, %v2490
      %v2774 = vsel %vm1332, %v2742, %v2492
      %v2776 = vsel %vm1332, %v2744, %v2494
      %v2778 = vsel %vm1332, %v2746, %v2496
      %v2780 = vsel %vm1332, %v2748, %v2498
      %v2782 = vsel %vm1332, %v2750, %v2500
      %v2784 = vsel %vm1332, %v2752, %v2502
      %v2786 = vsel %vm1332, %v2754, %v2504
      %v2788 = vsel %vm1365, %v2756, %v2564
      %v2790 = vsel %vm1365, %v2758, %v2566
      %v2792 = vsel %vm1365, %v2760, %v2568
      %v2794 = vsel %vm1365, %v2762, %v2570
      %v2796 = vsel %vm1365, %v2764, %v2572
      %v2798 = vsel %vm1365, %v2766, %v2574
      %v2800 = vsel %vm1365, %v2768, %v2576
      %v2802 = vsel %vm1365, %v2770, %v2578
      %v2804 = vsel %vm1365, %v2772, %v2580
      %v2806 = vsel %vm1365, %v2774, %v2582
      %v2808 = vsel %vm1365, %v2776, %v2584
      %v2810 = vsel %vm1365, %v2778, %v2586
      %v2812 = vsel %vm1365, %v2780, %v2588
      %v2814 = vsel %vm1365, %v2782, %v2590
      %v2816 = vsel %vm1365, %v2784, %v2592
      %v2818 = vsel %vm1365, %v2786, %v2594
      %s2819 = scalar_lea.vmem %s2, 32
      %v2820 = vld [vmem:[%s2819] sm:$0xf]
      %v2821 = vld [vmem:[%s2819 + $0x4] sm:$0xf]
      %v2822 = vld [vmem:[%s2819 + $0x8] sm:$0xf]
      %v2823 = vld [vmem:[%s2819 + $0xc] sm:$0xf]
      %v2828 = vunpack.c.l.b16 %v2820
      %v2829 = vunpack.c.l.b16 %v2821
      %v2830 = vunpack.c.l.b16 %v2822
      %v2831 = vunpack.c.l.b16 %v2823
      %v2832 = vpack.c.b16 %v2829, %v2828
      %v2833 = vpack.c.b16 %v2831, %v2830
      %v2836 = vsel %vm1414, %v2788, 0
      %v2838 = vsel %vm1414, %v2790, 0
      %v2840 = vsel %vm1414, %v2792, 0
      %v2842 = vsel %vm1414, %v2794, 0
      %v2844 = vsel %vm1414, %v2796, 0
      %v2846 = vsel %vm1414, %v2798, 0
      %v2848 = vsel %vm1414, %v2800, 0
      %v2850 = vsel %vm1414, %v2802, 0
      %v2852 = vsel %vm1414, %v2804, 0
      %v2854 = vsel %vm1414, %v2806, 0
      %v2856 = vsel %vm1414, %v2808, 0
      %v2858 = vsel %vm1414, %v2810, 0
      %v2860 = vsel %vm1414, %v2812, 0
      %v2862 = vsel %vm1414, %v2814, 0
      %v2864 = vsel %vm1414, %v2816, 0
      %v2866 = vsel %vm1414, %v2818, 0
      %2868 = vmatprep.subr.bf16.mxu0 0
      %2869 = vmatpush1.bf16.msra.mxu0 0
      %2870 = vmatprep.subr.bf16.mxu0 0
      %2871 = vmatpush1.bf16.msra.mxu0 0
      %2872 = vmatprep.subr.bf16.mxu0 0
      %2873 = vmatpush1.bf16.msra.mxu0 0
      %2874 = vmatprep.subr.bf16.mxu0 0
      %2875 = vmatpush1.bf16.msra.mxu0 0
      %2876 = vmatprep.subr.bf16.mxu0 0
      %2877 = vmatpush1.bf16.msra.mxu0 0
      %2878 = vmatprep.subr.bf16.mxu0 0
      %2879 = vmatpush1.bf16.msra.mxu0 0
      %2880 = vmatprep.subr.bf16.mxu0 0
      %2881 = vmatpush1.bf16.msra.mxu0 %v2833
      %2882 = vmatprep.subr.bf16.mxu0 0
      %2883 = vmatpush1.bf16.msra.mxu0 %v2832
      %2884 = vmatprep.subr.bf16.mxu0 0
      %2885 = vmatpush2.bf16.msra.mxu0 0
      %2886 = vmatprep.subr.bf16.mxu0 0
      %2887 = vmatpush2.bf16.msra.mxu0 0
      %2888 = vmatprep.subr.bf16.mxu0 0
      %2889 = vmatpush2.bf16.msra.mxu0 0
      %2890 = vmatprep.subr.bf16.mxu0 0
      %2891 = vmatpush2.bf16.msra.mxu0 0
      %2892 = vmatprep.subr.bf16.mxu0 0
      %2893 = vmatpush2.bf16.msra.mxu0 0
      %2894 = vmatprep.subr.bf16.mxu0 0
      %2895 = vmatpush2.bf16.msra.mxu0 0
      %2896 = vmatprep.subr.bf16.mxu0 0
      %2897 = vmatpush2.bf16.msra.mxu0 0
      %2898 = vmatprep.subr.bf16.mxu0 0
      %2899 = vmatpush2.bf16.msra.mxu0 0
      %2900 = vmatprep.mubr.bf16.mxu0 0
      %2901 = vmatmul.mubr.bf16.gmra.mxu0 %v2836
      %v2902 = vpop.f32.mrf.mxu0
      %v2903 = vadd.f32 0.0, %v2902
      %v2904 = vpop.f32.mrf.mxu0
      %v2905 = vpop.f32.mrf.mxu0
      %v2906 = vadd.f32 0.0, %v2905
      %v2907 = vpop.f32.mrf.mxu0
      %2908 = vmatprep.mubr.bf16.mxu0 0
      %2909 = vmatmul.mubr.bf16.gmra.mxu0 %v2838
      %v2910 = vpop.f32.mrf.mxu0
      %v2911 = vadd.f32 0.0, %v2910
      %v2912 = vpop.f32.mrf.mxu0
      %v2913 = vpop.f32.mrf.mxu0
      %v2914 = vadd.f32 0.0, %v2913
      %v2915 = vpop.f32.mrf.mxu0
      %2916 = vmatprep.mubr.bf16.mxu0 0
      %2917 = vmatmul.mubr.bf16.gmra.mxu0 %v2840
      %v2918 = vpop.f32.mrf.mxu0
      %v2919 = vadd.f32 0.0, %v2918
      %v2920 = vpop.f32.mrf.mxu0
      %v2921 = vpop.f32.mrf.mxu0
      %v2922 = vadd.f32 0.0, %v2921
      %v2923 = vpop.f32.mrf.mxu0
      %2924 = vmatprep.mubr.bf16.mxu0 0
      %2925 = vmatmul.mubr.bf16.gmra.mxu0 %v2842
      %v2926 = vpop.f32.mrf.mxu0
      %v2927 = vadd.f32 0.0, %v2926
      %v2928 = vpop.f32.mrf.mxu0
      %v2929 = vpop.f32.mrf.mxu0
      %v2930 = vadd.f32 0.0, %v2929
      %v2931 = vpop.f32.mrf.mxu0
      %2932 = vmatprep.mubr.bf16.mxu0 0
      %2933 = vmatmul.mubr.bf16.gmra.mxu0 %v2844
      %v2934 = vpop.f32.mrf.mxu0
      %v2935 = vadd.f32 0.0, %v2934
      %v2936 = vpop.f32.mrf.mxu0
      %v2937 = vpop.f32.mrf.mxu0
      %v2938 = vadd.f32 0.0, %v2937
      %v2939 = vpop.f32.mrf.mxu0
      %2940 = vmatprep.mubr.bf16.mxu0 0
      %2941 = vmatmul.mubr.bf16.gmra.mxu0 %v2846
      %v2942 = vpop.f32.mrf.mxu0
      %v2943 = vadd.f32 0.0, %v2942
      %v2944 = vpop.f32.mrf.mxu0
      %v2945 = vpop.f32.mrf.mxu0
      %v2946 = vadd.f32 0.0, %v2945
      %v2947 = vpop.f32.mrf.mxu0
      %2948 = vmatprep.mubr.bf16.mxu0 0
      %2949 = vmatmul.mubr.bf16.gmra.mxu0 %v2848
      %v2950 = vpop.f32.mrf.mxu0
      %v2951 = vadd.f32 0.0, %v2950
      %v2952 = vpop.f32.mrf.mxu0
      %v2953 = vpop.f32.mrf.mxu0
      %v2954 = vadd.f32 0.0, %v2953
      %v2955 = vpop.f32.mrf.mxu0
      %2956 = vmatprep.mubr.bf16.mxu0 0
      %2957 = vmatmul.mubr.bf16.gmra.mxu0 %v2850
      %v2958 = vpop.f32.mrf.mxu0
      %v2959 = vadd.f32 0.0, %v2958
      %v2960 = vpop.f32.mrf.mxu0
      %v2961 = vpop.f32.mrf.mxu0
      %v2962 = vadd.f32 0.0, %v2961
      %v2963 = vpop.f32.mrf.mxu0
      %2964 = vmatprep.mubr.bf16.mxu0 0
      %2965 = vmatmul.mubr.bf16.gmra.mxu0 %v2852
      %v2966 = vpop.f32.mrf.mxu0
      %v2967 = vadd.f32 0.0, %v2966
      %v2968 = vpop.f32.mrf.mxu0
      %v2969 = vpop.f32.mrf.mxu0
      %v2970 = vadd.f32 0.0, %v2969
      %v2971 = vpop.f32.mrf.mxu0
      %2972 = vmatprep.mubr.bf16.mxu0 0
      %2973 = vmatmul.mubr.bf16.gmra.mxu0 %v2854
      %v2974 = vpop.f32.mrf.mxu0
      %v2975 = vadd.f32 0.0, %v2974
      %v2976 = vpop.f32.mrf.mxu0
      %v2977 = vpop.f32.mrf.mxu0
      %v2978 = vadd.f32 0.0, %v2977
      %v2979 = vpop.f32.mrf.mxu0
      %2980 = vmatprep.mubr.bf16.mxu0 0
      %2981 = vmatmul.mubr.bf16.gmra.mxu0 %v2856
      %v2982 = vpop.f32.mrf.mxu0
      %v2983 = vadd.f32 0.0, %v2982
      %v2984 = vpop.f32.mrf.mxu0
      %v2985 = vpop.f32.mrf.mxu0
      %v2986 = vadd.f32 0.0, %v2985
      %v2987 = vpop.f32.mrf.mxu0
      %2988 = vmatprep.mubr.bf16.mxu0 0
      %2989 = vmatmul.mubr.bf16.gmra.mxu0 %v2858
      %v2990 = vpop.f32.mrf.mxu0
      %v2991 = vadd.f32 0.0, %v2990
      %v2992 = vpop.f32.mrf.mxu0
      %v2993 = vpop.f32.mrf.mxu0
      %v2994 = vadd.f32 0.0, %v2993
      %v2995 = vpop.f32.mrf.mxu0
      %2996 = vmatprep.mubr.bf16.mxu0 0
      %2997 = vmatmul.mubr.bf16.gmra.mxu0 %v2860
      %v2998 = vpop.f32.mrf.mxu0
      %v2999 = vadd.f32 0.0, %v2998
      %v3000 = vpop.f32.mrf.mxu0
      %v3001 = vpop.f32.mrf.mxu0
      %v3002 = vadd.f32 0.0, %v3001
      %v3003 = vpop.f32.mrf.mxu0
      %3004 = vmatprep.mubr.bf16.mxu0 0
      %3005 = vmatmul.mubr.bf16.gmra.mxu0 %v2862
      %v3006 = vpop.f32.mrf.mxu0
      %v3007 = vadd.f32 0.0, %v3006
      %v3008 = vpop.f32.mrf.mxu0
      %v3009 = vpop.f32.mrf.mxu0
      %v3010 = vadd.f32 0.0, %v3009
      %v3011 = vpop.f32.mrf.mxu0
      %3012 = vmatprep.mubr.bf16.mxu0 0
      %3013 = vmatmul.mubr.bf16.gmra.mxu0 %v2864
      %v3014 = vpop.f32.mrf.mxu0
      %v3015 = vadd.f32 0.0, %v3014
      %v3016 = vpop.f32.mrf.mxu0
      %v3017 = vpop.f32.mrf.mxu0
      %v3018 = vadd.f32 0.0, %v3017
      %v3019 = vpop.f32.mrf.mxu0
      %3020 = vmatprep.mubr.bf16.mxu0 0
      %3021 = vmatmul.mubr.bf16.gmra.mxu0 %v2866
      %v3022 = vpop.f32.mrf.mxu0
      %v3023 = vadd.f32 0.0, %v3022
      %v3024 = vpop.f32.mrf.mxu0
      %v3025 = vpop.f32.mrf.mxu0
      %v3026 = vadd.f32 0.0, %v3025
      %v3027 = vpop.f32.mrf.mxu0
      %3028 = vdwg.mxu0
      %v3029 = vld [vmem:[#allocation2 + $0x8] sm:$0xe]
      %v3030 = vld [vmem:[#allocation2 + $0x28] sm:$0xe]
      %3031 = vrot.lane.b32.xlu0 %v1641, 4
      %v3032 = vpop.permute.xlu0 %3031
      %3033 = vrot.lane.b32.xlu0 %v1642, 4
      %v3034 = vpop.permute.xlu0 %3033
      %3035 = vrot.lane.b32.xlu0 %v2225, 8
      %v3036 = vpop.permute.xlu0 %3035
      %3037 = vrot.lane.b32.xlu0 %v2226, 8
      %v3038 = vpop.permute.xlu0 %3037
      %3039 = vrot.lane.b32.xlu0 %v2227, 8
      %v3040 = vpop.permute.xlu0 %3039
      %3041 = vrot.lane.b32.xlu0 %v2228, 8
      %v3042 = vpop.permute.xlu0 %3041
      %3043 = vrot.lane.b32.xlu0 %v2229, 8
      %v3044 = vpop.permute.xlu0 %3043
      %3045 = vrot.lane.b32.xlu0 %v2230, 8
      %v3046 = vpop.permute.xlu0 %3045
      %3047 = vrot.lane.b32.xlu0 %v2231, 8
      %v3048 = vpop.permute.xlu0 %3047
      %3049 = vrot.lane.b32.xlu0 %v2232, 8
      %v3050 = vpop.permute.xlu0 %3049
      %3051 = vrot.lane.b32.xlu0 %v2233, 8
      %v3052 = vpop.permute.xlu0 %3051
      %3053 = vrot.lane.b32.xlu0 %v2234, 8
      %v3054 = vpop.permute.xlu0 %3053
      %3055 = vrot.lane.b32.xlu0 %v2235, 8
      %v3056 = vpop.permute.xlu0 %3055
      %3057 = vrot.lane.b32.xlu0 %v2236, 8
      %v3058 = vpop.permute.xlu0 %3057
      %3059 = vrot.lane.b32.xlu0 %v2237, 8
      %v3060 = vpop.permute.xlu0 %3059
      %3061 = vrot.lane.b32.xlu0 %v2238, 8
      %v3062 = vpop.permute.xlu0 %3061
      %3063 = vrot.lane.b32.xlu0 %v2239, 8
      %v3064 = vpop.permute.xlu0 %3063
      %3065 = vrot.lane.b32.xlu0 %v2240, 8
      %v3066 = vpop.permute.xlu0 %3065
      %3067 = vrot.lane.b32.xlu0 %v2241, 8
      %v3068 = vpop.permute.xlu0 %3067
      %v3070 = vunpack.c.l.b16 %v3029
      %v3071 = vpack.c.b16 %v2194, %v3070
      %v3073 = vshrl.u32 %v3071, 16
      %v3075 = vshll.u32 %v3071, 16
      %v3077 = vrot.slane %v3075, 1
      %v3078 = vor.u32 %v3073, %v3077
      %v3079 = vsel %vm553, %v3078, %v2252
      %v3080 = vshrl.u32 %v2241, 16
      %3082 = vrot.lane.b32.xlu0 %v3079, 12
      %v3083 = vpop.permute.xlu0 %3082
      %3084 = vrot.lane.b32.xlu0 %v3080, 12
      %v3085 = vpop.permute.xlu0 %3084
      %3086 = vrot.lane.b32.xlu0 %v1097, 16
      %v3087 = vpop.permute.xlu0 %3086
      %3088 = vrot.lane.b32.xlu0 %v1679, 20
      %v3089 = vpop.permute.xlu0 %3088
      %3090 = vrot.lane.b32.xlu0 %v1680, 20
      %v3091 = vpop.permute.xlu0 %3090
      %3092 = vrot.lane.b32.xlu0 %v2229, 24
      %v3093 = vpop.permute.xlu0 %3092
      %3094 = vrot.lane.b32.xlu0 %v2230, 24
      %v3095 = vpop.permute.xlu0 %3094
      %3096 = vrot.lane.b32.xlu0 %v2231, 24
      %v3097 = vpop.permute.xlu0 %3096
      %3098 = vrot.lane.b32.xlu0 %v2232, 24
      %v3099 = vpop.permute.xlu0 %3098
      %3100 = vrot.lane.b32.xlu0 %v2233, 24
      %v3101 = vpop.permute.xlu0 %3100
      %3102 = vrot.lane.b32.xlu0 %v2234, 24
      %v3103 = vpop.permute.xlu0 %3102
      %3104 = vrot.lane.b32.xlu0 %v2235, 24
      %v3105 = vpop.permute.xlu0 %3104
      %3106 = vrot.lane.b32.xlu0 %v2236, 24
      %v3107 = vpop.permute.xlu0 %3106
      %3108 = vrot.lane.b32.xlu0 %v2237, 24
      %v3109 = vpop.permute.xlu0 %3108
      %3110 = vrot.lane.b32.xlu0 %v2238, 24
      %v3111 = vpop.permute.xlu0 %3110
      %3112 = vrot.lane.b32.xlu0 %v2239, 24
      %v3113 = vpop.permute.xlu0 %3112
      %3114 = vrot.lane.b32.xlu0 %v2240, 24
      %v3115 = vpop.permute.xlu0 %3114
      %3116 = vrot.lane.b32.xlu0 %v2521, 24
      %v3117 = vpop.permute.xlu0 %3116
      %3118 = vrot.lane.b32.xlu0 %v2522, 24
      %v3119 = vpop.permute.xlu0 %3118
      %3120 = vrot.lane.b32.xlu0 %v2523, 24
      %v3121 = vpop.permute.xlu0 %3120
      %3122 = vrot.lane.b32.xlu0 %v2524, 24
      %v3123 = vpop.permute.xlu0 %3122
      %3124 = vrot.lane.b32.xlu0 %v2525, 24
      %v3125 = vpop.permute.xlu0 %3124
      %v3127 = vunpack.c.l.b16 %v3030
      %v3128 = vpack.c.b16 %v2202, %v3127
      %v3130 = vshrl.u32 %v3128, 16
      %v3132 = vshll.u32 %v3128, 16
      %v3134 = vrot.slane %v3132, 1
      %v3135 = vor.u32 %v3130, %v3134
      %v3136 = vsel %vm553, %v3135, %v2284
      %v3137 = vshrl.u32 %v2525, 16
      %3139 = vrot.lane.b32.xlu0 %v3136, 28
      %v3140 = vpop.permute.xlu0 %3139
      %3141 = vrot.lane.b32.xlu0 %v3137, 28
      %v3142 = vpop.permute.xlu0 %3141
      %v3144 = vsel %vm1167, %v720, %v3032
      %v3146 = vsel %vm1167, %v770, %v3034
      %v3148 = vsel %vm1200, %v3144, %v3036
      %v3150 = vsel %vm1200, %v2598, %v3038
      %v3152 = vsel %vm1200, %v2600, %v3040
      %v3154 = vsel %vm1200, %v2602, %v3042
      %v3156 = vsel %vm1200, %v2604, %v3044
      %v3158 = vsel %vm1200, %v2606, %v3046
      %v3160 = vsel %vm1200, %v2608, %v3048
      %v3162 = vsel %vm1200, %v2610, %v3050
      %v3164 = vsel %vm1200, %v2612, %v3052
      %v3166 = vsel %vm1200, %v2614, %v3054
      %v3168 = vsel %vm1200, %v2616, %v3056
      %v3170 = vsel %vm1200, %v2618, %v3058
      %v3172 = vsel %vm1200, %v2620, %v3060
      %v3174 = vsel %vm1200, %v2622, %v3062
      %v3176 = vsel %vm1200, %v2624, %v3064
      %v3178 = vsel %vm1200, %v2626, %v3066
      %v3180 = vsel %vm1200, %v3146, %v3068
      %v3182 = vsel %vm1233, %v3148, %v3083
      %v3183 = vsel %vm1233, %v3150, %v2377
      %v3184 = vsel %vm1233, %v3152, %v2379
      %v3185 = vsel %vm1233, %v3154, %v2381
      %v3186 = vsel %vm1233, %v3156, %v2383
      %v3187 = vsel %vm1233, %v3158, %v2385
      %v3188 = vsel %vm1233, %v3160, %v2387
      %v3189 = vsel %vm1233, %v3162, %v2389
      %v3190 = vsel %vm1233, %v3164, %v2391
      %v3191 = vsel %vm1233, %v3166, %v2393
      %v3192 = vsel %vm1233, %v3168, %v2395
      %v3193 = vsel %vm1233, %v3170, %v2397
      %v3194 = vsel %vm1233, %v3172, %v2399
      %v3195 = vsel %vm1233, %v3174, %v2401
      %v3196 = vsel %vm1233, %v3176, %v2403
      %v3197 = vsel %vm1233, %v3178, %v2405
      %v3199 = vsel %vm1233, %v3180, %v3085
      %v3200 = vsel %vm1266, %v3182, %v2407
      %v3201 = vsel %vm1266, %v3183, %v2409
      %v3202 = vsel %vm1266, %v3184, %v2411
      %v3203 = vsel %vm1266, %v3185, %v2413
      %v3204 = vsel %vm1266, %v3186, %v2415
      %v3205 = vsel %vm1266, %v3187, %v2417
      %v3206 = vsel %vm1266, %v3188, %v2419
      %v3207 = vsel %vm1266, %v3189, %v2421
      %v3208 = vsel %vm1266, %v3190, %v2423
      %v3209 = vsel %vm1266, %v3191, %v2425
      %v3210 = vsel %vm1266, %v3192, %v2427
      %v3211 = vsel %vm1266, %v3193, %v2429
      %v3212 = vsel %vm1266, %v3194, %v2431
      %v3213 = vsel %vm1266, %v3195, %v2433
      %v3214 = vsel %vm1266, %v3196, %v2435
      %v3215 = vsel %vm1266, %v3197, %v2437
      %v3217 = vsel %vm1266, %v3199, %v3087
      %v3219 = vsel %vm1299, %v3200, %v3089
      %v3220 = vsel %vm1299, %v3201, %v2441
      %v3221 = vsel %vm1299, %v3202, %v2443
      %v3222 = vsel %vm1299, %v3203, %v2445
      %v3223 = vsel %vm1299, %v3204, %v2447
      %v3224 = vsel %vm1299, %v3205, %v2449
      %v3225 = vsel %vm1299, %v3206, %v2451
      %v3226 = vsel %vm1299, %v3207, %v2453
      %v3227 = vsel %vm1299, %v3208, %v2455
      %v3228 = vsel %vm1299, %v3209, %v2457
      %v3229 = vsel %vm1299, %v3210, %v2459
      %v3230 = vsel %vm1299, %v3211, %v2461
      %v3231 = vsel %vm1299, %v3212, %v2463
      %v3232 = vsel %vm1299, %v3213, %v2465
      %v3233 = vsel %vm1299, %v3214, %v2467
      %v3234 = vsel %vm1299, %v3215, %v2469
      %v3236 = vsel %vm1299, %v3217, %v3091
      %v3238 = vsel %vm1332, %v3219, %v3093
      %v3240 = vsel %vm1332, %v3220, %v3095
      %v3242 = vsel %vm1332, %v3221, %v3097
      %v3244 = vsel %vm1332, %v3222, %v3099
      %v3246 = vsel %vm1332, %v3223, %v3101
      %v3248 = vsel %vm1332, %v3224, %v3103
      %v3250 = vsel %vm1332, %v3225, %v3105
      %v3252 = vsel %vm1332, %v3226, %v3107
      %v3254 = vsel %vm1332, %v3227, %v3109
      %v3256 = vsel %vm1332, %v3228, %v3111
      %v3258 = vsel %vm1332, %v3229, %v3113
      %v3260 = vsel %vm1332, %v3230, %v3115
      %v3262 = vsel %vm1332, %v3231, %v3117
      %v3264 = vsel %vm1332, %v3232, %v3119
      %v3266 = vsel %vm1332, %v3233, %v3121
      %v3268 = vsel %vm1332, %v3234, %v3123
      %v3270 = vsel %vm1332, %v3236, %v3125
      %v3272 = vsel %vm1365, %v3238, %v3140
      %v3273 = vsel %vm1365, %v3240, %v2566
      %v3274 = vsel %vm1365, %v3242, %v2568
      %v3275 = vsel %vm1365, %v3244, %v2570
      %v3276 = vsel %vm1365, %v3246, %v2572
      %v3277 = vsel %vm1365, %v3248, %v2574
      %v3278 = vsel %vm1365, %v3250, %v2576
      %v3279 = vsel %vm1365, %v3252, %v2578
      %v3280 = vsel %vm1365, %v3254, %v2580
      %v3281 = vsel %vm1365, %v3256, %v2582
      %v3282 = vsel %vm1365, %v3258, %v2584
      %v3283 = vsel %vm1365, %v3260, %v2586
      %v3284 = vsel %vm1365, %v3262, %v2588
      %v3285 = vsel %vm1365, %v3264, %v2590
      %v3286 = vsel %vm1365, %v3266, %v2592
      %v3287 = vsel %vm1365, %v3268, %v2594
      %v3289 = vsel %vm1365, %v3270, %v3142
      %s3290 = scalar_lea.vmem %s2, 48
      %v3291 = vld [vmem:[%s3290] sm:$0xf]
      %v3292 = vld [vmem:[%s3290 + $0x4] sm:$0xf]
      %v3293 = vld [vmem:[%s3290 + $0x8] sm:$0xf]
      %v3294 = vld [vmem:[%s3290 + $0xc] sm:$0xf]
      %v3295 = vshrl.u32 %v3272, 16
      %v3297 = vshll.u32 %v3272, 16
      %v3299 = vrot.slane %v3297, 1
      %v3300 = vor.u32 %v3295, %v3299
      %v3301 = vshll.u32 %v3273, 16
      %v3303 = vrot.slane %v3301, 1
      %v3304 = vsel %vm553, %v3300, %v3303
      %v3305 = vshrl.u32 %v3273, 16
      %v3307 = vor.u32 %v3305, %v3303
      %v3308 = vshll.u32 %v3274, 16
      %v3310 = vrot.slane %v3308, 1
      %v3311 = vsel %vm553, %v3307, %v3310
      %v3312 = vshrl.u32 %v3274, 16
      %v3314 = vor.u32 %v3312, %v3310
      %v3315 = vshll.u32 %v3275, 16
      %v3317 = vrot.slane %v3315, 1
      %v3318 = vsel %vm553, %v3314, %v3317
      %v3319 = vshrl.u32 %v3275, 16
      %v3321 = vor.u32 %v3319, %v3317
      %v3322 = vshll.u32 %v3276, 16
      %v3324 = vrot.slane %v3322, 1
      %v3325 = vsel %vm553, %v3321, %v3324
      %v3326 = vshrl.u32 %v3276, 16
      %v3328 = vor.u32 %v3326, %v3324
      %v3329 = vshll.u32 %v3277, 16
      %v3331 = vrot.slane %v3329, 1
      %v3332 = vsel %vm553, %v3328, %v3331
      %v3333 = vshrl.u32 %v3277, 16
      %v3335 = vor.u32 %v3333, %v3331
      %v3336 = vshll.u32 %v3278, 16
      %v3338 = vrot.slane %v3336, 1
      %v3339 = vsel %vm553, %v3335, %v3338
      %v3340 = vshrl.u32 %v3278, 16
      %v3342 = vor.u32 %v3340, %v3338
      %v3343 = vshll.u32 %v3279, 16
      %v3345 = vrot.slane %v3343, 1
      %v3346 = vsel %vm553, %v3342, %v3345
      %v3347 = vshrl.u32 %v3279, 16
      %v3349 = vor.u32 %v3347, %v3345
      %v3350 = vshll.u32 %v3280, 16
      %v3352 = vrot.slane %v3350, 1
      %v3353 = vsel %vm553, %v3349, %v3352
      %v3354 = vshrl.u32 %v3280, 16
      %v3356 = vor.u32 %v3354, %v3352
      %v3357 = vshll.u32 %v3281, 16
      %v3359 = vrot.slane %v3357, 1
      %v3360 = vsel %vm553, %v3356, %v3359
      %v3361 = vshrl.u32 %v3281, 16
      %v3363 = vor.u32 %v3361, %v3359
      %v3364 = vshll.u32 %v3282, 16
      %v3366 = vrot.slane %v3364, 1
      %v3367 = vsel %vm553, %v3363, %v3366
      %v3368 = vshrl.u32 %v3282, 16
      %v3370 = vor.u32 %v3368, %v3366
      %v3371 = vshll.u32 %v3283, 16
      %v3373 = vrot.slane %v3371, 1
      %v3374 = vsel %vm553, %v3370, %v3373
      %v3375 = vshrl.u32 %v3283, 16
      %v3377 = vor.u32 %v3375, %v3373
      %v3378 = vshll.u32 %v3284, 16
      %v3380 = vrot.slane %v3378, 1
      %v3381 = vsel %vm553, %v3377, %v3380
      %v3382 = vshrl.u32 %v3284, 16
      %v3384 = vor.u32 %v3382, %v3380
      %v3385 = vshll.u32 %v3285, 16
      %v3387 = vrot.slane %v3385, 1
      %v3388 = vsel %vm553, %v3384, %v3387
      %v3389 = vshrl.u32 %v3285, 16
      %v3391 = vor.u32 %v3389, %v3387
      %v3392 = vshll.u32 %v3286, 16
      %v3394 = vrot.slane %v3392, 1
      %v3395 = vsel %vm553, %v3391, %v3394
      %v3396 = vshrl.u32 %v3286, 16
      %v3398 = vor.u32 %v3396, %v3394
      %v3399 = vshll.u32 %v3287, 16
      %v3401 = vrot.slane %v3399, 1
      %v3402 = vsel %vm553, %v3398, %v3401
      %v3403 = vshrl.u32 %v3287, 16
      %v3405 = vor.u32 %v3403, %v3401
      %v3406 = vshll.u32 %v3289, 16
      %v3408 = vrot.slane %v3406, 1
      %v3409 = vsel %vm553, %v3405, %v3408
      %v3414 = vunpack.c.l.b16 %v3291
      %v3415 = vunpack.c.l.b16 %v3292
      %v3416 = vunpack.c.l.b16 %v3293
      %v3417 = vunpack.c.l.b16 %v3294
      %v3418 = vpack.c.b16 %v3415, %v3414
      %v3419 = vpack.c.b16 %v3417, %v3416
      %v3423 = vsel %vm1414, %v3304, 0
      %v3426 = vsel %vm1414, %v3311, 0
      %v3429 = vsel %vm1414, %v3318, 0
      %v3432 = vsel %vm1414, %v3325, 0
      %v3435 = vsel %vm1414, %v3332, 0
      %v3438 = vsel %vm1414, %v3339, 0
      %v3441 = vsel %vm1414, %v3346, 0
      %v3444 = vsel %vm1414, %v3353, 0
      %v3447 = vsel %vm1414, %v3360, 0
      %v3450 = vsel %vm1414, %v3367, 0
      %v3453 = vsel %vm1414, %v3374, 0
      %v3456 = vsel %vm1414, %v3381, 0
      %v3459 = vsel %vm1414, %v3388, 0
      %v3462 = vsel %vm1414, %v3395, 0
      %v3465 = vsel %vm1414, %v3402, 0
      %v3468 = vsel %vm1414, %v3409, 0
      %3470 = vmatprep.subr.bf16.mxu0 0
      %3471 = vmatpush1.bf16.msra.mxu0 0
      %3472 = vmatprep.subr.bf16.mxu0 0
      %3473 = vmatpush1.bf16.msra.mxu0 0
      %3474 = vmatprep.subr.bf16.mxu0 0
      %3475 = vmatpush1.bf16.msra.mxu0 0
      %3476 = vmatprep.subr.bf16.mxu0 0
      %3477 = vmatpush1.bf16.msra.mxu0 0
      %3478 = vmatprep.subr.bf16.mxu0 0
      %3479 = vmatpush1.bf16.msra.mxu0 0
      %3480 = vmatprep.subr.bf16.mxu0 0
      %3481 = vmatpush1.bf16.msra.mxu0 0
      %3482 = vmatprep.subr.bf16.mxu0 0
      %3483 = vmatpush1.bf16.msra.mxu0 %v3419
      %3484 = vmatprep.subr.bf16.mxu0 0
      %3485 = vmatpush1.bf16.msra.mxu0 %v3418
      %3486 = vmatprep.subr.bf16.mxu0 0
      %3487 = vmatpush2.bf16.msra.mxu0 0
      %3488 = vmatprep.subr.bf16.mxu0 0
      %3489 = vmatpush2.bf16.msra.mxu0 0
      %3490 = vmatprep.subr.bf16.mxu0 0
      %3491 = vmatpush2.bf16.msra.mxu0 0
      %3492 = vmatprep.subr.bf16.mxu0 0
      %3493 = vmatpush2.bf16.msra.mxu0 0
      %3494 = vmatprep.subr.bf16.mxu0 0
      %3495 = vmatpush2.bf16.msra.mxu0 0
      %3496 = vmatprep.subr.bf16.mxu0 0
      %3497 = vmatpush2.bf16.msra.mxu0 0
      %3498 = vmatprep.subr.bf16.mxu0 0
      %3499 = vmatpush2.bf16.msra.mxu0 0
      %3500 = vmatprep.subr.bf16.mxu0 0
      %3501 = vmatpush2.bf16.msra.mxu0 0
      %3502 = vmatprep.mubr.bf16.mxu0 0
      %3503 = vmatmul.mubr.bf16.gmra.mxu0 %v3423
      %v3504 = vpop.f32.mrf.mxu0
      %v3505 = vadd.f32 0.0, %v3504
      %v3506 = vpop.f32.mrf.mxu0
      %v3507 = vpop.f32.mrf.mxu0
      %v3508 = vadd.f32 0.0, %v3507
      %v3509 = vpop.f32.mrf.mxu0
      %3510 = vmatprep.mubr.bf16.mxu0 0
      %3511 = vmatmul.mubr.bf16.gmra.mxu0 %v3426
      %v3512 = vpop.f32.mrf.mxu0
      %v3513 = vadd.f32 0.0, %v3512
      %v3514 = vpop.f32.mrf.mxu0
      %v3515 = vpop.f32.mrf.mxu0
      %v3516 = vadd.f32 0.0, %v3515
      %v3517 = vpop.f32.mrf.mxu0
      %3518 = vmatprep.mubr.bf16.mxu0 0
      %3519 = vmatmul.mubr.bf16.gmra.mxu0 %v3429
      %v3520 = vpop.f32.mrf.mxu0
      %v3521 = vadd.f32 0.0, %v3520
      %v3522 = vpop.f32.mrf.mxu0
      %v3523 = vpop.f32.mrf.mxu0
      %v3524 = vadd.f32 0.0, %v3523
      %v3525 = vpop.f32.mrf.mxu0
      %3526 = vmatprep.mubr.bf16.mxu0 0
      %3527 = vmatmul.mubr.bf16.gmra.mxu0 %v3432
      %v3528 = vpop.f32.mrf.mxu0
      %v3529 = vadd.f32 0.0, %v3528
      %v3530 = vpop.f32.mrf.mxu0
      %v3531 = vpop.f32.mrf.mxu0
      %v3532 = vadd.f32 0.0, %v3531
      %v3533 = vpop.f32.mrf.mxu0
      %3534 = vmatprep.mubr.bf16.mxu0 0
      %3535 = vmatmul.mubr.bf16.gmra.mxu0 %v3435
      %v3536 = vpop.f32.mrf.mxu0
      %v3537 = vadd.f32 0.0, %v3536
      %v3538 = vpop.f32.mrf.mxu0
      %v3539 = vpop.f32.mrf.mxu0
      %v3540 = vadd.f32 0.0, %v3539
      %v3541 = vpop.f32.mrf.mxu0
      %3542 = vmatprep.mubr.bf16.mxu0 0
      %3543 = vmatmul.mubr.bf16.gmra.mxu0 %v3438
      %v3544 = vpop.f32.mrf.mxu0
      %v3545 = vadd.f32 0.0, %v3544
      %v3546 = vpop.f32.mrf.mxu0
      %v3547 = vpop.f32.mrf.mxu0
      %v3548 = vadd.f32 0.0, %v3547
      %v3549 = vpop.f32.mrf.mxu0
      %3550 = vmatprep.mubr.bf16.mxu0 0
      %3551 = vmatmul.mubr.bf16.gmra.mxu0 %v3441
      %v3552 = vpop.f32.mrf.mxu0
      %v3553 = vadd.f32 0.0, %v3552
      %v3554 = vpop.f32.mrf.mxu0
      %v3555 = vpop.f32.mrf.mxu0
      %v3556 = vadd.f32 0.0, %v3555
      %v3557 = vpop.f32.mrf.mxu0
      %3558 = vmatprep.mubr.bf16.mxu0 0
      %3559 = vmatmul.mubr.bf16.gmra.mxu0 %v3444
      %v3560 = vpop.f32.mrf.mxu0
      %v3561 = vadd.f32 0.0, %v3560
      %v3562 = vpop.f32.mrf.mxu0
      %v3563 = vpop.f32.mrf.mxu0
      %v3564 = vadd.f32 0.0, %v3563
      %v3565 = vpop.f32.mrf.mxu0
      %3566 = vmatprep.mubr.bf16.mxu0 0
      %3567 = vmatmul.mubr.bf16.gmra.mxu0 %v3447
      %v3568 = vpop.f32.mrf.mxu0
      %v3569 = vadd.f32 0.0, %v3568
      %v3570 = vpop.f32.mrf.mxu0
      %v3571 = vpop.f32.mrf.mxu0
      %v3572 = vadd.f32 0.0, %v3571
      %v3573 = vpop.f32.mrf.mxu0
      %3574 = vmatprep.mubr.bf16.mxu0 0
      %3575 = vmatmul.mubr.bf16.gmra.mxu0 %v3450
      %v3576 = vpop.f32.mrf.mxu0
      %v3577 = vadd.f32 0.0, %v3576
      %v3578 = vpop.f32.mrf.mxu0
      %v3579 = vpop.f32.mrf.mxu0
      %v3580 = vadd.f32 0.0, %v3579
      %v3581 = vpop.f32.mrf.mxu0
      %3582 = vmatprep.mubr.bf16.mxu0 0
      %3583 = vmatmul.mubr.bf16.gmra.mxu0 %v3453
      %v3584 = vpop.f32.mrf.mxu0
      %v3585 = vadd.f32 0.0, %v3584
      %v3586 = vpop.f32.mrf.mxu0
      %v3587 = vpop.f32.mrf.mxu0
      %v3588 = vadd.f32 0.0, %v3587
      %v3589 = vpop.f32.mrf.mxu0
      %3590 = vmatprep.mubr.bf16.mxu0 0
      %3591 = vmatmul.mubr.bf16.gmra.mxu0 %v3456
      %v3592 = vpop.f32.mrf.mxu0
      %v3593 = vadd.f32 0.0, %v3592
      %v3594 = vpop.f32.mrf.mxu0
      %v3595 = vpop.f32.mrf.mxu0
      %v3596 = vadd.f32 0.0, %v3595
      %v3597 = vpop.f32.mrf.mxu0
      %3598 = vmatprep.mubr.bf16.mxu0 0
      %3599 = vmatmul.mubr.bf16.gmra.mxu0 %v3459
      %v3600 = vpop.f32.mrf.mxu0
      %v3601 = vadd.f32 0.0, %v3600
      %v3602 = vpop.f32.mrf.mxu0
      %v3603 = vpop.f32.mrf.mxu0
      %v3604 = vadd.f32 0.0, %v3603
      %v3605 = vpop.f32.mrf.mxu0
      %3606 = vmatprep.mubr.bf16.mxu0 0
      %3607 = vmatmul.mubr.bf16.gmra.mxu0 %v3462
      %v3608 = vpop.f32.mrf.mxu0
      %v3609 = vadd.f32 0.0, %v3608
      %v3610 = vpop.f32.mrf.mxu0
      %v3611 = vpop.f32.mrf.mxu0
      %v3612 = vadd.f32 0.0, %v3611
      %v3613 = vpop.f32.mrf.mxu0
      %3614 = vmatprep.mubr.bf16.mxu0 0
      %3615 = vmatmul.mubr.bf16.gmra.mxu0 %v3465
      %v3616 = vpop.f32.mrf.mxu0
      %v3617 = vadd.f32 0.0, %v3616
      %v3618 = vpop.f32.mrf.mxu0
      %v3619 = vpop.f32.mrf.mxu0
      %v3620 = vadd.f32 0.0, %v3619
      %v3621 = vpop.f32.mrf.mxu0
      %3622 = vmatprep.mubr.bf16.mxu0 0
      %3623 = vmatmul.mubr.bf16.gmra.mxu0 %v3468
      %v3624 = vpop.f32.mrf.mxu0
      %v3625 = vadd.f32 0.0, %v3624
      %v3626 = vpop.f32.mrf.mxu0
      %v3627 = vpop.f32.mrf.mxu0
      %v3628 = vadd.f32 0.0, %v3627
      %v3629 = vpop.f32.mrf.mxu0
      %3630 = vdwg.mxu0
      %v3631 = vld [vmem:[#allocation2 + $0x40] sm:$0xf]
      %v3632 = vld [vmem:[#allocation2 + $0x44] sm:$0xf]
      %v3633 = vld [vmem:[#allocation2 + $0x48] sm:$0xf]
      %v3634 = vld [vmem:[#allocation2 + $0x4c] sm:$0xf]
      %v3635 = vld [vmem:[#allocation2 + $0x50] sm:$0xf]
      %v3636 = vld [vmem:[#allocation2 + $0x54] sm:$0xf]
      %v3637 = vld [vmem:[#allocation2 + $0x58] sm:$0xf]
      %v3638 = vld [vmem:[#allocation2 + $0x5c] sm:$0xf]
      %v3639 = vld [vmem:[#allocation2 + $0x60] sm:$0xf]
      %v3640 = vld [vmem:[#allocation2 + $0x64] sm:$0xf]
      %v3641 = vld [vmem:[#allocation2 + $0x68] sm:$0xf]
      %v3642 = vld [vmem:[#allocation2 + $0x6c] sm:$0xf]
      %v3643 = vld [vmem:[#allocation2 + $0x70] sm:$0xf]
      %v3644 = vld [vmem:[#allocation2 + $0x74] sm:$0xf]
      %v3645 = vld [vmem:[#allocation2 + $0x78] sm:$0xf]
      %v3646 = vld [vmem:[#allocation2 + $0x7c] sm:$0xf]
      %v3647 = vld [vmem:[#allocation2 + $0x80] sm:$0xf]
      %v3648 = vld [vmem:[#allocation2 + $0x84] sm:$0xf]
      %v3649 = vld [vmem:[#allocation2 + $0x88] sm:$0xf]
      %v3650 = vld [vmem:[#allocation2 + $0x8c] sm:$0xf]
      %v3651 = vld [vmem:[#allocation2 + $0x90] sm:$0xf]
      %v3652 = vld [vmem:[#allocation2 + $0x94] sm:$0xf]
      %v3653 = vld [vmem:[#allocation2 + $0x98] sm:$0xf]
      %v3654 = vld [vmem:[#allocation2 + $0x9c] sm:$0xf]
      %v3655 = vld [vmem:[#allocation2 + $0xa0] sm:$0xf]
      %v3656 = vld [vmem:[#allocation2 + $0xa4] sm:$0xf]
      %v3657 = vld [vmem:[#allocation2 + $0xa8] sm:$0xf]
      %v3658 = vld [vmem:[#allocation2 + $0xac] sm:$0xf]
      %v3659 = vld [vmem:[#allocation2 + $0xb0] sm:$0xf]
      %v3660 = vld [vmem:[#allocation2 + $0xb4] sm:$0xf]
      %v3661 = vld [vmem:[#allocation2 + $0xb8] sm:$0xf]
      %v3662 = vld [vmem:[#allocation2 + $0xbc] sm:$0xf]
      %v3663 = vld [vmem:[#allocation2 + $0xc0] sm:$0x1]
      %v3664 = vld [vmem:[#allocation2 + $0xc0] sm:$0xf]
      %v3665 = vld [vmem:[#allocation2 + $0xc4] sm:$0x1]
      %3666 = vrot.lane.b32.xlu0 %v992, 4
      %v3667 = vpop.permute.xlu0 %3666
      %3668 = vrot.lane.b32.xlu0 %v1000, 4
      %v3669 = vpop.permute.xlu0 %3668
      %3670 = vrot.lane.b32.xlu0 %v1008, 4
      %v3671 = vpop.permute.xlu0 %3670
      %3672 = vrot.lane.b32.xlu0 %v1016, 4
      %v3673 = vpop.permute.xlu0 %3672
      %3674 = vrot.lane.b32.xlu0 %v1024, 4
      %v3675 = vpop.permute.xlu0 %3674
      %3676 = vrot.lane.b32.xlu0 %v1059, 8
      %v3677 = vpop.permute.xlu0 %3676
      %3678 = vrot.lane.b32.xlu0 %v1060, 8
      %v3679 = vpop.permute.xlu0 %3678
      %3680 = vrot.lane.b32.xlu0 %v1061, 8
      %v3681 = vpop.permute.xlu0 %3680
      %3682 = vrot.lane.b32.xlu0 %v1062, 8
      %v3683 = vpop.permute.xlu0 %3682
      %3684 = vrot.lane.b32.xlu0 %v1102, 12
      %v3685 = vpop.permute.xlu0 %3684
      %3686 = vrot.lane.b32.xlu0 %v1110, 12
      %v3687 = vpop.permute.xlu0 %3686
      %3688 = vrot.lane.b32.xlu0 %v1118, 12
      %v3689 = vpop.permute.xlu0 %3688
      %3690 = vrot.lane.b32.xlu0 %v1126, 12
      %v3691 = vpop.permute.xlu0 %3690
      %3692 = vrot.lane.b32.xlu0 %v1134, 12
      %v3693 = vpop.permute.xlu0 %3692
      %v3726 = vunpack.c.l.b16 %v3631
      %v3727 = vunpack.c.l.b16 %v3632
      %v3728 = vunpack.c.l.b16 %v3633
      %v3729 = vunpack.c.l.b16 %v3634
      %v3730 = vunpack.c.l.b16 %v3635
      %v3731 = vunpack.c.l.b16 %v3636
      %v3732 = vunpack.c.l.b16 %v3637
      %v3733 = vunpack.c.l.b16 %v3638
      %v3734 = vunpack.c.l.b16 %v3639
      %v3735 = vunpack.c.l.b16 %v3640
      %v3736 = vunpack.c.l.b16 %v3641
      %v3737 = vunpack.c.l.b16 %v3642
      %v3738 = vunpack.c.l.b16 %v3643
      %v3739 = vunpack.c.l.b16 %v3644
      %v3740 = vunpack.c.l.b16 %v3645
      %v3741 = vunpack.c.l.b16 %v3646
      %v3742 = vunpack.c.l.b16 %v3647
      %v3743 = vunpack.c.l.b16 %v3648
      %v3744 = vunpack.c.l.b16 %v3649
      %v3745 = vunpack.c.l.b16 %v3650
      %v3746 = vunpack.c.l.b16 %v3651
      %v3747 = vunpack.c.l.b16 %v3652
      %v3748 = vunpack.c.l.b16 %v3653
      %v3749 = vunpack.c.l.b16 %v3654
      %v3750 = vunpack.c.l.b16 %v3655
      %v3751 = vunpack.c.l.b16 %v3656
      %v3752 = vunpack.c.l.b16 %v3657
      %v3753 = vunpack.c.l.b16 %v3658
      %v3754 = vunpack.c.l.b16 %v3659
      %v3755 = vunpack.c.l.b16 %v3660
      %v3756 = vunpack.c.l.b16 %v3661
      %v3757 = vunpack.c.l.b16 %v3662
      %v3758 = vpack.c.b16 %v3727, %v3726
      %v3759 = vpack.c.b16 %v3729, %v3728
      %v3760 = vpack.c.b16 %v3731, %v3730
      %v3761 = vpack.c.b16 %v3733, %v3732
      %v3762 = vpack.c.b16 %v3735, %v3734
      %v3763 = vpack.c.b16 %v3737, %v3736
      %v3764 = vpack.c.b16 %v3739, %v3738
      %v3765 = vpack.c.b16 %v3741, %v3740
      %v3766 = vpack.c.b16 %v3743, %v3742
      %v3767 = vpack.c.b16 %v3745, %v3744
      %v3768 = vpack.c.b16 %v3747, %v3746
      %v3769 = vpack.c.b16 %v3749, %v3748
      %v3770 = vpack.c.b16 %v3751, %v3750
      %v3771 = vpack.c.b16 %v3753, %v3752
      %v3772 = vpack.c.b16 %v3755, %v3754
      %v3773 = vpack.c.b16 %v3757, %v3756
      %3774 = vrot.lane.b32.xlu0 %v3758, 16
      %v3775 = vpop.permute.xlu0 %3774
      %3776 = vrot.lane.b32.xlu0 %v3759, 16
      %v3777 = vpop.permute.xlu0 %3776
      %3778 = vrot.lane.b32.xlu0 %v3760, 16
      %v3779 = vpop.permute.xlu0 %3778
      %3780 = vrot.lane.b32.xlu0 %v3761, 16
      %v3781 = vpop.permute.xlu0 %3780
      %3782 = vrot.lane.b32.xlu0 %v3762, 16
      %v3783 = vpop.permute.xlu0 %3782
      %3784 = vrot.lane.b32.xlu0 %v3763, 16
      %v3785 = vpop.permute.xlu0 %3784
      %3786 = vrot.lane.b32.xlu0 %v3764, 16
      %v3787 = vpop.permute.xlu0 %3786
      %3788 = vrot.lane.b32.xlu0 %v3765, 16
      %v3789 = vpop.permute.xlu0 %3788
      %3790 = vrot.lane.b32.xlu0 %v3766, 16
      %v3791 = vpop.permute.xlu0 %3790
      %3792 = vrot.lane.b32.xlu0 %v3767, 16
      %v3793 = vpop.permute.xlu0 %3792
      %3794 = vrot.lane.b32.xlu0 %v3768, 16
      %v3795 = vpop.permute.xlu0 %3794
      %3796 = vrot.lane.b32.xlu0 %v3769, 16
      %v3797 = vpop.permute.xlu0 %3796
      %3798 = vrot.lane.b32.xlu0 %v3770, 16
      %v3799 = vpop.permute.xlu0 %3798
      %3800 = vrot.lane.b32.xlu0 %v3771, 16
      %v3801 = vpop.permute.xlu0 %3800
      %3802 = vrot.lane.b32.xlu0 %v3772, 16
      %v3803 = vpop.permute.xlu0 %3802
      %3804 = vrot.lane.b32.xlu0 %v3773, 16
      %v3805 = vpop.permute.xlu0 %3804
      %v3807 = vunpack.c.l.b16 %v3663
      %v3808 = vpack.c.b16 %v3807, %v3807
      %v3810 = vshrl.u32 %v3758, 16
      %v3812 = vshll.u32 %v3758, 16
      %v3814 = vrot.slane %v3812, 1
      %v3815 = vor.u32 %v3810, %v3814
      %v3817 = vshll.u32 %v3759, 16
      %v3819 = vrot.slane %v3817, 1
      %v3820 = vsel %vm553, %v3815, %v3819
      %v3821 = vshrl.u32 %v3759, 16
      %v3823 = vor.u32 %v3821, %v3819
      %v3825 = vshll.u32 %v3760, 16
      %v3827 = vrot.slane %v3825, 1
      %v3828 = vsel %vm553, %v3823, %v3827
      %v3829 = vshrl.u32 %v3760, 16
      %v3831 = vor.u32 %v3829, %v3827
      %v3833 = vshll.u32 %v3761, 16
      %v3835 = vrot.slane %v3833, 1
      %v3836 = vsel %vm553, %v3831, %v3835
      %v3837 = vshrl.u32 %v3761, 16
      %v3839 = vor.u32 %v3837, %v3835
      %v3841 = vshll.u32 %v3762, 16
      %v3843 = vrot.slane %v3841, 1
      %v3844 = vsel %vm553, %v3839, %v3843
      %v3845 = vshrl.u32 %v3762, 16
      %v3847 = vor.u32 %v3845, %v3843
      %v3849 = vshll.u32 %v3763, 16
      %v3851 = vrot.slane %v3849, 1
      %v3852 = vsel %vm553, %v3847, %v3851
      %v3853 = vshrl.u32 %v3763, 16
      %v3855 = vor.u32 %v3853, %v3851
      %v3857 = vshll.u32 %v3764, 16
      %v3859 = vrot.slane %v3857, 1
      %v3860 = vsel %vm553, %v3855, %v3859
      %v3861 = vshrl.u32 %v3764, 16
      %v3863 = vor.u32 %v3861, %v3859
      %v3865 = vshll.u32 %v3765, 16
      %v3867 = vrot.slane %v3865, 1
      %v3868 = vsel %vm553, %v3863, %v3867
      %v3869 = vshrl.u32 %v3765, 16
      %v3871 = vor.u32 %v3869, %v3867
      %v3873 = vshll.u32 %v3766, 16
      %v3875 = vrot.slane %v3873, 1
      %v3876 = vsel %vm553, %v3871, %v3875
      %v3877 = vshrl.u32 %v3766, 16
      %v3879 = vor.u32 %v3877, %v3875
      %v3881 = vshll.u32 %v3767, 16
      %v3883 = vrot.slane %v3881, 1
      %v3884 = vsel %vm553, %v3879, %v3883
      %v3885 = vshrl.u32 %v3767, 16
      %v3887 = vor.u32 %v3885, %v3883
      %v3889 = vshll.u32 %v3768, 16
      %v3891 = vrot.slane %v3889, 1
      %v3892 = vsel %vm553, %v3887, %v3891
      %v3893 = vshrl.u32 %v3768, 16
      %v3895 = vor.u32 %v3893, %v3891
      %v3897 = vshll.u32 %v3769, 16
      %v3899 = vrot.slane %v3897, 1
      %v3900 = vsel %vm553, %v3895, %v3899
      %v3901 = vshrl.u32 %v3769, 16
      %v3903 = vor.u32 %v3901, %v3899
      %v3905 = vshll.u32 %v3770, 16
      %v3907 = vrot.slane %v3905, 1
      %v3908 = vsel %vm553, %v3903, %v3907
      %v3909 = vshrl.u32 %v3770, 16
      %v3911 = vor.u32 %v3909, %v3907
      %v3913 = vshll.u32 %v3771, 16
      %v3915 = vrot.slane %v3913, 1
      %v3916 = vsel %vm553, %v3911, %v3915
      %v3917 = vshrl.u32 %v3771, 16
      %v3919 = vor.u32 %v3917, %v3915
      %v3921 = vshll.u32 %v3772, 16
      %v3923 = vrot.slane %v3921, 1
      %v3924 = vsel %vm553, %v3919, %v3923
      %v3925 = vshrl.u32 %v3772, 16
      %v3927 = vor.u32 %v3925, %v3923
      %v3929 = vshll.u32 %v3773, 16
      %v3931 = vrot.slane %v3929, 1
      %v3932 = vsel %vm553, %v3927, %v3931
      %v3933 = vshrl.u32 %v3773, 16
      %v3935 = vor.u32 %v3933, %v3931
      %v3937 = vshll.u32 %v3808, 16
      %v3939 = vrot.slane %v3937, 1
      %v3940 = vsel %vm553, %v3935, %v3939
      %3941 = vrot.lane.b32.xlu0 %v3820, 20
      %v3942 = vpop.permute.xlu0 %3941
      %3943 = vrot.lane.b32.xlu0 %v3828, 20
      %v3944 = vpop.permute.xlu0 %3943
      %3945 = vrot.lane.b32.xlu0 %v3836, 20
      %v3946 = vpop.permute.xlu0 %3945
      %3947 = vrot.lane.b32.xlu0 %v3844, 20
      %v3948 = vpop.permute.xlu0 %3947
      %3949 = vrot.lane.b32.xlu0 %v3852, 20
      %v3950 = vpop.permute.xlu0 %3949
      %3951 = vrot.lane.b32.xlu0 %v3860, 20
      %v3952 = vpop.permute.xlu0 %3951
      %3953 = vrot.lane.b32.xlu0 %v3868, 20
      %v3954 = vpop.permute.xlu0 %3953
      %3955 = vrot.lane.b32.xlu0 %v3876, 20
      %v3956 = vpop.permute.xlu0 %3955
      %3957 = vrot.lane.b32.xlu0 %v3884, 20
      %v3958 = vpop.permute.xlu0 %3957
      %3959 = vrot.lane.b32.xlu0 %v3892, 20
      %v3960 = vpop.permute.xlu0 %3959
      %3961 = vrot.lane.b32.xlu0 %v3900, 20
      %v3962 = vpop.permute.xlu0 %3961
      %3963 = vrot.lane.b32.xlu0 %v3908, 20
      %v3964 = vpop.permute.xlu0 %3963
      %3965 = vrot.lane.b32.xlu0 %v3916, 20
      %v3966 = vpop.permute.xlu0 %3965
      %3967 = vrot.lane.b32.xlu0 %v3924, 20
      %v3968 = vpop.permute.xlu0 %3967
      %3969 = vrot.lane.b32.xlu0 %v3932, 20
      %v3970 = vpop.permute.xlu0 %3969
      %3971 = vrot.lane.b32.xlu0 %v3940, 20
      %v3972 = vpop.permute.xlu0 %3971
      %v3974 = vunpack.c.l.b16 %v3664
      %v3975 = vpack.c.b16 %v3728, %v3727
      %v3976 = vpack.c.b16 %v3730, %v3729
      %v3977 = vpack.c.b16 %v3732, %v3731
      %v3978 = vpack.c.b16 %v3734, %v3733
      %v3979 = vpack.c.b16 %v3736, %v3735
      %v3980 = vpack.c.b16 %v3738, %v3737
      %v3981 = vpack.c.b16 %v3740, %v3739
      %v3982 = vpack.c.b16 %v3742, %v3741
      %v3983 = vpack.c.b16 %v3744, %v3743
      %v3984 = vpack.c.b16 %v3746, %v3745
      %v3985 = vpack.c.b16 %v3748, %v3747
      %v3986 = vpack.c.b16 %v3750, %v3749
      %v3987 = vpack.c.b16 %v3752, %v3751
      %v3988 = vpack.c.b16 %v3754, %v3753
      %v3989 = vpack.c.b16 %v3756, %v3755
      %v3990 = vpack.c.b16 %v3974, %v3757
      %3991 = vrot.lane.b32.xlu0 %v3975, 24
      %v3992 = vpop.permute.xlu0 %3991
      %3993 = vrot.lane.b32.xlu0 %v3976, 24
      %v3994 = vpop.permute.xlu0 %3993
      %3995 = vrot.lane.b32.xlu0 %v3977, 24
      %v3996 = vpop.permute.xlu0 %3995
      %3997 = vrot.lane.b32.xlu0 %v3978, 24
      %v3998 = vpop.permute.xlu0 %3997
      %3999 = vrot.lane.b32.xlu0 %v3979, 24
      %v4000 = vpop.permute.xlu0 %3999
      %4001 = vrot.lane.b32.xlu0 %v3980, 24
      %v4002 = vpop.permute.xlu0 %4001
      %4003 = vrot.lane.b32.xlu0 %v3981, 24
      %v4004 = vpop.permute.xlu0 %4003
      %4005 = vrot.lane.b32.xlu0 %v3982, 24
      %v4006 = vpop.permute.xlu0 %4005
      %4007 = vrot.lane.b32.xlu0 %v3983, 24
      %v4008 = vpop.permute.xlu0 %4007
      %4009 = vrot.lane.b32.xlu0 %v3984, 24
      %v4010 = vpop.permute.xlu0 %4009
      %4011 = vrot.lane.b32.xlu0 %v3985, 24
      %v4012 = vpop.permute.xlu0 %4011
      %4013 = vrot.lane.b32.xlu0 %v3986, 24
      %v4014 = vpop.permute.xlu0 %4013
      %4015 = vrot.lane.b32.xlu0 %v3987, 24
      %v4016 = vpop.permute.xlu0 %4015
      %4017 = vrot.lane.b32.xlu0 %v3988, 24
      %v4018 = vpop.permute.xlu0 %4017
      %4019 = vrot.lane.b32.xlu0 %v3989, 24
      %v4020 = vpop.permute.xlu0 %4019
      %4021 = vrot.lane.b32.xlu0 %v3990, 24
      %v4022 = vpop.permute.xlu0 %4021
      %v4024 = vunpack.c.l.b16 %v3665
      %v4025 = vpack.c.b16 %v4024, %v4024
      %v4027 = vshrl.u32 %v3975, 16
      %v4029 = vshll.u32 %v3975, 16
      %v4031 = vrot.slane %v4029, 1
      %v4032 = vor.u32 %v4027, %v4031
      %v4034 = vshll.u32 %v3976, 16
      %v4036 = vrot.slane %v4034, 1
      %v4037 = vsel %vm553, %v4032, %v4036
      %v4038 = vshrl.u32 %v3976, 16
      %v4040 = vor.u32 %v4038, %v4036
      %v4042 = vshll.u32 %v3977, 16
      %v4044 = vrot.slane %v4042, 1
      %v4045 = vsel %vm553, %v4040, %v4044
      %v4046 = vshrl.u32 %v3977, 16
      %v4048 = vor.u32 %v4046, %v4044
      %v4050 = vshll.u32 %v3978, 16
      %v4052 = vrot.slane %v4050, 1
      %v4053 = vsel %vm553, %v4048, %v4052
      %v4054 = vshrl.u32 %v3978, 16
      %v4056 = vor.u32 %v4054, %v4052
      %v4058 = vshll.u32 %v3979, 16
      %v4060 = vrot.slane %v4058, 1
      %v4061 = vsel %vm553, %v4056, %v4060
      %v4062 = vshrl.u32 %v3979, 16
      %v4064 = vor.u32 %v4062, %v4060
      %v4066 = vshll.u32 %v3980, 16
      %v4068 = vrot.slane %v4066, 1
      %v4069 = vsel %vm553, %v4064, %v4068
      %v4070 = vshrl.u32 %v3980, 16
      %v4072 = vor.u32 %v4070, %v4068
      %v4074 = vshll.u32 %v3981, 16
      %v4076 = vrot.slane %v4074, 1
      %v4077 = vsel %vm553, %v4072, %v4076
      %v4078 = vshrl.u32 %v3981, 16
      %v4080 = vor.u32 %v4078, %v4076
      %v4082 = vshll.u32 %v3982, 16
      %v4084 = vrot.slane %v4082, 1
      %v4085 = vsel %vm553, %v4080, %v4084
      %v4086 = vshrl.u32 %v3982, 16
      %v4088 = vor.u32 %v4086, %v4084
      %v4090 = vshll.u32 %v3983, 16
      %v4092 = vrot.slane %v4090, 1
      %v4093 = vsel %vm553, %v4088, %v4092
      %v4094 = vshrl.u32 %v3983, 16
      %v4096 = vor.u32 %v4094, %v4092
      %v4098 = vshll.u32 %v3984, 16
      %v4100 = vrot.slane %v4098, 1
      %v4101 = vsel %vm553, %v4096, %v4100
      %v4102 = vshrl.u32 %v3984, 16
      %v4104 = vor.u32 %v4102, %v4100
      %v4106 = vshll.u32 %v3985, 16
      %v4108 = vrot.slane %v4106, 1
      %v4109 = vsel %vm553, %v4104, %v4108
      %v4110 = vshrl.u32 %v3985, 16
      %v4112 = vor.u32 %v4110, %v4108
      %v4114 = vshll.u32 %v3986, 16
      %v4116 = vrot.slane %v4114, 1
      %v4117 = vsel %vm553, %v4112, %v4116
      %v4118 = vshrl.u32 %v3986, 16
      %v4120 = vor.u32 %v4118, %v4116
      %v4122 = vshll.u32 %v3987, 16
      %v4124 = vrot.slane %v4122, 1
      %v4125 = vsel %vm553, %v4120, %v4124
      %v4126 = vshrl.u32 %v3987, 16
      %v4128 = vor.u32 %v4126, %v4124
      %v4130 = vshll.u32 %v3988, 16
      %v4132 = vrot.slane %v4130, 1
      %v4133 = vsel %vm553, %v4128, %v4132
      %v4134 = vshrl.u32 %v3988, 16
      %v4136 = vor.u32 %v4134, %v4132
      %v4138 = vshll.u32 %v3989, 16
      %v4140 = vrot.slane %v4138, 1
      %v4141 = vsel %vm553, %v4136, %v4140
      %v4142 = vshrl.u32 %v3989, 16
      %v4144 = vor.u32 %v4142, %v4140
      %v4146 = vshll.u32 %v3990, 16
      %v4148 = vrot.slane %v4146, 1
      %v4149 = vsel %vm553, %v4144, %v4148
      %v4150 = vshrl.u32 %v3990, 16
      %v4152 = vor.u32 %v4150, %v4148
      %v4154 = vshll.u32 %v4025, 16
      %v4156 = vrot.slane %v4154, 1
      %v4157 = vsel %vm553, %v4152, %v4156
      %4158 = vrot.lane.b32.xlu0 %v4037, 28
      %v4159 = vpop.permute.xlu0 %4158
      %4160 = vrot.lane.b32.xlu0 %v4045, 28
      %v4161 = vpop.permute.xlu0 %4160
      %4162 = vrot.lane.b32.xlu0 %v4053, 28
      %v4163 = vpop.permute.xlu0 %4162
      %4164 = vrot.lane.b32.xlu0 %v4061, 28
      %v4165 = vpop.permute.xlu0 %4164
      %4166 = vrot.lane.b32.xlu0 %v4069, 28
      %v4167 = vpop.permute.xlu0 %4166
      %4168 = vrot.lane.b32.xlu0 %v4077, 28
      %v4169 = vpop.permute.xlu0 %4168
      %4170 = vrot.lane.b32.xlu0 %v4085, 28
      %v4171 = vpop.permute.xlu0 %4170
      %4172 = vrot.lane.b32.xlu0 %v4093, 28
      %v4173 = vpop.permute.xlu0 %4172
      %4174 = vrot.lane.b32.xlu0 %v4101, 28
      %v4175 = vpop.permute.xlu0 %4174
      %4176 = vrot.lane.b32.xlu0 %v4109, 28
      %v4177 = vpop.permute.xlu0 %4176
      %4178 = vrot.lane.b32.xlu0 %v4117, 28
      %v4179 = vpop.permute.xlu0 %4178
      %4180 = vrot.lane.b32.xlu0 %v4125, 28
      %v4181 = vpop.permute.xlu0 %4180
      %4182 = vrot.lane.b32.xlu0 %v4133, 28
      %v4183 = vpop.permute.xlu0 %4182
      %4184 = vrot.lane.b32.xlu0 %v4141, 28
      %v4185 = vpop.permute.xlu0 %4184
      %4186 = vrot.lane.b32.xlu0 %v4149, 28
      %v4187 = vpop.permute.xlu0 %4186
      %4188 = vrot.lane.b32.xlu0 %v4157, 28
      %v4189 = vpop.permute.xlu0 %4188
      %v4191 = vsel %vm1167, %v549, %v3667
      %v4193 = vsel %vm1167, %v949, %v3669
      %v4195 = vsel %vm1167, %v950, %v3671
      %v4197 = vsel %vm1167, %v951, %v3673
      %v4199 = vsel %vm1167, %v952, %v3675
      %v4200 = vsel %vm1200, %v4191, %v767
      %v4202 = vsel %vm1200, %v4193, %v3677
      %v4204 = vsel %vm1200, %v4195, %v3679
      %v4206 = vsel %vm1200, %v4197, %v3681
      %v4208 = vsel %vm1200, %v4199, %v3683
      %v4210 = vsel %vm1233, %v4200, %v3685
      %v4212 = vsel %vm1233, %v4202, %v3687
      %v4214 = vsel %vm1233, %v4204, %v3689
      %v4216 = vsel %vm1233, %v4206, %v3691
      %v4218 = vsel %vm1233, %v4208, %v3693
      %v4220 = vsel %vm1266, %v1243, %v3775
      %v4222 = vsel %vm1266, %v1245, %v3777
      %v4224 = vsel %vm1266, %v1247, %v3779
      %v4226 = vsel %vm1266, %v1249, %v3781
      %v4228 = vsel %vm1266, %v1251, %v3783
      %v4230 = vsel %vm1266, %v1253, %v3785
      %v4232 = vsel %vm1266, %v1255, %v3787
      %v4234 = vsel %vm1266, %v1257, %v3789
      %v4236 = vsel %vm1266, %v1259, %v3791
      %v4238 = vsel %vm1266, %v1261, %v3793
      %v4240 = vsel %vm1266, %v1263, %v3795
      %v4242 = vsel %vm1266, %v4210, %v3797
      %v4244 = vsel %vm1266, %v4212, %v3799
      %v4246 = vsel %vm1266, %v4214, %v3801
      %v4248 = vsel %vm1266, %v4216, %v3803
      %v4250 = vsel %vm1266, %v4218, %v3805
      %v4252 = vsel %vm1299, %v4220, %v3942
      %v4254 = vsel %vm1299, %v4222, %v3944
      %v4256 = vsel %vm1299, %v4224, %v3946
      %v4258 = vsel %vm1299, %v4226, %v3948
      %v4260 = vsel %vm1299, %v4228, %v3950
      %v4262 = vsel %vm1299, %v4230, %v3952
      %v4264 = vsel %vm1299, %v4232, %v3954
      %v4266 = vsel %vm1299, %v4234, %v3956
      %v4268 = vsel %vm1299, %v4236, %v3958
      %v4270 = vsel %vm1299, %v4238, %v3960
      %v4272 = vsel %vm1299, %v4240, %v3962
      %v4274 = vsel %vm1299, %v4242, %v3964
      %v4276 = vsel %vm1299, %v4244, %v3966
      %v4278 = vsel %vm1299, %v4246, %v3968
      %v4280 = vsel %vm1299, %v4248, %v3970
      %v4282 = vsel %vm1299, %v4250, %v3972
      %v4284 = vsel %vm1332, %v4252, %v3992
      %v4286 = vsel %vm1332, %v4254, %v3994
      %v4288 = vsel %vm1332, %v4256, %v3996
      %v4290 = vsel %vm1332, %v4258, %v3998
      %v4292 = vsel %vm1332, %v4260, %v4000
      %v4294 = vsel %vm1332, %v4262, %v4002
      %v4296 = vsel %vm1332, %v4264, %v4004
      %v4298 = vsel %vm1332, %v4266, %v4006
      %v4300 = vsel %vm1332, %v4268, %v4008
      %v4302 = vsel %vm1332, %v4270, %v4010
      %v4304 = vsel %vm1332, %v4272, %v4012
      %v4306 = vsel %vm1332, %v4274, %v4014
      %v4308 = vsel %vm1332, %v4276, %v4016
      %v4310 = vsel %vm1332, %v4278, %v4018
      %v4312 = vsel %vm1332, %v4280, %v4020
      %v4314 = vsel %vm1332, %v4282, %v4022
      %v4316 = vsel %vm1365, %v4284, %v4159
      %v4318 = vsel %vm1365, %v4286, %v4161
      %v4320 = vsel %vm1365, %v4288, %v4163
      %v4322 = vsel %vm1365, %v4290, %v4165
      %v4324 = vsel %vm1365, %v4292, %v4167
      %v4326 = vsel %vm1365, %v4294, %v4169
      %v4328 = vsel %vm1365, %v4296, %v4171
      %v4330 = vsel %vm1365, %v4298, %v4173
      %v4332 = vsel %vm1365, %v4300, %v4175
      %v4334 = vsel %vm1365, %v4302, %v4177
      %v4336 = vsel %vm1365, %v4304, %v4179
      %v4338 = vsel %vm1365, %v4306, %v4181
      %v4340 = vsel %vm1365, %v4308, %v4183
      %v4342 = vsel %vm1365, %v4310, %v4185
      %v4344 = vsel %vm1365, %v4312, %v4187
      %v4346 = vsel %vm1365, %v4314, %v4189
      %s4347 = scalar_lea.vmem %s2, 64
      %v4348 = vld [vmem:[%s4347] sm:$0xf]
      %v4349 = vld [vmem:[%s4347 + $0x4] sm:$0xf]
      %v4350 = vld [vmem:[%s4347 + $0x8] sm:$0xf]
      %v4351 = vld [vmem:[%s4347 + $0xc] sm:$0xf]
      %v4356 = vunpack.c.l.b16 %v4348
      %v4357 = vunpack.c.l.b16 %v4349
      %v4358 = vunpack.c.l.b16 %v4350
      %v4359 = vunpack.c.l.b16 %v4351
      %v4360 = vpack.c.b16 %v4357, %v4356
      %v4361 = vpack.c.b16 %v4359, %v4358
      %v4364 = vsel %vm1414, %v4316, 0
      %v4366 = vsel %vm1414, %v4318, 0
      %v4368 = vsel %vm1414, %v4320, 0
      %v4370 = vsel %vm1414, %v4322, 0
      %v4372 = vsel %vm1414, %v4324, 0
      %v4374 = vsel %vm1414, %v4326, 0
      %v4376 = vsel %vm1414, %v4328, 0
      %v4378 = vsel %vm1414, %v4330, 0
      %v4380 = vsel %vm1414, %v4332, 0
      %v4382 = vsel %vm1414, %v4334, 0
      %v4384 = vsel %vm1414, %v4336, 0
      %v4386 = vsel %vm1414, %v4338, 0
      %v4388 = vsel %vm1414, %v4340, 0
      %v4390 = vsel %vm1414, %v4342, 0
      %v4392 = vsel %vm1414, %v4344, 0
      %v4394 = vsel %vm1414, %v4346, 0
      %4396 = vmatprep.subr.bf16.mxu0 0
      %4397 = vmatpush1.bf16.msra.mxu0 0
      %4398 = vmatprep.subr.bf16.mxu0 0
      %4399 = vmatpush1.bf16.msra.mxu0 0
      %4400 = vmatprep.subr.bf16.mxu0 0
      %4401 = vmatpush1.bf16.msra.mxu0 0
      %4402 = vmatprep.subr.bf16.mxu0 0
      %4403 = vmatpush1.bf16.msra.mxu0 0
      %4404 = vmatprep.subr.bf16.mxu0 0
      %4405 = vmatpush1.bf16.msra.mxu0 0
      %4406 = vmatprep.subr.bf16.mxu0 0
      %4407 = vmatpush1.bf16.msra.mxu0 0
      %4408 = vmatprep.subr.bf16.mxu0 0
      %4409 = vmatpush1.bf16.msra.mxu0 %v4361
      %4410 = vmatprep.subr.bf16.mxu0 0
      %4411 = vmatpush1.bf16.msra.mxu0 %v4360
      %4412 = vmatprep.subr.bf16.mxu0 0
      %4413 = vmatpush2.bf16.msra.mxu0 0
      %4414 = vmatprep.subr.bf16.mxu0 0
      %4415 = vmatpush2.bf16.msra.mxu0 0
      %4416 = vmatprep.subr.bf16.mxu0 0
      %4417 = vmatpush2.bf16.msra.mxu0 0
      %4418 = vmatprep.subr.bf16.mxu0 0
      %4419 = vmatpush2.bf16.msra.mxu0 0
      %4420 = vmatprep.subr.bf16.mxu0 0
      %4421 = vmatpush2.bf16.msra.mxu0 0
      %4422 = vmatprep.subr.bf16.mxu0 0
      %4423 = vmatpush2.bf16.msra.mxu0 0
      %4424 = vmatprep.subr.bf16.mxu0 0
      %4425 = vmatpush2.bf16.msra.mxu0 0
      %4426 = vmatprep.subr.bf16.mxu0 0
      %4427 = vmatpush2.bf16.msra.mxu0 0
      %4428 = vmatprep.mubr.bf16.mxu0 0
      %4429 = vmatmul.mubr.bf16.gmra.mxu0 %v4364
      %v4430 = vpop.f32.mrf.mxu0
      %v4431 = vadd.f32 0.0, %v4430
      %v4432 = vpop.f32.mrf.mxu0
      %v4433 = vpop.f32.mrf.mxu0
      %v4434 = vadd.f32 0.0, %v4433
      %v4435 = vpop.f32.mrf.mxu0
      %4436 = vmatprep.mubr.bf16.mxu0 0
      %4437 = vmatmul.mubr.bf16.gmra.mxu0 %v4366
      %v4438 = vpop.f32.mrf.mxu0
      %v4439 = vadd.f32 0.0, %v4438
      %v4440 = vpop.f32.mrf.mxu0
      %v4441 = vpop.f32.mrf.mxu0
      %v4442 = vadd.f32 0.0, %v4441
      %v4443 = vpop.f32.mrf.mxu0
      %4444 = vmatprep.mubr.bf16.mxu0 0
      %4445 = vmatmul.mubr.bf16.gmra.mxu0 %v4368
      %v4446 = vpop.f32.mrf.mxu0
      %v4447 = vadd.f32 0.0, %v4446
      %v4448 = vpop.f32.mrf.mxu0
      %v4449 = vpop.f32.mrf.mxu0
      %v4450 = vadd.f32 0.0, %v4449
      %v4451 = vpop.f32.mrf.mxu0
      %4452 = vmatprep.mubr.bf16.mxu0 0
      %4453 = vmatmul.mubr.bf16.gmra.mxu0 %v4370
      %v4454 = vpop.f32.mrf.mxu0
      %v4455 = vadd.f32 0.0, %v4454
      %v4456 = vpop.f32.mrf.mxu0
      %v4457 = vpop.f32.mrf.mxu0
      %v4458 = vadd.f32 0.0, %v4457
      %v4459 = vpop.f32.mrf.mxu0
      %4460 = vmatprep.mubr.bf16.mxu0 0
      %4461 = vmatmul.mubr.bf16.gmra.mxu0 %v4372
      %v4462 = vpop.f32.mrf.mxu0
      %v4463 = vadd.f32 0.0, %v4462
      %v4464 = vpop.f32.mrf.mxu0
      %v4465 = vpop.f32.mrf.mxu0
      %v4466 = vadd.f32 0.0, %v4465
      %v4467 = vpop.f32.mrf.mxu0
      %4468 = vmatprep.mubr.bf16.mxu0 0
      %4469 = vmatmul.mubr.bf16.gmra.mxu0 %v4374
      %v4470 = vpop.f32.mrf.mxu0
      %v4471 = vadd.f32 0.0, %v4470
      %v4472 = vpop.f32.mrf.mxu0
      %v4473 = vpop.f32.mrf.mxu0
      %v4474 = vadd.f32 0.0, %v4473
      %v4475 = vpop.f32.mrf.mxu0
      %4476 = vmatprep.mubr.bf16.mxu0 0
      %4477 = vmatmul.mubr.bf16.gmra.mxu0 %v4376
      %v4478 = vpop.f32.mrf.mxu0
      %v4479 = vadd.f32 0.0, %v4478
      %v4480 = vpop.f32.mrf.mxu0
      %v4481 = vpop.f32.mrf.mxu0
      %v4482 = vadd.f32 0.0, %v4481
      %v4483 = vpop.f32.mrf.mxu0
      %4484 = vmatprep.mubr.bf16.mxu0 0
      %4485 = vmatmul.mubr.bf16.gmra.mxu0 %v4378
      %v4486 = vpop.f32.mrf.mxu0
      %v4487 = vadd.f32 0.0, %v4486
      %v4488 = vpop.f32.mrf.mxu0
      %v4489 = vpop.f32.mrf.mxu0
      %v4490 = vadd.f32 0.0, %v4489
      %v4491 = vpop.f32.mrf.mxu0
      %4492 = vmatprep.mubr.bf16.mxu0 0
      %4493 = vmatmul.mubr.bf16.gmra.mxu0 %v4380
      %v4494 = vpop.f32.mrf.mxu0
      %v4495 = vadd.f32 0.0, %v4494
      %v4496 = vpop.f32.mrf.mxu0
      %v4497 = vpop.f32.mrf.mxu0
      %v4498 = vadd.f32 0.0, %v4497
      %v4499 = vpop.f32.mrf.mxu0
      %4500 = vmatprep.mubr.bf16.mxu0 0
      %4501 = vmatmul.mubr.bf16.gmra.mxu0 %v4382
      %v4502 = vpop.f32.mrf.mxu0
      %v4503 = vadd.f32 0.0, %v4502
      %v4504 = vpop.f32.mrf.mxu0
      %v4505 = vpop.f32.mrf.mxu0
      %v4506 = vadd.f32 0.0, %v4505
      %v4507 = vpop.f32.mrf.mxu0
      %4508 = vmatprep.mubr.bf16.mxu0 0
      %4509 = vmatmul.mubr.bf16.gmra.mxu0 %v4384
      %v4510 = vpop.f32.mrf.mxu0
      %v4511 = vadd.f32 0.0, %v4510
      %v4512 = vpop.f32.mrf.mxu0
      %v4513 = vpop.f32.mrf.mxu0
      %v4514 = vadd.f32 0.0, %v4513
      %v4515 = vpop.f32.mrf.mxu0
      %4516 = vmatprep.mubr.bf16.mxu0 0
      %4517 = vmatmul.mubr.bf16.gmra.mxu0 %v4386
      %v4518 = vpop.f32.mrf.mxu0
      %v4519 = vadd.f32 0.0, %v4518
      %v4520 = vpop.f32.mrf.mxu0
      %v4521 = vpop.f32.mrf.mxu0
      %v4522 = vadd.f32 0.0, %v4521
      %v4523 = vpop.f32.mrf.mxu0
      %4524 = vmatprep.mubr.bf16.mxu0 0
      %4525 = vmatmul.mubr.bf16.gmra.mxu0 %v4388
      %v4526 = vpop.f32.mrf.mxu0
      %v4527 = vadd.f32 0.0, %v4526
      %v4528 = vpop.f32.mrf.mxu0
      %v4529 = vpop.f32.mrf.mxu0
      %v4530 = vadd.f32 0.0, %v4529
      %v4531 = vpop.f32.mrf.mxu0
      %4532 = vmatprep.mubr.bf16.mxu0 0
      %4533 = vmatmul.mubr.bf16.gmra.mxu0 %v4390
      %v4534 = vpop.f32.mrf.mxu0
      %v4535 = vadd.f32 0.0, %v4534
      %v4536 = vpop.f32.mrf.mxu0
      %v4537 = vpop.f32.mrf.mxu0
      %v4538 = vadd.f32 0.0, %v4537
      %v4539 = vpop.f32.mrf.mxu0
      %4540 = vmatprep.mubr.bf16.mxu0 0
      %4541 = vmatmul.mubr.bf16.gmra.mxu0 %v4392
      %v4542 = vpop.f32.mrf.mxu0
      %v4543 = vadd.f32 0.0, %v4542
      %v4544 = vpop.f32.mrf.mxu0
      %v4545 = vpop.f32.mrf.mxu0
      %v4546 = vadd.f32 0.0, %v4545
      %v4547 = vpop.f32.mrf.mxu0
      %4548 = vmatprep.mubr.bf16.mxu0 0
      %4549 = vmatmul.mubr.bf16.gmra.mxu0 %v4394
      %v4550 = vpop.f32.mrf.mxu0
      %v4551 = vadd.f32 0.0, %v4550
      %v4552 = vpop.f32.mrf.mxu0
      %v4553 = vpop.f32.mrf.mxu0
      %v4554 = vadd.f32 0.0, %v4553
      %v4555 = vpop.f32.mrf.mxu0
      %4556 = vdwg.mxu0
      %v4557 = vld [vmem:[#allocation2 + $0x40] sm:$0xe]
      %v4558 = vld [vmem:[#allocation2 + $0x44] sm:$0xe]
      %4559 = vrot.lane.b32.xlu0 %v1660, 4
      %v4560 = vpop.permute.xlu0 %4559
      %4561 = vrot.lane.b32.xlu0 %v1661, 4
      %v4562 = vpop.permute.xlu0 %4561
      %4563 = vrot.lane.b32.xlu0 %v1097, 8
      %v4564 = vpop.permute.xlu0 %4563
      %4565 = vrot.lane.b32.xlu0 %v1679, 12
      %v4566 = vpop.permute.xlu0 %4565
      %4567 = vrot.lane.b32.xlu0 %v1680, 12
      %v4568 = vpop.permute.xlu0 %4567
      %4569 = vrot.lane.b32.xlu0 %v3808, 16
      %v4570 = vpop.permute.xlu0 %4569
      %v4572 = vunpack.c.l.b16 %v4557
      %v4573 = vpack.c.b16 %v3727, %v4572
      %v4575 = vshrl.u32 %v4573, 16
      %v4577 = vshll.u32 %v4573, 16
      %v4579 = vrot.slane %v4577, 1
      %v4580 = vor.u32 %v4575, %v4579
      %v4581 = vsel %vm553, %v4580, %v3819
      %v4582 = vshrl.u32 %v3808, 16
      %4584 = vrot.lane.b32.xlu0 %v4581, 20
      %v4585 = vpop.permute.xlu0 %4584
      %4586 = vrot.lane.b32.xlu0 %v4582, 20
      %v4587 = vpop.permute.xlu0 %4586
      %4588 = vrot.lane.b32.xlu0 %v4025, 24
      %v4589 = vpop.permute.xlu0 %4588
      %v4591 = vunpack.c.l.b16 %v4558
      %v4592 = vpack.c.b16 %v3728, %v4591
      %v4594 = vshrl.u32 %v4592, 16
      %v4596 = vshll.u32 %v4592, 16
      %v4598 = vrot.slane %v4596, 1
      %v4599 = vor.u32 %v4594, %v4598
      %v4600 = vsel %vm553, %v4599, %v4036
      %v4601 = vshrl.u32 %v4025, 16
      %4603 = vrot.lane.b32.xlu0 %v4600, 28
      %v4604 = vpop.permute.xlu0 %4603
      %4605 = vrot.lane.b32.xlu0 %v4601, 28
      %v4606 = vpop.permute.xlu0 %4605
      %v4608 = vsel %vm1167, %v538, %v4560
      %v4610 = vsel %vm1167, %v987, %v4562
      %v4611 = vsel %vm1200, %v4608, %v745
      %v4613 = vsel %vm1200, %v4610, %v4564
      %v4615 = vsel %vm1233, %v4611, %v4566
      %v4617 = vsel %vm1233, %v4613, %v4568
      %v4618 = vsel %vm1266, %v4615, %v3775
      %v4620 = vsel %vm1266, %v4617, %v4570
      %v4622 = vsel %vm1299, %v4618, %v4585
      %v4624 = vsel %vm1299, %v4620, %v4587
      %v4625 = vsel %vm1332, %v4622, %v3992
      %v4627 = vsel %vm1332, %v4624, %v4589
      %v4629 = vsel %vm1365, %v4625, %v4604
      %v4631 = vsel %vm1365, %v4627, %v4606
      %s4632 = scalar_lea.vmem %s2, 80
      %v4633 = vld [vmem:[%s4632] sm:$0xf]
      %v4634 = vld [vmem:[%s4632 + $0x4] sm:$0xf]
      %v4635 = vld [vmem:[%s4632 + $0x8] sm:$0xf]
      %v4636 = vld [vmem:[%s4632 + $0xc] sm:$0xf]
      %v4637 = vshrl.u32 %v4629, 16
      %v4639 = vshll.u32 %v4629, 16
      %v4641 = vrot.slane %v4639, 1
      %v4642 = vor.u32 %v4637, %v4641
      %v4643 = vshll.u32 %v4318, 16
      %v4645 = vrot.slane %v4643, 1
      %v4646 = vsel %vm553, %v4642, %v4645
      %v4647 = vshrl.u32 %v4318, 16
      %v4649 = vor.u32 %v4647, %v4645
      %v4650 = vshll.u32 %v4320, 16
      %v4652 = vrot.slane %v4650, 1
      %v4653 = vsel %vm553, %v4649, %v4652
      %v4654 = vshrl.u32 %v4320, 16
      %v4656 = vor.u32 %v4654, %v4652
      %v4657 = vshll.u32 %v4322, 16
      %v4659 = vrot.slane %v4657, 1
      %v4660 = vsel %vm553, %v4656, %v4659
      %v4661 = vshrl.u32 %v4322, 16
      %v4663 = vor.u32 %v4661, %v4659
      %v4664 = vshll.u32 %v4324, 16
      %v4666 = vrot.slane %v4664, 1
      %v4667 = vsel %vm553, %v4663, %v4666
      %v4668 = vshrl.u32 %v4324, 16
      %v4670 = vor.u32 %v4668, %v4666
      %v4671 = vshll.u32 %v4326, 16
      %v4673 = vrot.slane %v4671, 1
      %v4674 = vsel %vm553, %v4670, %v4673
      %v4675 = vshrl.u32 %v4326, 16
      %v4677 = vor.u32 %v4675, %v4673
      %v4678 = vshll.u32 %v4328, 16
      %v4680 = vrot.slane %v4678, 1
      %v4681 = vsel %vm553, %v4677, %v4680
      %v4682 = vshrl.u32 %v4328, 16
      %v4684 = vor.u32 %v4682, %v4680
      %v4685 = vshll.u32 %v4330, 16
      %v4687 = vrot.slane %v4685, 1
      %v4688 = vsel %vm553, %v4684, %v4687
      %v4689 = vshrl.u32 %v4330, 16
      %v4691 = vor.u32 %v4689, %v4687
      %v4692 = vshll.u32 %v4332, 16
      %v4694 = vrot.slane %v4692, 1
      %v4695 = vsel %vm553, %v4691, %v4694
      %v4696 = vshrl.u32 %v4332, 16
      %v4698 = vor.u32 %v4696, %v4694
      %v4699 = vshll.u32 %v4334, 16
      %v4701 = vrot.slane %v4699, 1
      %v4702 = vsel %vm553, %v4698, %v4701
      %v4703 = vshrl.u32 %v4334, 16
      %v4705 = vor.u32 %v4703, %v4701
      %v4706 = vshll.u32 %v4336, 16
      %v4708 = vrot.slane %v4706, 1
      %v4709 = vsel %vm553, %v4705, %v4708
      %v4710 = vshrl.u32 %v4336, 16
      %v4712 = vor.u32 %v4710, %v4708
      %v4713 = vshll.u32 %v4338, 16
      %v4715 = vrot.slane %v4713, 1
      %v4716 = vsel %vm553, %v4712, %v4715
      %v4717 = vshrl.u32 %v4338, 16
      %v4719 = vor.u32 %v4717, %v4715
      %v4720 = vshll.u32 %v4340, 16
      %v4722 = vrot.slane %v4720, 1
      %v4723 = vsel %vm553, %v4719, %v4722
      %v4724 = vshrl.u32 %v4340, 16
      %v4726 = vor.u32 %v4724, %v4722
      %v4727 = vshll.u32 %v4342, 16
      %v4729 = vrot.slane %v4727, 1
      %v4730 = vsel %vm553, %v4726, %v4729
      %v4731 = vshrl.u32 %v4342, 16
      %v4733 = vor.u32 %v4731, %v4729
      %v4734 = vshll.u32 %v4344, 16
      %v4736 = vrot.slane %v4734, 1
      %v4737 = vsel %vm553, %v4733, %v4736
      %v4738 = vshrl.u32 %v4344, 16
      %v4740 = vor.u32 %v4738, %v4736
      %v4741 = vshll.u32 %v4346, 16
      %v4743 = vrot.slane %v4741, 1
      %v4744 = vsel %vm553, %v4740, %v4743
      %v4745 = vshrl.u32 %v4346, 16
      %v4747 = vor.u32 %v4745, %v4743
      %v4748 = vshll.u32 %v4631, 16
      %v4750 = vrot.slane %v4748, 1
      %v4751 = vsel %vm553, %v4747, %v4750
      %v4756 = vunpack.c.l.b16 %v4633
      %v4757 = vunpack.c.l.b16 %v4634
      %v4758 = vunpack.c.l.b16 %v4635
      %v4759 = vunpack.c.l.b16 %v4636
      %v4760 = vpack.c.b16 %v4757, %v4756
      %v4761 = vpack.c.b16 %v4759, %v4758
      %v4765 = vsel %vm1414, %v4646, 0
      %v4768 = vsel %vm1414, %v4653, 0
      %v4771 = vsel %vm1414, %v4660, 0
      %v4774 = vsel %vm1414, %v4667, 0
      %v4777 = vsel %vm1414, %v4674, 0
      %v4780 = vsel %vm1414, %v4681, 0
      %v4783 = vsel %vm1414, %v4688, 0
      %v4786 = vsel %vm1414, %v4695, 0
      %v4789 = vsel %vm1414, %v4702, 0
      %v4792 = vsel %vm1414, %v4709, 0
      %v4795 = vsel %vm1414, %v4716, 0
      %v4798 = vsel %vm1414, %v4723, 0
      %v4801 = vsel %vm1414, %v4730, 0
      %v4804 = vsel %vm1414, %v4737, 0
      %v4807 = vsel %vm1414, %v4744, 0
      %v4810 = vsel %vm1414, %v4751, 0
      %4812 = vmatprep.subr.bf16.mxu0 0
      %4813 = vmatpush1.bf16.msra.mxu0 0
      %4814 = vmatprep.subr.bf16.mxu0 0
      %4815 = vmatpush1.bf16.msra.mxu0 0
      %4816 = vmatprep.subr.bf16.mxu0 0
      %4817 = vmatpush1.bf16.msra.mxu0 0
      %4818 = vmatprep.subr.bf16.mxu0 0
      %4819 = vmatpush1.bf16.msra.mxu0 0
      %4820 = vmatprep.subr.bf16.mxu0 0
      %4821 = vmatpush1.bf16.msra.mxu0 0
      %4822 = vmatprep.subr.bf16.mxu0 0
      %4823 = vmatpush1.bf16.msra.mxu0 0
      %4824 = vmatprep.subr.bf16.mxu0 0
      %4825 = vmatpush1.bf16.msra.mxu0 %v4761
      %4826 = vmatprep.subr.bf16.mxu0 0
      %4827 = vmatpush1.bf16.msra.mxu0 %v4760
      %4828 = vmatprep.subr.bf16.mxu0 0
      %4829 = vmatpush2.bf16.msra.mxu0 0
      %4830 = vmatprep.subr.bf16.mxu0 0
      %4831 = vmatpush2.bf16.msra.mxu0 0
      %4832 = vmatprep.subr.bf16.mxu0 0
      %4833 = vmatpush2.bf16.msra.mxu0 0
      %4834 = vmatprep.subr.bf16.mxu0 0
      %4835 = vmatpush2.bf16.msra.mxu0 0
      %4836 = vmatprep.subr.bf16.mxu0 0
      %4837 = vmatpush2.bf16.msra.mxu0 0
      %4838 = vmatprep.subr.bf16.mxu0 0
      %4839 = vmatpush2.bf16.msra.mxu0 0
      %4840 = vmatprep.subr.bf16.mxu0 0
      %4841 = vmatpush2.bf16.msra.mxu0 0
      %4842 = vmatprep.subr.bf16.mxu0 0
      %4843 = vmatpush2.bf16.msra.mxu0 0
      %4844 = vmatprep.mubr.bf16.mxu0 0
      %4845 = vmatmul.mubr.bf16.gmra.mxu0 %v4765
      %v4846 = vpop.f32.mrf.mxu0
      %v4847 = vadd.f32 0.0, %v4846
      %v4848 = vpop.f32.mrf.mxu0
      %v4849 = vpop.f32.mrf.mxu0
      %v4850 = vadd.f32 0.0, %v4849
      %v4851 = vpop.f32.mrf.mxu0
      %4852 = vmatprep.mubr.bf16.mxu0 0
      %4853 = vmatmul.mubr.bf16.gmra.mxu0 %v4768
      %v4854 = vpop.f32.mrf.mxu0
      %v4855 = vadd.f32 0.0, %v4854
      %v4856 = vpop.f32.mrf.mxu0
      %v4857 = vpop.f32.mrf.mxu0
      %v4858 = vadd.f32 0.0, %v4857
      %v4859 = vpop.f32.mrf.mxu0
      %4860 = vmatprep.mubr.bf16.mxu0 0
      %4861 = vmatmul.mubr.bf16.gmra.mxu0 %v4771
      %v4862 = vpop.f32.mrf.mxu0
      %v4863 = vadd.f32 0.0, %v4862
      %v4864 = vpop.f32.mrf.mxu0
      %v4865 = vpop.f32.mrf.mxu0
      %v4866 = vadd.f32 0.0, %v4865
      %v4867 = vpop.f32.mrf.mxu0
      %4868 = vmatprep.mubr.bf16.mxu0 0
      %4869 = vmatmul.mubr.bf16.gmra.mxu0 %v4774
      %v4870 = vpop.f32.mrf.mxu0
      %v4871 = vadd.f32 0.0, %v4870
      %v4872 = vpop.f32.mrf.mxu0
      %v4873 = vpop.f32.mrf.mxu0
      %v4874 = vadd.f32 0.0, %v4873
      %v4875 = vpop.f32.mrf.mxu0
      %4876 = vmatprep.mubr.bf16.mxu0 0
      %4877 = vmatmul.mubr.bf16.gmra.mxu0 %v4777
      %v4878 = vpop.f32.mrf.mxu0
      %v4879 = vadd.f32 0.0, %v4878
      %v4880 = vpop.f32.mrf.mxu0
      %v4881 = vpop.f32.mrf.mxu0
      %v4882 = vadd.f32 0.0, %v4881
      %v4883 = vpop.f32.mrf.mxu0
      %4884 = vmatprep.mubr.bf16.mxu0 0
      %4885 = vmatmul.mubr.bf16.gmra.mxu0 %v4780
      %v4886 = vpop.f32.mrf.mxu0
      %v4887 = vadd.f32 0.0, %v4886
      %v4888 = vpop.f32.mrf.mxu0
      %v4889 = vpop.f32.mrf.mxu0
      %v4890 = vadd.f32 0.0, %v4889
      %v4891 = vpop.f32.mrf.mxu0
      %4892 = vmatprep.mubr.bf16.mxu0 0
      %4893 = vmatmul.mubr.bf16.gmra.mxu0 %v4783
      %v4894 = vpop.f32.mrf.mxu0
      %v4895 = vadd.f32 0.0, %v4894
      %v4896 = vpop.f32.mrf.mxu0
      %v4897 = vpop.f32.mrf.mxu0
      %v4898 = vadd.f32 0.0, %v4897
      %v4899 = vpop.f32.mrf.mxu0
      %4900 = vmatprep.mubr.bf16.mxu0 0
      %4901 = vmatmul.mubr.bf16.gmra.mxu0 %v4786
      %v4902 = vpop.f32.mrf.mxu0
      %v4903 = vadd.f32 0.0, %v4902
      %v4904 = vpop.f32.mrf.mxu0
      %v4905 = vpop.f32.mrf.mxu0
      %v4906 = vadd.f32 0.0, %v4905
      %v4907 = vpop.f32.mrf.mxu0
      %4908 = vmatprep.mubr.bf16.mxu0 0
      %4909 = vmatmul.mubr.bf16.gmra.mxu0 %v4789
      %v4910 = vpop.f32.mrf.mxu0
      %v4911 = vadd.f32 0.0, %v4910
      %v4912 = vpop.f32.mrf.mxu0
      %v4913 = vpop.f32.mrf.mxu0
      %v4914 = vadd.f32 0.0, %v4913
      %v4915 = vpop.f32.mrf.mxu0
      %4916 = vmatprep.mubr.bf16.mxu0 0
      %4917 = vmatmul.mubr.bf16.gmra.mxu0 %v4792
      %v4918 = vpop.f32.mrf.mxu0
      %v4919 = vadd.f32 0.0, %v4918
      %v4920 = vpop.f32.mrf.mxu0
      %v4921 = vpop.f32.mrf.mxu0
      %v4922 = vadd.f32 0.0, %v4921
      %v4923 = vpop.f32.mrf.mxu0
      %4924 = vmatprep.mubr.bf16.mxu0 0
      %4925 = vmatmul.mubr.bf16.gmra.mxu0 %v4795
      %v4926 = vpop.f32.mrf.mxu0
      %v4927 = vadd.f32 0.0, %v4926
      %v4928 = vpop.f32.mrf.mxu0
      %v4929 = vpop.f32.mrf.mxu0
      %v4930 = vadd.f32 0.0, %v4929
      %v4931 = vpop.f32.mrf.mxu0
      %4932 = vmatprep.mubr.bf16.mxu0 0
      %4933 = vmatmul.mubr.bf16.gmra.mxu0 %v4798
      %v4934 = vpop.f32.mrf.mxu0
      %v4935 = vadd.f32 0.0, %v4934
      %v4936 = vpop.f32.mrf.mxu0
      %v4937 = vpop.f32.mrf.mxu0
      %v4938 = vadd.f32 0.0, %v4937
      %v4939 = vpop.f32.mrf.mxu0
      %4940 = vmatprep.mubr.bf16.mxu0 0
      %4941 = vmatmul.mubr.bf16.gmra.mxu0 %v4801
      %v4942 = vpop.f32.mrf.mxu0
      %v4943 = vadd.f32 0.0, %v4942
      %v4944 = vpop.f32.mrf.mxu0
      %v4945 = vpop.f32.mrf.mxu0
      %v4946 = vadd.f32 0.0, %v4945
      %v4947 = vpop.f32.mrf.mxu0
      %4948 = vmatprep.mubr.bf16.mxu0 0
      %4949 = vmatmul.mubr.bf16.gmra.mxu0 %v4804
      %v4950 = vpop.f32.mrf.mxu0
      %v4951 = vadd.f32 0.0, %v4950
      %v4952 = vpop.f32.mrf.mxu0
      %v4953 = vpop.f32.mrf.mxu0
      %v4954 = vadd.f32 0.0, %v4953
      %v4955 = vpop.f32.mrf.mxu0
      %4956 = vmatprep.mubr.bf16.mxu0 0
      %4957 = vmatmul.mubr.bf16.gmra.mxu0 %v4807
      %v4958 = vpop.f32.mrf.mxu0
      %v4959 = vadd.f32 0.0, %v4958
      %v4960 = vpop.f32.mrf.mxu0
      %v4961 = vpop.f32.mrf.mxu0
      %v4962 = vadd.f32 0.0, %v4961
      %v4963 = vpop.f32.mrf.mxu0
      %4964 = vmatprep.mubr.bf16.mxu0 0
      %4965 = vmatmul.mubr.bf16.gmra.mxu0 %v4810
      %v4966 = vpop.f32.mrf.mxu0
      %v4967 = vadd.f32 0.0, %v4966
      %v4968 = vpop.f32.mrf.mxu0
      %v4969 = vpop.f32.mrf.mxu0
      %v4970 = vadd.f32 0.0, %v4969
      %v4971 = vpop.f32.mrf.mxu0
      %4972 = vdwg.mxu0
      %v4973 = vld [vmem:[#allocation2 + $0xc4] sm:$0xf]
      %v4974 = vld [vmem:[#allocation2 + $0x48] sm:$0xf]
      %v4975 = vld [vmem:[#allocation2 + $0x4c] sm:$0xf]
      %v4976 = vld [vmem:[#allocation2 + $0x50] sm:$0xf]
      %v4977 = vld [vmem:[#allocation2 + $0x54] sm:$0xf]
      %v4978 = vld [vmem:[#allocation2 + $0x58] sm:$0xf]
      %v4979 = vld [vmem:[#allocation2 + $0x5c] sm:$0xf]
      %v4980 = vld [vmem:[#allocation2 + $0x60] sm:$0xf]
      %v4981 = vld [vmem:[#allocation2 + $0x64] sm:$0xf]
      %v4982 = vld [vmem:[#allocation2 + $0x68] sm:$0xf]
      %v4983 = vld [vmem:[#allocation2 + $0x6c] sm:$0xf]
      %v4984 = vld [vmem:[#allocation2 + $0x70] sm:$0xf]
      %v4985 = vld [vmem:[#allocation2 + $0x74] sm:$0xf]
      %v4986 = vld [vmem:[#allocation2 + $0x78] sm:$0xf]
      %v4987 = vld [vmem:[#allocation2 + $0x7c] sm:$0xf]
      %v4988 = vld [vmem:[#allocation2 + $0x80] sm:$0xf]
      %v4989 = vld [vmem:[#allocation2 + $0x84] sm:$0xf]
      %v4990 = vld [vmem:[#allocation2 + $0x88] sm:$0xf]
      %v4991 = vld [vmem:[#allocation2 + $0x8c] sm:$0xf]
      %v4992 = vld [vmem:[#allocation2 + $0x90] sm:$0xf]
      %v4993 = vld [vmem:[#allocation2 + $0x94] sm:$0xf]
      %v4994 = vld [vmem:[#allocation2 + $0x98] sm:$0xf]
      %v4995 = vld [vmem:[#allocation2 + $0x9c] sm:$0xf]
      %v4996 = vld [vmem:[#allocation2 + $0xa0] sm:$0xf]
      %v4997 = vld [vmem:[#allocation2 + $0xa4] sm:$0xf]
      %v4998 = vld [vmem:[#allocation2 + $0xa8] sm:$0xf]
      %v4999 = vld [vmem:[#allocation2 + $0xac] sm:$0xf]
      %v5000 = vld [vmem:[#allocation2 + $0xb0] sm:$0xf]
      %v5001 = vld [vmem:[#allocation2 + $0xb4] sm:$0xf]
      %v5002 = vld [vmem:[#allocation2 + $0xb8] sm:$0xf]
      %v5003 = vld [vmem:[#allocation2 + $0xbc] sm:$0xf]
      %v5004 = vld [vmem:[#allocation2 + $0xc0] sm:$0xf]
      %v5005 = vld [vmem:[#allocation2 + $0xc8] sm:$0x1]
      %5006 = vrot.lane.b32.xlu0 %v1102, 4
      %v5007 = vpop.permute.xlu0 %5006
      %5008 = vrot.lane.b32.xlu0 %v1110, 4
      %v5009 = vpop.permute.xlu0 %5008
      %5010 = vrot.lane.b32.xlu0 %v1118, 4
      %v5011 = vpop.permute.xlu0 %5010
      %5012 = vrot.lane.b32.xlu0 %v1126, 4
      %v5013 = vpop.permute.xlu0 %5012
      %5014 = vrot.lane.b32.xlu0 %v1134, 4
      %v5015 = vpop.permute.xlu0 %5014
      %5016 = vrot.lane.b32.xlu0 %v949, 8
      %v5017 = vpop.permute.xlu0 %5016
      %5018 = vrot.lane.b32.xlu0 %v950, 8
      %v5019 = vpop.permute.xlu0 %5018
      %5020 = vrot.lane.b32.xlu0 %v951, 8
      %v5021 = vpop.permute.xlu0 %5020
      %5022 = vrot.lane.b32.xlu0 %v952, 8
      %v5023 = vpop.permute.xlu0 %5022
      %5024 = vrot.lane.b32.xlu0 %v2472, 8
      %v5025 = vpop.permute.xlu0 %5024
      %5026 = vrot.lane.b32.xlu0 %v2530, 12
      %v5027 = vpop.permute.xlu0 %5026
      %5028 = vrot.lane.b32.xlu0 %v2538, 12
      %v5029 = vpop.permute.xlu0 %5028
      %5030 = vrot.lane.b32.xlu0 %v2546, 12
      %v5031 = vpop.permute.xlu0 %5030
      %5032 = vrot.lane.b32.xlu0 %v2554, 12
      %v5033 = vpop.permute.xlu0 %5032
      %5034 = vrot.lane.b32.xlu0 %v2562, 12
      %v5035 = vpop.permute.xlu0 %5034
      %5036 = vrot.lane.b32.xlu0 %v3975, 16
      %v5037 = vpop.permute.xlu0 %5036
      %5038 = vrot.lane.b32.xlu0 %v3976, 16
      %v5039 = vpop.permute.xlu0 %5038
      %5040 = vrot.lane.b32.xlu0 %v3977, 16
      %v5041 = vpop.permute.xlu0 %5040
      %5042 = vrot.lane.b32.xlu0 %v3978, 16
      %v5043 = vpop.permute.xlu0 %5042
      %5044 = vrot.lane.b32.xlu0 %v3979, 16
      %v5045 = vpop.permute.xlu0 %5044
      %5046 = vrot.lane.b32.xlu0 %v3980, 16
      %v5047 = vpop.permute.xlu0 %5046
      %5048 = vrot.lane.b32.xlu0 %v3981, 16
      %v5049 = vpop.permute.xlu0 %5048
      %5050 = vrot.lane.b32.xlu0 %v3982, 16
      %v5051 = vpop.permute.xlu0 %5050
      %5052 = vrot.lane.b32.xlu0 %v3983, 16
      %v5053 = vpop.permute.xlu0 %5052
      %5054 = vrot.lane.b32.xlu0 %v3984, 16
      %v5055 = vpop.permute.xlu0 %5054
      %5056 = vrot.lane.b32.xlu0 %v3985, 16
      %v5057 = vpop.permute.xlu0 %5056
      %5058 = vrot.lane.b32.xlu0 %v3986, 16
      %v5059 = vpop.permute.xlu0 %5058
      %5060 = vrot.lane.b32.xlu0 %v3987, 16
      %v5061 = vpop.permute.xlu0 %5060
      %5062 = vrot.lane.b32.xlu0 %v3988, 16
      %v5063 = vpop.permute.xlu0 %5062
      %5064 = vrot.lane.b32.xlu0 %v3989, 16
      %v5065 = vpop.permute.xlu0 %5064
      %5066 = vrot.lane.b32.xlu0 %v3990, 16
      %v5067 = vpop.permute.xlu0 %5066
      %5068 = vrot.lane.b32.xlu0 %v4037, 20
      %v5069 = vpop.permute.xlu0 %5068
      %5070 = vrot.lane.b32.xlu0 %v4045, 20
      %v5071 = vpop.permute.xlu0 %5070
      %5072 = vrot.lane.b32.xlu0 %v4053, 20
      %v5073 = vpop.permute.xlu0 %5072
      %5074 = vrot.lane.b32.xlu0 %v4061, 20
      %v5075 = vpop.permute.xlu0 %5074
      %5076 = vrot.lane.b32.xlu0 %v4069, 20
      %v5077 = vpop.permute.xlu0 %5076
      %5078 = vrot.lane.b32.xlu0 %v4077, 20
      %v5079 = vpop.permute.xlu0 %5078
      %5080 = vrot.lane.b32.xlu0 %v4085, 20
      %v5081 = vpop.permute.xlu0 %5080
      %5082 = vrot.lane.b32.xlu0 %v4093, 20
      %v5083 = vpop.permute.xlu0 %5082
      %5084 = vrot.lane.b32.xlu0 %v4101, 20
      %v5085 = vpop.permute.xlu0 %5084
      %5086 = vrot.lane.b32.xlu0 %v4109, 20
      %v5087 = vpop.permute.xlu0 %5086
      %5088 = vrot.lane.b32.xlu0 %v4117, 20
      %v5089 = vpop.permute.xlu0 %5088
      %5090 = vrot.lane.b32.xlu0 %v4125, 20
      %v5091 = vpop.permute.xlu0 %5090
      %5092 = vrot.lane.b32.xlu0 %v4133, 20
      %v5093 = vpop.permute.xlu0 %5092
      %5094 = vrot.lane.b32.xlu0 %v4141, 20
      %v5095 = vpop.permute.xlu0 %5094
      %5096 = vrot.lane.b32.xlu0 %v4149, 20
      %v5097 = vpop.permute.xlu0 %5096
      %5098 = vrot.lane.b32.xlu0 %v4157, 20
      %v5099 = vpop.permute.xlu0 %5098
      %v5101 = vunpack.c.l.b16 %v4973
      %v5102 = vpack.c.b16 %v5101, %v3974
      %5103 = vrot.lane.b32.xlu0 %v3759, 24
      %v5104 = vpop.permute.xlu0 %5103
      %5105 = vrot.lane.b32.xlu0 %v3760, 24
      %v5106 = vpop.permute.xlu0 %5105
      %5107 = vrot.lane.b32.xlu0 %v3761, 24
      %v5108 = vpop.permute.xlu0 %5107
      %5109 = vrot.lane.b32.xlu0 %v3762, 24
      %v5110 = vpop.permute.xlu0 %5109
      %5111 = vrot.lane.b32.xlu0 %v3763, 24
      %v5112 = vpop.permute.xlu0 %5111
      %5113 = vrot.lane.b32.xlu0 %v3764, 24
      %v5114 = vpop.permute.xlu0 %5113
      %5115 = vrot.lane.b32.xlu0 %v3765, 24
      %v5116 = vpop.permute.xlu0 %5115
      %5117 = vrot.lane.b32.xlu0 %v3766, 24
      %v5118 = vpop.permute.xlu0 %5117
      %5119 = vrot.lane.b32.xlu0 %v3767, 24
      %v5120 = vpop.permute.xlu0 %5119
      %5121 = vrot.lane.b32.xlu0 %v3768, 24
      %v5122 = vpop.permute.xlu0 %5121
      %5123 = vrot.lane.b32.xlu0 %v3769, 24
      %v5124 = vpop.permute.xlu0 %5123
      %5125 = vrot.lane.b32.xlu0 %v3770, 24
      %v5126 = vpop.permute.xlu0 %5125
      %5127 = vrot.lane.b32.xlu0 %v3771, 24
      %v5128 = vpop.permute.xlu0 %5127
      %5129 = vrot.lane.b32.xlu0 %v3772, 24
      %v5130 = vpop.permute.xlu0 %5129
      %5131 = vrot.lane.b32.xlu0 %v3773, 24
      %v5132 = vpop.permute.xlu0 %5131
      %5133 = vrot.lane.b32.xlu0 %v5102, 24
      %v5134 = vpop.permute.xlu0 %5133
      %v5167 = vunpack.c.l.b16 %v4974
      %v5168 = vunpack.c.l.b16 %v4975
      %v5169 = vunpack.c.l.b16 %v4976
      %v5170 = vunpack.c.l.b16 %v4977
      %v5171 = vunpack.c.l.b16 %v4978
      %v5172 = vunpack.c.l.b16 %v4979
      %v5173 = vunpack.c.l.b16 %v4980
      %v5174 = vunpack.c.l.b16 %v4981
      %v5175 = vunpack.c.l.b16 %v4982
      %v5176 = vunpack.c.l.b16 %v4983
      %v5177 = vunpack.c.l.b16 %v4984
      %v5178 = vunpack.c.l.b16 %v4985
      %v5179 = vunpack.c.l.b16 %v4986
      %v5180 = vunpack.c.l.b16 %v4987
      %v5181 = vunpack.c.l.b16 %v4988
      %v5182 = vunpack.c.l.b16 %v4989
      %v5183 = vunpack.c.l.b16 %v4990
      %v5184 = vunpack.c.l.b16 %v4991
      %v5185 = vunpack.c.l.b16 %v4992
      %v5186 = vunpack.c.l.b16 %v4993
      %v5187 = vunpack.c.l.b16 %v4994
      %v5188 = vunpack.c.l.b16 %v4995
      %v5189 = vunpack.c.l.b16 %v4996
      %v5190 = vunpack.c.l.b16 %v4997
      %v5191 = vunpack.c.l.b16 %v4998
      %v5192 = vunpack.c.l.b16 %v4999
      %v5193 = vunpack.c.l.b16 %v5000
      %v5194 = vunpack.c.l.b16 %v5001
      %v5195 = vunpack.c.l.b16 %v5002
      %v5196 = vunpack.c.l.b16 %v5003
      %v5197 = vunpack.c.l.b16 %v5004
      %v5198 = vunpack.c.l.b16 %v5005
      %v5199 = vpack.c.b16 %v5168, %v5167
      %v5200 = vpack.c.b16 %v5170, %v5169
      %v5201 = vpack.c.b16 %v5172, %v5171
      %v5202 = vpack.c.b16 %v5174, %v5173
      %v5203 = vpack.c.b16 %v5176, %v5175
      %v5204 = vpack.c.b16 %v5178, %v5177
      %v5205 = vpack.c.b16 %v5180, %v5179
      %v5206 = vpack.c.b16 %v5182, %v5181
      %v5207 = vpack.c.b16 %v5184, %v5183
      %v5208 = vpack.c.b16 %v5186, %v5185
      %v5209 = vpack.c.b16 %v5188, %v5187
      %v5210 = vpack.c.b16 %v5190, %v5189
      %v5211 = vpack.c.b16 %v5192, %v5191
      %v5212 = vpack.c.b16 %v5194, %v5193
      %v5213 = vpack.c.b16 %v5196, %v5195
      %v5214 = vpack.c.b16 %v5101, %v5197
      %v5215 = vpack.c.b16 %v5198, %v5198
      %v5217 = vshrl.u32 %v5199, 16
      %v5219 = vshll.u32 %v5199, 16
      %v5221 = vrot.slane %v5219, 1
      %v5222 = vor.u32 %v5217, %v5221
      %v5224 = vshll.u32 %v5200, 16
      %v5226 = vrot.slane %v5224, 1
      %v5227 = vsel %vm553, %v5222, %v5226
      %v5228 = vshrl.u32 %v5200, 16
      %v5230 = vor.u32 %v5228, %v5226
      %v5232 = vshll.u32 %v5201, 16
      %v5234 = vrot.slane %v5232, 1
      %v5235 = vsel %vm553, %v5230, %v5234
      %v5236 = vshrl.u32 %v5201, 16
      %v5238 = vor.u32 %v5236, %v5234
      %v5240 = vshll.u32 %v5202, 16
      %v5242 = vrot.slane %v5240, 1
      %v5243 = vsel %vm553, %v5238, %v5242
      %v5244 = vshrl.u32 %v5202, 16
      %v5246 = vor.u32 %v5244, %v5242
      %v5248 = vshll.u32 %v5203, 16
      %v5250 = vrot.slane %v5248, 1
      %v5251 = vsel %vm553, %v5246, %v5250
      %v5252 = vshrl.u32 %v5203, 16
      %v5254 = vor.u32 %v5252, %v5250
      %v5256 = vshll.u32 %v5204, 16
      %v5258 = vrot.slane %v5256, 1
      %v5259 = vsel %vm553, %v5254, %v5258
      %v5260 = vshrl.u32 %v5204, 16
      %v5262 = vor.u32 %v5260, %v5258
      %v5264 = vshll.u32 %v5205, 16
      %v5266 = vrot.slane %v5264, 1
      %v5267 = vsel %vm553, %v5262, %v5266
      %v5268 = vshrl.u32 %v5205, 16
      %v5270 = vor.u32 %v5268, %v5266
      %v5272 = vshll.u32 %v5206, 16
      %v5274 = vrot.slane %v5272, 1
      %v5275 = vsel %vm553, %v5270, %v5274
      %v5276 = vshrl.u32 %v5206, 16
      %v5278 = vor.u32 %v5276, %v5274
      %v5280 = vshll.u32 %v5207, 16
      %v5282 = vrot.slane %v5280, 1
      %v5283 = vsel %vm553, %v5278, %v5282
      %v5284 = vshrl.u32 %v5207, 16
      %v5286 = vor.u32 %v5284, %v5282
      %v5288 = vshll.u32 %v5208, 16
      %v5290 = vrot.slane %v5288, 1
      %v5291 = vsel %vm553, %v5286, %v5290
      %v5292 = vshrl.u32 %v5208, 16
      %v5294 = vor.u32 %v5292, %v5290
      %v5296 = vshll.u32 %v5209, 16
      %v5298 = vrot.slane %v5296, 1
      %v5299 = vsel %vm553, %v5294, %v5298
      %v5300 = vshrl.u32 %v5209, 16
      %v5302 = vor.u32 %v5300, %v5298
      %v5304 = vshll.u32 %v5210, 16
      %v5306 = vrot.slane %v5304, 1
      %v5307 = vsel %vm553, %v5302, %v5306
      %v5308 = vshrl.u32 %v5210, 16
      %v5310 = vor.u32 %v5308, %v5306
      %v5312 = vshll.u32 %v5211, 16
      %v5314 = vrot.slane %v5312, 1
      %v5315 = vsel %vm553, %v5310, %v5314
      %v5316 = vshrl.u32 %v5211, 16
      %v5318 = vor.u32 %v5316, %v5314
      %v5320 = vshll.u32 %v5212, 16
      %v5322 = vrot.slane %v5320, 1
      %v5323 = vsel %vm553, %v5318, %v5322
      %v5324 = vshrl.u32 %v5212, 16
      %v5326 = vor.u32 %v5324, %v5322
      %v5328 = vshll.u32 %v5213, 16
      %v5330 = vrot.slane %v5328, 1
      %v5331 = vsel %vm553, %v5326, %v5330
      %v5332 = vshrl.u32 %v5213, 16
      %v5334 = vor.u32 %v5332, %v5330
      %v5336 = vshll.u32 %v5214, 16
      %v5338 = vrot.slane %v5336, 1
      %v5339 = vsel %vm553, %v5334, %v5338
      %v5340 = vshrl.u32 %v5214, 16
      %v5342 = vor.u32 %v5340, %v5338
      %v5344 = vshll.u32 %v5215, 16
      %v5346 = vrot.slane %v5344, 1
      %v5347 = vsel %vm553, %v5342, %v5346
      %5348 = vrot.lane.b32.xlu0 %v5227, 28
      %v5349 = vpop.permute.xlu0 %5348
      %5350 = vrot.lane.b32.xlu0 %v5235, 28
      %v5351 = vpop.permute.xlu0 %5350
      %5352 = vrot.lane.b32.xlu0 %v5243, 28
      %v5353 = vpop.permute.xlu0 %5352
      %5354 = vrot.lane.b32.xlu0 %v5251, 28
      %v5355 = vpop.permute.xlu0 %5354
      %5356 = vrot.lane.b32.xlu0 %v5259, 28
      %v5357 = vpop.permute.xlu0 %5356
      %5358 = vrot.lane.b32.xlu0 %v5267, 28
      %v5359 = vpop.permute.xlu0 %5358
      %5360 = vrot.lane.b32.xlu0 %v5275, 28
      %v5361 = vpop.permute.xlu0 %5360
      %5362 = vrot.lane.b32.xlu0 %v5283, 28
      %v5363 = vpop.permute.xlu0 %5362
      %5364 = vrot.lane.b32.xlu0 %v5291, 28
      %v5365 = vpop.permute.xlu0 %5364
      %5366 = vrot.lane.b32.xlu0 %v5299, 28
      %v5367 = vpop.permute.xlu0 %5366
      %5368 = vrot.lane.b32.xlu0 %v5307, 28
      %v5369 = vpop.permute.xlu0 %5368
      %5370 = vrot.lane.b32.xlu0 %v5315, 28
      %v5371 = vpop.permute.xlu0 %5370
      %5372 = vrot.lane.b32.xlu0 %v5323, 28
      %v5373 = vpop.permute.xlu0 %5372
      %5374 = vrot.lane.b32.xlu0 %v5331, 28
      %v5375 = vpop.permute.xlu0 %5374
      %5376 = vrot.lane.b32.xlu0 %v5339, 28
      %v5377 = vpop.permute.xlu0 %5376
      %5378 = vrot.lane.b32.xlu0 %v5347, 28
      %v5379 = vpop.permute.xlu0 %5378
      %v5381 = vsel %vm1167, %v735, %v5007
      %v5383 = vsel %vm1167, %v1059, %v5009
      %v5385 = vsel %vm1167, %v1060, %v5011
      %v5387 = vsel %vm1167, %v1061, %v5013
      %v5389 = vsel %vm1167, %v1062, %v5015
      %v5391 = vsel %vm1200, %v5381, %v5017
      %v5393 = vsel %vm1200, %v5383, %v5019
      %v5395 = vsel %vm1200, %v5385, %v5021
      %v5397 = vsel %vm1200, %v5387, %v5023
      %v5399 = vsel %vm1200, %v5389, %v5025
      %v5401 = vsel %vm1233, %v5391, %v5027
      %v5403 = vsel %vm1233, %v5393, %v5029
      %v5405 = vsel %vm1233, %v5395, %v5031
      %v5407 = vsel %vm1233, %v5397, %v5033
      %v5409 = vsel %vm1233, %v5399, %v5035
      %v5411 = vsel %vm1266, %v2668, %v5037
      %v5413 = vsel %vm1266, %v2670, %v5039
      %v5415 = vsel %vm1266, %v2672, %v5041
      %v5417 = vsel %vm1266, %v2674, %v5043
      %v5419 = vsel %vm1266, %v2676, %v5045
      %v5421 = vsel %vm1266, %v2678, %v5047
      %v5423 = vsel %vm1266, %v2680, %v5049
      %v5425 = vsel %vm1266, %v2682, %v5051
      %v5427 = vsel %vm1266, %v2684, %v5053
      %v5429 = vsel %vm1266, %v2686, %v5055
      %v5431 = vsel %vm1266, %v2688, %v5057
      %v5433 = vsel %vm1266, %v5401, %v5059
      %v5435 = vsel %vm1266, %v5403, %v5061
      %v5437 = vsel %vm1266, %v5405, %v5063
      %v5439 = vsel %vm1266, %v5407, %v5065
      %v5441 = vsel %vm1266, %v5409, %v5067
      %v5443 = vsel %vm1299, %v5411, %v5069
      %v5445 = vsel %vm1299, %v5413, %v5071
      %v5447 = vsel %vm1299, %v5415, %v5073
      %v5449 = vsel %vm1299, %v5417, %v5075
      %v5451 = vsel %vm1299, %v5419, %v5077
      %v5453 = vsel %vm1299, %v5421, %v5079
      %v5455 = vsel %vm1299, %v5423, %v5081
      %v5457 = vsel %vm1299, %v5425, %v5083
      %v5459 = vsel %vm1299, %v5427, %v5085
      %v5461 = vsel %vm1299, %v5429, %v5087
      %v5463 = vsel %vm1299, %v5431, %v5089
      %v5465 = vsel %vm1299, %v5433, %v5091
      %v5467 = vsel %vm1299, %v5435, %v5093
      %v5469 = vsel %vm1299, %v5437, %v5095
      %v5471 = vsel %vm1299, %v5439, %v5097
      %v5473 = vsel %vm1299, %v5441, %v5099
      %v5475 = vsel %vm1332, %v5443, %v5104
      %v5477 = vsel %vm1332, %v5445, %v5106
      %v5479 = vsel %vm1332, %v5447, %v5108
      %v5481 = vsel %vm1332, %v5449, %v5110
      %v5483 = vsel %vm1332, %v5451, %v5112
      %v5485 = vsel %vm1332, %v5453, %v5114
      %v5487 = vsel %vm1332, %v5455, %v5116
      %v5489 = vsel %vm1332, %v5457, %v5118
      %v5491 = vsel %vm1332, %v5459, %v5120
      %v5493 = vsel %vm1332, %v5461, %v5122
      %v5495 = vsel %vm1332, %v5463, %v5124
      %v5497 = vsel %vm1332, %v5465, %v5126
      %v5499 = vsel %vm1332, %v5467, %v5128
      %v5501 = vsel %vm1332, %v5469, %v5130
      %v5503 = vsel %vm1332, %v5471, %v5132
      %v5505 = vsel %vm1332, %v5473, %v5134
      %v5507 = vsel %vm1365, %v5475, %v5349
      %v5509 = vsel %vm1365, %v5477, %v5351
      %v5511 = vsel %vm1365, %v5479, %v5353
      %v5513 = vsel %vm1365, %v5481, %v5355
      %v5515 = vsel %vm1365, %v5483, %v5357
      %v5517 = vsel %vm1365, %v5485, %v5359
      %v5519 = vsel %vm1365, %v5487, %v5361
      %v5521 = vsel %vm1365, %v5489, %v5363
      %v5523 = vsel %vm1365, %v5491, %v5365
      %v5525 = vsel %vm1365, %v5493, %v5367
      %v5527 = vsel %vm1365, %v5495, %v5369
      %v5529 = vsel %vm1365, %v5497, %v5371
      %v5531 = vsel %vm1365, %v5499, %v5373
      %v5533 = vsel %vm1365, %v5501, %v5375
      %v5535 = vsel %vm1365, %v5503, %v5377
      %v5537 = vsel %vm1365, %v5505, %v5379
      %s5538 = scalar_lea.vmem %s2, 96
      %v5539 = vld [vmem:[%s5538] sm:$0xf]
      %v5540 = vld [vmem:[%s5538 + $0x4] sm:$0xf]
      %v5541 = vld [vmem:[%s5538 + $0x8] sm:$0xf]
      %v5542 = vld [vmem:[%s5538 + $0xc] sm:$0xf]
      %v5547 = vunpack.c.l.b16 %v5539
      %v5548 = vunpack.c.l.b16 %v5540
      %v5549 = vunpack.c.l.b16 %v5541
      %v5550 = vunpack.c.l.b16 %v5542
      %v5551 = vpack.c.b16 %v5548, %v5547
      %v5552 = vpack.c.b16 %v5550, %v5549
      %v5555 = vsel %vm1414, %v5507, 0
      %v5557 = vsel %vm1414, %v5509, 0
      %v5559 = vsel %vm1414, %v5511, 0
      %v5561 = vsel %vm1414, %v5513, 0
      %v5563 = vsel %vm1414, %v5515, 0
      %v5565 = vsel %vm1414, %v5517, 0
      %v5567 = vsel %vm1414, %v5519, 0
      %v5569 = vsel %vm1414, %v5521, 0
      %v5571 = vsel %vm1414, %v5523, 0
      %v5573 = vsel %vm1414, %v5525, 0
      %v5575 = vsel %vm1414, %v5527, 0
      %v5577 = vsel %vm1414, %v5529, 0
      %v5579 = vsel %vm1414, %v5531, 0
      %v5581 = vsel %vm1414, %v5533, 0
      %v5583 = vsel %vm1414, %v5535, 0
      %v5585 = vsel %vm1414, %v5537, 0
      %5587 = vmatprep.subr.bf16.mxu0 0
      %5588 = vmatpush1.bf16.msra.mxu0 0
      %5589 = vmatprep.subr.bf16.mxu0 0
      %5590 = vmatpush1.bf16.msra.mxu0 0
      %5591 = vmatprep.subr.bf16.mxu0 0
      %5592 = vmatpush1.bf16.msra.mxu0 0
      %5593 = vmatprep.subr.bf16.mxu0 0
      %5594 = vmatpush1.bf16.msra.mxu0 0
      %5595 = vmatprep.subr.bf16.mxu0 0
      %5596 = vmatpush1.bf16.msra.mxu0 0
      %5597 = vmatprep.subr.bf16.mxu0 0
      %5598 = vmatpush1.bf16.msra.mxu0 0
      %5599 = vmatprep.subr.bf16.mxu0 0
      %5600 = vmatpush1.bf16.msra.mxu0 %v5552
      %5601 = vmatprep.subr.bf16.mxu0 0
      %5602 = vmatpush1.bf16.msra.mxu0 %v5551
      %5603 = vmatprep.subr.bf16.mxu0 0
      %5604 = vmatpush2.bf16.msra.mxu0 0
      %5605 = vmatprep.subr.bf16.mxu0 0
      %5606 = vmatpush2.bf16.msra.mxu0 0
      %5607 = vmatprep.subr.bf16.mxu0 0
      %5608 = vmatpush2.bf16.msra.mxu0 0
      %5609 = vmatprep.subr.bf16.mxu0 0
      %5610 = vmatpush2.bf16.msra.mxu0 0
      %5611 = vmatprep.subr.bf16.mxu0 0
      %5612 = vmatpush2.bf16.msra.mxu0 0
      %5613 = vmatprep.subr.bf16.mxu0 0
      %5614 = vmatpush2.bf16.msra.mxu0 0
      %5615 = vmatprep.subr.bf16.mxu0 0
      %5616 = vmatpush2.bf16.msra.mxu0 0
      %5617 = vmatprep.subr.bf16.mxu0 0
      %5618 = vmatpush2.bf16.msra.mxu0 0
      %5619 = vmatprep.mubr.bf16.mxu0 0
      %5620 = vmatmul.mubr.bf16.gmra.mxu0 %v5555
      %v5621 = vpop.f32.mrf.mxu0
      %v5622 = vadd.f32 0.0, %v5621
      %v5623 = vpop.f32.mrf.mxu0
      %v5624 = vpop.f32.mrf.mxu0
      %v5625 = vadd.f32 0.0, %v5624
      %v5626 = vpop.f32.mrf.mxu0
      %5627 = vmatprep.mubr.bf16.mxu0 0
      %5628 = vmatmul.mubr.bf16.gmra.mxu0 %v5557
      %v5629 = vpop.f32.mrf.mxu0
      %v5630 = vadd.f32 0.0, %v5629
      %v5631 = vpop.f32.mrf.mxu0
      %v5632 = vpop.f32.mrf.mxu0
      %v5633 = vadd.f32 0.0, %v5632
      %v5634 = vpop.f32.mrf.mxu0
      %5635 = vmatprep.mubr.bf16.mxu0 0
      %5636 = vmatmul.mubr.bf16.gmra.mxu0 %v5559
      %v5637 = vpop.f32.mrf.mxu0
      %v5638 = vadd.f32 0.0, %v5637
      %v5639 = vpop.f32.mrf.mxu0
      %v5640 = vpop.f32.mrf.mxu0
      %v5641 = vadd.f32 0.0, %v5640
      %v5642 = vpop.f32.mrf.mxu0
      %5643 = vmatprep.mubr.bf16.mxu0 0
      %5644 = vmatmul.mubr.bf16.gmra.mxu0 %v5561
      %v5645 = vpop.f32.mrf.mxu0
      %v5646 = vadd.f32 0.0, %v5645
      %v5647 = vpop.f32.mrf.mxu0
      %v5648 = vpop.f32.mrf.mxu0
      %v5649 = vadd.f32 0.0, %v5648
      %v5650 = vpop.f32.mrf.mxu0
      %5651 = vmatprep.mubr.bf16.mxu0 0
      %5652 = vmatmul.mubr.bf16.gmra.mxu0 %v5563
      %v5653 = vpop.f32.mrf.mxu0
      %v5654 = vadd.f32 0.0, %v5653
      %v5655 = vpop.f32.mrf.mxu0
      %v5656 = vpop.f32.mrf.mxu0
      %v5657 = vadd.f32 0.0, %v5656
      %v5658 = vpop.f32.mrf.mxu0
      %5659 = vmatprep.mubr.bf16.mxu0 0
      %5660 = vmatmul.mubr.bf16.gmra.mxu0 %v5565
      %v5661 = vpop.f32.mrf.mxu0
      %v5662 = vadd.f32 0.0, %v5661
      %v5663 = vpop.f32.mrf.mxu0
      %v5664 = vpop.f32.mrf.mxu0
      %v5665 = vadd.f32 0.0, %v5664
      %v5666 = vpop.f32.mrf.mxu0
      %5667 = vmatprep.mubr.bf16.mxu0 0
      %5668 = vmatmul.mubr.bf16.gmra.mxu0 %v5567
      %v5669 = vpop.f32.mrf.mxu0
      %v5670 = vadd.f32 0.0, %v5669
      %v5671 = vpop.f32.mrf.mxu0
      %v5672 = vpop.f32.mrf.mxu0
      %v5673 = vadd.f32 0.0, %v5672
      %v5674 = vpop.f32.mrf.mxu0
      %5675 = vmatprep.mubr.bf16.mxu0 0
      %5676 = vmatmul.mubr.bf16.gmra.mxu0 %v5569
      %v5677 = vpop.f32.mrf.mxu0
      %v5678 = vadd.f32 0.0, %v5677
      %v5679 = vpop.f32.mrf.mxu0
      %v5680 = vpop.f32.mrf.mxu0
      %v5681 = vadd.f32 0.0, %v5680
      %v5682 = vpop.f32.mrf.mxu0
      %5683 = vmatprep.mubr.bf16.mxu0 0
      %5684 = vmatmul.mubr.bf16.gmra.mxu0 %v5571
      %v5685 = vpop.f32.mrf.mxu0
      %v5686 = vadd.f32 0.0, %v5685
      %v5687 = vpop.f32.mrf.mxu0
      %v5688 = vpop.f32.mrf.mxu0
      %v5689 = vadd.f32 0.0, %v5688
      %v5690 = vpop.f32.mrf.mxu0
      %5691 = vmatprep.mubr.bf16.mxu0 0
      %5692 = vmatmul.mubr.bf16.gmra.mxu0 %v5573
      %v5693 = vpop.f32.mrf.mxu0
      %v5694 = vadd.f32 0.0, %v5693
      %v5695 = vpop.f32.mrf.mxu0
      %v5696 = vpop.f32.mrf.mxu0
      %v5697 = vadd.f32 0.0, %v5696
      %v5698 = vpop.f32.mrf.mxu0
      %5699 = vmatprep.mubr.bf16.mxu0 0
      %5700 = vmatmul.mubr.bf16.gmra.mxu0 %v5575
      %v5701 = vpop.f32.mrf.mxu0
      %v5702 = vadd.f32 0.0, %v5701
      %v5703 = vpop.f32.mrf.mxu0
      %v5704 = vpop.f32.mrf.mxu0
      %v5705 = vadd.f32 0.0, %v5704
      %v5706 = vpop.f32.mrf.mxu0
      %5707 = vmatprep.mubr.bf16.mxu0 0
      %5708 = vmatmul.mubr.bf16.gmra.mxu0 %v5577
      %v5709 = vpop.f32.mrf.mxu0
      %v5710 = vadd.f32 0.0, %v5709
      %v5711 = vpop.f32.mrf.mxu0
      %v5712 = vpop.f32.mrf.mxu0
      %v5713 = vadd.f32 0.0, %v5712
      %v5714 = vpop.f32.mrf.mxu0
      %5715 = vmatprep.mubr.bf16.mxu0 0
      %5716 = vmatmul.mubr.bf16.gmra.mxu0 %v5579
      %v5717 = vpop.f32.mrf.mxu0
      %v5718 = vadd.f32 0.0, %v5717
      %v5719 = vpop.f32.mrf.mxu0
      %v5720 = vpop.f32.mrf.mxu0
      %v5721 = vadd.f32 0.0, %v5720
      %v5722 = vpop.f32.mrf.mxu0
      %5723 = vmatprep.mubr.bf16.mxu0 0
      %5724 = vmatmul.mubr.bf16.gmra.mxu0 %v5581
      %v5725 = vpop.f32.mrf.mxu0
      %v5726 = vadd.f32 0.0, %v5725
      %v5727 = vpop.f32.mrf.mxu0
      %v5728 = vpop.f32.mrf.mxu0
      %v5729 = vadd.f32 0.0, %v5728
      %v5730 = vpop.f32.mrf.mxu0
      %5731 = vmatprep.mubr.bf16.mxu0 0
      %5732 = vmatmul.mubr.bf16.gmra.mxu0 %v5583
      %v5733 = vpop.f32.mrf.mxu0
      %v5734 = vadd.f32 0.0, %v5733
      %v5735 = vpop.f32.mrf.mxu0
      %v5736 = vpop.f32.mrf.mxu0
      %v5737 = vadd.f32 0.0, %v5736
      %v5738 = vpop.f32.mrf.mxu0
      %5739 = vmatprep.mubr.bf16.mxu0 0
      %5740 = vmatmul.mubr.bf16.gmra.mxu0 %v5585
      %v5741 = vpop.f32.mrf.mxu0
      %v5742 = vadd.f32 0.0, %v5741
      %v5743 = vpop.f32.mrf.mxu0
      %v5744 = vpop.f32.mrf.mxu0
      %v5745 = vadd.f32 0.0, %v5744
      %v5746 = vpop.f32.mrf.mxu0
      %5747 = vdwg.mxu0
      %v5748 = vld [vmem:[#allocation2 + $0x48] sm:$0xe]
      %5749 = vrot.lane.b32.xlu0 %v1679, 4
      %v5750 = vpop.permute.xlu0 %5749
      %5751 = vrot.lane.b32.xlu0 %v1680, 4
      %v5752 = vpop.permute.xlu0 %5751
      %5753 = vrot.lane.b32.xlu0 %v2521, 8
      %v5754 = vpop.permute.xlu0 %5753
      %5755 = vrot.lane.b32.xlu0 %v2522, 8
      %v5756 = vpop.permute.xlu0 %5755
      %5757 = vrot.lane.b32.xlu0 %v2523, 8
      %v5758 = vpop.permute.xlu0 %5757
      %5759 = vrot.lane.b32.xlu0 %v2524, 8
      %v5760 = vpop.permute.xlu0 %5759
      %5761 = vrot.lane.b32.xlu0 %v2525, 8
      %v5762 = vpop.permute.xlu0 %5761
      %5763 = vrot.lane.b32.xlu0 %v3136, 12
      %v5764 = vpop.permute.xlu0 %5763
      %5765 = vrot.lane.b32.xlu0 %v3137, 12
      %v5766 = vpop.permute.xlu0 %5765
      %5767 = vrot.lane.b32.xlu0 %v4025, 16
      %v5768 = vpop.permute.xlu0 %5767
      %5769 = vrot.lane.b32.xlu0 %v4600, 20
      %v5770 = vpop.permute.xlu0 %5769
      %5771 = vrot.lane.b32.xlu0 %v4601, 20
      %v5772 = vpop.permute.xlu0 %5771
      %5773 = vrot.lane.b32.xlu0 %v5199, 24
      %v5774 = vpop.permute.xlu0 %5773
      %5775 = vrot.lane.b32.xlu0 %v5200, 24
      %v5776 = vpop.permute.xlu0 %5775
      %5777 = vrot.lane.b32.xlu0 %v5201, 24
      %v5778 = vpop.permute.xlu0 %5777
      %5779 = vrot.lane.b32.xlu0 %v5202, 24
      %v5780 = vpop.permute.xlu0 %5779
      %5781 = vrot.lane.b32.xlu0 %v5203, 24
      %v5782 = vpop.permute.xlu0 %5781
      %5783 = vrot.lane.b32.xlu0 %v5204, 24
      %v5784 = vpop.permute.xlu0 %5783
      %5785 = vrot.lane.b32.xlu0 %v5205, 24
      %v5786 = vpop.permute.xlu0 %5785
      %5787 = vrot.lane.b32.xlu0 %v5206, 24
      %v5788 = vpop.permute.xlu0 %5787
      %5789 = vrot.lane.b32.xlu0 %v5207, 24
      %v5790 = vpop.permute.xlu0 %5789
      %5791 = vrot.lane.b32.xlu0 %v5208, 24
      %v5792 = vpop.permute.xlu0 %5791
      %5793 = vrot.lane.b32.xlu0 %v5209, 24
      %v5794 = vpop.permute.xlu0 %5793
      %5795 = vrot.lane.b32.xlu0 %v5210, 24
      %v5796 = vpop.permute.xlu0 %5795
      %5797 = vrot.lane.b32.xlu0 %v5211, 24
      %v5798 = vpop.permute.xlu0 %5797
      %5799 = vrot.lane.b32.xlu0 %v5212, 24
      %v5800 = vpop.permute.xlu0 %5799
      %5801 = vrot.lane.b32.xlu0 %v5213, 24
      %v5802 = vpop.permute.xlu0 %5801
      %5803 = vrot.lane.b32.xlu0 %v5214, 24
      %v5804 = vpop.permute.xlu0 %5803
      %5805 = vrot.lane.b32.xlu0 %v5215, 24
      %v5806 = vpop.permute.xlu0 %5805
      %v5808 = vunpack.c.l.b16 %v5748
      %v5809 = vpack.c.b16 %v5168, %v5808
      %v5811 = vshrl.u32 %v5809, 16
      %v5813 = vshll.u32 %v5809, 16
      %v5815 = vrot.slane %v5813, 1
      %v5816 = vor.u32 %v5811, %v5815
      %v5817 = vsel %vm553, %v5816, %v5226
      %v5818 = vshrl.u32 %v5215, 16
      %5820 = vrot.lane.b32.xlu0 %v5817, 28
      %v5821 = vpop.permute.xlu0 %5820
      %5822 = vrot.lane.b32.xlu0 %v5818, 28
      %v5823 = vpop.permute.xlu0 %5822
      %v5825 = vsel %vm1167, %v724, %v5750
      %v5827 = vsel %vm1167, %v1097, %v5752
      %v5828 = vsel %vm1200, %v5825, %v3044
      %v5829 = vsel %vm1200, %v5381, %v3066
      %v5831 = vsel %vm1200, %v5383, %v5754
      %v5833 = vsel %vm1200, %v5385, %v5756
      %v5835 = vsel %vm1200, %v5387, %v5758
      %v5837 = vsel %vm1200, %v5389, %v5760
      %v5839 = vsel %vm1200, %v5827, %v5762
      %v5841 = vsel %vm1233, %v5828, %v5764
      %v5842 = vsel %vm1233, %v5829, %v5027
      %v5843 = vsel %vm1233, %v5831, %v5029
      %v5844 = vsel %vm1233, %v5833, %v5031
      %v5845 = vsel %vm1233, %v5835, %v5033
      %v5846 = vsel %vm1233, %v5837, %v5035
      %v5848 = vsel %vm1233, %v5839, %v5766
      %v5849 = vsel %vm1266, %v5841, %v5037
      %v5850 = vsel %vm1266, %v3187, %v5039
      %v5851 = vsel %vm1266, %v3188, %v5041
      %v5852 = vsel %vm1266, %v3189, %v5043
      %v5853 = vsel %vm1266, %v3190, %v5045
      %v5854 = vsel %vm1266, %v3191, %v5047
      %v5855 = vsel %vm1266, %v3192, %v5049
      %v5856 = vsel %vm1266, %v3193, %v5051
      %v5857 = vsel %vm1266, %v3194, %v5053
      %v5858 = vsel %vm1266, %v3195, %v5055
      %v5859 = vsel %vm1266, %v3196, %v5057
      %v5860 = vsel %vm1266, %v5842, %v5059
      %v5861 = vsel %vm1266, %v5843, %v5061
      %v5862 = vsel %vm1266, %v5844, %v5063
      %v5863 = vsel %vm1266, %v5845, %v5065
      %v5864 = vsel %vm1266, %v5846, %v5067
      %v5866 = vsel %vm1266, %v5848, %v5768
      %v5868 = vsel %vm1299, %v5849, %v5770
      %v5869 = vsel %vm1299, %v5850, %v5071
      %v5870 = vsel %vm1299, %v5851, %v5073
      %v5871 = vsel %vm1299, %v5852, %v5075
      %v5872 = vsel %vm1299, %v5853, %v5077
      %v5873 = vsel %vm1299, %v5854, %v5079
      %v5874 = vsel %vm1299, %v5855, %v5081
      %v5875 = vsel %vm1299, %v5856, %v5083
      %v5876 = vsel %vm1299, %v5857, %v5085
      %v5877 = vsel %vm1299, %v5858, %v5087
      %v5878 = vsel %vm1299, %v5859, %v5089
      %v5879 = vsel %vm1299, %v5860, %v5091
      %v5880 = vsel %vm1299, %v5861, %v5093
      %v5881 = vsel %vm1299, %v5862, %v5095
      %v5882 = vsel %vm1299, %v5863, %v5097
      %v5883 = vsel %vm1299, %v5864, %v5099
      %v5885 = vsel %vm1299, %v5866, %v5772
      %v5887 = vsel %vm1332, %v5868, %v5774
      %v5889 = vsel %vm1332, %v5869, %v5776
      %v5891 = vsel %vm1332, %v5870, %v5778
      %v5893 = vsel %vm1332, %v5871, %v5780
      %v5895 = vsel %vm1332, %v5872, %v5782
      %v5897 = vsel %vm1332, %v5873, %v5784
      %v5899 = vsel %vm1332, %v5874, %v5786
      %v5901 = vsel %vm1332, %v5875, %v5788
      %v5903 = vsel %vm1332, %v5876, %v5790
      %v5905 = vsel %vm1332, %v5877, %v5792
      %v5907 = vsel %vm1332, %v5878, %v5794
      %v5909 = vsel %vm1332, %v5879, %v5796
      %v5911 = vsel %vm1332, %v5880, %v5798
      %v5913 = vsel %vm1332, %v5881, %v5800
      %v5915 = vsel %vm1332, %v5882, %v5802
      %v5917 = vsel %vm1332, %v5883, %v5804
      %v5919 = vsel %vm1332, %v5885, %v5806
      %v5921 = vsel %vm1365, %v5887, %v5821
      %v5922 = vsel %vm1365, %v5889, %v5351
      %v5923 = vsel %vm1365, %v5891, %v5353
      %v5924 = vsel %vm1365, %v5893, %v5355
      %v5925 = vsel %vm1365, %v5895, %v5357
      %v5926 = vsel %vm1365, %v5897, %v5359
      %v5927 = vsel %vm1365, %v5899, %v5361
      %v5928 = vsel %vm1365, %v5901, %v5363
      %v5929 = vsel %vm1365, %v5903, %v5365
      %v5930 = vsel %vm1365, %v5905, %v5367
      %v5931 = vsel %vm1365, %v5907, %v5369
      %v5932 = vsel %vm1365, %v5909, %v5371
      %v5933 = vsel %vm1365, %v5911, %v5373
      %v5934 = vsel %vm1365, %v5913, %v5375
      %v5935 = vsel %vm1365, %v5915, %v5377
      %v5936 = vsel %vm1365, %v5917, %v5379
      %v5938 = vsel %vm1365, %v5919, %v5823
      %s5939 = scalar_lea.vmem %s2, 112
      %v5940 = vld [vmem:[%s5939] sm:$0xf]
      %v5941 = vld [vmem:[%s5939 + $0x4] sm:$0xf]
      %v5942 = vld [vmem:[%s5939 + $0x8] sm:$0xf]
      %v5943 = vld [vmem:[%s5939 + $0xc] sm:$0xf]
      %v5944 = vshrl.u32 %v5921, 16
      %v5946 = vshll.u32 %v5921, 16
      %v5948 = vrot.slane %v5946, 1
      %v5949 = vor.u32 %v5944, %v5948
      %v5950 = vshll.u32 %v5922, 16
      %v5952 = vrot.slane %v5950, 1
      %v5953 = vsel %vm553, %v5949, %v5952
      %v5954 = vshrl.u32 %v5922, 16
      %v5956 = vor.u32 %v5954, %v5952
      %v5957 = vshll.u32 %v5923, 16
      %v5959 = vrot.slane %v5957, 1
      %v5960 = vsel %vm553, %v5956, %v5959
      %v5961 = vshrl.u32 %v5923, 16
      %v5963 = vor.u32 %v5961, %v5959
      %v5964 = vshll.u32 %v5924, 16
      %v5966 = vrot.slane %v5964, 1
      %v5967 = vsel %vm553, %v5963, %v5966
      %v5968 = vshrl.u32 %v5924, 16
      %v5970 = vor.u32 %v5968, %v5966
      %v5971 = vshll.u32 %v5925, 16
      %v5973 = vrot.slane %v5971, 1
      %v5974 = vsel %vm553, %v5970, %v5973
      %v5975 = vshrl.u32 %v5925, 16
      %v5977 = vor.u32 %v5975, %v5973
      %v5978 = vshll.u32 %v5926, 16
      %v5980 = vrot.slane %v5978, 1
      %v5981 = vsel %vm553, %v5977, %v5980
      %v5982 = vshrl.u32 %v5926, 16
      %v5984 = vor.u32 %v5982, %v5980
      %v5985 = vshll.u32 %v5927, 16
      %v5987 = vrot.slane %v5985, 1
      %v5988 = vsel %vm553, %v5984, %v5987
      %v5989 = vshrl.u32 %v5927, 16
      %v5991 = vor.u32 %v5989, %v5987
      %v5992 = vshll.u32 %v5928, 16
      %v5994 = vrot.slane %v5992, 1
      %v5995 = vsel %vm553, %v5991, %v5994
      %v5996 = vshrl.u32 %v5928, 16
      %v5998 = vor.u32 %v5996, %v5994
      %v5999 = vshll.u32 %v5929, 16
      %v6001 = vrot.slane %v5999, 1
      %v6002 = vsel %vm553, %v5998, %v6001
      %v6003 = vshrl.u32 %v5929, 16
      %v6005 = vor.u32 %v6003, %v6001
      %v6006 = vshll.u32 %v5930, 16
      %v6008 = vrot.slane %v6006, 1
      %v6009 = vsel %vm553, %v6005, %v6008
      %v6010 = vshrl.u32 %v5930, 16
      %v6012 = vor.u32 %v6010, %v6008
      %v6013 = vshll.u32 %v5931, 16
      %v6015 = vrot.slane %v6013, 1
      %v6016 = vsel %vm553, %v6012, %v6015
      %v6017 = vshrl.u32 %v5931, 16
      %v6019 = vor.u32 %v6017, %v6015
      %v6020 = vshll.u32 %v5932, 16
      %v6022 = vrot.slane %v6020, 1
      %v6023 = vsel %vm553, %v6019, %v6022
      %v6024 = vshrl.u32 %v5932, 16
      %v6026 = vor.u32 %v6024, %v6022
      %v6027 = vshll.u32 %v5933, 16
      %v6029 = vrot.slane %v6027, 1
      %v6030 = vsel %vm553, %v6026, %v6029
      %v6031 = vshrl.u32 %v5933, 16
      %v6033 = vor.u32 %v6031, %v6029
      %v6034 = vshll.u32 %v5934, 16
      %v6036 = vrot.slane %v6034, 1
      %v6037 = vsel %vm553, %v6033, %v6036
      %v6038 = vshrl.u32 %v5934, 16
      %v6040 = vor.u32 %v6038, %v6036
      %v6041 = vshll.u32 %v5935, 16
      %v6043 = vrot.slane %v6041, 1
      %v6044 = vsel %vm553, %v6040, %v6043
      %v6045 = vshrl.u32 %v5935, 16
      %v6047 = vor.u32 %v6045, %v6043
      %v6048 = vshll.u32 %v5936, 16
      %v6050 = vrot.slane %v6048, 1
      %v6051 = vsel %vm553, %v6047, %v6050
      %v6052 = vshrl.u32 %v5936, 16
      %v6054 = vor.u32 %v6052, %v6050
      %v6055 = vshll.u32 %v5938, 16
      %v6057 = vrot.slane %v6055, 1
      %v6058 = vsel %vm553, %v6054, %v6057
      %v6063 = vunpack.c.l.b16 %v5940
      %v6064 = vunpack.c.l.b16 %v5941
      %v6065 = vunpack.c.l.b16 %v5942
      %v6066 = vunpack.c.l.b16 %v5943
      %v6067 = vpack.c.b16 %v6064, %v6063
      %v6068 = vpack.c.b16 %v6066, %v6065
      %v6072 = vsel %vm1414, %v5953, 0
      %v6075 = vsel %vm1414, %v5960, 0
      %v6078 = vsel %vm1414, %v5967, 0
      %v6081 = vsel %vm1414, %v5974, 0
      %v6084 = vsel %vm1414, %v5981, 0
      %v6087 = vsel %vm1414, %v5988, 0
      %v6090 = vsel %vm1414, %v5995, 0
      %v6093 = vsel %vm1414, %v6002, 0
      %v6096 = vsel %vm1414, %v6009, 0
      %v6099 = vsel %vm1414, %v6016, 0
      %v6102 = vsel %vm1414, %v6023, 0
      %v6105 = vsel %vm1414, %v6030, 0
      %v6108 = vsel %vm1414, %v6037, 0
      %v6111 = vsel %vm1414, %v6044, 0
      %v6114 = vsel %vm1414, %v6051, 0
      %v6117 = vsel %vm1414, %v6058, 0
      %6119 = vmatprep.subr.bf16.mxu0 0
      %6120 = vmatpush1.bf16.msra.mxu0 0
      %6121 = vmatprep.subr.bf16.mxu0 0
      %6122 = vmatpush1.bf16.msra.mxu0 0
      %6123 = vmatprep.subr.bf16.mxu0 0
      %6124 = vmatpush1.bf16.msra.mxu0 0
      %6125 = vmatprep.subr.bf16.mxu0 0
      %6126 = vmatpush1.bf16.msra.mxu0 0
      %6127 = vmatprep.subr.bf16.mxu0 0
      %6128 = vmatpush1.bf16.msra.mxu0 0
      %6129 = vmatprep.subr.bf16.mxu0 0
      %6130 = vmatpush1.bf16.msra.mxu0 0
      %6131 = vmatprep.subr.bf16.mxu0 0
      %6132 = vmatpush1.bf16.msra.mxu0 %v6068
      %6133 = vmatprep.subr.bf16.mxu0 0
      %6134 = vmatpush1.bf16.msra.mxu0 %v6067
      %6135 = vmatprep.subr.bf16.mxu0 0
      %6136 = vmatpush2.bf16.msra.mxu0 0
      %6137 = vmatprep.subr.bf16.mxu0 0
      %6138 = vmatpush2.bf16.msra.mxu0 0
      %6139 = vmatprep.subr.bf16.mxu0 0
      %6140 = vmatpush2.bf16.msra.mxu0 0
      %6141 = vmatprep.subr.bf16.mxu0 0
      %6142 = vmatpush2.bf16.msra.mxu0 0
      %6143 = vmatprep.subr.bf16.mxu0 0
      %6144 = vmatpush2.bf16.msra.mxu0 0
      %6145 = vmatprep.subr.bf16.mxu0 0
      %6146 = vmatpush2.bf16.msra.mxu0 0
      %6147 = vmatprep.subr.bf16.mxu0 0
      %6148 = vmatpush2.bf16.msra.mxu0 0
      %6149 = vmatprep.subr.bf16.mxu0 0
      %6150 = vmatpush2.bf16.msra.mxu0 0
      %6151 = vmatprep.mubr.bf16.mxu0 0
      %6152 = vmatmul.mubr.bf16.gmra.mxu0 %v6072
      %v6153 = vpop.f32.mrf.mxu0
      %v6154 = vadd.f32 0.0, %v6153
      %v6155 = vpop.f32.mrf.mxu0
      %v6156 = vpop.f32.mrf.mxu0
      %v6157 = vadd.f32 0.0, %v6156
      %v6158 = vpop.f32.mrf.mxu0
      %6159 = vmatprep.mubr.bf16.mxu0 0
      %6160 = vmatmul.mubr.bf16.gmra.mxu0 %v6075
      %v6161 = vpop.f32.mrf.mxu0
      %v6162 = vadd.f32 0.0, %v6161
      %v6163 = vpop.f32.mrf.mxu0
      %v6164 = vpop.f32.mrf.mxu0
      %v6165 = vadd.f32 0.0, %v6164
      %v6166 = vpop.f32.mrf.mxu0
      %6167 = vmatprep.mubr.bf16.mxu0 0
      %6168 = vmatmul.mubr.bf16.gmra.mxu0 %v6078
      %v6169 = vpop.f32.mrf.mxu0
      %v6170 = vadd.f32 0.0, %v6169
      %v6171 = vpop.f32.mrf.mxu0
      %v6172 = vpop.f32.mrf.mxu0
      %v6173 = vadd.f32 0.0, %v6172
      %v6174 = vpop.f32.mrf.mxu0
      %6175 = vmatprep.mubr.bf16.mxu0 0
      %6176 = vmatmul.mubr.bf16.gmra.mxu0 %v6081
      %v6177 = vpop.f32.mrf.mxu0
      %v6178 = vadd.f32 0.0, %v6177
      %v6179 = vpop.f32.mrf.mxu0
      %v6180 = vpop.f32.mrf.mxu0
      %v6181 = vadd.f32 0.0, %v6180
      %v6182 = vpop.f32.mrf.mxu0
      %6183 = vmatprep.mubr.bf16.mxu0 0
      %6184 = vmatmul.mubr.bf16.gmra.mxu0 %v6084
      %v6185 = vpop.f32.mrf.mxu0
      %v6186 = vadd.f32 0.0, %v6185
      %v6187 = vpop.f32.mrf.mxu0
      %v6188 = vpop.f32.mrf.mxu0
      %v6189 = vadd.f32 0.0, %v6188
      %v6190 = vpop.f32.mrf.mxu0
      %6191 = vmatprep.mubr.bf16.mxu0 0
      %6192 = vmatmul.mubr.bf16.gmra.mxu0 %v6087
      %v6193 = vpop.f32.mrf.mxu0
      %v6194 = vadd.f32 0.0, %v6193
      %v6195 = vpop.f32.mrf.mxu0
      %v6196 = vpop.f32.mrf.mxu0
      %v6197 = vadd.f32 0.0, %v6196
      %v6198 = vpop.f32.mrf.mxu0
      %6199 = vmatprep.mubr.bf16.mxu0 0
      %6200 = vmatmul.mubr.bf16.gmra.mxu0 %v6090
      %v6201 = vpop.f32.mrf.mxu0
      %v6202 = vadd.f32 0.0, %v6201
      %v6203 = vpop.f32.mrf.mxu0
      %v6204 = vpop.f32.mrf.mxu0
      %v6205 = vadd.f32 0.0, %v6204
      %v6206 = vpop.f32.mrf.mxu0
      %6207 = vmatprep.mubr.bf16.mxu0 0
      %6208 = vmatmul.mubr.bf16.gmra.mxu0 %v6093
      %v6209 = vpop.f32.mrf.mxu0
      %v6210 = vadd.f32 0.0, %v6209
      %v6211 = vpop.f32.mrf.mxu0
      %v6212 = vpop.f32.mrf.mxu0
      %v6213 = vadd.f32 0.0, %v6212
      %v6214 = vpop.f32.mrf.mxu0
      %6215 = vmatprep.mubr.bf16.mxu0 0
      %6216 = vmatmul.mubr.bf16.gmra.mxu0 %v6096
      %v6217 = vpop.f32.mrf.mxu0
      %v6218 = vadd.f32 0.0, %v6217
      %v6219 = vpop.f32.mrf.mxu0
      %v6220 = vpop.f32.mrf.mxu0
      %v6221 = vadd.f32 0.0, %v6220
      %v6222 = vpop.f32.mrf.mxu0
      %6223 = vmatprep.mubr.bf16.mxu0 0
      %6224 = vmatmul.mubr.bf16.gmra.mxu0 %v6099
      %v6225 = vpop.f32.mrf.mxu0
      %v6226 = vadd.f32 0.0, %v6225
      %v6227 = vpop.f32.mrf.mxu0
      %v6228 = vpop.f32.mrf.mxu0
      %v6229 = vadd.f32 0.0, %v6228
      %v6230 = vpop.f32.mrf.mxu0
      %6231 = vmatprep.mubr.bf16.mxu0 0
      %6232 = vmatmul.mubr.bf16.gmra.mxu0 %v6102
      %v6233 = vpop.f32.mrf.mxu0
      %v6234 = vadd.f32 0.0, %v6233
      %v6235 = vpop.f32.mrf.mxu0
      %v6236 = vpop.f32.mrf.mxu0
      %v6237 = vadd.f32 0.0, %v6236
      %v6238 = vpop.f32.mrf.mxu0
      %6239 = vmatprep.mubr.bf16.mxu0 0
      %6240 = vmatmul.mubr.bf16.gmra.mxu0 %v6105
      %v6241 = vpop.f32.mrf.mxu0
      %v6242 = vadd.f32 0.0, %v6241
      %v6243 = vpop.f32.mrf.mxu0
      %v6244 = vpop.f32.mrf.mxu0
      %v6245 = vadd.f32 0.0, %v6244
      %v6246 = vpop.f32.mrf.mxu0
      %6247 = vmatprep.mubr.bf16.mxu0 0
      %6248 = vmatmul.mubr.bf16.gmra.mxu0 %v6108
      %v6249 = vpop.f32.mrf.mxu0
      %v6250 = vadd.f32 0.0, %v6249
      %v6251 = vpop.f32.mrf.mxu0
      %v6252 = vpop.f32.mrf.mxu0
      %v6253 = vadd.f32 0.0, %v6252
      %v6254 = vpop.f32.mrf.mxu0
      %6255 = vmatprep.mubr.bf16.mxu0 0
      %6256 = vmatmul.mubr.bf16.gmra.mxu0 %v6111
      %v6257 = vpop.f32.mrf.mxu0
      %v6258 = vadd.f32 0.0, %v6257
      %v6259 = vpop.f32.mrf.mxu0
      %v6260 = vpop.f32.mrf.mxu0
      %v6261 = vadd.f32 0.0, %v6260
      %v6262 = vpop.f32.mrf.mxu0
      %6263 = vmatprep.mubr.bf16.mxu0 0
      %6264 = vmatmul.mubr.bf16.gmra.mxu0 %v6114
      %v6265 = vpop.f32.mrf.mxu0
      %v6266 = vadd.f32 0.0, %v6265
      %v6267 = vpop.f32.mrf.mxu0
      %v6268 = vpop.f32.mrf.mxu0
      %v6269 = vadd.f32 0.0, %v6268
      %v6270 = vpop.f32.mrf.mxu0
      %6271 = vmatprep.mubr.bf16.mxu0 0
      %6272 = vmatmul.mubr.bf16.gmra.mxu0 %v6117
      %v6273 = vpop.f32.mrf.mxu0
      %v6274 = vadd.f32 0.0, %v6273
      %v6275 = vpop.f32.mrf.mxu0
      %v6276 = vpop.f32.mrf.mxu0
      %v6277 = vadd.f32 0.0, %v6276
      %v6278 = vpop.f32.mrf.mxu0
      %6279 = vdwg.mxu0
      %6312 = vrot.lane.b32.xlu0 %v1926, 4
      %v6313 = vpop.permute.xlu0 %6312
      %6314 = vrot.lane.b32.xlu0 %v1929, 4
      %v6315 = vpop.permute.xlu0 %6314
      %6316 = vrot.lane.b32.xlu0 %v1934, 4
      %v6317 = vpop.permute.xlu0 %6316
      %6318 = vrot.lane.b32.xlu0 %v1937, 4
      %v6319 = vpop.permute.xlu0 %6318
      %6320 = vrot.lane.b32.xlu0 %v1942, 4
      %v6321 = vpop.permute.xlu0 %6320
      %6322 = vrot.lane.b32.xlu0 %v1945, 4
      %v6323 = vpop.permute.xlu0 %6322
      %6324 = vrot.lane.b32.xlu0 %v1950, 4
      %v6325 = vpop.permute.xlu0 %6324
      %6326 = vrot.lane.b32.xlu0 %v1953, 4
      %v6327 = vpop.permute.xlu0 %6326
      %6328 = vrot.lane.b32.xlu0 %v1958, 4
      %v6329 = vpop.permute.xlu0 %6328
      %6330 = vrot.lane.b32.xlu0 %v1961, 4
      %v6331 = vpop.permute.xlu0 %6330
      %6332 = vrot.lane.b32.xlu0 %v1966, 4
      %v6333 = vpop.permute.xlu0 %6332
      %6334 = vrot.lane.b32.xlu0 %v1969, 4
      %v6335 = vpop.permute.xlu0 %6334
      %6336 = vrot.lane.b32.xlu0 %v1974, 4
      %v6337 = vpop.permute.xlu0 %6336
      %6338 = vrot.lane.b32.xlu0 %v1977, 4
      %v6339 = vpop.permute.xlu0 %6338
      %6340 = vrot.lane.b32.xlu0 %v1982, 4
      %v6341 = vpop.permute.xlu0 %6340
      %6342 = vrot.lane.b32.xlu0 %v1985, 4
      %v6343 = vpop.permute.xlu0 %6342
      %6344 = vrot.lane.b32.xlu0 %v1990, 4
      %v6345 = vpop.permute.xlu0 %6344
      %6346 = vrot.lane.b32.xlu0 %v1993, 4
      %v6347 = vpop.permute.xlu0 %6346
      %6348 = vrot.lane.b32.xlu0 %v1998, 4
      %v6349 = vpop.permute.xlu0 %6348
      %6350 = vrot.lane.b32.xlu0 %v2001, 4
      %v6351 = vpop.permute.xlu0 %6350
      %6352 = vrot.lane.b32.xlu0 %v2006, 4
      %v6353 = vpop.permute.xlu0 %6352
      %6354 = vrot.lane.b32.xlu0 %v2009, 4
      %v6355 = vpop.permute.xlu0 %6354
      %6356 = vrot.lane.b32.xlu0 %v2014, 4
      %v6357 = vpop.permute.xlu0 %6356
      %6358 = vrot.lane.b32.xlu0 %v2017, 4
      %v6359 = vpop.permute.xlu0 %6358
      %6360 = vrot.lane.b32.xlu0 %v2022, 4
      %v6361 = vpop.permute.xlu0 %6360
      %6362 = vrot.lane.b32.xlu0 %v2025, 4
      %v6363 = vpop.permute.xlu0 %6362
      %6364 = vrot.lane.b32.xlu0 %v2030, 4
      %v6365 = vpop.permute.xlu0 %6364
      %6366 = vrot.lane.b32.xlu0 %v2033, 4
      %v6367 = vpop.permute.xlu0 %6366
      %6368 = vrot.lane.b32.xlu0 %v2038, 4
      %v6369 = vpop.permute.xlu0 %6368
      %6370 = vrot.lane.b32.xlu0 %v2041, 4
      %v6371 = vpop.permute.xlu0 %6370
      %6372 = vrot.lane.b32.xlu0 %v2046, 4
      %v6373 = vpop.permute.xlu0 %6372
      %6374 = vrot.lane.b32.xlu0 %v2049, 4
      %v6375 = vpop.permute.xlu0 %6374
      %6440 = vrot.lane.b32.xlu0 %v2903, 8
      %v6441 = vpop.permute.xlu0 %6440
      %6442 = vrot.lane.b32.xlu0 %v2906, 8
      %v6443 = vpop.permute.xlu0 %6442
      %6444 = vrot.lane.b32.xlu0 %v2911, 8
      %v6445 = vpop.permute.xlu0 %6444
      %6446 = vrot.lane.b32.xlu0 %v2914, 8
      %v6447 = vpop.permute.xlu0 %6446
      %6448 = vrot.lane.b32.xlu0 %v2919, 8
      %v6449 = vpop.permute.xlu0 %6448
      %6450 = vrot.lane.b32.xlu0 %v2922, 8
      %v6451 = vpop.permute.xlu0 %6450
      %6452 = vrot.lane.b32.xlu0 %v2927, 8
      %v6453 = vpop.permute.xlu0 %6452
      %6454 = vrot.lane.b32.xlu0 %v2930, 8
      %v6455 = vpop.permute.xlu0 %6454
      %6456 = vrot.lane.b32.xlu0 %v2935, 8
      %v6457 = vpop.permute.xlu0 %6456
      %6458 = vrot.lane.b32.xlu0 %v2938, 8
      %v6459 = vpop.permute.xlu0 %6458
      %6460 = vrot.lane.b32.xlu0 %v2943, 8
      %v6461 = vpop.permute.xlu0 %6460
      %6462 = vrot.lane.b32.xlu0 %v2946, 8
      %v6463 = vpop.permute.xlu0 %6462
      %6464 = vrot.lane.b32.xlu0 %v2951, 8
      %v6465 = vpop.permute.xlu0 %6464
      %6466 = vrot.lane.b32.xlu0 %v2954, 8
      %v6467 = vpop.permute.xlu0 %6466
      %6468 = vrot.lane.b32.xlu0 %v2959, 8
      %v6469 = vpop.permute.xlu0 %6468
      %6470 = vrot.lane.b32.xlu0 %v2962, 8
      %v6471 = vpop.permute.xlu0 %6470
      %6472 = vrot.lane.b32.xlu0 %v2967, 8
      %v6473 = vpop.permute.xlu0 %6472
      %6474 = vrot.lane.b32.xlu0 %v2970, 8
      %v6475 = vpop.permute.xlu0 %6474
      %6476 = vrot.lane.b32.xlu0 %v2975, 8
      %v6477 = vpop.permute.xlu0 %6476
      %6478 = vrot.lane.b32.xlu0 %v2978, 8
      %v6479 = vpop.permute.xlu0 %6478
      %6480 = vrot.lane.b32.xlu0 %v2983, 8
      %v6481 = vpop.permute.xlu0 %6480
      %6482 = vrot.lane.b32.xlu0 %v2986, 8
      %v6483 = vpop.permute.xlu0 %6482
      %6484 = vrot.lane.b32.xlu0 %v2991, 8
      %v6485 = vpop.permute.xlu0 %6484
      %6486 = vrot.lane.b32.xlu0 %v2994, 8
      %v6487 = vpop.permute.xlu0 %6486
      %6488 = vrot.lane.b32.xlu0 %v2999, 8
      %v6489 = vpop.permute.xlu0 %6488
      %6490 = vrot.lane.b32.xlu0 %v3002, 8
      %v6491 = vpop.permute.xlu0 %6490
      %6492 = vrot.lane.b32.xlu0 %v3007, 8
      %v6493 = vpop.permute.xlu0 %6492
      %6494 = vrot.lane.b32.xlu0 %v3010, 8
      %v6495 = vpop.permute.xlu0 %6494
      %6496 = vrot.lane.b32.xlu0 %v3015, 8
      %v6497 = vpop.permute.xlu0 %6496
      %6498 = vrot.lane.b32.xlu0 %v3018, 8
      %v6499 = vpop.permute.xlu0 %6498
      %6500 = vrot.lane.b32.xlu0 %v3023, 8
      %v6501 = vpop.permute.xlu0 %6500
      %6502 = vrot.lane.b32.xlu0 %v3026, 8
      %v6503 = vpop.permute.xlu0 %6502
      %6568 = vrot.lane.b32.xlu0 %v3505, 12
      %v6569 = vpop.permute.xlu0 %6568
      %6570 = vrot.lane.b32.xlu0 %v3508, 12
      %v6571 = vpop.permute.xlu0 %6570
      %6572 = vrot.lane.b32.xlu0 %v3513, 12
      %v6573 = vpop.permute.xlu0 %6572
      %6574 = vrot.lane.b32.xlu0 %v3516, 12
      %v6575 = vpop.permute.xlu0 %6574
      %6576 = vrot.lane.b32.xlu0 %v3521, 12
      %v6577 = vpop.permute.xlu0 %6576
      %6578 = vrot.lane.b32.xlu0 %v3524, 12
      %v6579 = vpop.permute.xlu0 %6578
      %6580 = vrot.lane.b32.xlu0 %v3529, 12
      %v6581 = vpop.permute.xlu0 %6580
      %6582 = vrot.lane.b32.xlu0 %v3532, 12
      %v6583 = vpop.permute.xlu0 %6582
      %6584 = vrot.lane.b32.xlu0 %v3537, 12
      %v6585 = vpop.permute.xlu0 %6584
      %6586 = vrot.lane.b32.xlu0 %v3540, 12
      %v6587 = vpop.permute.xlu0 %6586
      %6588 = vrot.lane.b32.xlu0 %v3545, 12
      %v6589 = vpop.permute.xlu0 %6588
      %6590 = vrot.lane.b32.xlu0 %v3548, 12
      %v6591 = vpop.permute.xlu0 %6590
      %6592 = vrot.lane.b32.xlu0 %v3553, 12
      %v6593 = vpop.permute.xlu0 %6592
      %6594 = vrot.lane.b32.xlu0 %v3556, 12
      %v6595 = vpop.permute.xlu0 %6594
      %6596 = vrot.lane.b32.xlu0 %v3561, 12
      %v6597 = vpop.permute.xlu0 %6596
      %6598 = vrot.lane.b32.xlu0 %v3564, 12
      %v6599 = vpop.permute.xlu0 %6598
      %6600 = vrot.lane.b32.xlu0 %v3569, 12
      %v6601 = vpop.permute.xlu0 %6600
      %6602 = vrot.lane.b32.xlu0 %v3572, 12
      %v6603 = vpop.permute.xlu0 %6602
      %6604 = vrot.lane.b32.xlu0 %v3577, 12
      %v6605 = vpop.permute.xlu0 %6604
      %6606 = vrot.lane.b32.xlu0 %v3580, 12
      %v6607 = vpop.permute.xlu0 %6606
      %6608 = vrot.lane.b32.xlu0 %v3585, 12
      %v6609 = vpop.permute.xlu0 %6608
      %6610 = vrot.lane.b32.xlu0 %v3588, 12
      %v6611 = vpop.permute.xlu0 %6610
      %6612 = vrot.lane.b32.xlu0 %v3593, 12
      %v6613 = vpop.permute.xlu0 %6612
      %6614 = vrot.lane.b32.xlu0 %v3596, 12
      %v6615 = vpop.permute.xlu0 %6614
      %6616 = vrot.lane.b32.xlu0 %v3601, 12
      %v6617 = vpop.permute.xlu0 %6616
      %6618 = vrot.lane.b32.xlu0 %v3604, 12
      %v6619 = vpop.permute.xlu0 %6618
      %6620 = vrot.lane.b32.xlu0 %v3609, 12
      %v6621 = vpop.permute.xlu0 %6620
      %6622 = vrot.lane.b32.xlu0 %v3612, 12
      %v6623 = vpop.permute.xlu0 %6622
      %6624 = vrot.lane.b32.xlu0 %v3617, 12
      %v6625 = vpop.permute.xlu0 %6624
      %6626 = vrot.lane.b32.xlu0 %v3620, 12
      %v6627 = vpop.permute.xlu0 %6626
      %6628 = vrot.lane.b32.xlu0 %v3625, 12
      %v6629 = vpop.permute.xlu0 %6628
      %6630 = vrot.lane.b32.xlu0 %v3628, 12
      %v6631 = vpop.permute.xlu0 %6630
      %6696 = vrot.lane.b32.xlu0 %v4431, 16
      %v6697 = vpop.permute.xlu0 %6696
      %6698 = vrot.lane.b32.xlu0 %v4434, 16
      %v6699 = vpop.permute.xlu0 %6698
      %6700 = vrot.lane.b32.xlu0 %v4439, 16
      %v6701 = vpop.permute.xlu0 %6700
      %6702 = vrot.lane.b32.xlu0 %v4442, 16
      %v6703 = vpop.permute.xlu0 %6702
      %6704 = vrot.lane.b32.xlu0 %v4447, 16
      %v6705 = vpop.permute.xlu0 %6704
      %6706 = vrot.lane.b32.xlu0 %v4450, 16
      %v6707 = vpop.permute.xlu0 %6706
      %6708 = vrot.lane.b32.xlu0 %v4455, 16
      %v6709 = vpop.permute.xlu0 %6708
      %6710 = vrot.lane.b32.xlu0 %v4458, 16
      %v6711 = vpop.permute.xlu0 %6710
      %6712 = vrot.lane.b32.xlu0 %v4463, 16
      %v6713 = vpop.permute.xlu0 %6712
      %6714 = vrot.lane.b32.xlu0 %v4466, 16
      %v6715 = vpop.permute.xlu0 %6714
      %6716 = vrot.lane.b32.xlu0 %v4471, 16
      %v6717 = vpop.permute.xlu0 %6716
      %6718 = vrot.lane.b32.xlu0 %v4474, 16
      %v6719 = vpop.permute.xlu0 %6718
      %6720 = vrot.lane.b32.xlu0 %v4479, 16
      %v6721 = vpop.permute.xlu0 %6720
      %6722 = vrot.lane.b32.xlu0 %v4482, 16
      %v6723 = vpop.permute.xlu0 %6722
      %6724 = vrot.lane.b32.xlu0 %v4487, 16
      %v6725 = vpop.permute.xlu0 %6724
      %6726 = vrot.lane.b32.xlu0 %v4490, 16
      %v6727 = vpop.permute.xlu0 %6726
      %6728 = vrot.lane.b32.xlu0 %v4495, 16
      %v6729 = vpop.permute.xlu0 %6728
      %6730 = vrot.lane.b32.xlu0 %v4498, 16
      %v6731 = vpop.permute.xlu0 %6730
      %6732 = vrot.lane.b32.xlu0 %v4503, 16
      %v6733 = vpop.permute.xlu0 %6732
      %6734 = vrot.lane.b32.xlu0 %v4506, 16
      %v6735 = vpop.permute.xlu0 %6734
      %6736 = vrot.lane.b32.xlu0 %v4511, 16
      %v6737 = vpop.permute.xlu0 %6736
      %6738 = vrot.lane.b32.xlu0 %v4514, 16
      %v6739 = vpop.permute.xlu0 %6738
      %6740 = vrot.lane.b32.xlu0 %v4519, 16
      %v6741 = vpop.permute.xlu0 %6740
      %6742 = vrot.lane.b32.xlu0 %v4522, 16
      %v6743 = vpop.permute.xlu0 %6742
      %6744 = vrot.lane.b32.xlu0 %v4527, 16
      %v6745 = vpop.permute.xlu0 %6744
      %6746 = vrot.lane.b32.xlu0 %v4530, 16
      %v6747 = vpop.permute.xlu0 %6746
      %6748 = vrot.lane.b32.xlu0 %v4535, 16
      %v6749 = vpop.permute.xlu0 %6748
      %6750 = vrot.lane.b32.xlu0 %v4538, 16
      %v6751 = vpop.permute.xlu0 %6750
      %6752 = vrot.lane.b32.xlu0 %v4543, 16
      %v6753 = vpop.permute.xlu0 %6752
      %6754 = vrot.lane.b32.xlu0 %v4546, 16
      %v6755 = vpop.permute.xlu0 %6754
      %6756 = vrot.lane.b32.xlu0 %v4551, 16
      %v6757 = vpop.permute.xlu0 %6756
      %6758 = vrot.lane.b32.xlu0 %v4554, 16
      %v6759 = vpop.permute.xlu0 %6758
      %6824 = vrot.lane.b32.xlu0 %v4847, 20
      %v6825 = vpop.permute.xlu0 %6824
      %6826 = vrot.lane.b32.xlu0 %v4850, 20
      %v6827 = vpop.permute.xlu0 %6826
      %6828 = vrot.lane.b32.xlu0 %v4855, 20
      %v6829 = vpop.permute.xlu0 %6828
      %6830 = vrot.lane.b32.xlu0 %v4858, 20
      %v6831 = vpop.permute.xlu0 %6830
      %6832 = vrot.lane.b32.xlu0 %v4863, 20
      %v6833 = vpop.permute.xlu0 %6832
      %6834 = vrot.lane.b32.xlu0 %v4866, 20
      %v6835 = vpop.permute.xlu0 %6834
      %6836 = vrot.lane.b32.xlu0 %v4871, 20
      %v6837 = vpop.permute.xlu0 %6836
      %6838 = vrot.lane.b32.xlu0 %v4874, 20
      %v6839 = vpop.permute.xlu0 %6838
      %6840 = vrot.lane.b32.xlu0 %v4879, 20
      %v6841 = vpop.permute.xlu0 %6840
      %6842 = vrot.lane.b32.xlu0 %v4882, 20
      %v6843 = vpop.permute.xlu0 %6842
      %6844 = vrot.lane.b32.xlu0 %v4887, 20
      %v6845 = vpop.permute.xlu0 %6844
      %6846 = vrot.lane.b32.xlu0 %v4890, 20
      %v6847 = vpop.permute.xlu0 %6846
      %6848 = vrot.lane.b32.xlu0 %v4895, 20
      %v6849 = vpop.permute.xlu0 %6848
      %6850 = vrot.lane.b32.xlu0 %v4898, 20
      %v6851 = vpop.permute.xlu0 %6850
      %6852 = vrot.lane.b32.xlu0 %v4903, 20
      %v6853 = vpop.permute.xlu0 %6852
      %6854 = vrot.lane.b32.xlu0 %v4906, 20
      %v6855 = vpop.permute.xlu0 %6854
      %6856 = vrot.lane.b32.xlu0 %v4911, 20
      %v6857 = vpop.permute.xlu0 %6856
      %6858 = vrot.lane.b32.xlu0 %v4914, 20
      %v6859 = vpop.permute.xlu0 %6858
      %6860 = vrot.lane.b32.xlu0 %v4919, 20
      %v6861 = vpop.permute.xlu0 %6860
      %6862 = vrot.lane.b32.xlu0 %v4922, 20
      %v6863 = vpop.permute.xlu0 %6862
      %6864 = vrot.lane.b32.xlu0 %v4927, 20
      %v6865 = vpop.permute.xlu0 %6864
      %6866 = vrot.lane.b32.xlu0 %v4930, 20
      %v6867 = vpop.permute.xlu0 %6866
      %6868 = vrot.lane.b32.xlu0 %v4935, 20
      %v6869 = vpop.permute.xlu0 %6868
      %6870 = vrot.lane.b32.xlu0 %v4938, 20
      %v6871 = vpop.permute.xlu0 %6870
      %6872 = vrot.lane.b32.xlu0 %v4943, 20
      %v6873 = vpop.permute.xlu0 %6872
      %6874 = vrot.lane.b32.xlu0 %v4946, 20
      %v6875 = vpop.permute.xlu0 %6874
      %6876 = vrot.lane.b32.xlu0 %v4951, 20
      %v6877 = vpop.permute.xlu0 %6876
      %6878 = vrot.lane.b32.xlu0 %v4954, 20
      %v6879 = vpop.permute.xlu0 %6878
      %6880 = vrot.lane.b32.xlu0 %v4959, 20
      %v6881 = vpop.permute.xlu0 %6880
      %6882 = vrot.lane.b32.xlu0 %v4962, 20
      %v6883 = vpop.permute.xlu0 %6882
      %6884 = vrot.lane.b32.xlu0 %v4967, 20
      %v6885 = vpop.permute.xlu0 %6884
      %6886 = vrot.lane.b32.xlu0 %v4970, 20
      %v6887 = vpop.permute.xlu0 %6886
      %6952 = vrot.lane.b32.xlu0 %v5622, 24
      %v6953 = vpop.permute.xlu0 %6952
      %6954 = vrot.lane.b32.xlu0 %v5625, 24
      %v6955 = vpop.permute.xlu0 %6954
      %6956 = vrot.lane.b32.xlu0 %v5630, 24
      %v6957 = vpop.permute.xlu0 %6956
      %6958 = vrot.lane.b32.xlu0 %v5633, 24
      %v6959 = vpop.permute.xlu0 %6958
      %6960 = vrot.lane.b32.xlu0 %v5638, 24
      %v6961 = vpop.permute.xlu0 %6960
      %6962 = vrot.lane.b32.xlu0 %v5641, 24
      %v6963 = vpop.permute.xlu0 %6962
      %6964 = vrot.lane.b32.xlu0 %v5646, 24
      %v6965 = vpop.permute.xlu0 %6964
      %6966 = vrot.lane.b32.xlu0 %v5649, 24
      %v6967 = vpop.permute.xlu0 %6966
      %6968 = vrot.lane.b32.xlu0 %v5654, 24
      %v6969 = vpop.permute.xlu0 %6968
      %6970 = vrot.lane.b32.xlu0 %v5657, 24
      %v6971 = vpop.permute.xlu0 %6970
      %6972 = vrot.lane.b32.xlu0 %v5662, 24
      %v6973 = vpop.permute.xlu0 %6972
      %6974 = vrot.lane.b32.xlu0 %v5665, 24
      %v6975 = vpop.permute.xlu0 %6974
      %6976 = vrot.lane.b32.xlu0 %v5670, 24
      %v6977 = vpop.permute.xlu0 %6976
      %6978 = vrot.lane.b32.xlu0 %v5673, 24
      %v6979 = vpop.permute.xlu0 %6978
      %6980 = vrot.lane.b32.xlu0 %v5678, 24
      %v6981 = vpop.permute.xlu0 %6980
      %6982 = vrot.lane.b32.xlu0 %v5681, 24
      %v6983 = vpop.permute.xlu0 %6982
      %6984 = vrot.lane.b32.xlu0 %v5686, 24
      %v6985 = vpop.permute.xlu0 %6984
      %6986 = vrot.lane.b32.xlu0 %v5689, 24
      %v6987 = vpop.permute.xlu0 %6986
      %6988 = vrot.lane.b32.xlu0 %v5694, 24
      %v6989 = vpop.permute.xlu0 %6988
      %6990 = vrot.lane.b32.xlu0 %v5697, 24
      %v6991 = vpop.permute.xlu0 %6990
      %6992 = vrot.lane.b32.xlu0 %v5702, 24
      %v6993 = vpop.permute.xlu0 %6992
      %6994 = vrot.lane.b32.xlu0 %v5705, 24
      %v6995 = vpop.permute.xlu0 %6994
      %6996 = vrot.lane.b32.xlu0 %v5710, 24
      %v6997 = vpop.permute.xlu0 %6996
      %6998 = vrot.lane.b32.xlu0 %v5713, 24
      %v6999 = vpop.permute.xlu0 %6998
      %7000 = vrot.lane.b32.xlu0 %v5718, 24
      %v7001 = vpop.permute.xlu0 %7000
      %7002 = vrot.lane.b32.xlu0 %v5721, 24
      %v7003 = vpop.permute.xlu0 %7002
      %7004 = vrot.lane.b32.xlu0 %v5726, 24
      %v7005 = vpop.permute.xlu0 %7004
      %7006 = vrot.lane.b32.xlu0 %v5729, 24
      %v7007 = vpop.permute.xlu0 %7006
      %7008 = vrot.lane.b32.xlu0 %v5734, 24
      %v7009 = vpop.permute.xlu0 %7008
      %7010 = vrot.lane.b32.xlu0 %v5737, 24
      %v7011 = vpop.permute.xlu0 %7010
      %7012 = vrot.lane.b32.xlu0 %v5742, 24
      %v7013 = vpop.permute.xlu0 %7012
      %7014 = vrot.lane.b32.xlu0 %v5745, 24
      %v7015 = vpop.permute.xlu0 %7014
      %7080 = vrot.lane.b32.xlu0 %v6154, 28
      %v7081 = vpop.permute.xlu0 %7080
      %7082 = vrot.lane.b32.xlu0 %v6157, 28
      %v7083 = vpop.permute.xlu0 %7082
      %7084 = vrot.lane.b32.xlu0 %v6162, 28
      %v7085 = vpop.permute.xlu0 %7084
      %7086 = vrot.lane.b32.xlu0 %v6165, 28
      %v7087 = vpop.permute.xlu0 %7086
      %7088 = vrot.lane.b32.xlu0 %v6170, 28
      %v7089 = vpop.permute.xlu0 %7088
      %7090 = vrot.lane.b32.xlu0 %v6173, 28
      %v7091 = vpop.permute.xlu0 %7090
      %7092 = vrot.lane.b32.xlu0 %v6178, 28
      %v7093 = vpop.permute.xlu0 %7092
      %7094 = vrot.lane.b32.xlu0 %v6181, 28
      %v7095 = vpop.permute.xlu0 %7094
      %7096 = vrot.lane.b32.xlu0 %v6186, 28
      %v7097 = vpop.permute.xlu0 %7096
      %7098 = vrot.lane.b32.xlu0 %v6189, 28
      %v7099 = vpop.permute.xlu0 %7098
      %7100 = vrot.lane.b32.xlu0 %v6194, 28
      %v7101 = vpop.permute.xlu0 %7100
      %7102 = vrot.lane.b32.xlu0 %v6197, 28
      %v7103 = vpop.permute.xlu0 %7102
      %7104 = vrot.lane.b32.xlu0 %v6202, 28
      %v7105 = vpop.permute.xlu0 %7104
      %7106 = vrot.lane.b32.xlu0 %v6205, 28
      %v7107 = vpop.permute.xlu0 %7106
      %7108 = vrot.lane.b32.xlu0 %v6210, 28
      %v7109 = vpop.permute.xlu0 %7108
      %7110 = vrot.lane.b32.xlu0 %v6213, 28
      %v7111 = vpop.permute.xlu0 %7110
      %7112 = vrot.lane.b32.xlu0 %v6218, 28
      %v7113 = vpop.permute.xlu0 %7112
      %7114 = vrot.lane.b32.xlu0 %v6221, 28
      %v7115 = vpop.permute.xlu0 %7114
      %7116 = vrot.lane.b32.xlu0 %v6226, 28
      %v7117 = vpop.permute.xlu0 %7116
      %7118 = vrot.lane.b32.xlu0 %v6229, 28
      %v7119 = vpop.permute.xlu0 %7118
      %7120 = vrot.lane.b32.xlu0 %v6234, 28
      %v7121 = vpop.permute.xlu0 %7120
      %7122 = vrot.lane.b32.xlu0 %v6237, 28
      %v7123 = vpop.permute.xlu0 %7122
      %7124 = vrot.lane.b32.xlu0 %v6242, 28
      %v7125 = vpop.permute.xlu0 %7124
      %7126 = vrot.lane.b32.xlu0 %v6245, 28
      %v7127 = vpop.permute.xlu0 %7126
      %7128 = vrot.lane.b32.xlu0 %v6250, 28
      %v7129 = vpop.permute.xlu0 %7128
      %7130 = vrot.lane.b32.xlu0 %v6253, 28
      %v7131 = vpop.permute.xlu0 %7130
      %7132 = vrot.lane.b32.xlu0 %v6258, 28
      %v7133 = vpop.permute.xlu0 %7132
      %7134 = vrot.lane.b32.xlu0 %v6261, 28
      %v7135 = vpop.permute.xlu0 %7134
      %7136 = vrot.lane.b32.xlu0 %v6266, 28
      %v7137 = vpop.permute.xlu0 %7136
      %7138 = vrot.lane.b32.xlu0 %v6269, 28
      %v7139 = vpop.permute.xlu0 %7138
      %7140 = vrot.lane.b32.xlu0 %v6274, 28
      %v7141 = vpop.permute.xlu0 %7140
      %7142 = vrot.lane.b32.xlu0 %v6277, 28
      %v7143 = vpop.permute.xlu0 %7142
      %v7176 = vsel %vm1167, %v1482, %v6313
      %v7177 = vsel %vm1167, %v1485, %v6315
      %v7178 = vsel %vm1167, %v1490, %v6317
      %v7179 = vsel %vm1167, %v1493, %v6319
      %v7180 = vsel %vm1167, %v1498, %v6321
      %v7181 = vsel %vm1167, %v1501, %v6323
      %v7182 = vsel %vm1167, %v1506, %v6325
      %v7183 = vsel %vm1167, %v1509, %v6327
      %v7184 = vsel %vm1167, %v1514, %v6329
      %v7185 = vsel %vm1167, %v1517, %v6331
      %v7186 = vsel %vm1167, %v1522, %v6333
      %v7187 = vsel %vm1167, %v1525, %v6335
      %v7188 = vsel %vm1167, %v1530, %v6337
      %v7189 = vsel %vm1167, %v1533, %v6339
      %v7190 = vsel %vm1167, %v1538, %v6341
      %v7191 = vsel %vm1167, %v1541, %v6343
      %v7192 = vsel %vm1167, %v1546, %v6345
      %v7193 = vsel %vm1167, %v1549, %v6347
      %v7194 = vsel %vm1167, %v1554, %v6349
      %v7195 = vsel %vm1167, %v1557, %v6351
      %v7196 = vsel %vm1167, %v1562, %v6353
      %v7197 = vsel %vm1167, %v1565, %v6355
      %v7198 = vsel %vm1167, %v1570, %v6357
      %v7199 = vsel %vm1167, %v1573, %v6359
      %v7200 = vsel %vm1167, %v1578, %v6361
      %v7201 = vsel %vm1167, %v1581, %v6363
      %v7202 = vsel %vm1167, %v1586, %v6365
      %v7203 = vsel %vm1167, %v1589, %v6367
      %v7204 = vsel %vm1167, %v1594, %v6369
      %v7205 = vsel %vm1167, %v1597, %v6371
      %v7206 = vsel %vm1167, %v1602, %v6373
      %v7207 = vsel %vm1167, %v1605, %v6375
      %v7208 = vsel %vm1200, %v7176, %v6441
      %v7209 = vsel %vm1200, %v7177, %v6443
      %v7210 = vsel %vm1200, %v7178, %v6445
      %v7211 = vsel %vm1200, %v7179, %v6447
      %v7212 = vsel %vm1200, %v7180, %v6449
      %v7213 = vsel %vm1200, %v7181, %v6451
      %v7214 = vsel %vm1200, %v7182, %v6453
      %v7215 = vsel %vm1200, %v7183, %v6455
      %v7216 = vsel %vm1200, %v7184, %v6457
      %v7217 = vsel %vm1200, %v7185, %v6459
      %v7218 = vsel %vm1200, %v7186, %v6461
      %v7219 = vsel %vm1200, %v7187, %v6463
      %v7220 = vsel %vm1200, %v7188, %v6465
      %v7221 = vsel %vm1200, %v7189, %v6467
      %v7222 = vsel %vm1200, %v7190, %v6469
      %v7223 = vsel %vm1200, %v7191, %v6471
      %v7224 = vsel %vm1200, %v7192, %v6473
      %v7225 = vsel %vm1200, %v7193, %v6475
      %v7226 = vsel %vm1200, %v7194, %v6477
      %v7227 = vsel %vm1200, %v7195, %v6479
      %v7228 = vsel %vm1200, %v7196, %v6481
      %v7229 = vsel %vm1200, %v7197, %v6483
      %v7230 = vsel %vm1200, %v7198, %v6485
      %v7231 = vsel %vm1200, %v7199, %v6487
      %v7232 = vsel %vm1200, %v7200, %v6489
      %v7233 = vsel %vm1200, %v7201, %v6491
      %v7234 = vsel %vm1200, %v7202, %v6493
      %v7235 = vsel %vm1200, %v7203, %v6495
      %v7236 = vsel %vm1200, %v7204, %v6497
      %v7237 = vsel %vm1200, %v7205, %v6499
      %v7238 = vsel %vm1200, %v7206, %v6501
      %v7239 = vsel %vm1200, %v7207, %v6503
      %v7240 = vsel %vm1233, %v7208, %v6569
      %v7241 = vsel %vm1233, %v7209, %v6571
      %v7242 = vsel %vm1233, %v7210, %v6573
      %v7243 = vsel %vm1233, %v7211, %v6575
      %v7244 = vsel %vm1233, %v7212, %v6577
      %v7245 = vsel %vm1233, %v7213, %v6579
      %v7246 = vsel %vm1233, %v7214, %v6581
      %v7247 = vsel %vm1233, %v7215, %v6583
      %v7248 = vsel %vm1233, %v7216, %v6585
      %v7249 = vsel %vm1233, %v7217, %v6587
      %v7250 = vsel %vm1233, %v7218, %v6589
      %v7251 = vsel %vm1233, %v7219, %v6591
      %v7252 = vsel %vm1233, %v7220, %v6593
      %v7253 = vsel %vm1233, %v7221, %v6595
      %v7254 = vsel %vm1233, %v7222, %v6597
      %v7255 = vsel %vm1233, %v7223, %v6599
      %v7256 = vsel %vm1233, %v7224, %v6601
      %v7257 = vsel %vm1233, %v7225, %v6603
      %v7258 = vsel %vm1233, %v7226, %v6605
      %v7259 = vsel %vm1233, %v7227, %v6607
      %v7260 = vsel %vm1233, %v7228, %v6609
      %v7261 = vsel %vm1233, %v7229, %v6611
      %v7262 = vsel %vm1233, %v7230, %v6613
      %v7263 = vsel %vm1233, %v7231, %v6615
      %v7264 = vsel %vm1233, %v7232, %v6617
      %v7265 = vsel %vm1233, %v7233, %v6619
      %v7266 = vsel %vm1233, %v7234, %v6621
      %v7267 = vsel %vm1233, %v7235, %v6623
      %v7268 = vsel %vm1233, %v7236, %v6625
      %v7269 = vsel %vm1233, %v7237, %v6627
      %v7270 = vsel %vm1233, %v7238, %v6629
      %v7271 = vsel %vm1233, %v7239, %v6631
      %v7272 = vsel %vm1266, %v7240, %v6697
      %v7273 = vsel %vm1266, %v7241, %v6699
      %v7274 = vsel %vm1266, %v7242, %v6701
      %v7275 = vsel %vm1266, %v7243, %v6703
      %v7276 = vsel %vm1266, %v7244, %v6705
      %v7277 = vsel %vm1266, %v7245, %v6707
      %v7278 = vsel %vm1266, %v7246, %v6709
      %v7279 = vsel %vm1266, %v7247, %v6711
      %v7280 = vsel %vm1266, %v7248, %v6713
      %v7281 = vsel %vm1266, %v7249, %v6715
      %v7282 = vsel %vm1266, %v7250, %v6717
      %v7283 = vsel %vm1266, %v7251, %v6719
      %v7284 = vsel %vm1266, %v7252, %v6721
      %v7285 = vsel %vm1266, %v7253, %v6723
      %v7286 = vsel %vm1266, %v7254, %v6725
      %v7287 = vsel %vm1266, %v7255, %v6727
      %v7288 = vsel %vm1266, %v7256, %v6729
      %v7289 = vsel %vm1266, %v7257, %v6731
      %v7290 = vsel %vm1266, %v7258, %v6733
      %v7291 = vsel %vm1266, %v7259, %v6735
      %v7292 = vsel %vm1266, %v7260, %v6737
      %v7293 = vsel %vm1266, %v7261, %v6739
      %v7294 = vsel %vm1266, %v7262, %v6741
      %v7295 = vsel %vm1266, %v7263, %v6743
      %v7296 = vsel %vm1266, %v7264, %v6745
      %v7297 = vsel %vm1266, %v7265, %v6747
      %v7298 = vsel %vm1266, %v7266, %v6749
      %v7299 = vsel %vm1266, %v7267, %v6751
      %v7300 = vsel %vm1266, %v7268, %v6753
      %v7301 = vsel %vm1266, %v7269, %v6755
      %v7302 = vsel %vm1266, %v7270, %v6757
      %v7303 = vsel %vm1266, %v7271, %v6759
      %v7304 = vsel %vm1299, %v7272, %v6825
      %v7305 = vsel %vm1299, %v7273, %v6827
      %v7306 = vsel %vm1299, %v7274, %v6829
      %v7307 = vsel %vm1299, %v7275, %v6831
      %v7308 = vsel %vm1299, %v7276, %v6833
      %v7309 = vsel %vm1299, %v7277, %v6835
      %v7310 = vsel %vm1299, %v7278, %v6837
      %v7311 = vsel %vm1299, %v7279, %v6839
      %v7312 = vsel %vm1299, %v7280, %v6841
      %v7313 = vsel %vm1299, %v7281, %v6843
      %v7314 = vsel %vm1299, %v7282, %v6845
      %v7315 = vsel %vm1299, %v7283, %v6847
      %v7316 = vsel %vm1299, %v7284, %v6849
      %v7317 = vsel %vm1299, %v7285, %v6851
      %v7318 = vsel %vm1299, %v7286, %v6853
      %v7319 = vsel %vm1299, %v7287, %v6855
      %v7320 = vsel %vm1299, %v7288, %v6857
      %v7321 = vsel %vm1299, %v7289, %v6859
      %v7322 = vsel %vm1299, %v7290, %v6861
      %v7323 = vsel %vm1299, %v7291, %v6863
      %v7324 = vsel %vm1299, %v7292, %v6865
      %v7325 = vsel %vm1299, %v7293, %v6867
      %v7326 = vsel %vm1299, %v7294, %v6869
      %v7327 = vsel %vm1299, %v7295, %v6871
      %v7328 = vsel %vm1299, %v7296, %v6873
      %v7329 = vsel %vm1299, %v7297, %v6875
      %v7330 = vsel %vm1299, %v7298, %v6877
      %v7331 = vsel %vm1299, %v7299, %v6879
      %v7332 = vsel %vm1299, %v7300, %v6881
      %v7333 = vsel %vm1299, %v7301, %v6883
      %v7334 = vsel %vm1299, %v7302, %v6885
      %v7335 = vsel %vm1299, %v7303, %v6887
      %v7336 = vsel %vm1332, %v7304, %v6953
      %v7337 = vsel %vm1332, %v7305, %v6955
      %v7338 = vsel %vm1332, %v7306, %v6957
      %v7339 = vsel %vm1332, %v7307, %v6959
      %v7340 = vsel %vm1332, %v7308, %v6961
      %v7341 = vsel %vm1332, %v7309, %v6963
      %v7342 = vsel %vm1332, %v7310, %v6965
      %v7343 = vsel %vm1332, %v7311, %v6967
      %v7344 = vsel %vm1332, %v7312, %v6969
      %v7345 = vsel %vm1332, %v7313, %v6971
      %v7346 = vsel %vm1332, %v7314, %v6973
      %v7347 = vsel %vm1332, %v7315, %v6975
      %v7348 = vsel %vm1332, %v7316, %v6977
      %v7349 = vsel %vm1332, %v7317, %v6979
      %v7350 = vsel %vm1332, %v7318, %v6981
      %v7351 = vsel %vm1332, %v7319, %v6983
      %v7352 = vsel %vm1332, %v7320, %v6985
      %v7353 = vsel %vm1332, %v7321, %v6987
      %v7354 = vsel %vm1332, %v7322, %v6989
      %v7355 = vsel %vm1332, %v7323, %v6991
      %v7356 = vsel %vm1332, %v7324, %v6993
      %v7357 = vsel %vm1332, %v7325, %v6995
      %v7358 = vsel %vm1332, %v7326, %v6997
      %v7359 = vsel %vm1332, %v7327, %v6999
      %v7360 = vsel %vm1332, %v7328, %v7001
      %v7361 = vsel %vm1332, %v7329, %v7003
      %v7362 = vsel %vm1332, %v7330, %v7005
      %v7363 = vsel %vm1332, %v7331, %v7007
      %v7364 = vsel %vm1332, %v7332, %v7009
      %v7365 = vsel %vm1332, %v7333, %v7011
      %v7366 = vsel %vm1332, %v7334, %v7013
      %v7367 = vsel %vm1332, %v7335, %v7015
      %v7368 = vsel %vm1365, %v7336, %v7081
      %v7369 = vsel %vm1365, %v7337, %v7083
      %v7370 = vsel %vm1365, %v7338, %v7085
      %v7371 = vsel %vm1365, %v7339, %v7087
      %v7372 = vsel %vm1365, %v7340, %v7089
      %v7373 = vsel %vm1365, %v7341, %v7091
      %v7374 = vsel %vm1365, %v7342, %v7093
      %v7375 = vsel %vm1365, %v7343, %v7095
      %v7376 = vsel %vm1365, %v7344, %v7097
      %v7377 = vsel %vm1365, %v7345, %v7099
      %v7378 = vsel %vm1365, %v7346, %v7101
      %v7379 = vsel %vm1365, %v7347, %v7103
      %v7380 = vsel %vm1365, %v7348, %v7105
      %v7381 = vsel %vm1365, %v7349, %v7107
      %v7382 = vsel %vm1365, %v7350, %v7109
      %v7383 = vsel %vm1365, %v7351, %v7111
      %v7384 = vsel %vm1365, %v7352, %v7113
      %v7385 = vsel %vm1365, %v7353, %v7115
      %v7386 = vsel %vm1365, %v7354, %v7117
      %v7387 = vsel %vm1365, %v7355, %v7119
      %v7388 = vsel %vm1365, %v7356, %v7121
      %v7389 = vsel %vm1365, %v7357, %v7123
      %v7390 = vsel %vm1365, %v7358, %v7125
      %v7391 = vsel %vm1365, %v7359, %v7127
      %v7392 = vsel %vm1365, %v7360, %v7129
      %v7393 = vsel %vm1365, %v7361, %v7131
      %v7394 = vsel %vm1365, %v7362, %v7133
      %v7395 = vsel %vm1365, %v7363, %v7135
      %v7396 = vsel %vm1365, %v7364, %v7137
      %v7397 = vsel %vm1365, %v7365, %v7139
      %v7398 = vsel %vm1365, %v7366, %v7141
      %v7399 = vsel %vm1365, %v7367, %v7143
      %v7400 = vld [vmem:[%s3] sm:$0x1]
      %v7402 = vlaneseq
      %v7403 = vshrl.u32 %v7402, 7
      %v7404 = vsub.s32 0, %v7403
      %v7405 = vrot.slane %v7400, %v7404
      %v7407 = vadd.f32 %v7368, %v7405
      %v7408 = vadd.f32 %v7369, %v7405
      %v7409 = vadd.f32 %v7370, %v7405
      %v7410 = vadd.f32 %v7371, %v7405
      %v7411 = vadd.f32 %v7372, %v7405
      %v7412 = vadd.f32 %v7373, %v7405
      %v7413 = vadd.f32 %v7374, %v7405
      %v7414 = vadd.f32 %v7375, %v7405
      %v7415 = vadd.f32 %v7376, %v7405
      %v7416 = vadd.f32 %v7377, %v7405
      %v7417 = vadd.f32 %v7378, %v7405
      %v7418 = vadd.f32 %v7379, %v7405
      %v7419 = vadd.f32 %v7380, %v7405
      %v7420 = vadd.f32 %v7381, %v7405
      %v7421 = vadd.f32 %v7382, %v7405
      %v7422 = vadd.f32 %v7383, %v7405
      %v7423 = vadd.f32 %v7384, %v7405
      %v7424 = vadd.f32 %v7385, %v7405
      %v7425 = vadd.f32 %v7386, %v7405
      %v7426 = vadd.f32 %v7387, %v7405
      %v7427 = vadd.f32 %v7388, %v7405
      %v7428 = vadd.f32 %v7389, %v7405
      %v7429 = vadd.f32 %v7390, %v7405
      %v7430 = vadd.f32 %v7391, %v7405
      %v7431 = vadd.f32 %v7392, %v7405
      %v7432 = vadd.f32 %v7393, %v7405
      %v7433 = vadd.f32 %v7394, %v7405
      %v7434 = vadd.f32 %v7395, %v7405
      %v7435 = vadd.f32 %v7396, %v7405
      %v7436 = vadd.f32 %v7397, %v7405
      %v7437 = vadd.f32 %v7398, %v7405
      %v7438 = vadd.f32 %v7399, %v7405
      %v7439 = vpack.c.bf16 %v7408, %v7407
      %v7440 = vpack.c.bf16 %v7410, %v7409
      %v7441 = vpack.c.bf16 %v7412, %v7411
      %v7442 = vpack.c.bf16 %v7414, %v7413
      %v7443 = vpack.c.bf16 %v7416, %v7415
      %v7444 = vpack.c.bf16 %v7418, %v7417
      %v7445 = vpack.c.bf16 %v7420, %v7419
      %v7446 = vpack.c.bf16 %v7422, %v7421
      %v7447 = vpack.c.bf16 %v7424, %v7423
      %v7448 = vpack.c.bf16 %v7426, %v7425
      %v7449 = vpack.c.bf16 %v7428, %v7427
      %v7450 = vpack.c.bf16 %v7430, %v7429
      %v7451 = vpack.c.bf16 %v7432, %v7431
      %v7452 = vpack.c.bf16 %v7434, %v7433
      %v7453 = vpack.c.bf16 %v7436, %v7435
      %v7454 = vpack.c.bf16 %v7438, %v7437
      %v7471 = vunpack.c.l.b16 %v7439
      %v7472 = vunpack.c.h.b16 %v7439
      %v7473 = vunpack.c.l.b16 %v7440
      %v7474 = vunpack.c.h.b16 %v7440
      %v7475 = vunpack.c.l.b16 %v7441
      %v7476 = vunpack.c.h.b16 %v7441
      %v7477 = vunpack.c.l.b16 %v7442
      %v7478 = vunpack.c.h.b16 %v7442
      %v7479 = vunpack.c.l.b16 %v7443
      %v7480 = vunpack.c.h.b16 %v7443
      %v7481 = vunpack.c.l.b16 %v7444
      %v7482 = vunpack.c.h.b16 %v7444
      %v7483 = vunpack.c.l.b16 %v7445
      %v7484 = vunpack.c.h.b16 %v7445
      %v7485 = vunpack.c.l.b16 %v7446
      %v7486 = vunpack.c.h.b16 %v7446
      %v7487 = vunpack.c.l.b16 %v7447
      %v7488 = vunpack.c.h.b16 %v7447
      %v7489 = vunpack.c.l.b16 %v7448
      %v7490 = vunpack.c.h.b16 %v7448
      %v7491 = vunpack.c.l.b16 %v7449
      %v7492 = vunpack.c.h.b16 %v7449
      %v7493 = vunpack.c.l.b16 %v7450
      %v7494 = vunpack.c.h.b16 %v7450
      %v7495 = vunpack.c.l.b16 %v7451
      %v7496 = vunpack.c.h.b16 %v7451
      %v7497 = vunpack.c.l.b16 %v7452
      %v7498 = vunpack.c.h.b16 %v7452
      %v7499 = vunpack.c.l.b16 %v7453
      %v7500 = vunpack.c.h.b16 %v7453
      %v7501 = vunpack.c.l.b16 %v7454
      %v7502 = vunpack.c.h.b16 %v7454
      %v7503 = vpack.c.b16 %v7471, %v7471
      %v7504 = vpack.c.b16 %v7472, %v7472
      %v7505 = vpack.c.b16 %v7473, %v7473
      %v7506 = vpack.c.b16 %v7474, %v7474
      %v7507 = vpack.c.b16 %v7475, %v7475
      %v7508 = vpack.c.b16 %v7476, %v7476
      %v7509 = vpack.c.b16 %v7477, %v7477
      %v7510 = vpack.c.b16 %v7478, %v7478
      %v7511 = vpack.c.b16 %v7479, %v7479
      %v7512 = vpack.c.b16 %v7480, %v7480
      %v7513 = vpack.c.b16 %v7481, %v7481
      %v7514 = vpack.c.b16 %v7482, %v7482
      %v7515 = vpack.c.b16 %v7483, %v7483
      %v7516 = vpack.c.b16 %v7484, %v7484
      %v7517 = vpack.c.b16 %v7485, %v7485
      %v7518 = vpack.c.b16 %v7486, %v7486
      %v7519 = vpack.c.b16 %v7487, %v7487
      %v7520 = vpack.c.b16 %v7488, %v7488
      %v7521 = vpack.c.b16 %v7489, %v7489
      %v7522 = vpack.c.b16 %v7490, %v7490
      %v7523 = vpack.c.b16 %v7491, %v7491
      %v7524 = vpack.c.b16 %v7492, %v7492
      %v7525 = vpack.c.b16 %v7493, %v7493
      %v7526 = vpack.c.b16 %v7494, %v7494
      %v7527 = vpack.c.b16 %v7495, %v7495
      %v7528 = vpack.c.b16 %v7496, %v7496
      %v7529 = vpack.c.b16 %v7497, %v7497
      %v7530 = vpack.c.b16 %v7498, %v7498
      %v7531 = vpack.c.b16 %v7499, %v7499
      %v7532 = vpack.c.b16 %v7500, %v7500
      %v7533 = vpack.c.b16 %v7501, %v7501
      %v7534 = vpack.c.b16 %v7502, %v7502
      %vm7567 = vcmask 257024
      %7568 = vst.msk [vmem:[%s193] sm:$0xf] %vm7567, %v7503
      %7569 = vst.msk [vmem:[%s193 + $0x4] sm:$0xf] %vm7567, %v7504
      %7570 = vst.msk [vmem:[%s193 + $0x8] sm:$0xf] %vm7567, %v7505
      %7571 = vst.msk [vmem:[%s193 + $0xc] sm:$0xf] %vm7567, %v7506
      %7572 = vst.msk [vmem:[%s193 + $0x10] sm:$0xf] %vm7567, %v7507
      %7573 = vst.msk [vmem:[%s193 + $0x14] sm:$0xf] %vm7567, %v7508
      %7574 = vst.msk [vmem:[%s193 + $0x18] sm:$0xf] %vm7567, %v7509
      %7575 = vst.msk [vmem:[%s193 + $0x1c] sm:$0xf] %vm7567, %v7510
      %7576 = vst.msk [vmem:[%s193 + $0x20] sm:$0xf] %vm7567, %v7511
      %7577 = vst.msk [vmem:[%s193 + $0x24] sm:$0xf] %vm7567, %v7512
      %7578 = vst.msk [vmem:[%s193 + $0x28] sm:$0xf] %vm7567, %v7513
      %7579 = vst.msk [vmem:[%s193 + $0x2c] sm:$0xf] %vm7567, %v7514
      %7580 = vst.msk [vmem:[%s193 + $0x30] sm:$0xf] %vm7567, %v7515
      %7581 = vst.msk [vmem:[%s193 + $0x34] sm:$0xf] %vm7567, %v7516
      %7582 = vst.msk [vmem:[%s193 + $0x38] sm:$0xf] %vm7567, %v7517
      %7583 = vst.msk [vmem:[%s193 + $0x3c] sm:$0xf] %vm7567, %v7518
      %7584 = vst.msk [vmem:[%s193 + $0x40] sm:$0xf] %vm7567, %v7519
      %7585 = vst.msk [vmem:[%s193 + $0x44] sm:$0xf] %vm7567, %v7520
      %7586 = vst.msk [vmem:[%s193 + $0x48] sm:$0xf] %vm7567, %v7521
      %7587 = vst.msk [vmem:[%s193 + $0x4c] sm:$0xf] %vm7567, %v7522
      %7588 = vst.msk [vmem:[%s193 + $0x50] sm:$0xf] %vm7567, %v7523
      %7589 = vst.msk [vmem:[%s193 + $0x54] sm:$0xf] %vm7567, %v7524
      %7590 = vst.msk [vmem:[%s193 + $0x58] sm:$0xf] %vm7567, %v7525
      %7591 = vst.msk [vmem:[%s193 + $0x5c] sm:$0xf] %vm7567, %v7526
      %7592 = vst.msk [vmem:[%s193 + $0x60] sm:$0xf] %vm7567, %v7527
      %7593 = vst.msk [vmem:[%s193 + $0x64] sm:$0xf] %vm7567, %v7528
      %7594 = vst.msk [vmem:[%s193 + $0x68] sm:$0xf] %vm7567, %v7529
      %7595 = vst.msk [vmem:[%s193 + $0x6c] sm:$0xf] %vm7567, %v7530
      %7596 = vst.msk [vmem:[%s193 + $0x70] sm:$0xf] %vm7567, %v7531
      %7597 = vst.msk [vmem:[%s193 + $0x74] sm:$0xf] %vm7567, %v7532
      %7598 = vst.msk [vmem:[%s193 + $0x78] sm:$0xf] %vm7567, %v7533
      %7599 = vst.msk [vmem:[%s193 + $0x7c] sm:$0xf] %vm7567, %v7534
      %s7600 = smul.u32 32, %s15
      %p7601 = scmp.lt.s32.totalorder %s7600, 127
      %s7602 = scalar_select %p7601, %s7600, 127
      %s7603 = smul.addr %s7602, 4
      %s7604 = scalar_lea.vmem %s4, %s7603
      // Predicated region
      $region67: #{deconv_block_with_emb.3} parent=31 // pred_check
        %p7605 = pneg %p101
      $region68: #{deconv_block_with_emb.3} parent=31 // pred_check_branch
        %7607 = sbr.rel (%p7605) target = $region70
      $region69: #{deconv_block_with_emb.3} parent=31 // pred_region
        %s7608 = smul.u32 32, %s15
      $region70: #{deconv_block_with_emb.3} parent=31 // pred_fallthru
        _
    $region32: #{deconv_block_with_emb.3} parent=5 // pred_fallthru
      _
    %p7609 = scmp.le.s32.totalorder 2, %s10
    // Predicated region
    $region71: #{deconv_block_with_emb.3} parent=5 // pred_check
      %p7610 = pneg %p7609
    $region72: #{deconv_block_with_emb.3} parent=5 // pred_check_branch
      %7612 = sbr.rel (%p7610) target = $region74
    $region73: #{deconv_block_with_emb.3} parent=5 // pred_region
      %s7613 = ssub.s32 %s10, 2
      // Predicated region
      $region75: #{deconv_block_with_emb.3} parent=73 // pred_check
        %p7614 = pneg %p107
      $region76: #{deconv_block_with_emb.3} parent=73 // pred_check_branch
        %7616 = sbr.rel (%p7614) target = $region78
      $region77: #{deconv_block_with_emb.3} parent=73 // pred_region
        %s7617 = smul.u32 32, %s16
        %p7618 = scmp.lt.s32.totalorder %s7617, 127
        %s7619 = scalar_select %p7618, %s7617, 127
        %s7620 = smul.addr %s7619, 4
        %s7621 = scalar_lea.vmem %s4, %s7620
      $region78: #{deconv_block_with_emb.3} parent=73 // pred_fallthru
        _
    $region74: #{deconv_block_with_emb.3} parent=5 // pred_fallthru
      _
  $region6: #{deconv_block_with_emb.3} parent=0 // loop_footer
    %s14 = sadd.s32 1, %s10
  $region7: #{deconv_block_with_emb.3} parent=0 // loop_footer_branch
    %9 = sbr.rel target = $region3
  $region8: #{deconv_block_with_emb.3} parent=0 // loop_exit
    _
  %7622 = vsyncmov [#allocation3]
  %s7623 = vpop.sfrf %7622
  %p7624 = scmp.eq.s32.totalorder %s7623, 0
  %p7625 = pneg %p7624
  %7627 = shalt.err (%p7625)

</llo_original>
